<compile_context>
chip_gen: v7x
topology: tpu7x:2x2x1
jax: 0.10.0
libtpu: 0.0.40
codegen_flags: <defaults>
</compile_context>

<pallas_src>
import math
import functools

import jax
import jax.numpy as jnp
from jax.experimental import pallas as pl
from jax.experimental.pallas import tpu as pltpu

LN_EPS = 1e-5

_ENC_KEYS = ('wqkv', 'bqkv', 'wo', 'bo',
             'w1', 'b1', 'w2', 'b2',
             'ln1w', 'ln1b', 'ln2w', 'ln2b')

_DEC_KEYS = ('sa_wqkv', 'sa_bqkv', 'sa_wo', 'sa_bo',
             'ca_wq', 'ca_bq', 'ca_wkv', 'ca_bkv', 'ca_wo', 'ca_bo',
             'w1', 'b1', 'w2', 'b2',
             'ln1w', 'ln1b', 'ln2w', 'ln2b', 'ln3w', 'ln3b')


def _vmem_limit_bytes():
    """Chip-aware VMEM budget: physical capacity minus headroom (v7x = 64 MiB total)."""
    try:
        cap = int(pltpu.get_tpu_info().vmem_capacity_bytes)
    except Exception:
        cap = 64 * 1024 * 1024
    return max(32 * 1024 * 1024, cap - 16 * 1024 * 1024)


# ---------------------------------------------------------------------------
# In-kernel building blocks (operate on jnp values loaded from refs)
# ---------------------------------------------------------------------------
def _layernorm(x, w, b):
    """f32 layernorm over the last axis (PyTorch eps=1e-5). x: (N, D)."""
    mu = jnp.mean(x, axis=-1, keepdims=True)
    xc = x - mu
    var = jnp.mean(xc * xc, axis=-1, keepdims=True)
    return xc * jax.lax.rsqrt(var + LN_EPS) * w + b


def _ffn(x, w1, b1, w2, b2):
    """Linear -> ReLU -> Linear; bf16 MXU matmuls, f32 accumulation. x: (N, D)."""
    h = jnp.dot(x.astype(jnp.bfloat16), w1, preferred_element_type=jnp.float32) + b1
    h = jnp.maximum(h, 0.0)
    return jnp.dot(h.astype(jnp.bfloat16), w2, preferred_element_type=jnp.float32) + b2


def _attn_core(q2, k2, v2, wo, bo, bb, sq, sk, nh):
    """Scaled-dot-product attention + output projection.

    q2: (bb*sq, D) f32 (scale already folded into Wq), k2/v2: (bb*sk, D) f32.
    Per-head score/context contractions are batch-`b` einsums on static lane
    slices; heads are re-assembled with a lane concat so the output projection
    is a single lane-dense (N, D) x (D, D) MXU matmul (head sum accumulated
    inside the contraction).
    """
    d = q2.shape[-1]
    hd = d // nh
    ctx_heads = []
    for h in range(nh):                                        # static unroll (small nh)
        qh = q2[:, h * hd:(h + 1) * hd].reshape(bb, sq, hd)
        kh = k2[:, h * hd:(h + 1) * hd].reshape(bb, sk, hd)
        vh = v2[:, h * hd:(h + 1) * hd].reshape(bb, sk, hd)
        s = jnp.einsum('bqf,bkf->bqk', qh.astype(jnp.bfloat16),
                       kh.astype(jnp.bfloat16),
                       preferred_element_type=jnp.float32)      # (bb, sq, sk) f32
        s = s - jnp.max(s, axis=-1, keepdims=True)
        p = jnp.exp(s)
        p = p * pl.reciprocal(jnp.sum(p, axis=-1, keepdims=True), approx=False)
        ctx = jnp.einsum('bqk,bkf->bqf', p.astype(jnp.bfloat16),
                         vh.astype(jnp.bfloat16),
                         preferred_element_type=jnp.float32)    # (bb, sq, hd) f32
        ctx_heads.append(ctx.reshape(bb * sq, hd))
    ctx2 = jnp.concatenate(ctx_heads, axis=-1)                  # (bb*sq, D)
    return jnp.dot(ctx2.astype(jnp.bfloat16), wo,
                   preferred_element_type=jnp.float32) + bo     # (bb*sq, D) f32


def _self_attn(x2, wqkv, bqkv, wo, bo, bb, s, nh):
    """Self-attention: one fused lane-dense QKV projection (N, D) x (D, 3D)."""
    d = wo.shape[0]
    qkv = jnp.dot(x2.astype(jnp.bfloat16), wqkv,
                  preferred_element_type=jnp.float32) + bqkv    # (N, 3D)
    q2, k2, v2 = qkv[:, :d], qkv[:, d:2 * d], qkv[:, 2 * d:]
    return _attn_core(q2, k2, v2, wo, bo, bb, s, s, nh)


def _cross_attn(y2, mem2, wq, bq, wkv, bkv, wo, bo, bb, t, s, nh):
    """Cross-attention: Q from decoder state, fused K/V projection from memory."""
    d = wo.shape[0]
    q2 = jnp.dot(y2.astype(jnp.bfloat16), wq,
                 preferred_element_type=jnp.float32) + bq       # (Nt, D)
    kv = jnp.dot(mem2.astype(jnp.bfloat16), wkv,
                 preferred_element_type=jnp.float32) + bkv      # (Ns, 2D)
    k2, v2 = kv[:, :d], kv[:, d:]
    return _attn_core(q2, k2, v2, wo, bo, bb, t, s, nh)


# ---------------------------------------------------------------------------
# Fully fused kernel: PE + encoder stack + decoder stack + Linear head
# ---------------------------------------------------------------------------
def _transformer_kernel(num_layers, nh, src_ref, tgt_ref, pe_ref, *refs):
    ne, nd = len(_ENC_KEYS), len(_DEC_KEYS)
    enc = dict(zip(_ENC_KEYS, refs[:ne]))
    dec = dict(zip(_DEC_KEYS, refs[ne:ne + nd]))
    fc_w = refs[ne + nd]
    fc_b = refs[ne + nd + 1]
    o_ref = refs[ne + nd + 2]

    bb, s, d = src_ref.shape
    _, t, _ = tgt_ref.shape

    pe = pe_ref[...]                                            # (bb, 1, D) f32

    # ---------------- encoder (memory stays resident in VMEM) ----------------
    x = (src_ref[...] + pe).reshape(bb * s, d)                  # PE fused, (B*S, D) f32
    for l in range(num_layers):                                 # static unroll
        attn = _self_attn(x, enc['wqkv'][l], enc['bqkv'][l],
                          enc['wo'][l], enc['bo'][l], bb, s, nh)
        x = _layernorm(x + attn, enc['ln1w'][l], enc['ln1b'][l])
        x = _layernorm(x + _ffn(x, enc['w1'][l], enc['b1'][l],
                                enc['w2'][l], enc['b2'][l]),
                       enc['ln2w'][l], enc['ln2b'][l])
    mem = x                                                     # (B*S, D), never hits HBM

    # ---------------- decoder + output head ----------------------------------
    y = (tgt_ref[...] + pe).reshape(bb * t, d)                  # PE fused, (B*T, D) f32
    for l in range(num_layers):
        # self-attention (no causal mask: tgt_mask=None in the reference)
        sa = _self_attn(y, dec['sa_wqkv'][l], dec['sa_bqkv'][l],
                        dec['sa_wo'][l], dec['sa_bo'][l], bb, t, nh)
        y = _layernorm(y + sa, dec['ln1w'][l], dec['ln1b'][l])
        # cross-attention over encoder memory
        ca = _cross_attn(y, mem, dec['ca_wq'][l], dec['ca_bq'][l],
                         dec['ca_wkv'][l], dec['ca_bkv'][l],
                         dec['ca_wo'][l], dec['ca_bo'][l], bb, t, s, nh)
        y = _layernorm(y + ca, dec['ln2w'][l], dec['ln2b'][l])
        # feed-forward
        y = _layernorm(y + _ffn(y, dec['w1'][l], dec['b1'][l],
                                dec['w2'][l], dec['b2'][l]),
                       dec['ln3w'][l], dec['ln3b'][l])

    # fused output head, lane-dense (O padded to a multiple of 128)
    out = jnp.dot(y.astype(jnp.bfloat16), fc_w[...],
                  preferred_element_type=jnp.float32) + fc_b[...]
    o_ref[...] = out.reshape(bb, t, fc_w.shape[1])


# ---------------------------------------------------------------------------
# pallas_call wrapper
# ---------------------------------------------------------------------------
def transformer_forward(src, tgt, params, out_dim, batch_block=None):
    """Mirrors Transformer.forward(src, tgt). One fused pallas_call.

    batch_block=None folds the whole batch into one program (best on single-TC
    v5e/v6e); set batch_block=B//2 on v7x to shard the batch across both
    TensorCores via the "parallel" grid axis.
    """
    enc, dec = params['enc'], params['dec']
    num_layers = enc['wqkv'].shape[0]
    nh = params['nh']
    B, S, D = src.shape
    _, T, _ = tgt.shape
    OP = params['fc_w'].shape[1]

    bb = B if batch_block is None else batch_block
    assert B % bb == 0, (B, bb)
    grid = (B // bb,)

    pe_b = params['pe'][:B]                   # (B, 1, D): reference's pe[:x.size(0)] quirk

    enc_ws = [enc[k] for k in _ENC_KEYS]
    dec_ws = [dec[k] for k in _DEC_KEYS]

    def _full(shape):
        n = len(shape)
        return pl.BlockSpec(shape, lambda i, _n=n: (0,) * _n)

    in_specs = ([pl.BlockSpec((bb, S, D), lambda i: (i, 0, 0)),
                 pl.BlockSpec((bb, T, D), lambda i: (i, 0, 0)),
                 pl.BlockSpec((bb, 1, D), lambda i: (i, 0, 0))]
                + [_full(w.shape) for w in enc_ws]
                + [_full(w.shape) for w in dec_ws]
                + [_full(params['fc_w'].shape), _full(params['fc_b'].shape)])

    out_pad = pl.pallas_call(
        functools.partial(_transformer_kernel, num_layers, nh),
        out_shape=jax.ShapeDtypeStruct((B, T, OP), jnp.float32),
        grid=grid,
        in_specs=in_specs,
        out_specs=pl.BlockSpec((bb, T, OP), lambda i: (i, 0, 0)),
        compiler_params=pltpu.CompilerParams(
            dimension_semantics=("parallel",),
            vmem_limit_bytes=_vmem_limit_bytes()),
    )(src, tgt, pe_b, *enc_ws, *dec_ws, params['fc_w'], params['fc_b'])

    return out_pad[..., :out_dim]             # strip lane padding of the head


# ---------------------------------------------------------------------------
# Parameter initialization (PyTorch-like shapes, pre-transposed / fused)
# ---------------------------------------------------------------------------
def _lin_init(key, in_f, out_f):
    """nn.Linear-style init; returns PRE-TRANSPOSED (in_f, out_f) f32 weight."""
    k1, k2 = jax.random.split(key)
    bound = 1.0 / math.sqrt(in_f)
    w = jax.random.uniform(k1, (out_f, in_f), jnp.float32, -bound, bound)
    b = jax.random.uniform(k2, (out_f,), jnp.float32, -bound, bound)
    return jnp.transpose(w), b


def _init_mha(key, d, nh):
    """MultiheadAttention weights: fused QKV, fused KV, scale folded into Q."""
    hd = d // nh
    scale = 1.0 / math.sqrt(hd)
    ks = jax.random.split(key, 4)
    wq, bq = _lin_init(ks[0], d, d)
    wk, bk = _lin_init(ks[1], d, d)
    wv, bv = _lin_init(ks[2], d, d)
    wo, bo = _lin_init(ks[3], d, d)
    wq = wq * scale                                  # fold 1/sqrt(hd) into Q projection
    bq = bq * scale
    return dict(
        wqkv=jnp.concatenate([wq, wk, wv], axis=1).astype(jnp.bfloat16),   # (d, 3d)
        bqkv=jnp.concatenate([bq, bk, bv]).reshape(1, 3 * d),
        wq=wq.astype(jnp.bfloat16),                                        # (d, d)
        bq=bq.reshape(1, d),
        wkv=jnp.concatenate([wk, wv], axis=1).astype(jnp.bfloat16),        # (d, 2d)
        bkv=jnp.concatenate([bk, bv]).reshape(1, 2 * d),
        wo=wo.astype(jnp.bfloat16),                                        # (d, d)
        bo=bo.reshape(1, d),
    )


def _init_encoder_layer(key, d, hid, nh):
    ka, kf1, kf2 = jax.random.split(key, 3)
    m = _init_mha(ka, d, nh)
    w1, b1 = _lin_init(kf1, d, hid)
    w2, b2 = _lin_init(kf2, hid, d)
    return dict(
        wqkv=m['wqkv'], bqkv=m['bqkv'], wo=m['wo'], bo=m['bo'],
        w1=w1.astype(jnp.bfloat16), b1=b1.reshape(1, hid),
        w2=w2.astype(jnp.bfloat16), b2=b2.reshape(1, d),
        ln1w=jnp.ones((1, d), jnp.float32), ln1b=jnp.zeros((1, d), jnp.float32),
        ln2w=jnp.ones((1, d), jnp.float32), ln2b=jnp.zeros((1, d), jnp.float32))


def _init_decoder_layer(key, d, hid, nh):
    ksa, kca, kf1, kf2 = jax.random.split(key, 4)
    sa = _init_mha(ksa, d, nh)
    ca = _init_mha(kca, d, nh)
    w1, b1 = _lin_init(kf1, d, hid)
    w2, b2 = _lin_init(kf2, hid, d)
    return dict(
        sa_wqkv=sa['wqkv'], sa_bqkv=sa['bqkv'], sa_wo=sa['wo'], sa_bo=sa['bo'],
        ca_wq=ca['wq'], ca_bq=ca['bq'], ca_wkv=ca['wkv'], ca_bkv=ca['bkv'],
        ca_wo=ca['wo'], ca_bo=ca['bo'],
        w1=w1.astype(jnp.bfloat16), b1=b1.reshape(1, hid),
        w2=w2.astype(jnp.bfloat16), b2=b2.reshape(1, d),
        ln1w=jnp.ones((1, d), jnp.float32), ln1b=jnp.zeros((1, d), jnp.float32),
        ln2w=jnp.ones((1, d), jnp.float32), ln2b=jnp.zeros((1, d), jnp.float32),
        ln3w=jnp.ones((1, d), jnp.float32), ln3b=jnp.zeros((1, d), jnp.float32))


def init_params(key, d, hid, out_dim, num_layers, nh, max_len=64):
    kfc, kenc, kdec = jax.random.split(key, 3)
    enc_keys = jax.random.split(kenc, num_layers)
    dec_keys = jax.random.split(kdec, num_layers)
    enc_layers = [_init_encoder_layer(enc_keys[i], d, hid, nh) for i in range(num_layers)]
    dec_layers = [_init_decoder_layer(dec_keys[i], d, hid, nh) for i in range(num_layers)]
    # stack per-layer params along a leading layer axis (few, larger kernel inputs)
    enc = jax.tree_util.tree_map(lambda *xs: jnp.stack(xs, 0), *enc_layers)
    dec = jax.tree_util.tree_map(lambda *xs: jnp.stack(xs, 0), *dec_layers)

    # final Linear head, padded to a lane-dense (multiple-of-128) output width
    fc_w, fc_b = _lin_init(kfc, d, out_dim)
    o_pad = ((out_dim + 127) // 128) * 128
    fc_w_pad = jnp.zeros((d, o_pad), jnp.float32).at[:, :out_dim].set(fc_w).astype(jnp.bfloat16)
    fc_b_pad = jnp.zeros((1, o_pad), jnp.float32).at[0, :out_dim].set(fc_b)

    # sinusoidal positional-encoding buffer, shape (max_len, 1, d)
    position = jnp.arange(max_len, dtype=jnp.float32)[:, None]
    div_term = jnp.exp(jnp.arange(0, d, 2, dtype=jnp.float32) * (-math.log(10000.0) / d))
    ang = position * div_term
    pe = jnp.zeros((max_len, d), jnp.float32)
    pe = pe.at[:, 0::2].set(jnp.sin(ang)).at[:, 1::2].set(jnp.cos(ang))
    pe = pe[:, None, :]

    return dict(enc=enc, dec=dec, fc_w=fc_w_pad, fc_b=fc_b_pad, pe=pe, nh=nh)


if __name__ == "__main__":
    B, S_SRC, S_TGT = 2, 8, 8
    D, HID, OUT, LAYERS, NH = 32, 64, 16, 2, 4

    key = jax.random.PRNGKey(0)
    k_src, k_tgt, k_par = jax.random.split(key, 3)
    src = jax.random.normal(k_src, (B, S_SRC, D), jnp.float32)
    tgt = jax.random.normal(k_tgt, (B, S_TGT, D), jnp.float32)

    params = init_params(k_par, D, HID, OUT, LAYERS, NH)
    out = transformer_forward(src, tgt, params, OUT)
    out = jax.block_until_ready(out)
    assert out.shape == (B, S_TGT, OUT), out.shape
    assert bool(jnp.all(jnp.isfinite(out)))
    print("KERNEL_OK")
</pallas_src>

<mosaic_0001>
module attributes {stable_mosaic.version = 11 : i64} {
  func.func @_transformer_kernel(%arg0: i32, %arg1: memref<2x8x32xf32, #tpu.memory_space<vmem>>, %arg2: memref<2x8x32xf32, #tpu.memory_space<vmem>>, %arg3: memref<2x1x32xf32, #tpu.memory_space<vmem>>, %arg4: memref<2x32x96xbf16, #tpu.memory_space<vmem>>, %arg5: memref<2x1x96xf32, #tpu.memory_space<vmem>>, %arg6: memref<2x32x32xbf16, #tpu.memory_space<vmem>>, %arg7: memref<2x1x32xf32, #tpu.memory_space<vmem>>, %arg8: memref<2x32x64xbf16, #tpu.memory_space<vmem>>, %arg9: memref<2x1x64xf32, #tpu.memory_space<vmem>>, %arg10: memref<2x64x32xbf16, #tpu.memory_space<vmem>>, %arg11: memref<2x1x32xf32, #tpu.memory_space<vmem>>, %arg12: memref<2x1x32xf32, #tpu.memory_space<vmem>>, %arg13: memref<2x1x32xf32, #tpu.memory_space<vmem>>, %arg14: memref<2x1x32xf32, #tpu.memory_space<vmem>>, %arg15: memref<2x1x32xf32, #tpu.memory_space<vmem>>, %arg16: memref<2x32x96xbf16, #tpu.memory_space<vmem>>, %arg17: memref<2x1x96xf32, #tpu.memory_space<vmem>>, %arg18: memref<2x32x32xbf16, #tpu.memory_space<vmem>>, %arg19: memref<2x1x32xf32, #tpu.memory_space<vmem>>, %arg20: memref<2x32x32xbf16, #tpu.memory_space<vmem>>, %arg21: memref<2x1x32xf32, #tpu.memory_space<vmem>>, %arg22: memref<2x32x64xbf16, #tpu.memory_space<vmem>>, %arg23: memref<2x1x64xf32, #tpu.memory_space<vmem>>, %arg24: memref<2x32x32xbf16, #tpu.memory_space<vmem>>, %arg25: memref<2x1x32xf32, #tpu.memory_space<vmem>>, %arg26: memref<2x32x64xbf16, #tpu.memory_space<vmem>>, %arg27: memref<2x1x64xf32, #tpu.memory_space<vmem>>, %arg28: memref<2x64x32xbf16, #tpu.memory_space<vmem>>, %arg29: memref<2x1x32xf32, #tpu.memory_space<vmem>>, %arg30: memref<2x1x32xf32, #tpu.memory_space<vmem>>, %arg31: memref<2x1x32xf32, #tpu.memory_space<vmem>>, %arg32: memref<2x1x32xf32, #tpu.memory_space<vmem>>, %arg33: memref<2x1x32xf32, #tpu.memory_space<vmem>>, %arg34: memref<2x1x32xf32, #tpu.memory_space<vmem>>, %arg35: memref<2x1x32xf32, #tpu.memory_space<vmem>>, %arg36: memref<32x128xbf16, #tpu.memory_space<vmem>>, %arg37: memref<1x128xf32, #tpu.memory_space<vmem>>, %arg38: memref<2x8x128xf32, #tpu.memory_space<vmem>>) attributes {dimension_semantics = [#tpu.dimension_semantics<parallel>], iteration_bounds = array<i64: 1>, scalar_prefetch = 0 : i64, scratch_operands = 0 : i64, tpu.core_type = #tpu.core_type<tc>, window_params = [{transform_indices = @transform_0, window_bounds = array<i64: 2, 8, 32>}, {transform_indices = @transform_1, window_bounds = array<i64: 2, 8, 32>}, {transform_indices = @transform_2, window_bounds = array<i64: 2, 1, 32>}, {pipeline_mode = #tpu.pipeline_mode<synchronous>, transform_indices = @transform_3, window_bounds = array<i64: 2, 32, 96>}, {pipeline_mode = #tpu.pipeline_mode<synchronous>, transform_indices = @transform_4, window_bounds = array<i64: 2, 1, 96>}, {pipeline_mode = #tpu.pipeline_mode<synchronous>, transform_indices = @transform_5, window_bounds = array<i64: 2, 32, 32>}, {pipeline_mode = #tpu.pipeline_mode<synchronous>, transform_indices = @transform_6, window_bounds = array<i64: 2, 1, 32>}, {pipeline_mode = #tpu.pipeline_mode<synchronous>, transform_indices = @transform_7, window_bounds = array<i64: 2, 32, 64>}, {pipeline_mode = #tpu.pipeline_mode<synchronous>, transform_indices = @transform_8, window_bounds = array<i64: 2, 1, 64>}, {pipeline_mode = #tpu.pipeline_mode<synchronous>, transform_indices = @transform_9, window_bounds = array<i64: 2, 64, 32>}, {pipeline_mode = #tpu.pipeline_mode<synchronous>, transform_indices = @transform_10, window_bounds = array<i64: 2, 1, 32>}, {pipeline_mode = #tpu.pipeline_mode<synchronous>, transform_indices = @transform_11, window_bounds = array<i64: 2, 1, 32>}, {pipeline_mode = #tpu.pipeline_mode<synchronous>, transform_indices = @transform_12, window_bounds = array<i64: 2, 1, 32>}, {pipeline_mode = #tpu.pipeline_mode<synchronous>, transform_indices = @transform_13, window_bounds = array<i64: 2, 1, 32>}, {pipeline_mode = #tpu.pipeline_mode<synchronous>, transform_indices = @transform_14, window_bounds = array<i64: 2, 1, 32>}, {pipeline_mode = #tpu.pipeline_mode<synchronous>, transform_indices = @transform_15, window_bounds = array<i64: 2, 32, 96>}, {pipeline_mode = #tpu.pipeline_mode<synchronous>, transform_indices = @transform_16, window_bounds = array<i64: 2, 1, 96>}, {pipeline_mode = #tpu.pipeline_mode<synchronous>, transform_indices = @transform_17, window_bounds = array<i64: 2, 32, 32>}, {pipeline_mode = #tpu.pipeline_mode<synchronous>, transform_indices = @transform_18, window_bounds = array<i64: 2, 1, 32>}, {pipeline_mode = #tpu.pipeline_mode<synchronous>, transform_indices = @transform_19, window_bounds = array<i64: 2, 32, 32>}, {pipeline_mode = #tpu.pipeline_mode<synchronous>, transform_indices = @transform_20, window_bounds = array<i64: 2, 1, 32>}, {pipeline_mode = #tpu.pipeline_mode<synchronous>, transform_indices = @transform_21, window_bounds = array<i64: 2, 32, 64>}, {pipeline_mode = #tpu.pipeline_mode<synchronous>, transform_indices = @transform_22, window_bounds = array<i64: 2, 1, 64>}, {pipeline_mode = #tpu.pipeline_mode<synchronous>, transform_indices = @transform_23, window_bounds = array<i64: 2, 32, 32>}, {pipeline_mode = #tpu.pipeline_mode<synchronous>, transform_indices = @transform_24, window_bounds = array<i64: 2, 1, 32>}, {pipeline_mode = #tpu.pipeline_mode<synchronous>, transform_indices = @transform_25, window_bounds = array<i64: 2, 32, 64>}, {pipeline_mode = #tpu.pipeline_mode<synchronous>, transform_indices = @transform_26, window_bounds = array<i64: 2, 1, 64>}, {pipeline_mode = #tpu.pipeline_mode<synchronous>, transform_indices = @transform_27, window_bounds = array<i64: 2, 64, 32>}, {pipeline_mode = #tpu.pipeline_mode<synchronous>, transform_indices = @transform_28, window_bounds = array<i64: 2, 1, 32>}, {pipeline_mode = #tpu.pipeline_mode<synchronous>, transform_indices = @transform_29, window_bounds = array<i64: 2, 1, 32>}, {pipeline_mode = #tpu.pipeline_mode<synchronous>, transform_indices = @transform_30, window_bounds = array<i64: 2, 1, 32>}, {pipeline_mode = #tpu.pipeline_mode<synchronous>, transform_indices = @transform_31, window_bounds = array<i64: 2, 1, 32>}, {pipeline_mode = #tpu.pipeline_mode<synchronous>, transform_indices = @transform_32, window_bounds = array<i64: 2, 1, 32>}, {pipeline_mode = #tpu.pipeline_mode<synchronous>, transform_indices = @transform_33, window_bounds = array<i64: 2, 1, 32>}, {pipeline_mode = #tpu.pipeline_mode<synchronous>, transform_indices = @transform_34, window_bounds = array<i64: 2, 1, 32>}, {pipeline_mode = #tpu.pipeline_mode<synchronous>, transform_indices = @transform_35, window_bounds = array<i64: 32, 128>}, {pipeline_mode = #tpu.pipeline_mode<synchronous>, transform_indices = @transform_36, window_bounds = array<i64: 1, 128>}, {transform_indices = @transform_37, window_bounds = array<i64: 2, 8, 128>}]} {
    %c0 = arith.constant 0 : index
    %c0_0 = arith.constant 0 : index
    %c0_1 = arith.constant 0 : index
    %0 = vector.load %arg3[%c0, %c0_0, %c0_1] : memref<2x1x32xf32, #tpu.memory_space<vmem>>, vector<2x1x32xf32>
    %c0_2 = arith.constant 0 : index
    %c0_3 = arith.constant 0 : index
    %c0_4 = arith.constant 0 : index
    %1 = vector.load %arg1[%c0_2, %c0_3, %c0_4] : memref<2x8x32xf32, #tpu.memory_space<vmem>>, vector<2x8x32xf32>
    %2 = vector.broadcast %0 : vector<2x1x32xf32> to vector<2x8x32xf32>
    %3 = arith.addf %1, %2 : vector<2x8x32xf32>
    %4 = vector.shape_cast %3 : vector<2x8x32xf32> to vector<16x32xf32>
    %c0_5 = arith.constant 0 : index
    %c0_6 = arith.constant 0 : index
    %c0_7 = arith.constant 0 : index
    %5 = vector.load %arg4[%c0_5, %c0_6, %c0_7] : memref<2x32x96xbf16, #tpu.memory_space<vmem>>, vector<1x32x96xbf16>
    %6 = vector.shape_cast %5 : vector<1x32x96xbf16> to vector<32x96xbf16>
    %c0_8 = arith.constant 0 : index
    %c0_9 = arith.constant 0 : index
    %c0_10 = arith.constant 0 : index
    %7 = vector.load %arg5[%c0_8, %c0_9, %c0_10] : memref<2x1x96xf32, #tpu.memory_space<vmem>>, vector<1x1x96xf32>
    %8 = vector.shape_cast %7 : vector<1x1x96xf32> to vector<1x96xf32>
    %c0_11 = arith.constant 0 : index
    %c0_12 = arith.constant 0 : index
    %c0_13 = arith.constant 0 : index
    %9 = vector.load %arg6[%c0_11, %c0_12, %c0_13] : memref<2x32x32xbf16, #tpu.memory_space<vmem>>, vector<1x32x32xbf16>
    %10 = vector.shape_cast %9 : vector<1x32x32xbf16> to vector<32x32xbf16>
    %c0_14 = arith.constant 0 : index
    %c0_15 = arith.constant 0 : index
    %c0_16 = arith.constant 0 : index
    %11 = vector.load %arg7[%c0_14, %c0_15, %c0_16] : memref<2x1x32xf32, #tpu.memory_space<vmem>>, vector<1x1x32xf32>
    %12 = vector.shape_cast %11 : vector<1x1x32xf32> to vector<1x32xf32>
    %13 = arith.truncf %4 : vector<16x32xf32> to vector<16x32xbf16>
    %cst = arith.constant dense<0.000000e+00> : vector<16x96xf32>
    %14 = tpu.matmul %13, %6, %cst {dimension_numbers = #tpu.dot_dimension_numbers<[1], [0], [0], [1], [0, 0, 1, 1], [], []>} : vector<16x32xbf16>, vector<32x96xbf16>, vector<16x96xf32> -> vector<16x96xf32>
    %15 = vector.broadcast %8 : vector<1x96xf32> to vector<16x96xf32>
    %16 = arith.addf %14, %15 : vector<16x96xf32>
    %17 = vector.extract_strided_slice %16 {offsets = [0, 0], sizes = [16, 32], strides = [1, 1]} : vector<16x96xf32> to vector<16x32xf32>
    %18 = vector.extract_strided_slice %16 {offsets = [0, 32], sizes = [16, 32], strides = [1, 1]} : vector<16x96xf32> to vector<16x32xf32>
    %19 = vector.extract_strided_slice %16 {offsets = [0, 64], sizes = [16, 32], strides = [1, 1]} : vector<16x96xf32> to vector<16x32xf32>
    %20 = vector.extract_strided_slice %17 {offsets = [0, 0], sizes = [16, 8], strides = [1, 1]} : vector<16x32xf32> to vector<16x8xf32>
    %21 = vector.shape_cast %20 : vector<16x8xf32> to vector<2x8x8xf32>
    %22 = vector.extract_strided_slice %18 {offsets = [0, 0], sizes = [16, 8], strides = [1, 1]} : vector<16x32xf32> to vector<16x8xf32>
    %23 = vector.shape_cast %22 : vector<16x8xf32> to vector<2x8x8xf32>
    %24 = vector.extract_strided_slice %19 {offsets = [0, 0], sizes = [16, 8], strides = [1, 1]} : vector<16x32xf32> to vector<16x8xf32>
    %25 = vector.shape_cast %24 : vector<16x8xf32> to vector<2x8x8xf32>
    %26 = arith.truncf %21 : vector<2x8x8xf32> to vector<2x8x8xbf16>
    %27 = arith.truncf %23 : vector<2x8x8xf32> to vector<2x8x8xbf16>
    "tpu.trace_start"() <{level = 10 : i32, message = "bqf,bkf->bqk"}> : () -> ()
    %cst_17 = arith.constant dense<0.000000e+00> : vector<2x8x8xf32>
    %28 = tpu.matmul %26, %27, %cst_17 {dimension_numbers = #tpu.dot_dimension_numbers<[2], [2], [1], [1], [0, 0, 0, 1, 1, 1], [0], [0]>} : vector<2x8x8xbf16>, vector<2x8x8xbf16>, vector<2x8x8xf32> -> vector<2x8x8xf32>
    "tpu.trace_stop"() : () -> ()
    %cst_18 = arith.constant dense<0xFF800000> : vector<2x8xf32>
    %29 = vector.multi_reduction <maximumf>, %28, %cst_18 [2] : vector<2x8x8xf32> to vector<2x8xf32>
    %30 = vector.shape_cast %29 : vector<2x8xf32> to vector<2x8x1xf32>
    %31 = vector.broadcast %30 : vector<2x8x1xf32> to vector<2x8x8xf32>
    %32 = arith.subf %28, %31 : vector<2x8x8xf32>
    %33 = math.exp %32 : vector<2x8x8xf32>
    %cst_19 = arith.constant dense<0.000000e+00> : vector<2x8xf32>
    %34 = vector.multi_reduction <add>, %33, %cst_19 [2] : vector<2x8x8xf32> to vector<2x8xf32>
    %35 = vector.shape_cast %34 : vector<2x8xf32> to vector<2x8x1xf32>
    %36 = tpu.reciprocal %35 : vector<2x8x1xf32> -> vector<2x8x1xf32>
    %37 = vector.broadcast %36 : vector<2x8x1xf32> to vector<2x8x8xf32>
    %38 = arith.mulf %33, %37 : vector<2x8x8xf32>
    %39 = arith.truncf %38 : vector<2x8x8xf32> to vector<2x8x8xbf16>
    %40 = arith.truncf %25 : vector<2x8x8xf32> to vector<2x8x8xbf16>
    "tpu.trace_start"() <{level = 10 : i32, message = "bqk,bkf->bqf"}> : () -> ()
    %cst_20 = arith.constant dense<0.000000e+00> : vector<2x8x8xf32>
    %41 = tpu.matmul %39, %40, %cst_20 {dimension_numbers = #tpu.dot_dimension_numbers<[2], [1], [1], [2], [0, 0, 0, 1, 1, 2], [0], [0]>} : vector<2x8x8xbf16>, vector<2x8x8xbf16>, vector<2x8x8xf32> -> vector<2x8x8xf32>
    "tpu.trace_stop"() : () -> ()
    %42 = vector.shape_cast %41 : vector<2x8x8xf32> to vector<16x8xf32>
    %43 = vector.extract_strided_slice %17 {offsets = [0, 8], sizes = [16, 8], strides = [1, 1]} : vector<16x32xf32> to vector<16x8xf32>
    %44 = vector.shape_cast %43 : vector<16x8xf32> to vector<2x8x8xf32>
    %45 = vector.extract_strided_slice %18 {offsets = [0, 8], sizes = [16, 8], strides = [1, 1]} : vector<16x32xf32> to vector<16x8xf32>
    %46 = vector.shape_cast %45 : vector<16x8xf32> to vector<2x8x8xf32>
    %47 = vector.extract_strided_slice %19 {offsets = [0, 8], sizes = [16, 8], strides = [1, 1]} : vector<16x32xf32> to vector<16x8xf32>
    %48 = vector.shape_cast %47 : vector<16x8xf32> to vector<2x8x8xf32>
    %49 = arith.truncf %44 : vector<2x8x8xf32> to vector<2x8x8xbf16>
    %50 = arith.truncf %46 : vector<2x8x8xf32> to vector<2x8x8xbf16>
    "tpu.trace_start"() <{level = 10 : i32, message = "bqf,bkf->bqk"}> : () -> ()
    %cst_21 = arith.constant dense<0.000000e+00> : vector<2x8x8xf32>
    %51 = tpu.matmul %49, %50, %cst_21 {dimension_numbers = #tpu.dot_dimension_numbers<[2], [2], [1], [1], [0, 0, 0, 1, 1, 1], [0], [0]>} : vector<2x8x8xbf16>, vector<2x8x8xbf16>, vector<2x8x8xf32> -> vector<2x8x8xf32>
    "tpu.trace_stop"() : () -> ()
    %cst_22 = arith.constant dense<0xFF800000> : vector<2x8xf32>
    %52 = vector.multi_reduction <maximumf>, %51, %cst_22 [2] : vector<2x8x8xf32> to vector<2x8xf32>
    %53 = vector.shape_cast %52 : vector<2x8xf32> to vector<2x8x1xf32>
    %54 = vector.broadcast %53 : vector<2x8x1xf32> to vector<2x8x8xf32>
    %55 = arith.subf %51, %54 : vector<2x8x8xf32>
    %56 = math.exp %55 : vector<2x8x8xf32>
    %cst_23 = arith.constant dense<0.000000e+00> : vector<2x8xf32>
    %57 = vector.multi_reduction <add>, %56, %cst_23 [2] : vector<2x8x8xf32> to vector<2x8xf32>
    %58 = vector.shape_cast %57 : vector<2x8xf32> to vector<2x8x1xf32>
    %59 = tpu.reciprocal %58 : vector<2x8x1xf32> -> vector<2x8x1xf32>
    %60 = vector.broadcast %59 : vector<2x8x1xf32> to vector<2x8x8xf32>
    %61 = arith.mulf %56, %60 : vector<2x8x8xf32>
    %62 = arith.truncf %61 : vector<2x8x8xf32> to vector<2x8x8xbf16>
    %63 = arith.truncf %48 : vector<2x8x8xf32> to vector<2x8x8xbf16>
    "tpu.trace_start"() <{level = 10 : i32, message = "bqk,bkf->bqf"}> : () -> ()
    %cst_24 = arith.constant dense<0.000000e+00> : vector<2x8x8xf32>
    %64 = tpu.matmul %62, %63, %cst_24 {dimension_numbers = #tpu.dot_dimension_numbers<[2], [1], [1], [2], [0, 0, 0, 1, 1, 2], [0], [0]>} : vector<2x8x8xbf16>, vector<2x8x8xbf16>, vector<2x8x8xf32> -> vector<2x8x8xf32>
    "tpu.trace_stop"() : () -> ()
    %65 = vector.shape_cast %64 : vector<2x8x8xf32> to vector<16x8xf32>
    %66 = vector.extract_strided_slice %17 {offsets = [0, 16], sizes = [16, 8], strides = [1, 1]} : vector<16x32xf32> to vector<16x8xf32>
    %67 = vector.shape_cast %66 : vector<16x8xf32> to vector<2x8x8xf32>
    %68 = vector.extract_strided_slice %18 {offsets = [0, 16], sizes = [16, 8], strides = [1, 1]} : vector<16x32xf32> to vector<16x8xf32>
    %69 = vector.shape_cast %68 : vector<16x8xf32> to vector<2x8x8xf32>
    %70 = vector.extract_strided_slice %19 {offsets = [0, 16], sizes = [16, 8], strides = [1, 1]} : vector<16x32xf32> to vector<16x8xf32>
    %71 = vector.shape_cast %70 : vector<16x8xf32> to vector<2x8x8xf32>
    %72 = arith.truncf %67 : vector<2x8x8xf32> to vector<2x8x8xbf16>
    %73 = arith.truncf %69 : vector<2x8x8xf32> to vector<2x8x8xbf16>
    "tpu.trace_start"() <{level = 10 : i32, message = "bqf,bkf->bqk"}> : () -> ()
    %cst_25 = arith.constant dense<0.000000e+00> : vector<2x8x8xf32>
    %74 = tpu.matmul %72, %73, %cst_25 {dimension_numbers = #tpu.dot_dimension_numbers<[2], [2], [1], [1], [0, 0, 0, 1, 1, 1], [0], [0]>} : vector<2x8x8xbf16>, vector<2x8x8xbf16>, vector<2x8x8xf32> -> vector<2x8x8xf32>
    "tpu.trace_stop"() : () -> ()
    %cst_26 = arith.constant dense<0xFF800000> : vector<2x8xf32>
    %75 = vector.multi_reduction <maximumf>, %74, %cst_26 [2] : vector<2x8x8xf32> to vector<2x8xf32>
    %76 = vector.shape_cast %75 : vector<2x8xf32> to vector<2x8x1xf32>
    %77 = vector.broadcast %76 : vector<2x8x1xf32> to vector<2x8x8xf32>
    %78 = arith.subf %74, %77 : vector<2x8x8xf32>
    %79 = math.exp %78 : vector<2x8x8xf32>
    %cst_27 = arith.constant dense<0.000000e+00> : vector<2x8xf32>
    %80 = vector.multi_reduction <add>, %79, %cst_27 [2] : vector<2x8x8xf32> to vector<2x8xf32>
    %81 = vector.shape_cast %80 : vector<2x8xf32> to vector<2x8x1xf32>
    %82 = tpu.reciprocal %81 : vector<2x8x1xf32> -> vector<2x8x1xf32>
    %83 = vector.broadcast %82 : vector<2x8x1xf32> to vector<2x8x8xf32>
    %84 = arith.mulf %79, %83 : vector<2x8x8xf32>
    %85 = arith.truncf %84 : vector<2x8x8xf32> to vector<2x8x8xbf16>
    %86 = arith.truncf %71 : vector<2x8x8xf32> to vector<2x8x8xbf16>
    "tpu.trace_start"() <{level = 10 : i32, message = "bqk,bkf->bqf"}> : () -> ()
    %cst_28 = arith.constant dense<0.000000e+00> : vector<2x8x8xf32>
    %87 = tpu.matmul %85, %86, %cst_28 {dimension_numbers = #tpu.dot_dimension_numbers<[2], [1], [1], [2], [0, 0, 0, 1, 1, 2], [0], [0]>} : vector<2x8x8xbf16>, vector<2x8x8xbf16>, vector<2x8x8xf32> -> vector<2x8x8xf32>
    "tpu.trace_stop"() : () -> ()
    %88 = vector.shape_cast %87 : vector<2x8x8xf32> to vector<16x8xf32>
    %89 = vector.extract_strided_slice %17 {offsets = [0, 24], sizes = [16, 8], strides = [1, 1]} : vector<16x32xf32> to vector<16x8xf32>
    %90 = vector.shape_cast %89 : vector<16x8xf32> to vector<2x8x8xf32>
    %91 = vector.extract_strided_slice %18 {offsets = [0, 24], sizes = [16, 8], strides = [1, 1]} : vector<16x32xf32> to vector<16x8xf32>
    %92 = vector.shape_cast %91 : vector<16x8xf32> to vector<2x8x8xf32>
    %93 = vector.extract_strided_slice %19 {offsets = [0, 24], sizes = [16, 8], strides = [1, 1]} : vector<16x32xf32> to vector<16x8xf32>
    %94 = vector.shape_cast %93 : vector<16x8xf32> to vector<2x8x8xf32>
    %95 = arith.truncf %90 : vector<2x8x8xf32> to vector<2x8x8xbf16>
    %96 = arith.truncf %92 : vector<2x8x8xf32> to vector<2x8x8xbf16>
    "tpu.trace_start"() <{level = 10 : i32, message = "bqf,bkf->bqk"}> : () -> ()
    %cst_29 = arith.constant dense<0.000000e+00> : vector<2x8x8xf32>
    %97 = tpu.matmul %95, %96, %cst_29 {dimension_numbers = #tpu.dot_dimension_numbers<[2], [2], [1], [1], [0, 0, 0, 1, 1, 1], [0], [0]>} : vector<2x8x8xbf16>, vector<2x8x8xbf16>, vector<2x8x8xf32> -> vector<2x8x8xf32>
    "tpu.trace_stop"() : () -> ()
    %cst_30 = arith.constant dense<0xFF800000> : vector<2x8xf32>
    %98 = vector.multi_reduction <maximumf>, %97, %cst_30 [2] : vector<2x8x8xf32> to vector<2x8xf32>
    %99 = vector.shape_cast %98 : vector<2x8xf32> to vector<2x8x1xf32>
    %100 = vector.broadcast %99 : vector<2x8x1xf32> to vector<2x8x8xf32>
    %101 = arith.subf %97, %100 : vector<2x8x8xf32>
    %102 = math.exp %101 : vector<2x8x8xf32>
    %cst_31 = arith.constant dense<0.000000e+00> : vector<2x8xf32>
    %103 = vector.multi_reduction <add>, %102, %cst_31 [2] : vector<2x8x8xf32> to vector<2x8xf32>
    %104 = vector.shape_cast %103 : vector<2x8xf32> to vector<2x8x1xf32>
    %105 = tpu.reciprocal %104 : vector<2x8x1xf32> -> vector<2x8x1xf32>
    %106 = vector.broadcast %105 : vector<2x8x1xf32> to vector<2x8x8xf32>
    %107 = arith.mulf %102, %106 : vector<2x8x8xf32>
    %108 = arith.truncf %107 : vector<2x8x8xf32> to vector<2x8x8xbf16>
    %109 = arith.truncf %94 : vector<2x8x8xf32> to vector<2x8x8xbf16>
    "tpu.trace_start"() <{level = 10 : i32, message = "bqk,bkf->bqf"}> : () -> ()
    %cst_32 = arith.constant dense<0.000000e+00> : vector<2x8x8xf32>
    %110 = tpu.matmul %108, %109, %cst_32 {dimension_numbers = #tpu.dot_dimension_numbers<[2], [1], [1], [2], [0, 0, 0, 1, 1, 2], [0], [0]>} : vector<2x8x8xbf16>, vector<2x8x8xbf16>, vector<2x8x8xf32> -> vector<2x8x8xf32>
    "tpu.trace_stop"() : () -> ()
    %111 = vector.shape_cast %110 : vector<2x8x8xf32> to vector<16x8xf32>
    %112 = tpu.concatenate %42, %65, %88, %111 in 1 : vector<16x8xf32>, vector<16x8xf32>, vector<16x8xf32>, vector<16x8xf32> -> vector<16x32xf32>
    %113 = arith.truncf %112 : vector<16x32xf32> to vector<16x32xbf16>
    %cst_33 = arith.constant dense<0.000000e+00> : vector<16x32xf32>
    %114 = tpu.matmul %113, %10, %cst_33 {dimension_numbers = #tpu.dot_dimension_numbers<[1], [0], [0], [1], [0, 0, 1, 1], [], []>} : vector<16x32xbf16>, vector<32x32xbf16>, vector<16x32xf32> -> vector<16x32xf32>
    %115 = vector.broadcast %12 : vector<1x32xf32> to vector<16x32xf32>
    %116 = arith.addf %114, %115 : vector<16x32xf32>
    %117 = arith.addf %4, %116 : vector<16x32xf32>
    %c0_34 = arith.constant 0 : index
    %c0_35 = arith.constant 0 : index
    %c0_36 = arith.constant 0 : index
    %118 = vector.load %arg12[%c0_34, %c0_35, %c0_36] : memref<2x1x32xf32, #tpu.memory_space<vmem>>, vector<1x1x32xf32>
    %119 = vector.shape_cast %118 : vector<1x1x32xf32> to vector<1x32xf32>
    %c0_37 = arith.constant 0 : index
    %c0_38 = arith.constant 0 : index
    %c0_39 = arith.constant 0 : index
    %120 = vector.load %arg13[%c0_37, %c0_38, %c0_39] : memref<2x1x32xf32, #tpu.memory_space<vmem>>, vector<1x1x32xf32>
    %121 = vector.shape_cast %120 : vector<1x1x32xf32> to vector<1x32xf32>
    %cst_40 = arith.constant dense<0.000000e+00> : vector<16xf32>
    %122 = vector.multi_reduction <add>, %117, %cst_40 [1] : vector<16x32xf32> to vector<16xf32>
    %123 = vector.shape_cast %122 : vector<16xf32> to vector<16x1xf32>
    %cst_41 = arith.constant 3.200000e+01 : f32
    %124 = vector.broadcast %cst_41 : f32 to vector<16x1xf32>
    %125 = arith.divf %123, %124 : vector<16x1xf32>
    %126 = vector.broadcast %125 : vector<16x1xf32> to vector<16x32xf32>
    %127 = arith.subf %117, %126 : vector<16x32xf32>
    %128 = arith.mulf %127, %127 : vector<16x32xf32>
    %cst_42 = arith.constant dense<0.000000e+00> : vector<16xf32>
    %129 = vector.multi_reduction <add>, %128, %cst_42 [1] : vector<16x32xf32> to vector<16xf32>
    %130 = vector.shape_cast %129 : vector<16xf32> to vector<16x1xf32>
    %cst_43 = arith.constant 3.200000e+01 : f32
    %131 = vector.broadcast %cst_43 : f32 to vector<16x1xf32>
    %132 = arith.divf %130, %131 : vector<16x1xf32>
    %cst_44 = arith.constant 9.99999974E-6 : f32
    %133 = vector.broadcast %cst_44 : f32 to vector<16x1xf32>
    %134 = arith.addf %132, %133 : vector<16x1xf32>
    %135 = math.rsqrt %134 : vector<16x1xf32>
    %136 = vector.broadcast %135 : vector<16x1xf32> to vector<16x32xf32>
    %137 = arith.mulf %127, %136 : vector<16x32xf32>
    %138 = vector.broadcast %119 : vector<1x32xf32> to vector<16x32xf32>
    %139 = arith.mulf %137, %138 : vector<16x32xf32>
    %140 = vector.broadcast %121 : vector<1x32xf32> to vector<16x32xf32>
    %141 = arith.addf %139, %140 : vector<16x32xf32>
    %c0_45 = arith.constant 0 : index
    %c0_46 = arith.constant 0 : index
    %c0_47 = arith.constant 0 : index
    %142 = vector.load %arg8[%c0_45, %c0_46, %c0_47] : memref<2x32x64xbf16, #tpu.memory_space<vmem>>, vector<1x32x64xbf16>
    %143 = vector.shape_cast %142 : vector<1x32x64xbf16> to vector<32x64xbf16>
    %c0_48 = arith.constant 0 : index
    %c0_49 = arith.constant 0 : index
    %c0_50 = arith.constant 0 : index
    %144 = vector.load %arg9[%c0_48, %c0_49, %c0_50] : memref<2x1x64xf32, #tpu.memory_space<vmem>>, vector<1x1x64xf32>
    %145 = vector.shape_cast %144 : vector<1x1x64xf32> to vector<1x64xf32>
    %c0_51 = arith.constant 0 : index
    %c0_52 = arith.constant 0 : index
    %c0_53 = arith.constant 0 : index
    %146 = vector.load %arg10[%c0_51, %c0_52, %c0_53] : memref<2x64x32xbf16, #tpu.memory_space<vmem>>, vector<1x64x32xbf16>
    %147 = vector.shape_cast %146 : vector<1x64x32xbf16> to vector<64x32xbf16>
    %c0_54 = arith.constant 0 : index
    %c0_55 = arith.constant 0 : index
    %c0_56 = arith.constant 0 : index
    %148 = vector.load %arg11[%c0_54, %c0_55, %c0_56] : memref<2x1x32xf32, #tpu.memory_space<vmem>>, vector<1x1x32xf32>
    %149 = vector.shape_cast %148 : vector<1x1x32xf32> to vector<1x32xf32>
    %150 = arith.truncf %141 : vector<16x32xf32> to vector<16x32xbf16>
    %cst_57 = arith.constant dense<0.000000e+00> : vector<16x64xf32>
    %151 = tpu.matmul %150, %143, %cst_57 {dimension_numbers = #tpu.dot_dimension_numbers<[1], [0], [0], [1], [0, 0, 1, 1], [], []>} : vector<16x32xbf16>, vector<32x64xbf16>, vector<16x64xf32> -> vector<16x64xf32>
    %152 = vector.broadcast %145 : vector<1x64xf32> to vector<16x64xf32>
    %153 = arith.addf %151, %152 : vector<16x64xf32>
    %cst_58 = arith.constant 0.000000e+00 : f32
    %154 = vector.broadcast %cst_58 : f32 to vector<16x64xf32>
    %155 = arith.maximumf %153, %154 : vector<16x64xf32>
    %156 = arith.truncf %155 : vector<16x64xf32> to vector<16x64xbf16>
    %cst_59 = arith.constant dense<0.000000e+00> : vector<16x32xf32>
    %157 = tpu.matmul %156, %147, %cst_59 {dimension_numbers = #tpu.dot_dimension_numbers<[1], [0], [0], [1], [0, 0, 1, 1], [], []>} : vector<16x64xbf16>, vector<64x32xbf16>, vector<16x32xf32> -> vector<16x32xf32>
    %158 = vector.broadcast %149 : vector<1x32xf32> to vector<16x32xf32>
    %159 = arith.addf %157, %158 : vector<16x32xf32>
    %160 = arith.addf %141, %159 : vector<16x32xf32>
    %c0_60 = arith.constant 0 : index
    %c0_61 = arith.constant 0 : index
    %c0_62 = arith.constant 0 : index
    %161 = vector.load %arg14[%c0_60, %c0_61, %c0_62] : memref<2x1x32xf32, #tpu.memory_space<vmem>>, vector<1x1x32xf32>
    %162 = vector.shape_cast %161 : vector<1x1x32xf32> to vector<1x32xf32>
    %c0_63 = arith.constant 0 : index
    %c0_64 = arith.constant 0 : index
    %c0_65 = arith.constant 0 : index
    %163 = vector.load %arg15[%c0_63, %c0_64, %c0_65] : memref<2x1x32xf32, #tpu.memory_space<vmem>>, vector<1x1x32xf32>
    %164 = vector.shape_cast %163 : vector<1x1x32xf32> to vector<1x32xf32>
    %cst_66 = arith.constant dense<0.000000e+00> : vector<16xf32>
    %165 = vector.multi_reduction <add>, %160, %cst_66 [1] : vector<16x32xf32> to vector<16xf32>
    %166 = vector.shape_cast %165 : vector<16xf32> to vector<16x1xf32>
    %cst_67 = arith.constant 3.200000e+01 : f32
    %167 = vector.broadcast %cst_67 : f32 to vector<16x1xf32>
    %168 = arith.divf %166, %167 : vector<16x1xf32>
    %169 = vector.broadcast %168 : vector<16x1xf32> to vector<16x32xf32>
    %170 = arith.subf %160, %169 : vector<16x32xf32>
    %171 = arith.mulf %170, %170 : vector<16x32xf32>
    %cst_68 = arith.constant dense<0.000000e+00> : vector<16xf32>
    %172 = vector.multi_reduction <add>, %171, %cst_68 [1] : vector<16x32xf32> to vector<16xf32>
    %173 = vector.shape_cast %172 : vector<16xf32> to vector<16x1xf32>
    %cst_69 = arith.constant 3.200000e+01 : f32
    %174 = vector.broadcast %cst_69 : f32 to vector<16x1xf32>
    %175 = arith.divf %173, %174 : vector<16x1xf32>
    %cst_70 = arith.constant 9.99999974E-6 : f32
    %176 = vector.broadcast %cst_70 : f32 to vector<16x1xf32>
    %177 = arith.addf %175, %176 : vector<16x1xf32>
    %178 = math.rsqrt %177 : vector<16x1xf32>
    %179 = vector.broadcast %178 : vector<16x1xf32> to vector<16x32xf32>
    %180 = arith.mulf %170, %179 : vector<16x32xf32>
    %181 = vector.broadcast %162 : vector<1x32xf32> to vector<16x32xf32>
    %182 = arith.mulf %180, %181 : vector<16x32xf32>
    %183 = vector.broadcast %164 : vector<1x32xf32> to vector<16x32xf32>
    %184 = arith.addf %182, %183 : vector<16x32xf32>
    %c1 = arith.constant 1 : index
    %c0_71 = arith.constant 0 : index
    %c0_72 = arith.constant 0 : index
    %185 = vector.load %arg4[%c1, %c0_71, %c0_72] : memref<2x32x96xbf16, #tpu.memory_space<vmem>>, vector<1x32x96xbf16>
    %186 = vector.shape_cast %185 : vector<1x32x96xbf16> to vector<32x96xbf16>
    %c1_73 = arith.constant 1 : index
    %c0_74 = arith.constant 0 : index
    %c0_75 = arith.constant 0 : index
    %187 = vector.load %arg5[%c1_73, %c0_74, %c0_75] : memref<2x1x96xf32, #tpu.memory_space<vmem>>, vector<1x1x96xf32>
    %188 = vector.shape_cast %187 : vector<1x1x96xf32> to vector<1x96xf32>
    %c1_76 = arith.constant 1 : index
    %c0_77 = arith.constant 0 : index
    %c0_78 = arith.constant 0 : index
    %189 = vector.load %arg6[%c1_76, %c0_77, %c0_78] : memref<2x32x32xbf16, #tpu.memory_space<vmem>>, vector<1x32x32xbf16>
    %190 = vector.shape_cast %189 : vector<1x32x32xbf16> to vector<32x32xbf16>
    %c1_79 = arith.constant 1 : index
    %c0_80 = arith.constant 0 : index
    %c0_81 = arith.constant 0 : index
    %191 = vector.load %arg7[%c1_79, %c0_80, %c0_81] : memref<2x1x32xf32, #tpu.memory_space<vmem>>, vector<1x1x32xf32>
    %192 = vector.shape_cast %191 : vector<1x1x32xf32> to vector<1x32xf32>
    %193 = arith.truncf %184 : vector<16x32xf32> to vector<16x32xbf16>
    %cst_82 = arith.constant dense<0.000000e+00> : vector<16x96xf32>
    %194 = tpu.matmul %193, %186, %cst_82 {dimension_numbers = #tpu.dot_dimension_numbers<[1], [0], [0], [1], [0, 0, 1, 1], [], []>} : vector<16x32xbf16>, vector<32x96xbf16>, vector<16x96xf32> -> vector<16x96xf32>
    %195 = vector.broadcast %188 : vector<1x96xf32> to vector<16x96xf32>
    %196 = arith.addf %194, %195 : vector<16x96xf32>
    %197 = vector.extract_strided_slice %196 {offsets = [0, 0], sizes = [16, 32], strides = [1, 1]} : vector<16x96xf32> to vector<16x32xf32>
    %198 = vector.extract_strided_slice %196 {offsets = [0, 32], sizes = [16, 32], strides = [1, 1]} : vector<16x96xf32> to vector<16x32xf32>
    %199 = vector.extract_strided_slice %196 {offsets = [0, 64], sizes = [16, 32], strides = [1, 1]} : vector<16x96xf32> to vector<16x32xf32>
    %200 = vector.extract_strided_slice %197 {offsets = [0, 0], sizes = [16, 8], strides = [1, 1]} : vector<16x32xf32> to vector<16x8xf32>
    %201 = vector.shape_cast %200 : vector<16x8xf32> to vector<2x8x8xf32>
    %202 = vector.extract_strided_slice %198 {offsets = [0, 0], sizes = [16, 8], strides = [1, 1]} : vector<16x32xf32> to vector<16x8xf32>
    %203 = vector.shape_cast %202 : vector<16x8xf32> to vector<2x8x8xf32>
    %204 = vector.extract_strided_slice %199 {offsets = [0, 0], sizes = [16, 8], strides = [1, 1]} : vector<16x32xf32> to vector<16x8xf32>
    %205 = vector.shape_cast %204 : vector<16x8xf32> to vector<2x8x8xf32>
    %206 = arith.truncf %201 : vector<2x8x8xf32> to vector<2x8x8xbf16>
    %207 = arith.truncf %203 : vector<2x8x8xf32> to vector<2x8x8xbf16>
    "tpu.trace_start"() <{level = 10 : i32, message = "bqf,bkf->bqk"}> : () -> ()
    %cst_83 = arith.constant dense<0.000000e+00> : vector<2x8x8xf32>
    %208 = tpu.matmul %206, %207, %cst_83 {dimension_numbers = #tpu.dot_dimension_numbers<[2], [2], [1], [1], [0, 0, 0, 1, 1, 1], [0], [0]>} : vector<2x8x8xbf16>, vector<2x8x8xbf16>, vector<2x8x8xf32> -> vector<2x8x8xf32>
    "tpu.trace_stop"() : () -> ()
    %cst_84 = arith.constant dense<0xFF800000> : vector<2x8xf32>
    %209 = vector.multi_reduction <maximumf>, %208, %cst_84 [2] : vector<2x8x8xf32> to vector<2x8xf32>
    %210 = vector.shape_cast %209 : vector<2x8xf32> to vector<2x8x1xf32>
    %211 = vector.broadcast %210 : vector<2x8x1xf32> to vector<2x8x8xf32>
    %212 = arith.subf %208, %211 : vector<2x8x8xf32>
    %213 = math.exp %212 : vector<2x8x8xf32>
    %cst_85 = arith.constant dense<0.000000e+00> : vector<2x8xf32>
    %214 = vector.multi_reduction <add>, %213, %cst_85 [2] : vector<2x8x8xf32> to vector<2x8xf32>
    %215 = vector.shape_cast %214 : vector<2x8xf32> to vector<2x8x1xf32>
    %216 = tpu.reciprocal %215 : vector<2x8x1xf32> -> vector<2x8x1xf32>
    %217 = vector.broadcast %216 : vector<2x8x1xf32> to vector<2x8x8xf32>
    %218 = arith.mulf %213, %217 : vector<2x8x8xf32>
    %219 = arith.truncf %218 : vector<2x8x8xf32> to vector<2x8x8xbf16>
    %220 = arith.truncf %205 : vector<2x8x8xf32> to vector<2x8x8xbf16>
    "tpu.trace_start"() <{level = 10 : i32, message = "bqk,bkf->bqf"}> : () -> ()
    %cst_86 = arith.constant dense<0.000000e+00> : vector<2x8x8xf32>
    %221 = tpu.matmul %219, %220, %cst_86 {dimension_numbers = #tpu.dot_dimension_numbers<[2], [1], [1], [2], [0, 0, 0, 1, 1, 2], [0], [0]>} : vector<2x8x8xbf16>, vector<2x8x8xbf16>, vector<2x8x8xf32> -> vector<2x8x8xf32>
    "tpu.trace_stop"() : () -> ()
    %222 = vector.shape_cast %221 : vector<2x8x8xf32> to vector<16x8xf32>
    %223 = vector.extract_strided_slice %197 {offsets = [0, 8], sizes = [16, 8], strides = [1, 1]} : vector<16x32xf32> to vector<16x8xf32>
    %224 = vector.shape_cast %223 : vector<16x8xf32> to vector<2x8x8xf32>
    %225 = vector.extract_strided_slice %198 {offsets = [0, 8], sizes = [16, 8], strides = [1, 1]} : vector<16x32xf32> to vector<16x8xf32>
    %226 = vector.shape_cast %225 : vector<16x8xf32> to vector<2x8x8xf32>
    %227 = vector.extract_strided_slice %199 {offsets = [0, 8], sizes = [16, 8], strides = [1, 1]} : vector<16x32xf32> to vector<16x8xf32>
    %228 = vector.shape_cast %227 : vector<16x8xf32> to vector<2x8x8xf32>
    %229 = arith.truncf %224 : vector<2x8x8xf32> to vector<2x8x8xbf16>
    %230 = arith.truncf %226 : vector<2x8x8xf32> to vector<2x8x8xbf16>
    "tpu.trace_start"() <{level = 10 : i32, message = "bqf,bkf->bqk"}> : () -> ()
    %cst_87 = arith.constant dense<0.000000e+00> : vector<2x8x8xf32>
    %231 = tpu.matmul %229, %230, %cst_87 {dimension_numbers = #tpu.dot_dimension_numbers<[2], [2], [1], [1], [0, 0, 0, 1, 1, 1], [0], [0]>} : vector<2x8x8xbf16>, vector<2x8x8xbf16>, vector<2x8x8xf32> -> vector<2x8x8xf32>
    "tpu.trace_stop"() : () -> ()
    %cst_88 = arith.constant dense<0xFF800000> : vector<2x8xf32>
    %232 = vector.multi_reduction <maximumf>, %231, %cst_88 [2] : vector<2x8x8xf32> to vector<2x8xf32>
    %233 = vector.shape_cast %232 : vector<2x8xf32> to vector<2x8x1xf32>
    %234 = vector.broadcast %233 : vector<2x8x1xf32> to vector<2x8x8xf32>
    %235 = arith.subf %231, %234 : vector<2x8x8xf32>
    %236 = math.exp %235 : vector<2x8x8xf32>
    %cst_89 = arith.constant dense<0.000000e+00> : vector<2x8xf32>
    %237 = vector.multi_reduction <add>, %236, %cst_89 [2] : vector<2x8x8xf32> to vector<2x8xf32>
    %238 = vector.shape_cast %237 : vector<2x8xf32> to vector<2x8x1xf32>
    %239 = tpu.reciprocal %238 : vector<2x8x1xf32> -> vector<2x8x1xf32>
    %240 = vector.broadcast %239 : vector<2x8x1xf32> to vector<2x8x8xf32>
    %241 = arith.mulf %236, %240 : vector<2x8x8xf32>
    %242 = arith.truncf %241 : vector<2x8x8xf32> to vector<2x8x8xbf16>
    %243 = arith.truncf %228 : vector<2x8x8xf32> to vector<2x8x8xbf16>
    "tpu.trace_start"() <{level = 10 : i32, message = "bqk,bkf->bqf"}> : () -> ()
    %cst_90 = arith.constant dense<0.000000e+00> : vector<2x8x8xf32>
    %244 = tpu.matmul %242, %243, %cst_90 {dimension_numbers = #tpu.dot_dimension_numbers<[2], [1], [1], [2], [0, 0, 0, 1, 1, 2], [0], [0]>} : vector<2x8x8xbf16>, vector<2x8x8xbf16>, vector<2x8x8xf32> -> vector<2x8x8xf32>
    "tpu.trace_stop"() : () -> ()
    %245 = vector.shape_cast %244 : vector<2x8x8xf32> to vector<16x8xf32>
    %246 = vector.extract_strided_slice %197 {offsets = [0, 16], sizes = [16, 8], strides = [1, 1]} : vector<16x32xf32> to vector<16x8xf32>
    %247 = vector.shape_cast %246 : vector<16x8xf32> to vector<2x8x8xf32>
    %248 = vector.extract_strided_slice %198 {offsets = [0, 16], sizes = [16, 8], strides = [1, 1]} : vector<16x32xf32> to vector<16x8xf32>
    %249 = vector.shape_cast %248 : vector<16x8xf32> to vector<2x8x8xf32>
    %250 = vector.extract_strided_slice %199 {offsets = [0, 16], sizes = [16, 8], strides = [1, 1]} : vector<16x32xf32> to vector<16x8xf32>
    %251 = vector.shape_cast %250 : vector<16x8xf32> to vector<2x8x8xf32>
    %252 = arith.truncf %247 : vector<2x8x8xf32> to vector<2x8x8xbf16>
    %253 = arith.truncf %249 : vector<2x8x8xf32> to vector<2x8x8xbf16>
    "tpu.trace_start"() <{level = 10 : i32, message = "bqf,bkf->bqk"}> : () -> ()
    %cst_91 = arith.constant dense<0.000000e+00> : vector<2x8x8xf32>
    %254 = tpu.matmul %252, %253, %cst_91 {dimension_numbers = #tpu.dot_dimension_numbers<[2], [2], [1], [1], [0, 0, 0, 1, 1, 1], [0], [0]>} : vector<2x8x8xbf16>, vector<2x8x8xbf16>, vector<2x8x8xf32> -> vector<2x8x8xf32>
    "tpu.trace_stop"() : () -> ()
    %cst_92 = arith.constant dense<0xFF800000> : vector<2x8xf32>
    %255 = vector.multi_reduction <maximumf>, %254, %cst_92 [2] : vector<2x8x8xf32> to vector<2x8xf32>
    %256 = vector.shape_cast %255 : vector<2x8xf32> to vector<2x8x1xf32>
    %257 = vector.broadcast %256 : vector<2x8x1xf32> to vector<2x8x8xf32>
    %258 = arith.subf %254, %257 : vector<2x8x8xf32>
    %259 = math.exp %258 : vector<2x8x8xf32>
    %cst_93 = arith.constant dense<0.000000e+00> : vector<2x8xf32>
    %260 = vector.multi_reduction <add>, %259, %cst_93 [2] : vector<2x8x8xf32> to vector<2x8xf32>
    %261 = vector.shape_cast %260 : vector<2x8xf32> to vector<2x8x1xf32>
    %262 = tpu.reciprocal %261 : vector<2x8x1xf32> -> vector<2x8x1xf32>
    %263 = vector.broadcast %262 : vector<2x8x1xf32> to vector<2x8x8xf32>
    %264 = arith.mulf %259, %263 : vector<2x8x8xf32>
    %265 = arith.truncf %264 : vector<2x8x8xf32> to vector<2x8x8xbf16>
    %266 = arith.truncf %251 : vector<2x8x8xf32> to vector<2x8x8xbf16>
    "tpu.trace_start"() <{level = 10 : i32, message = "bqk,bkf->bqf"}> : () -> ()
    %cst_94 = arith.constant dense<0.000000e+00> : vector<2x8x8xf32>
    %267 = tpu.matmul %265, %266, %cst_94 {dimension_numbers = #tpu.dot_dimension_numbers<[2], [1], [1], [2], [0, 0, 0, 1, 1, 2], [0], [0]>} : vector<2x8x8xbf16>, vector<2x8x8xbf16>, vector<2x8x8xf32> -> vector<2x8x8xf32>
    "tpu.trace_stop"() : () -> ()
    %268 = vector.shape_cast %267 : vector<2x8x8xf32> to vector<16x8xf32>
    %269 = vector.extract_strided_slice %197 {offsets = [0, 24], sizes = [16, 8], strides = [1, 1]} : vector<16x32xf32> to vector<16x8xf32>
    %270 = vector.shape_cast %269 : vector<16x8xf32> to vector<2x8x8xf32>
    %271 = vector.extract_strided_slice %198 {offsets = [0, 24], sizes = [16, 8], strides = [1, 1]} : vector<16x32xf32> to vector<16x8xf32>
    %272 = vector.shape_cast %271 : vector<16x8xf32> to vector<2x8x8xf32>
    %273 = vector.extract_strided_slice %199 {offsets = [0, 24], sizes = [16, 8], strides = [1, 1]} : vector<16x32xf32> to vector<16x8xf32>
    %274 = vector.shape_cast %273 : vector<16x8xf32> to vector<2x8x8xf32>
    %275 = arith.truncf %270 : vector<2x8x8xf32> to vector<2x8x8xbf16>
    %276 = arith.truncf %272 : vector<2x8x8xf32> to vector<2x8x8xbf16>
    "tpu.trace_start"() <{level = 10 : i32, message = "bqf,bkf->bqk"}> : () -> ()
    %cst_95 = arith.constant dense<0.000000e+00> : vector<2x8x8xf32>
    %277 = tpu.matmul %275, %276, %cst_95 {dimension_numbers = #tpu.dot_dimension_numbers<[2], [2], [1], [1], [0, 0, 0, 1, 1, 1], [0], [0]>} : vector<2x8x8xbf16>, vector<2x8x8xbf16>, vector<2x8x8xf32> -> vector<2x8x8xf32>
    "tpu.trace_stop"() : () -> ()
    %cst_96 = arith.constant dense<0xFF800000> : vector<2x8xf32>
    %278 = vector.multi_reduction <maximumf>, %277, %cst_96 [2] : vector<2x8x8xf32> to vector<2x8xf32>
    %279 = vector.shape_cast %278 : vector<2x8xf32> to vector<2x8x1xf32>
    %280 = vector.broadcast %279 : vector<2x8x1xf32> to vector<2x8x8xf32>
    %281 = arith.subf %277, %280 : vector<2x8x8xf32>
    %282 = math.exp %281 : vector<2x8x8xf32>
    %cst_97 = arith.constant dense<0.000000e+00> : vector<2x8xf32>
    %283 = vector.multi_reduction <add>, %282, %cst_97 [2] : vector<2x8x8xf32> to vector<2x8xf32>
    %284 = vector.shape_cast %283 : vector<2x8xf32> to vector<2x8x1xf32>
    %285 = tpu.reciprocal %284 : vector<2x8x1xf32> -> vector<2x8x1xf32>
    %286 = vector.broadcast %285 : vector<2x8x1xf32> to vector<2x8x8xf32>
    %287 = arith.mulf %282, %286 : vector<2x8x8xf32>
    %288 = arith.truncf %287 : vector<2x8x8xf32> to vector<2x8x8xbf16>
    %289 = arith.truncf %274 : vector<2x8x8xf32> to vector<2x8x8xbf16>
    "tpu.trace_start"() <{level = 10 : i32, message = "bqk,bkf->bqf"}> : () -> ()
    %cst_98 = arith.constant dense<0.000000e+00> : vector<2x8x8xf32>
    %290 = tpu.matmul %288, %289, %cst_98 {dimension_numbers = #tpu.dot_dimension_numbers<[2], [1], [1], [2], [0, 0, 0, 1, 1, 2], [0], [0]>} : vector<2x8x8xbf16>, vector<2x8x8xbf16>, vector<2x8x8xf32> -> vector<2x8x8xf32>
    "tpu.trace_stop"() : () -> ()
    %291 = vector.shape_cast %290 : vector<2x8x8xf32> to vector<16x8xf32>
    %292 = tpu.concatenate %222, %245, %268, %291 in 1 : vector<16x8xf32>, vector<16x8xf32>, vector<16x8xf32>, vector<16x8xf32> -> vector<16x32xf32>
    %293 = arith.truncf %292 : vector<16x32xf32> to vector<16x32xbf16>
    %cst_99 = arith.constant dense<0.000000e+00> : vector<16x32xf32>
    %294 = tpu.matmul %293, %190, %cst_99 {dimension_numbers = #tpu.dot_dimension_numbers<[1], [0], [0], [1], [0, 0, 1, 1], [], []>} : vector<16x32xbf16>, vector<32x32xbf16>, vector<16x32xf32> -> vector<16x32xf32>
    %295 = vector.broadcast %192 : vector<1x32xf32> to vector<16x32xf32>
    %296 = arith.addf %294, %295 : vector<16x32xf32>
    %297 = arith.addf %184, %296 : vector<16x32xf32>
    %c1_100 = arith.constant 1 : index
    %c0_101 = arith.constant 0 : index
    %c0_102 = arith.constant 0 : index
    %298 = vector.load %arg12[%c1_100, %c0_101, %c0_102] : memref<2x1x32xf32, #tpu.memory_space<vmem>>, vector<1x1x32xf32>
    %299 = vector.shape_cast %298 : vector<1x1x32xf32> to vector<1x32xf32>
    %c1_103 = arith.constant 1 : index
    %c0_104 = arith.constant 0 : index
    %c0_105 = arith.constant 0 : index
    %300 = vector.load %arg13[%c1_103, %c0_104, %c0_105] : memref<2x1x32xf32, #tpu.memory_space<vmem>>, vector<1x1x32xf32>
    %301 = vector.shape_cast %300 : vector<1x1x32xf32> to vector<1x32xf32>
    %cst_106 = arith.constant dense<0.000000e+00> : vector<16xf32>
    %302 = vector.multi_reduction <add>, %297, %cst_106 [1] : vector<16x32xf32> to vector<16xf32>
    %303 = vector.shape_cast %302 : vector<16xf32> to vector<16x1xf32>
    %cst_107 = arith.constant 3.200000e+01 : f32
    %304 = vector.broadcast %cst_107 : f32 to vector<16x1xf32>
    %305 = arith.divf %303, %304 : vector<16x1xf32>
    %306 = vector.broadcast %305 : vector<16x1xf32> to vector<16x32xf32>
    %307 = arith.subf %297, %306 : vector<16x32xf32>
    %308 = arith.mulf %307, %307 : vector<16x32xf32>
    %cst_108 = arith.constant dense<0.000000e+00> : vector<16xf32>
    %309 = vector.multi_reduction <add>, %308, %cst_108 [1] : vector<16x32xf32> to vector<16xf32>
    %310 = vector.shape_cast %309 : vector<16xf32> to vector<16x1xf32>
    %cst_109 = arith.constant 3.200000e+01 : f32
    %311 = vector.broadcast %cst_109 : f32 to vector<16x1xf32>
    %312 = arith.divf %310, %311 : vector<16x1xf32>
    %cst_110 = arith.constant 9.99999974E-6 : f32
    %313 = vector.broadcast %cst_110 : f32 to vector<16x1xf32>
    %314 = arith.addf %312, %313 : vector<16x1xf32>
    %315 = math.rsqrt %314 : vector<16x1xf32>
    %316 = vector.broadcast %315 : vector<16x1xf32> to vector<16x32xf32>
    %317 = arith.mulf %307, %316 : vector<16x32xf32>
    %318 = vector.broadcast %299 : vector<1x32xf32> to vector<16x32xf32>
    %319 = arith.mulf %317, %318 : vector<16x32xf32>
    %320 = vector.broadcast %301 : vector<1x32xf32> to vector<16x32xf32>
    %321 = arith.addf %319, %320 : vector<16x32xf32>
    %c1_111 = arith.constant 1 : index
    %c0_112 = arith.constant 0 : index
    %c0_113 = arith.constant 0 : index
    %322 = vector.load %arg8[%c1_111, %c0_112, %c0_113] : memref<2x32x64xbf16, #tpu.memory_space<vmem>>, vector<1x32x64xbf16>
    %323 = vector.shape_cast %322 : vector<1x32x64xbf16> to vector<32x64xbf16>
    %c1_114 = arith.constant 1 : index
    %c0_115 = arith.constant 0 : index
    %c0_116 = arith.constant 0 : index
    %324 = vector.load %arg9[%c1_114, %c0_115, %c0_116] : memref<2x1x64xf32, #tpu.memory_space<vmem>>, vector<1x1x64xf32>
    %325 = vector.shape_cast %324 : vector<1x1x64xf32> to vector<1x64xf32>
    %c1_117 = arith.constant 1 : index
    %c0_118 = arith.constant 0 : index
    %c0_119 = arith.constant 0 : index
    %326 = vector.load %arg10[%c1_117, %c0_118, %c0_119] : memref<2x64x32xbf16, #tpu.memory_space<vmem>>, vector<1x64x32xbf16>
    %327 = vector.shape_cast %326 : vector<1x64x32xbf16> to vector<64x32xbf16>
    %c1_120 = arith.constant 1 : index
    %c0_121 = arith.constant 0 : index
    %c0_122 = arith.constant 0 : index
    %328 = vector.load %arg11[%c1_120, %c0_121, %c0_122] : memref<2x1x32xf32, #tpu.memory_space<vmem>>, vector<1x1x32xf32>
    %329 = vector.shape_cast %328 : vector<1x1x32xf32> to vector<1x32xf32>
    %330 = arith.truncf %321 : vector<16x32xf32> to vector<16x32xbf16>
    %cst_123 = arith.constant dense<0.000000e+00> : vector<16x64xf32>
    %331 = tpu.matmul %330, %323, %cst_123 {dimension_numbers = #tpu.dot_dimension_numbers<[1], [0], [0], [1], [0, 0, 1, 1], [], []>} : vector<16x32xbf16>, vector<32x64xbf16>, vector<16x64xf32> -> vector<16x64xf32>
    %332 = vector.broadcast %325 : vector<1x64xf32> to vector<16x64xf32>
    %333 = arith.addf %331, %332 : vector<16x64xf32>
    %cst_124 = arith.constant 0.000000e+00 : f32
    %334 = vector.broadcast %cst_124 : f32 to vector<16x64xf32>
    %335 = arith.maximumf %333, %334 : vector<16x64xf32>
    %336 = arith.truncf %335 : vector<16x64xf32> to vector<16x64xbf16>
    %cst_125 = arith.constant dense<0.000000e+00> : vector<16x32xf32>
    %337 = tpu.matmul %336, %327, %cst_125 {dimension_numbers = #tpu.dot_dimension_numbers<[1], [0], [0], [1], [0, 0, 1, 1], [], []>} : vector<16x64xbf16>, vector<64x32xbf16>, vector<16x32xf32> -> vector<16x32xf32>
    %338 = vector.broadcast %329 : vector<1x32xf32> to vector<16x32xf32>
    %339 = arith.addf %337, %338 : vector<16x32xf32>
    %340 = arith.addf %321, %339 : vector<16x32xf32>
    %c1_126 = arith.constant 1 : index
    %c0_127 = arith.constant 0 : index
    %c0_128 = arith.constant 0 : index
    %341 = vector.load %arg14[%c1_126, %c0_127, %c0_128] : memref<2x1x32xf32, #tpu.memory_space<vmem>>, vector<1x1x32xf32>
    %342 = vector.shape_cast %341 : vector<1x1x32xf32> to vector<1x32xf32>
    %c1_129 = arith.constant 1 : index
    %c0_130 = arith.constant 0 : index
    %c0_131 = arith.constant 0 : index
    %343 = vector.load %arg15[%c1_129, %c0_130, %c0_131] : memref<2x1x32xf32, #tpu.memory_space<vmem>>, vector<1x1x32xf32>
    %344 = vector.shape_cast %343 : vector<1x1x32xf32> to vector<1x32xf32>
    %cst_132 = arith.constant dense<0.000000e+00> : vector<16xf32>
    %345 = vector.multi_reduction <add>, %340, %cst_132 [1] : vector<16x32xf32> to vector<16xf32>
    %346 = vector.shape_cast %345 : vector<16xf32> to vector<16x1xf32>
    %cst_133 = arith.constant 3.200000e+01 : f32
    %347 = vector.broadcast %cst_133 : f32 to vector<16x1xf32>
    %348 = arith.divf %346, %347 : vector<16x1xf32>
    %349 = vector.broadcast %348 : vector<16x1xf32> to vector<16x32xf32>
    %350 = arith.subf %340, %349 : vector<16x32xf32>
    %351 = arith.mulf %350, %350 : vector<16x32xf32>
    %cst_134 = arith.constant dense<0.000000e+00> : vector<16xf32>
    %352 = vector.multi_reduction <add>, %351, %cst_134 [1] : vector<16x32xf32> to vector<16xf32>
    %353 = vector.shape_cast %352 : vector<16xf32> to vector<16x1xf32>
    %cst_135 = arith.constant 3.200000e+01 : f32
    %354 = vector.broadcast %cst_135 : f32 to vector<16x1xf32>
    %355 = arith.divf %353, %354 : vector<16x1xf32>
    %cst_136 = arith.constant 9.99999974E-6 : f32
    %356 = vector.broadcast %cst_136 : f32 to vector<16x1xf32>
    %357 = arith.addf %355, %356 : vector<16x1xf32>
    %358 = math.rsqrt %357 : vector<16x1xf32>
    %359 = vector.broadcast %358 : vector<16x1xf32> to vector<16x32xf32>
    %360 = arith.mulf %350, %359 : vector<16x32xf32>
    %361 = vector.broadcast %342 : vector<1x32xf32> to vector<16x32xf32>
    %362 = arith.mulf %360, %361 : vector<16x32xf32>
    %363 = vector.broadcast %344 : vector<1x32xf32> to vector<16x32xf32>
    %364 = arith.addf %362, %363 : vector<16x32xf32>
    %c0_137 = arith.constant 0 : index
    %c0_138 = arith.constant 0 : index
    %c0_139 = arith.constant 0 : index
    %365 = vector.load %arg2[%c0_137, %c0_138, %c0_139] : memref<2x8x32xf32, #tpu.memory_space<vmem>>, vector<2x8x32xf32>
    %366 = vector.broadcast %0 : vector<2x1x32xf32> to vector<2x8x32xf32>
    %367 = arith.addf %365, %366 : vector<2x8x32xf32>
    %368 = vector.shape_cast %367 : vector<2x8x32xf32> to vector<16x32xf32>
    %c0_140 = arith.constant 0 : index
    %c0_141 = arith.constant 0 : index
    %c0_142 = arith.constant 0 : index
    %369 = vector.load %arg16[%c0_140, %c0_141, %c0_142] : memref<2x32x96xbf16, #tpu.memory_space<vmem>>, vector<1x32x96xbf16>
    %370 = vector.shape_cast %369 : vector<1x32x96xbf16> to vector<32x96xbf16>
    %c0_143 = arith.constant 0 : index
    %c0_144 = arith.constant 0 : index
    %c0_145 = arith.constant 0 : index
    %371 = vector.load %arg17[%c0_143, %c0_144, %c0_145] : memref<2x1x96xf32, #tpu.memory_space<vmem>>, vector<1x1x96xf32>
    %372 = vector.shape_cast %371 : vector<1x1x96xf32> to vector<1x96xf32>
    %c0_146 = arith.constant 0 : index
    %c0_147 = arith.constant 0 : index
    %c0_148 = arith.constant 0 : index
    %373 = vector.load %arg18[%c0_146, %c0_147, %c0_148] : memref<2x32x32xbf16, #tpu.memory_space<vmem>>, vector<1x32x32xbf16>
    %374 = vector.shape_cast %373 : vector<1x32x32xbf16> to vector<32x32xbf16>
    %c0_149 = arith.constant 0 : index
    %c0_150 = arith.constant 0 : index
    %c0_151 = arith.constant 0 : index
    %375 = vector.load %arg19[%c0_149, %c0_150, %c0_151] : memref<2x1x32xf32, #tpu.memory_space<vmem>>, vector<1x1x32xf32>
    %376 = vector.shape_cast %375 : vector<1x1x32xf32> to vector<1x32xf32>
    %377 = arith.truncf %368 : vector<16x32xf32> to vector<16x32xbf16>
    %cst_152 = arith.constant dense<0.000000e+00> : vector<16x96xf32>
    %378 = tpu.matmul %377, %370, %cst_152 {dimension_numbers = #tpu.dot_dimension_numbers<[1], [0], [0], [1], [0, 0, 1, 1], [], []>} : vector<16x32xbf16>, vector<32x96xbf16>, vector<16x96xf32> -> vector<16x96xf32>
    %379 = vector.broadcast %372 : vector<1x96xf32> to vector<16x96xf32>
    %380 = arith.addf %378, %379 : vector<16x96xf32>
    %381 = vector.extract_strided_slice %380 {offsets = [0, 0], sizes = [16, 32], strides = [1, 1]} : vector<16x96xf32> to vector<16x32xf32>
    %382 = vector.extract_strided_slice %380 {offsets = [0, 32], sizes = [16, 32], strides = [1, 1]} : vector<16x96xf32> to vector<16x32xf32>
    %383 = vector.extract_strided_slice %380 {offsets = [0, 64], sizes = [16, 32], strides = [1, 1]} : vector<16x96xf32> to vector<16x32xf32>
    %384 = vector.extract_strided_slice %381 {offsets = [0, 0], sizes = [16, 8], strides = [1, 1]} : vector<16x32xf32> to vector<16x8xf32>
    %385 = vector.shape_cast %384 : vector<16x8xf32> to vector<2x8x8xf32>
    %386 = vector.extract_strided_slice %382 {offsets = [0, 0], sizes = [16, 8], strides = [1, 1]} : vector<16x32xf32> to vector<16x8xf32>
    %387 = vector.shape_cast %386 : vector<16x8xf32> to vector<2x8x8xf32>
    %388 = vector.extract_strided_slice %383 {offsets = [0, 0], sizes = [16, 8], strides = [1, 1]} : vector<16x32xf32> to vector<16x8xf32>
    %389 = vector.shape_cast %388 : vector<16x8xf32> to vector<2x8x8xf32>
    %390 = arith.truncf %385 : vector<2x8x8xf32> to vector<2x8x8xbf16>
    %391 = arith.truncf %387 : vector<2x8x8xf32> to vector<2x8x8xbf16>
    "tpu.trace_start"() <{level = 10 : i32, message = "bqf,bkf->bqk"}> : () -> ()
    %cst_153 = arith.constant dense<0.000000e+00> : vector<2x8x8xf32>
    %392 = tpu.matmul %390, %391, %cst_153 {dimension_numbers = #tpu.dot_dimension_numbers<[2], [2], [1], [1], [0, 0, 0, 1, 1, 1], [0], [0]>} : vector<2x8x8xbf16>, vector<2x8x8xbf16>, vector<2x8x8xf32> -> vector<2x8x8xf32>
    "tpu.trace_stop"() : () -> ()
    %cst_154 = arith.constant dense<0xFF800000> : vector<2x8xf32>
    %393 = vector.multi_reduction <maximumf>, %392, %cst_154 [2] : vector<2x8x8xf32> to vector<2x8xf32>
    %394 = vector.shape_cast %393 : vector<2x8xf32> to vector<2x8x1xf32>
    %395 = vector.broadcast %394 : vector<2x8x1xf32> to vector<2x8x8xf32>
    %396 = arith.subf %392, %395 : vector<2x8x8xf32>
    %397 = math.exp %396 : vector<2x8x8xf32>
    %cst_155 = arith.constant dense<0.000000e+00> : vector<2x8xf32>
    %398 = vector.multi_reduction <add>, %397, %cst_155 [2] : vector<2x8x8xf32> to vector<2x8xf32>
    %399 = vector.shape_cast %398 : vector<2x8xf32> to vector<2x8x1xf32>
    %400 = tpu.reciprocal %399 : vector<2x8x1xf32> -> vector<2x8x1xf32>
    %401 = vector.broadcast %400 : vector<2x8x1xf32> to vector<2x8x8xf32>
    %402 = arith.mulf %397, %401 : vector<2x8x8xf32>
    %403 = arith.truncf %402 : vector<2x8x8xf32> to vector<2x8x8xbf16>
    %404 = arith.truncf %389 : vector<2x8x8xf32> to vector<2x8x8xbf16>
    "tpu.trace_start"() <{level = 10 : i32, message = "bqk,bkf->bqf"}> : () -> ()
    %cst_156 = arith.constant dense<0.000000e+00> : vector<2x8x8xf32>
    %405 = tpu.matmul %403, %404, %cst_156 {dimension_numbers = #tpu.dot_dimension_numbers<[2], [1], [1], [2], [0, 0, 0, 1, 1, 2], [0], [0]>} : vector<2x8x8xbf16>, vector<2x8x8xbf16>, vector<2x8x8xf32> -> vector<2x8x8xf32>
    "tpu.trace_stop"() : () -> ()
    %406 = vector.shape_cast %405 : vector<2x8x8xf32> to vector<16x8xf32>
    %407 = vector.extract_strided_slice %381 {offsets = [0, 8], sizes = [16, 8], strides = [1, 1]} : vector<16x32xf32> to vector<16x8xf32>
    %408 = vector.shape_cast %407 : vector<16x8xf32> to vector<2x8x8xf32>
    %409 = vector.extract_strided_slice %382 {offsets = [0, 8], sizes = [16, 8], strides = [1, 1]} : vector<16x32xf32> to vector<16x8xf32>
    %410 = vector.shape_cast %409 : vector<16x8xf32> to vector<2x8x8xf32>
    %411 = vector.extract_strided_slice %383 {offsets = [0, 8], sizes = [16, 8], strides = [1, 1]} : vector<16x32xf32> to vector<16x8xf32>
    %412 = vector.shape_cast %411 : vector<16x8xf32> to vector<2x8x8xf32>
    %413 = arith.truncf %408 : vector<2x8x8xf32> to vector<2x8x8xbf16>
    %414 = arith.truncf %410 : vector<2x8x8xf32> to vector<2x8x8xbf16>
    "tpu.trace_start"() <{level = 10 : i32, message = "bqf,bkf->bqk"}> : () -> ()
    %cst_157 = arith.constant dense<0.000000e+00> : vector<2x8x8xf32>
    %415 = tpu.matmul %413, %414, %cst_157 {dimension_numbers = #tpu.dot_dimension_numbers<[2], [2], [1], [1], [0, 0, 0, 1, 1, 1], [0], [0]>} : vector<2x8x8xbf16>, vector<2x8x8xbf16>, vector<2x8x8xf32> -> vector<2x8x8xf32>
    "tpu.trace_stop"() : () -> ()
    %cst_158 = arith.constant dense<0xFF800000> : vector<2x8xf32>
    %416 = vector.multi_reduction <maximumf>, %415, %cst_158 [2] : vector<2x8x8xf32> to vector<2x8xf32>
    %417 = vector.shape_cast %416 : vector<2x8xf32> to vector<2x8x1xf32>
    %418 = vector.broadcast %417 : vector<2x8x1xf32> to vector<2x8x8xf32>
    %419 = arith.subf %415, %418 : vector<2x8x8xf32>
    %420 = math.exp %419 : vector<2x8x8xf32>
    %cst_159 = arith.constant dense<0.000000e+00> : vector<2x8xf32>
    %421 = vector.multi_reduction <add>, %420, %cst_159 [2] : vector<2x8x8xf32> to vector<2x8xf32>
    %422 = vector.shape_cast %421 : vector<2x8xf32> to vector<2x8x1xf32>
    %423 = tpu.reciprocal %422 : vector<2x8x1xf32> -> vector<2x8x1xf32>
    %424 = vector.broadcast %423 : vector<2x8x1xf32> to vector<2x8x8xf32>
    %425 = arith.mulf %420, %424 : vector<2x8x8xf32>
    %426 = arith.truncf %425 : vector<2x8x8xf32> to vector<2x8x8xbf16>
    %427 = arith.truncf %412 : vector<2x8x8xf32> to vector<2x8x8xbf16>
    "tpu.trace_start"() <{level = 10 : i32, message = "bqk,bkf->bqf"}> : () -> ()
    %cst_160 = arith.constant dense<0.000000e+00> : vector<2x8x8xf32>
    %428 = tpu.matmul %426, %427, %cst_160 {dimension_numbers = #tpu.dot_dimension_numbers<[2], [1], [1], [2], [0, 0, 0, 1, 1, 2], [0], [0]>} : vector<2x8x8xbf16>, vector<2x8x8xbf16>, vector<2x8x8xf32> -> vector<2x8x8xf32>
    "tpu.trace_stop"() : () -> ()
    %429 = vector.shape_cast %428 : vector<2x8x8xf32> to vector<16x8xf32>
    %430 = vector.extract_strided_slice %381 {offsets = [0, 16], sizes = [16, 8], strides = [1, 1]} : vector<16x32xf32> to vector<16x8xf32>
    %431 = vector.shape_cast %430 : vector<16x8xf32> to vector<2x8x8xf32>
    %432 = vector.extract_strided_slice %382 {offsets = [0, 16], sizes = [16, 8], strides = [1, 1]} : vector<16x32xf32> to vector<16x8xf32>
    %433 = vector.shape_cast %432 : vector<16x8xf32> to vector<2x8x8xf32>
    %434 = vector.extract_strided_slice %383 {offsets = [0, 16], sizes = [16, 8], strides = [1, 1]} : vector<16x32xf32> to vector<16x8xf32>
    %435 = vector.shape_cast %434 : vector<16x8xf32> to vector<2x8x8xf32>
    %436 = arith.truncf %431 : vector<2x8x8xf32> to vector<2x8x8xbf16>
    %437 = arith.truncf %433 : vector<2x8x8xf32> to vector<2x8x8xbf16>
    "tpu.trace_start"() <{level = 10 : i32, message = "bqf,bkf->bqk"}> : () -> ()
    %cst_161 = arith.constant dense<0.000000e+00> : vector<2x8x8xf32>
    %438 = tpu.matmul %436, %437, %cst_161 {dimension_numbers = #tpu.dot_dimension_numbers<[2], [2], [1], [1], [0, 0, 0, 1, 1, 1], [0], [0]>} : vector<2x8x8xbf16>, vector<2x8x8xbf16>, vector<2x8x8xf32> -> vector<2x8x8xf32>
    "tpu.trace_stop"() : () -> ()
    %cst_162 = arith.constant dense<0xFF800000> : vector<2x8xf32>
    %439 = vector.multi_reduction <maximumf>, %438, %cst_162 [2] : vector<2x8x8xf32> to vector<2x8xf32>
    %440 = vector.shape_cast %439 : vector<2x8xf32> to vector<2x8x1xf32>
    %441 = vector.broadcast %440 : vector<2x8x1xf32> to vector<2x8x8xf32>
    %442 = arith.subf %438, %441 : vector<2x8x8xf32>
    %443 = math.exp %442 : vector<2x8x8xf32>
    %cst_163 = arith.constant dense<0.000000e+00> : vector<2x8xf32>
    %444 = vector.multi_reduction <add>, %443, %cst_163 [2] : vector<2x8x8xf32> to vector<2x8xf32>
    %445 = vector.shape_cast %444 : vector<2x8xf32> to vector<2x8x1xf32>
    %446 = tpu.reciprocal %445 : vector<2x8x1xf32> -> vector<2x8x1xf32>
    %447 = vector.broadcast %446 : vector<2x8x1xf32> to vector<2x8x8xf32>
    %448 = arith.mulf %443, %447 : vector<2x8x8xf32>
    %449 = arith.truncf %448 : vector<2x8x8xf32> to vector<2x8x8xbf16>
    %450 = arith.truncf %435 : vector<2x8x8xf32> to vector<2x8x8xbf16>
    "tpu.trace_start"() <{level = 10 : i32, message = "bqk,bkf->bqf"}> : () -> ()
    %cst_164 = arith.constant dense<0.000000e+00> : vector<2x8x8xf32>
    %451 = tpu.matmul %449, %450, %cst_164 {dimension_numbers = #tpu.dot_dimension_numbers<[2], [1], [1], [2], [0, 0, 0, 1, 1, 2], [0], [0]>} : vector<2x8x8xbf16>, vector<2x8x8xbf16>, vector<2x8x8xf32> -> vector<2x8x8xf32>
    "tpu.trace_stop"() : () -> ()
    %452 = vector.shape_cast %451 : vector<2x8x8xf32> to vector<16x8xf32>
    %453 = vector.extract_strided_slice %381 {offsets = [0, 24], sizes = [16, 8], strides = [1, 1]} : vector<16x32xf32> to vector<16x8xf32>
    %454 = vector.shape_cast %453 : vector<16x8xf32> to vector<2x8x8xf32>
    %455 = vector.extract_strided_slice %382 {offsets = [0, 24], sizes = [16, 8], strides = [1, 1]} : vector<16x32xf32> to vector<16x8xf32>
    %456 = vector.shape_cast %455 : vector<16x8xf32> to vector<2x8x8xf32>
    %457 = vector.extract_strided_slice %383 {offsets = [0, 24], sizes = [16, 8], strides = [1, 1]} : vector<16x32xf32> to vector<16x8xf32>
    %458 = vector.shape_cast %457 : vector<16x8xf32> to vector<2x8x8xf32>
    %459 = arith.truncf %454 : vector<2x8x8xf32> to vector<2x8x8xbf16>
    %460 = arith.truncf %456 : vector<2x8x8xf32> to vector<2x8x8xbf16>
    "tpu.trace_start"() <{level = 10 : i32, message = "bqf,bkf->bqk"}> : () -> ()
    %cst_165 = arith.constant dense<0.000000e+00> : vector<2x8x8xf32>
    %461 = tpu.matmul %459, %460, %cst_165 {dimension_numbers = #tpu.dot_dimension_numbers<[2], [2], [1], [1], [0, 0, 0, 1, 1, 1], [0], [0]>} : vector<2x8x8xbf16>, vector<2x8x8xbf16>, vector<2x8x8xf32> -> vector<2x8x8xf32>
    "tpu.trace_stop"() : () -> ()
    %cst_166 = arith.constant dense<0xFF800000> : vector<2x8xf32>
    %462 = vector.multi_reduction <maximumf>, %461, %cst_166 [2] : vector<2x8x8xf32> to vector<2x8xf32>
    %463 = vector.shape_cast %462 : vector<2x8xf32> to vector<2x8x1xf32>
    %464 = vector.broadcast %463 : vector<2x8x1xf32> to vector<2x8x8xf32>
    %465 = arith.subf %461, %464 : vector<2x8x8xf32>
    %466 = math.exp %465 : vector<2x8x8xf32>
    %cst_167 = arith.constant dense<0.000000e+00> : vector<2x8xf32>
    %467 = vector.multi_reduction <add>, %466, %cst_167 [2] : vector<2x8x8xf32> to vector<2x8xf32>
    %468 = vector.shape_cast %467 : vector<2x8xf32> to vector<2x8x1xf32>
    %469 = tpu.reciprocal %468 : vector<2x8x1xf32> -> vector<2x8x1xf32>
    %470 = vector.broadcast %469 : vector<2x8x1xf32> to vector<2x8x8xf32>
    %471 = arith.mulf %466, %470 : vector<2x8x8xf32>
    %472 = arith.truncf %471 : vector<2x8x8xf32> to vector<2x8x8xbf16>
    %473 = arith.truncf %458 : vector<2x8x8xf32> to vector<2x8x8xbf16>
    "tpu.trace_start"() <{level = 10 : i32, message = "bqk,bkf->bqf"}> : () -> ()
    %cst_168 = arith.constant dense<0.000000e+00> : vector<2x8x8xf32>
    %474 = tpu.matmul %472, %473, %cst_168 {dimension_numbers = #tpu.dot_dimension_numbers<[2], [1], [1], [2], [0, 0, 0, 1, 1, 2], [0], [0]>} : vector<2x8x8xbf16>, vector<2x8x8xbf16>, vector<2x8x8xf32> -> vector<2x8x8xf32>
    "tpu.trace_stop"() : () -> ()
    %475 = vector.shape_cast %474 : vector<2x8x8xf32> to vector<16x8xf32>
    %476 = tpu.concatenate %406, %429, %452, %475 in 1 : vector<16x8xf32>, vector<16x8xf32>, vector<16x8xf32>, vector<16x8xf32> -> vector<16x32xf32>
    %477 = arith.truncf %476 : vector<16x32xf32> to vector<16x32xbf16>
    %cst_169 = arith.constant dense<0.000000e+00> : vector<16x32xf32>
    %478 = tpu.matmul %477, %374, %cst_169 {dimension_numbers = #tpu.dot_dimension_numbers<[1], [0], [0], [1], [0, 0, 1, 1], [], []>} : vector<16x32xbf16>, vector<32x32xbf16>, vector<16x32xf32> -> vector<16x32xf32>
    %479 = vector.broadcast %376 : vector<1x32xf32> to vector<16x32xf32>
    %480 = arith.addf %478, %479 : vector<16x32xf32>
    %481 = arith.addf %368, %480 : vector<16x32xf32>
    %c0_170 = arith.constant 0 : index
    %c0_171 = arith.constant 0 : index
    %c0_172 = arith.constant 0 : index
    %482 = vector.load %arg30[%c0_170, %c0_171, %c0_172] : memref<2x1x32xf32, #tpu.memory_space<vmem>>, vector<1x1x32xf32>
    %483 = vector.shape_cast %482 : vector<1x1x32xf32> to vector<1x32xf32>
    %c0_173 = arith.constant 0 : index
    %c0_174 = arith.constant 0 : index
    %c0_175 = arith.constant 0 : index
    %484 = vector.load %arg31[%c0_173, %c0_174, %c0_175] : memref<2x1x32xf32, #tpu.memory_space<vmem>>, vector<1x1x32xf32>
    %485 = vector.shape_cast %484 : vector<1x1x32xf32> to vector<1x32xf32>
    %cst_176 = arith.constant dense<0.000000e+00> : vector<16xf32>
    %486 = vector.multi_reduction <add>, %481, %cst_176 [1] : vector<16x32xf32> to vector<16xf32>
    %487 = vector.shape_cast %486 : vector<16xf32> to vector<16x1xf32>
    %cst_177 = arith.constant 3.200000e+01 : f32
    %488 = vector.broadcast %cst_177 : f32 to vector<16x1xf32>
    %489 = arith.divf %487, %488 : vector<16x1xf32>
    %490 = vector.broadcast %489 : vector<16x1xf32> to vector<16x32xf32>
    %491 = arith.subf %481, %490 : vector<16x32xf32>
    %492 = arith.mulf %491, %491 : vector<16x32xf32>
    %cst_178 = arith.constant dense<0.000000e+00> : vector<16xf32>
    %493 = vector.multi_reduction <add>, %492, %cst_178 [1] : vector<16x32xf32> to vector<16xf32>
    %494 = vector.shape_cast %493 : vector<16xf32> to vector<16x1xf32>
    %cst_179 = arith.constant 3.200000e+01 : f32
    %495 = vector.broadcast %cst_179 : f32 to vector<16x1xf32>
    %496 = arith.divf %494, %495 : vector<16x1xf32>
    %cst_180 = arith.constant 9.99999974E-6 : f32
    %497 = vector.broadcast %cst_180 : f32 to vector<16x1xf32>
    %498 = arith.addf %496, %497 : vector<16x1xf32>
    %499 = math.rsqrt %498 : vector<16x1xf32>
    %500 = vector.broadcast %499 : vector<16x1xf32> to vector<16x32xf32>
    %501 = arith.mulf %491, %500 : vector<16x32xf32>
    %502 = vector.broadcast %483 : vector<1x32xf32> to vector<16x32xf32>
    %503 = arith.mulf %501, %502 : vector<16x32xf32>
    %504 = vector.broadcast %485 : vector<1x32xf32> to vector<16x32xf32>
    %505 = arith.addf %503, %504 : vector<16x32xf32>
    %c0_181 = arith.constant 0 : index
    %c0_182 = arith.constant 0 : index
    %c0_183 = arith.constant 0 : index
    %506 = vector.load %arg20[%c0_181, %c0_182, %c0_183] : memref<2x32x32xbf16, #tpu.memory_space<vmem>>, vector<1x32x32xbf16>
    %507 = vector.shape_cast %506 : vector<1x32x32xbf16> to vector<32x32xbf16>
    %c0_184 = arith.constant 0 : index
    %c0_185 = arith.constant 0 : index
    %c0_186 = arith.constant 0 : index
    %508 = vector.load %arg21[%c0_184, %c0_185, %c0_186] : memref<2x1x32xf32, #tpu.memory_space<vmem>>, vector<1x1x32xf32>
    %509 = vector.shape_cast %508 : vector<1x1x32xf32> to vector<1x32xf32>
    %c0_187 = arith.constant 0 : index
    %c0_188 = arith.constant 0 : index
    %c0_189 = arith.constant 0 : index
    %510 = vector.load %arg22[%c0_187, %c0_188, %c0_189] : memref<2x32x64xbf16, #tpu.memory_space<vmem>>, vector<1x32x64xbf16>
    %511 = vector.shape_cast %510 : vector<1x32x64xbf16> to vector<32x64xbf16>
    %c0_190 = arith.constant 0 : index
    %c0_191 = arith.constant 0 : index
    %c0_192 = arith.constant 0 : index
    %512 = vector.load %arg23[%c0_190, %c0_191, %c0_192] : memref<2x1x64xf32, #tpu.memory_space<vmem>>, vector<1x1x64xf32>
    %513 = vector.shape_cast %512 : vector<1x1x64xf32> to vector<1x64xf32>
    %c0_193 = arith.constant 0 : index
    %c0_194 = arith.constant 0 : index
    %c0_195 = arith.constant 0 : index
    %514 = vector.load %arg24[%c0_193, %c0_194, %c0_195] : memref<2x32x32xbf16, #tpu.memory_space<vmem>>, vector<1x32x32xbf16>
    %515 = vector.shape_cast %514 : vector<1x32x32xbf16> to vector<32x32xbf16>
    %c0_196 = arith.constant 0 : index
    %c0_197 = arith.constant 0 : index
    %c0_198 = arith.constant 0 : index
    %516 = vector.load %arg25[%c0_196, %c0_197, %c0_198] : memref<2x1x32xf32, #tpu.memory_space<vmem>>, vector<1x1x32xf32>
    %517 = vector.shape_cast %516 : vector<1x1x32xf32> to vector<1x32xf32>
    %518 = arith.truncf %505 : vector<16x32xf32> to vector<16x32xbf16>
    %cst_199 = arith.constant dense<0.000000e+00> : vector<16x32xf32>
    %519 = tpu.matmul %518, %507, %cst_199 {dimension_numbers = #tpu.dot_dimension_numbers<[1], [0], [0], [1], [0, 0, 1, 1], [], []>} : vector<16x32xbf16>, vector<32x32xbf16>, vector<16x32xf32> -> vector<16x32xf32>
    %520 = vector.broadcast %509 : vector<1x32xf32> to vector<16x32xf32>
    %521 = arith.addf %519, %520 : vector<16x32xf32>
    %522 = arith.truncf %364 : vector<16x32xf32> to vector<16x32xbf16>
    %cst_200 = arith.constant dense<0.000000e+00> : vector<16x64xf32>
    %523 = tpu.matmul %522, %511, %cst_200 {dimension_numbers = #tpu.dot_dimension_numbers<[1], [0], [0], [1], [0, 0, 1, 1], [], []>} : vector<16x32xbf16>, vector<32x64xbf16>, vector<16x64xf32> -> vector<16x64xf32>
    %524 = vector.broadcast %513 : vector<1x64xf32> to vector<16x64xf32>
    %525 = arith.addf %523, %524 : vector<16x64xf32>
    %526 = vector.extract_strided_slice %525 {offsets = [0, 0], sizes = [16, 32], strides = [1, 1]} : vector<16x64xf32> to vector<16x32xf32>
    %527 = vector.extract_strided_slice %525 {offsets = [0, 32], sizes = [16, 32], strides = [1, 1]} : vector<16x64xf32> to vector<16x32xf32>
    %528 = vector.extract_strided_slice %521 {offsets = [0, 0], sizes = [16, 8], strides = [1, 1]} : vector<16x32xf32> to vector<16x8xf32>
    %529 = vector.shape_cast %528 : vector<16x8xf32> to vector<2x8x8xf32>
    %530 = vector.extract_strided_slice %526 {offsets = [0, 0], sizes = [16, 8], strides = [1, 1]} : vector<16x32xf32> to vector<16x8xf32>
    %531 = vector.shape_cast %530 : vector<16x8xf32> to vector<2x8x8xf32>
    %532 = vector.extract_strided_slice %527 {offsets = [0, 0], sizes = [16, 8], strides = [1, 1]} : vector<16x32xf32> to vector<16x8xf32>
    %533 = vector.shape_cast %532 : vector<16x8xf32> to vector<2x8x8xf32>
    %534 = arith.truncf %529 : vector<2x8x8xf32> to vector<2x8x8xbf16>
    %535 = arith.truncf %531 : vector<2x8x8xf32> to vector<2x8x8xbf16>
    "tpu.trace_start"() <{level = 10 : i32, message = "bqf,bkf->bqk"}> : () -> ()
    %cst_201 = arith.constant dense<0.000000e+00> : vector<2x8x8xf32>
    %536 = tpu.matmul %534, %535, %cst_201 {dimension_numbers = #tpu.dot_dimension_numbers<[2], [2], [1], [1], [0, 0, 0, 1, 1, 1], [0], [0]>} : vector<2x8x8xbf16>, vector<2x8x8xbf16>, vector<2x8x8xf32> -> vector<2x8x8xf32>
    "tpu.trace_stop"() : () -> ()
    %cst_202 = arith.constant dense<0xFF800000> : vector<2x8xf32>
    %537 = vector.multi_reduction <maximumf>, %536, %cst_202 [2] : vector<2x8x8xf32> to vector<2x8xf32>
    %538 = vector.shape_cast %537 : vector<2x8xf32> to vector<2x8x1xf32>
    %539 = vector.broadcast %538 : vector<2x8x1xf32> to vector<2x8x8xf32>
    %540 = arith.subf %536, %539 : vector<2x8x8xf32>
    %541 = math.exp %540 : vector<2x8x8xf32>
    %cst_203 = arith.constant dense<0.000000e+00> : vector<2x8xf32>
    %542 = vector.multi_reduction <add>, %541, %cst_203 [2] : vector<2x8x8xf32> to vector<2x8xf32>
    %543 = vector.shape_cast %542 : vector<2x8xf32> to vector<2x8x1xf32>
    %544 = tpu.reciprocal %543 : vector<2x8x1xf32> -> vector<2x8x1xf32>
    %545 = vector.broadcast %544 : vector<2x8x1xf32> to vector<2x8x8xf32>
    %546 = arith.mulf %541, %545 : vector<2x8x8xf32>
    %547 = arith.truncf %546 : vector<2x8x8xf32> to vector<2x8x8xbf16>
    %548 = arith.truncf %533 : vector<2x8x8xf32> to vector<2x8x8xbf16>
    "tpu.trace_start"() <{level = 10 : i32, message = "bqk,bkf->bqf"}> : () -> ()
    %cst_204 = arith.constant dense<0.000000e+00> : vector<2x8x8xf32>
    %549 = tpu.matmul %547, %548, %cst_204 {dimension_numbers = #tpu.dot_dimension_numbers<[2], [1], [1], [2], [0, 0, 0, 1, 1, 2], [0], [0]>} : vector<2x8x8xbf16>, vector<2x8x8xbf16>, vector<2x8x8xf32> -> vector<2x8x8xf32>
    "tpu.trace_stop"() : () -> ()
    %550 = vector.shape_cast %549 : vector<2x8x8xf32> to vector<16x8xf32>
    %551 = vector.extract_strided_slice %521 {offsets = [0, 8], sizes = [16, 8], strides = [1, 1]} : vector<16x32xf32> to vector<16x8xf32>
    %552 = vector.shape_cast %551 : vector<16x8xf32> to vector<2x8x8xf32>
    %553 = vector.extract_strided_slice %526 {offsets = [0, 8], sizes = [16, 8], strides = [1, 1]} : vector<16x32xf32> to vector<16x8xf32>
    %554 = vector.shape_cast %553 : vector<16x8xf32> to vector<2x8x8xf32>
    %555 = vector.extract_strided_slice %527 {offsets = [0, 8], sizes = [16, 8], strides = [1, 1]} : vector<16x32xf32> to vector<16x8xf32>
    %556 = vector.shape_cast %555 : vector<16x8xf32> to vector<2x8x8xf32>
    %557 = arith.truncf %552 : vector<2x8x8xf32> to vector<2x8x8xbf16>
    %558 = arith.truncf %554 : vector<2x8x8xf32> to vector<2x8x8xbf16>
    "tpu.trace_start"() <{level = 10 : i32, message = "bqf,bkf->bqk"}> : () -> ()
    %cst_205 = arith.constant dense<0.000000e+00> : vector<2x8x8xf32>
    %559 = tpu.matmul %557, %558, %cst_205 {dimension_numbers = #tpu.dot_dimension_numbers<[2], [2], [1], [1], [0, 0, 0, 1, 1, 1], [0], [0]>} : vector<2x8x8xbf16>, vector<2x8x8xbf16>, vector<2x8x8xf32> -> vector<2x8x8xf32>
    "tpu.trace_stop"() : () -> ()
    %cst_206 = arith.constant dense<0xFF800000> : vector<2x8xf32>
    %560 = vector.multi_reduction <maximumf>, %559, %cst_206 [2] : vector<2x8x8xf32> to vector<2x8xf32>
    %561 = vector.shape_cast %560 : vector<2x8xf32> to vector<2x8x1xf32>
    %562 = vector.broadcast %561 : vector<2x8x1xf32> to vector<2x8x8xf32>
    %563 = arith.subf %559, %562 : vector<2x8x8xf32>
    %564 = math.exp %563 : vector<2x8x8xf32>
    %cst_207 = arith.constant dense<0.000000e+00> : vector<2x8xf32>
    %565 = vector.multi_reduction <add>, %564, %cst_207 [2] : vector<2x8x8xf32> to vector<2x8xf32>
    %566 = vector.shape_cast %565 : vector<2x8xf32> to vector<2x8x1xf32>
    %567 = tpu.reciprocal %566 : vector<2x8x1xf32> -> vector<2x8x1xf32>
    %568 = vector.broadcast %567 : vector<2x8x1xf32> to vector<2x8x8xf32>
    %569 = arith.mulf %564, %568 : vector<2x8x8xf32>
    %570 = arith.truncf %569 : vector<2x8x8xf32> to vector<2x8x8xbf16>
    %571 = arith.truncf %556 : vector<2x8x8xf32> to vector<2x8x8xbf16>
    "tpu.trace_start"() <{level = 10 : i32, message = "bqk,bkf->bqf"}> : () -> ()
    %cst_208 = arith.constant dense<0.000000e+00> : vector<2x8x8xf32>
    %572 = tpu.matmul %570, %571, %cst_208 {dimension_numbers = #tpu.dot_dimension_numbers<[2], [1], [1], [2], [0, 0, 0, 1, 1, 2], [0], [0]>} : vector<2x8x8xbf16>, vector<2x8x8xbf16>, vector<2x8x8xf32> -> vector<2x8x8xf32>
    "tpu.trace_stop"() : () -> ()
    %573 = vector.shape_cast %572 : vector<2x8x8xf32> to vector<16x8xf32>
    %574 = vector.extract_strided_slice %521 {offsets = [0, 16], sizes = [16, 8], strides = [1, 1]} : vector<16x32xf32> to vector<16x8xf32>
    %575 = vector.shape_cast %574 : vector<16x8xf32> to vector<2x8x8xf32>
    %576 = vector.extract_strided_slice %526 {offsets = [0, 16], sizes = [16, 8], strides = [1, 1]} : vector<16x32xf32> to vector<16x8xf32>
    %577 = vector.shape_cast %576 : vector<16x8xf32> to vector<2x8x8xf32>
    %578 = vector.extract_strided_slice %527 {offsets = [0, 16], sizes = [16, 8], strides = [1, 1]} : vector<16x32xf32> to vector<16x8xf32>
    %579 = vector.shape_cast %578 : vector<16x8xf32> to vector<2x8x8xf32>
    %580 = arith.truncf %575 : vector<2x8x8xf32> to vector<2x8x8xbf16>
    %581 = arith.truncf %577 : vector<2x8x8xf32> to vector<2x8x8xbf16>
    "tpu.trace_start"() <{level = 10 : i32, message = "bqf,bkf->bqk"}> : () -> ()
    %cst_209 = arith.constant dense<0.000000e+00> : vector<2x8x8xf32>
    %582 = tpu.matmul %580, %581, %cst_209 {dimension_numbers = #tpu.dot_dimension_numbers<[2], [2], [1], [1], [0, 0, 0, 1, 1, 1], [0], [0]>} : vector<2x8x8xbf16>, vector<2x8x8xbf16>, vector<2x8x8xf32> -> vector<2x8x8xf32>
    "tpu.trace_stop"() : () -> ()
    %cst_210 = arith.constant dense<0xFF800000> : vector<2x8xf32>
    %583 = vector.multi_reduction <maximumf>, %582, %cst_210 [2] : vector<2x8x8xf32> to vector<2x8xf32>
    %584 = vector.shape_cast %583 : vector<2x8xf32> to vector<2x8x1xf32>
    %585 = vector.broadcast %584 : vector<2x8x1xf32> to vector<2x8x8xf32>
    %586 = arith.subf %582, %585 : vector<2x8x8xf32>
    %587 = math.exp %586 : vector<2x8x8xf32>
    %cst_211 = arith.constant dense<0.000000e+00> : vector<2x8xf32>
    %588 = vector.multi_reduction <add>, %587, %cst_211 [2] : vector<2x8x8xf32> to vector<2x8xf32>
    %589 = vector.shape_cast %588 : vector<2x8xf32> to vector<2x8x1xf32>
    %590 = tpu.reciprocal %589 : vector<2x8x1xf32> -> vector<2x8x1xf32>
    %591 = vector.broadcast %590 : vector<2x8x1xf32> to vector<2x8x8xf32>
    %592 = arith.mulf %587, %591 : vector<2x8x8xf32>
    %593 = arith.truncf %592 : vector<2x8x8xf32> to vector<2x8x8xbf16>
    %594 = arith.truncf %579 : vector<2x8x8xf32> to vector<2x8x8xbf16>
    "tpu.trace_start"() <{level = 10 : i32, message = "bqk,bkf->bqf"}> : () -> ()
    %cst_212 = arith.constant dense<0.000000e+00> : vector<2x8x8xf32>
    %595 = tpu.matmul %593, %594, %cst_212 {dimension_numbers = #tpu.dot_dimension_numbers<[2], [1], [1], [2], [0, 0, 0, 1, 1, 2], [0], [0]>} : vector<2x8x8xbf16>, vector<2x8x8xbf16>, vector<2x8x8xf32> -> vector<2x8x8xf32>
    "tpu.trace_stop"() : () -> ()
    %596 = vector.shape_cast %595 : vector<2x8x8xf32> to vector<16x8xf32>
    %597 = vector.extract_strided_slice %521 {offsets = [0, 24], sizes = [16, 8], strides = [1, 1]} : vector<16x32xf32> to vector<16x8xf32>
    %598 = vector.shape_cast %597 : vector<16x8xf32> to vector<2x8x8xf32>
    %599 = vector.extract_strided_slice %526 {offsets = [0, 24], sizes = [16, 8], strides = [1, 1]} : vector<16x32xf32> to vector<16x8xf32>
    %600 = vector.shape_cast %599 : vector<16x8xf32> to vector<2x8x8xf32>
    %601 = vector.extract_strided_slice %527 {offsets = [0, 24], sizes = [16, 8], strides = [1, 1]} : vector<16x32xf32> to vector<16x8xf32>
    %602 = vector.shape_cast %601 : vector<16x8xf32> to vector<2x8x8xf32>
    %603 = arith.truncf %598 : vector<2x8x8xf32> to vector<2x8x8xbf16>
    %604 = arith.truncf %600 : vector<2x8x8xf32> to vector<2x8x8xbf16>
    "tpu.trace_start"() <{level = 10 : i32, message = "bqf,bkf->bqk"}> : () -> ()
    %cst_213 = arith.constant dense<0.000000e+00> : vector<2x8x8xf32>
    %605 = tpu.matmul %603, %604, %cst_213 {dimension_numbers = #tpu.dot_dimension_numbers<[2], [2], [1], [1], [0, 0, 0, 1, 1, 1], [0], [0]>} : vector<2x8x8xbf16>, vector<2x8x8xbf16>, vector<2x8x8xf32> -> vector<2x8x8xf32>
    "tpu.trace_stop"() : () -> ()
    %cst_214 = arith.constant dense<0xFF800000> : vector<2x8xf32>
    %606 = vector.multi_reduction <maximumf>, %605, %cst_214 [2] : vector<2x8x8xf32> to vector<2x8xf32>
    %607 = vector.shape_cast %606 : vector<2x8xf32> to vector<2x8x1xf32>
    %608 = vector.broadcast %607 : vector<2x8x1xf32> to vector<2x8x8xf32>
    %609 = arith.subf %605, %608 : vector<2x8x8xf32>
    %610 = math.exp %609 : vector<2x8x8xf32>
    %cst_215 = arith.constant dense<0.000000e+00> : vector<2x8xf32>
    %611 = vector.multi_reduction <add>, %610, %cst_215 [2] : vector<2x8x8xf32> to vector<2x8xf32>
    %612 = vector.shape_cast %611 : vector<2x8xf32> to vector<2x8x1xf32>
    %613 = tpu.reciprocal %612 : vector<2x8x1xf32> -> vector<2x8x1xf32>
    %614 = vector.broadcast %613 : vector<2x8x1xf32> to vector<2x8x8xf32>
    %615 = arith.mulf %610, %614 : vector<2x8x8xf32>
    %616 = arith.truncf %615 : vector<2x8x8xf32> to vector<2x8x8xbf16>
    %617 = arith.truncf %602 : vector<2x8x8xf32> to vector<2x8x8xbf16>
    "tpu.trace_start"() <{level = 10 : i32, message = "bqk,bkf->bqf"}> : () -> ()
    %cst_216 = arith.constant dense<0.000000e+00> : vector<2x8x8xf32>
    %618 = tpu.matmul %616, %617, %cst_216 {dimension_numbers = #tpu.dot_dimension_numbers<[2], [1], [1], [2], [0, 0, 0, 1, 1, 2], [0], [0]>} : vector<2x8x8xbf16>, vector<2x8x8xbf16>, vector<2x8x8xf32> -> vector<2x8x8xf32>
    "tpu.trace_stop"() : () -> ()
    %619 = vector.shape_cast %618 : vector<2x8x8xf32> to vector<16x8xf32>
    %620 = tpu.concatenate %550, %573, %596, %619 in 1 : vector<16x8xf32>, vector<16x8xf32>, vector<16x8xf32>, vector<16x8xf32> -> vector<16x32xf32>
    %621 = arith.truncf %620 : vector<16x32xf32> to vector<16x32xbf16>
    %cst_217 = arith.constant dense<0.000000e+00> : vector<16x32xf32>
    %622 = tpu.matmul %621, %515, %cst_217 {dimension_numbers = #tpu.dot_dimension_numbers<[1], [0], [0], [1], [0, 0, 1, 1], [], []>} : vector<16x32xbf16>, vector<32x32xbf16>, vector<16x32xf32> -> vector<16x32xf32>
    %623 = vector.broadcast %517 : vector<1x32xf32> to vector<16x32xf32>
    %624 = arith.addf %622, %623 : vector<16x32xf32>
    %625 = arith.addf %505, %624 : vector<16x32xf32>
    %c0_218 = arith.constant 0 : index
    %c0_219 = arith.constant 0 : index
    %c0_220 = arith.constant 0 : index
    %626 = vector.load %arg32[%c0_218, %c0_219, %c0_220] : memref<2x1x32xf32, #tpu.memory_space<vmem>>, vector<1x1x32xf32>
    %627 = vector.shape_cast %626 : vector<1x1x32xf32> to vector<1x32xf32>
    %c0_221 = arith.constant 0 : index
    %c0_222 = arith.constant 0 : index
    %c0_223 = arith.constant 0 : index
    %628 = vector.load %arg33[%c0_221, %c0_222, %c0_223] : memref<2x1x32xf32, #tpu.memory_space<vmem>>, vector<1x1x32xf32>
    %629 = vector.shape_cast %628 : vector<1x1x32xf32> to vector<1x32xf32>
    %cst_224 = arith.constant dense<0.000000e+00> : vector<16xf32>
    %630 = vector.multi_reduction <add>, %625, %cst_224 [1] : vector<16x32xf32> to vector<16xf32>
    %631 = vector.shape_cast %630 : vector<16xf32> to vector<16x1xf32>
    %cst_225 = arith.constant 3.200000e+01 : f32
    %632 = vector.broadcast %cst_225 : f32 to vector<16x1xf32>
    %633 = arith.divf %631, %632 : vector<16x1xf32>
    %634 = vector.broadcast %633 : vector<16x1xf32> to vector<16x32xf32>
    %635 = arith.subf %625, %634 : vector<16x32xf32>
    %636 = arith.mulf %635, %635 : vector<16x32xf32>
    %cst_226 = arith.constant dense<0.000000e+00> : vector<16xf32>
    %637 = vector.multi_reduction <add>, %636, %cst_226 [1] : vector<16x32xf32> to vector<16xf32>
    %638 = vector.shape_cast %637 : vector<16xf32> to vector<16x1xf32>
    %cst_227 = arith.constant 3.200000e+01 : f32
    %639 = vector.broadcast %cst_227 : f32 to vector<16x1xf32>
    %640 = arith.divf %638, %639 : vector<16x1xf32>
    %cst_228 = arith.constant 9.99999974E-6 : f32
    %641 = vector.broadcast %cst_228 : f32 to vector<16x1xf32>
    %642 = arith.addf %640, %641 : vector<16x1xf32>
    %643 = math.rsqrt %642 : vector<16x1xf32>
    %644 = vector.broadcast %643 : vector<16x1xf32> to vector<16x32xf32>
    %645 = arith.mulf %635, %644 : vector<16x32xf32>
    %646 = vector.broadcast %627 : vector<1x32xf32> to vector<16x32xf32>
    %647 = arith.mulf %645, %646 : vector<16x32xf32>
    %648 = vector.broadcast %629 : vector<1x32xf32> to vector<16x32xf32>
    %649 = arith.addf %647, %648 : vector<16x32xf32>
    %c0_229 = arith.constant 0 : index
    %c0_230 = arith.constant 0 : index
    %c0_231 = arith.constant 0 : index
    %650 = vector.load %arg26[%c0_229, %c0_230, %c0_231] : memref<2x32x64xbf16, #tpu.memory_space<vmem>>, vector<1x32x64xbf16>
    %651 = vector.shape_cast %650 : vector<1x32x64xbf16> to vector<32x64xbf16>
    %c0_232 = arith.constant 0 : index
    %c0_233 = arith.constant 0 : index
    %c0_234 = arith.constant 0 : index
    %652 = vector.load %arg27[%c0_232, %c0_233, %c0_234] : memref<2x1x64xf32, #tpu.memory_space<vmem>>, vector<1x1x64xf32>
    %653 = vector.shape_cast %652 : vector<1x1x64xf32> to vector<1x64xf32>
    %c0_235 = arith.constant 0 : index
    %c0_236 = arith.constant 0 : index
    %c0_237 = arith.constant 0 : index
    %654 = vector.load %arg28[%c0_235, %c0_236, %c0_237] : memref<2x64x32xbf16, #tpu.memory_space<vmem>>, vector<1x64x32xbf16>
    %655 = vector.shape_cast %654 : vector<1x64x32xbf16> to vector<64x32xbf16>
    %c0_238 = arith.constant 0 : index
    %c0_239 = arith.constant 0 : index
    %c0_240 = arith.constant 0 : index
    %656 = vector.load %arg29[%c0_238, %c0_239, %c0_240] : memref<2x1x32xf32, #tpu.memory_space<vmem>>, vector<1x1x32xf32>
    %657 = vector.shape_cast %656 : vector<1x1x32xf32> to vector<1x32xf32>
    %658 = arith.truncf %649 : vector<16x32xf32> to vector<16x32xbf16>
    %cst_241 = arith.constant dense<0.000000e+00> : vector<16x64xf32>
    %659 = tpu.matmul %658, %651, %cst_241 {dimension_numbers = #tpu.dot_dimension_numbers<[1], [0], [0], [1], [0, 0, 1, 1], [], []>} : vector<16x32xbf16>, vector<32x64xbf16>, vector<16x64xf32> -> vector<16x64xf32>
    %660 = vector.broadcast %653 : vector<1x64xf32> to vector<16x64xf32>
    %661 = arith.addf %659, %660 : vector<16x64xf32>
    %cst_242 = arith.constant 0.000000e+00 : f32
    %662 = vector.broadcast %cst_242 : f32 to vector<16x64xf32>
    %663 = arith.maximumf %661, %662 : vector<16x64xf32>
    %664 = arith.truncf %663 : vector<16x64xf32> to vector<16x64xbf16>
    %cst_243 = arith.constant dense<0.000000e+00> : vector<16x32xf32>
    %665 = tpu.matmul %664, %655, %cst_243 {dimension_numbers = #tpu.dot_dimension_numbers<[1], [0], [0], [1], [0, 0, 1, 1], [], []>} : vector<16x64xbf16>, vector<64x32xbf16>, vector<16x32xf32> -> vector<16x32xf32>
    %666 = vector.broadcast %657 : vector<1x32xf32> to vector<16x32xf32>
    %667 = arith.addf %665, %666 : vector<16x32xf32>
    %668 = arith.addf %649, %667 : vector<16x32xf32>
    %c0_244 = arith.constant 0 : index
    %c0_245 = arith.constant 0 : index
    %c0_246 = arith.constant 0 : index
    %669 = vector.load %arg34[%c0_244, %c0_245, %c0_246] : memref<2x1x32xf32, #tpu.memory_space<vmem>>, vector<1x1x32xf32>
    %670 = vector.shape_cast %669 : vector<1x1x32xf32> to vector<1x32xf32>
    %c0_247 = arith.constant 0 : index
    %c0_248 = arith.constant 0 : index
    %c0_249 = arith.constant 0 : index
    %671 = vector.load %arg35[%c0_247, %c0_248, %c0_249] : memref<2x1x32xf32, #tpu.memory_space<vmem>>, vector<1x1x32xf32>
    %672 = vector.shape_cast %671 : vector<1x1x32xf32> to vector<1x32xf32>
    %cst_250 = arith.constant dense<0.000000e+00> : vector<16xf32>
    %673 = vector.multi_reduction <add>, %668, %cst_250 [1] : vector<16x32xf32> to vector<16xf32>
    %674 = vector.shape_cast %673 : vector<16xf32> to vector<16x1xf32>
    %cst_251 = arith.constant 3.200000e+01 : f32
    %675 = vector.broadcast %cst_251 : f32 to vector<16x1xf32>
    %676 = arith.divf %674, %675 : vector<16x1xf32>
    %677 = vector.broadcast %676 : vector<16x1xf32> to vector<16x32xf32>
    %678 = arith.subf %668, %677 : vector<16x32xf32>
    %679 = arith.mulf %678, %678 : vector<16x32xf32>
    %cst_252 = arith.constant dense<0.000000e+00> : vector<16xf32>
    %680 = vector.multi_reduction <add>, %679, %cst_252 [1] : vector<16x32xf32> to vector<16xf32>
    %681 = vector.shape_cast %680 : vector<16xf32> to vector<16x1xf32>
    %cst_253 = arith.constant 3.200000e+01 : f32
    %682 = vector.broadcast %cst_253 : f32 to vector<16x1xf32>
    %683 = arith.divf %681, %682 : vector<16x1xf32>
    %cst_254 = arith.constant 9.99999974E-6 : f32
    %684 = vector.broadcast %cst_254 : f32 to vector<16x1xf32>
    %685 = arith.addf %683, %684 : vector<16x1xf32>
    %686 = math.rsqrt %685 : vector<16x1xf32>
    %687 = vector.broadcast %686 : vector<16x1xf32> to vector<16x32xf32>
    %688 = arith.mulf %678, %687 : vector<16x32xf32>
    %689 = vector.broadcast %670 : vector<1x32xf32> to vector<16x32xf32>
    %690 = arith.mulf %688, %689 : vector<16x32xf32>
    %691 = vector.broadcast %672 : vector<1x32xf32> to vector<16x32xf32>
    %692 = arith.addf %690, %691 : vector<16x32xf32>
    %c1_255 = arith.constant 1 : index
    %c0_256 = arith.constant 0 : index
    %c0_257 = arith.constant 0 : index
    %693 = vector.load %arg16[%c1_255, %c0_256, %c0_257] : memref<2x32x96xbf16, #tpu.memory_space<vmem>>, vector<1x32x96xbf16>
    %694 = vector.shape_cast %693 : vector<1x32x96xbf16> to vector<32x96xbf16>
    %c1_258 = arith.constant 1 : index
    %c0_259 = arith.constant 0 : index
    %c0_260 = arith.constant 0 : index
    %695 = vector.load %arg17[%c1_258, %c0_259, %c0_260] : memref<2x1x96xf32, #tpu.memory_space<vmem>>, vector<1x1x96xf32>
    %696 = vector.shape_cast %695 : vector<1x1x96xf32> to vector<1x96xf32>
    %c1_261 = arith.constant 1 : index
    %c0_262 = arith.constant 0 : index
    %c0_263 = arith.constant 0 : index
    %697 = vector.load %arg18[%c1_261, %c0_262, %c0_263] : memref<2x32x32xbf16, #tpu.memory_space<vmem>>, vector<1x32x32xbf16>
    %698 = vector.shape_cast %697 : vector<1x32x32xbf16> to vector<32x32xbf16>
    %c1_264 = arith.constant 1 : index
    %c0_265 = arith.constant 0 : index
    %c0_266 = arith.constant 0 : index
    %699 = vector.load %arg19[%c1_264, %c0_265, %c0_266] : memref<2x1x32xf32, #tpu.memory_space<vmem>>, vector<1x1x32xf32>
    %700 = vector.shape_cast %699 : vector<1x1x32xf32> to vector<1x32xf32>
    %701 = arith.truncf %692 : vector<16x32xf32> to vector<16x32xbf16>
    %cst_267 = arith.constant dense<0.000000e+00> : vector<16x96xf32>
    %702 = tpu.matmul %701, %694, %cst_267 {dimension_numbers = #tpu.dot_dimension_numbers<[1], [0], [0], [1], [0, 0, 1, 1], [], []>} : vector<16x32xbf16>, vector<32x96xbf16>, vector<16x96xf32> -> vector<16x96xf32>
    %703 = vector.broadcast %696 : vector<1x96xf32> to vector<16x96xf32>
    %704 = arith.addf %702, %703 : vector<16x96xf32>
    %705 = vector.extract_strided_slice %704 {offsets = [0, 0], sizes = [16, 32], strides = [1, 1]} : vector<16x96xf32> to vector<16x32xf32>
    %706 = vector.extract_strided_slice %704 {offsets = [0, 32], sizes = [16, 32], strides = [1, 1]} : vector<16x96xf32> to vector<16x32xf32>
    %707 = vector.extract_strided_slice %704 {offsets = [0, 64], sizes = [16, 32], strides = [1, 1]} : vector<16x96xf32> to vector<16x32xf32>
    %708 = vector.extract_strided_slice %705 {offsets = [0, 0], sizes = [16, 8], strides = [1, 1]} : vector<16x32xf32> to vector<16x8xf32>
    %709 = vector.shape_cast %708 : vector<16x8xf32> to vector<2x8x8xf32>
    %710 = vector.extract_strided_slice %706 {offsets = [0, 0], sizes = [16, 8], strides = [1, 1]} : vector<16x32xf32> to vector<16x8xf32>
    %711 = vector.shape_cast %710 : vector<16x8xf32> to vector<2x8x8xf32>
    %712 = vector.extract_strided_slice %707 {offsets = [0, 0], sizes = [16, 8], strides = [1, 1]} : vector<16x32xf32> to vector<16x8xf32>
    %713 = vector.shape_cast %712 : vector<16x8xf32> to vector<2x8x8xf32>
    %714 = arith.truncf %709 : vector<2x8x8xf32> to vector<2x8x8xbf16>
    %715 = arith.truncf %711 : vector<2x8x8xf32> to vector<2x8x8xbf16>
    "tpu.trace_start"() <{level = 10 : i32, message = "bqf,bkf->bqk"}> : () -> ()
    %cst_268 = arith.constant dense<0.000000e+00> : vector<2x8x8xf32>
    %716 = tpu.matmul %714, %715, %cst_268 {dimension_numbers = #tpu.dot_dimension_numbers<[2], [2], [1], [1], [0, 0, 0, 1, 1, 1], [0], [0]>} : vector<2x8x8xbf16>, vector<2x8x8xbf16>, vector<2x8x8xf32> -> vector<2x8x8xf32>
    "tpu.trace_stop"() : () -> ()
    %cst_269 = arith.constant dense<0xFF800000> : vector<2x8xf32>
    %717 = vector.multi_reduction <maximumf>, %716, %cst_269 [2] : vector<2x8x8xf32> to vector<2x8xf32>
    %718 = vector.shape_cast %717 : vector<2x8xf32> to vector<2x8x1xf32>
    %719 = vector.broadcast %718 : vector<2x8x1xf32> to vector<2x8x8xf32>
    %720 = arith.subf %716, %719 : vector<2x8x8xf32>
    %721 = math.exp %720 : vector<2x8x8xf32>
    %cst_270 = arith.constant dense<0.000000e+00> : vector<2x8xf32>
    %722 = vector.multi_reduction <add>, %721, %cst_270 [2] : vector<2x8x8xf32> to vector<2x8xf32>
    %723 = vector.shape_cast %722 : vector<2x8xf32> to vector<2x8x1xf32>
    %724 = tpu.reciprocal %723 : vector<2x8x1xf32> -> vector<2x8x1xf32>
    %725 = vector.broadcast %724 : vector<2x8x1xf32> to vector<2x8x8xf32>
    %726 = arith.mulf %721, %725 : vector<2x8x8xf32>
    %727 = arith.truncf %726 : vector<2x8x8xf32> to vector<2x8x8xbf16>
    %728 = arith.truncf %713 : vector<2x8x8xf32> to vector<2x8x8xbf16>
    "tpu.trace_start"() <{level = 10 : i32, message = "bqk,bkf->bqf"}> : () -> ()
    %cst_271 = arith.constant dense<0.000000e+00> : vector<2x8x8xf32>
    %729 = tpu.matmul %727, %728, %cst_271 {dimension_numbers = #tpu.dot_dimension_numbers<[2], [1], [1], [2], [0, 0, 0, 1, 1, 2], [0], [0]>} : vector<2x8x8xbf16>, vector<2x8x8xbf16>, vector<2x8x8xf32> -> vector<2x8x8xf32>
    "tpu.trace_stop"() : () -> ()
    %730 = vector.shape_cast %729 : vector<2x8x8xf32> to vector<16x8xf32>
    %731 = vector.extract_strided_slice %705 {offsets = [0, 8], sizes = [16, 8], strides = [1, 1]} : vector<16x32xf32> to vector<16x8xf32>
    %732 = vector.shape_cast %731 : vector<16x8xf32> to vector<2x8x8xf32>
    %733 = vector.extract_strided_slice %706 {offsets = [0, 8], sizes = [16, 8], strides = [1, 1]} : vector<16x32xf32> to vector<16x8xf32>
    %734 = vector.shape_cast %733 : vector<16x8xf32> to vector<2x8x8xf32>
    %735 = vector.extract_strided_slice %707 {offsets = [0, 8], sizes = [16, 8], strides = [1, 1]} : vector<16x32xf32> to vector<16x8xf32>
    %736 = vector.shape_cast %735 : vector<16x8xf32> to vector<2x8x8xf32>
    %737 = arith.truncf %732 : vector<2x8x8xf32> to vector<2x8x8xbf16>
    %738 = arith.truncf %734 : vector<2x8x8xf32> to vector<2x8x8xbf16>
    "tpu.trace_start"() <{level = 10 : i32, message = "bqf,bkf->bqk"}> : () -> ()
    %cst_272 = arith.constant dense<0.000000e+00> : vector<2x8x8xf32>
    %739 = tpu.matmul %737, %738, %cst_272 {dimension_numbers = #tpu.dot_dimension_numbers<[2], [2], [1], [1], [0, 0, 0, 1, 1, 1], [0], [0]>} : vector<2x8x8xbf16>, vector<2x8x8xbf16>, vector<2x8x8xf32> -> vector<2x8x8xf32>
    "tpu.trace_stop"() : () -> ()
    %cst_273 = arith.constant dense<0xFF800000> : vector<2x8xf32>
    %740 = vector.multi_reduction <maximumf>, %739, %cst_273 [2] : vector<2x8x8xf32> to vector<2x8xf32>
    %741 = vector.shape_cast %740 : vector<2x8xf32> to vector<2x8x1xf32>
    %742 = vector.broadcast %741 : vector<2x8x1xf32> to vector<2x8x8xf32>
    %743 = arith.subf %739, %742 : vector<2x8x8xf32>
    %744 = math.exp %743 : vector<2x8x8xf32>
    %cst_274 = arith.constant dense<0.000000e+00> : vector<2x8xf32>
    %745 = vector.multi_reduction <add>, %744, %cst_274 [2] : vector<2x8x8xf32> to vector<2x8xf32>
    %746 = vector.shape_cast %745 : vector<2x8xf32> to vector<2x8x1xf32>
    %747 = tpu.reciprocal %746 : vector<2x8x1xf32> -> vector<2x8x1xf32>
    %748 = vector.broadcast %747 : vector<2x8x1xf32> to vector<2x8x8xf32>
    %749 = arith.mulf %744, %748 : vector<2x8x8xf32>
    %750 = arith.truncf %749 : vector<2x8x8xf32> to vector<2x8x8xbf16>
    %751 = arith.truncf %736 : vector<2x8x8xf32> to vector<2x8x8xbf16>
    "tpu.trace_start"() <{level = 10 : i32, message = "bqk,bkf->bqf"}> : () -> ()
    %cst_275 = arith.constant dense<0.000000e+00> : vector<2x8x8xf32>
    %752 = tpu.matmul %750, %751, %cst_275 {dimension_numbers = #tpu.dot_dimension_numbers<[2], [1], [1], [2], [0, 0, 0, 1, 1, 2], [0], [0]>} : vector<2x8x8xbf16>, vector<2x8x8xbf16>, vector<2x8x8xf32> -> vector<2x8x8xf32>
    "tpu.trace_stop"() : () -> ()
    %753 = vector.shape_cast %752 : vector<2x8x8xf32> to vector<16x8xf32>
    %754 = vector.extract_strided_slice %705 {offsets = [0, 16], sizes = [16, 8], strides = [1, 1]} : vector<16x32xf32> to vector<16x8xf32>
    %755 = vector.shape_cast %754 : vector<16x8xf32> to vector<2x8x8xf32>
    %756 = vector.extract_strided_slice %706 {offsets = [0, 16], sizes = [16, 8], strides = [1, 1]} : vector<16x32xf32> to vector<16x8xf32>
    %757 = vector.shape_cast %756 : vector<16x8xf32> to vector<2x8x8xf32>
    %758 = vector.extract_strided_slice %707 {offsets = [0, 16], sizes = [16, 8], strides = [1, 1]} : vector<16x32xf32> to vector<16x8xf32>
    %759 = vector.shape_cast %758 : vector<16x8xf32> to vector<2x8x8xf32>
    %760 = arith.truncf %755 : vector<2x8x8xf32> to vector<2x8x8xbf16>
    %761 = arith.truncf %757 : vector<2x8x8xf32> to vector<2x8x8xbf16>
    "tpu.trace_start"() <{level = 10 : i32, message = "bqf,bkf->bqk"}> : () -> ()
    %cst_276 = arith.constant dense<0.000000e+00> : vector<2x8x8xf32>
    %762 = tpu.matmul %760, %761, %cst_276 {dimension_numbers = #tpu.dot_dimension_numbers<[2], [2], [1], [1], [0, 0, 0, 1, 1, 1], [0], [0]>} : vector<2x8x8xbf16>, vector<2x8x8xbf16>, vector<2x8x8xf32> -> vector<2x8x8xf32>
    "tpu.trace_stop"() : () -> ()
    %cst_277 = arith.constant dense<0xFF800000> : vector<2x8xf32>
    %763 = vector.multi_reduction <maximumf>, %762, %cst_277 [2] : vector<2x8x8xf32> to vector<2x8xf32>
    %764 = vector.shape_cast %763 : vector<2x8xf32> to vector<2x8x1xf32>
    %765 = vector.broadcast %764 : vector<2x8x1xf32> to vector<2x8x8xf32>
    %766 = arith.subf %762, %765 : vector<2x8x8xf32>
    %767 = math.exp %766 : vector<2x8x8xf32>
    %cst_278 = arith.constant dense<0.000000e+00> : vector<2x8xf32>
    %768 = vector.multi_reduction <add>, %767, %cst_278 [2] : vector<2x8x8xf32> to vector<2x8xf32>
    %769 = vector.shape_cast %768 : vector<2x8xf32> to vector<2x8x1xf32>
    %770 = tpu.reciprocal %769 : vector<2x8x1xf32> -> vector<2x8x1xf32>
    %771 = vector.broadcast %770 : vector<2x8x1xf32> to vector<2x8x8xf32>
    %772 = arith.mulf %767, %771 : vector<2x8x8xf32>
    %773 = arith.truncf %772 : vector<2x8x8xf32> to vector<2x8x8xbf16>
    %774 = arith.truncf %759 : vector<2x8x8xf32> to vector<2x8x8xbf16>
    "tpu.trace_start"() <{level = 10 : i32, message = "bqk,bkf->bqf"}> : () -> ()
    %cst_279 = arith.constant dense<0.000000e+00> : vector<2x8x8xf32>
    %775 = tpu.matmul %773, %774, %cst_279 {dimension_numbers = #tpu.dot_dimension_numbers<[2], [1], [1], [2], [0, 0, 0, 1, 1, 2], [0], [0]>} : vector<2x8x8xbf16>, vector<2x8x8xbf16>, vector<2x8x8xf32> -> vector<2x8x8xf32>
    "tpu.trace_stop"() : () -> ()
    %776 = vector.shape_cast %775 : vector<2x8x8xf32> to vector<16x8xf32>
    %777 = vector.extract_strided_slice %705 {offsets = [0, 24], sizes = [16, 8], strides = [1, 1]} : vector<16x32xf32> to vector<16x8xf32>
    %778 = vector.shape_cast %777 : vector<16x8xf32> to vector<2x8x8xf32>
    %779 = vector.extract_strided_slice %706 {offsets = [0, 24], sizes = [16, 8], strides = [1, 1]} : vector<16x32xf32> to vector<16x8xf32>
    %780 = vector.shape_cast %779 : vector<16x8xf32> to vector<2x8x8xf32>
    %781 = vector.extract_strided_slice %707 {offsets = [0, 24], sizes = [16, 8], strides = [1, 1]} : vector<16x32xf32> to vector<16x8xf32>
    %782 = vector.shape_cast %781 : vector<16x8xf32> to vector<2x8x8xf32>
    %783 = arith.truncf %778 : vector<2x8x8xf32> to vector<2x8x8xbf16>
    %784 = arith.truncf %780 : vector<2x8x8xf32> to vector<2x8x8xbf16>
    "tpu.trace_start"() <{level = 10 : i32, message = "bqf,bkf->bqk"}> : () -> ()
    %cst_280 = arith.constant dense<0.000000e+00> : vector<2x8x8xf32>
    %785 = tpu.matmul %783, %784, %cst_280 {dimension_numbers = #tpu.dot_dimension_numbers<[2], [2], [1], [1], [0, 0, 0, 1, 1, 1], [0], [0]>} : vector<2x8x8xbf16>, vector<2x8x8xbf16>, vector<2x8x8xf32> -> vector<2x8x8xf32>
    "tpu.trace_stop"() : () -> ()
    %cst_281 = arith.constant dense<0xFF800000> : vector<2x8xf32>
    %786 = vector.multi_reduction <maximumf>, %785, %cst_281 [2] : vector<2x8x8xf32> to vector<2x8xf32>
    %787 = vector.shape_cast %786 : vector<2x8xf32> to vector<2x8x1xf32>
    %788 = vector.broadcast %787 : vector<2x8x1xf32> to vector<2x8x8xf32>
    %789 = arith.subf %785, %788 : vector<2x8x8xf32>
    %790 = math.exp %789 : vector<2x8x8xf32>
    %cst_282 = arith.constant dense<0.000000e+00> : vector<2x8xf32>
    %791 = vector.multi_reduction <add>, %790, %cst_282 [2] : vector<2x8x8xf32> to vector<2x8xf32>
    %792 = vector.shape_cast %791 : vector<2x8xf32> to vector<2x8x1xf32>
    %793 = tpu.reciprocal %792 : vector<2x8x1xf32> -> vector<2x8x1xf32>
    %794 = vector.broadcast %793 : vector<2x8x1xf32> to vector<2x8x8xf32>
    %795 = arith.mulf %790, %794 : vector<2x8x8xf32>
    %796 = arith.truncf %795 : vector<2x8x8xf32> to vector<2x8x8xbf16>
    %797 = arith.truncf %782 : vector<2x8x8xf32> to vector<2x8x8xbf16>
    "tpu.trace_start"() <{level = 10 : i32, message = "bqk,bkf->bqf"}> : () -> ()
    %cst_283 = arith.constant dense<0.000000e+00> : vector<2x8x8xf32>
    %798 = tpu.matmul %796, %797, %cst_283 {dimension_numbers = #tpu.dot_dimension_numbers<[2], [1], [1], [2], [0, 0, 0, 1, 1, 2], [0], [0]>} : vector<2x8x8xbf16>, vector<2x8x8xbf16>, vector<2x8x8xf32> -> vector<2x8x8xf32>
    "tpu.trace_stop"() : () -> ()
    %799 = vector.shape_cast %798 : vector<2x8x8xf32> to vector<16x8xf32>
    %800 = tpu.concatenate %730, %753, %776, %799 in 1 : vector<16x8xf32>, vector<16x8xf32>, vector<16x8xf32>, vector<16x8xf32> -> vector<16x32xf32>
    %801 = arith.truncf %800 : vector<16x32xf32> to vector<16x32xbf16>
    %cst_284 = arith.constant dense<0.000000e+00> : vector<16x32xf32>
    %802 = tpu.matmul %801, %698, %cst_284 {dimension_numbers = #tpu.dot_dimension_numbers<[1], [0], [0], [1], [0, 0, 1, 1], [], []>} : vector<16x32xbf16>, vector<32x32xbf16>, vector<16x32xf32> -> vector<16x32xf32>
    %803 = vector.broadcast %700 : vector<1x32xf32> to vector<16x32xf32>
    %804 = arith.addf %802, %803 : vector<16x32xf32>
    %805 = arith.addf %692, %804 : vector<16x32xf32>
    %c1_285 = arith.constant 1 : index
    %c0_286 = arith.constant 0 : index
    %c0_287 = arith.constant 0 : index
    %806 = vector.load %arg30[%c1_285, %c0_286, %c0_287] : memref<2x1x32xf32, #tpu.memory_space<vmem>>, vector<1x1x32xf32>
    %807 = vector.shape_cast %806 : vector<1x1x32xf32> to vector<1x32xf32>
    %c1_288 = arith.constant 1 : index
    %c0_289 = arith.constant 0 : index
    %c0_290 = arith.constant 0 : index
    %808 = vector.load %arg31[%c1_288, %c0_289, %c0_290] : memref<2x1x32xf32, #tpu.memory_space<vmem>>, vector<1x1x32xf32>
    %809 = vector.shape_cast %808 : vector<1x1x32xf32> to vector<1x32xf32>
    %cst_291 = arith.constant dense<0.000000e+00> : vector<16xf32>
    %810 = vector.multi_reduction <add>, %805, %cst_291 [1] : vector<16x32xf32> to vector<16xf32>
    %811 = vector.shape_cast %810 : vector<16xf32> to vector<16x1xf32>
    %cst_292 = arith.constant 3.200000e+01 : f32
    %812 = vector.broadcast %cst_292 : f32 to vector<16x1xf32>
    %813 = arith.divf %811, %812 : vector<16x1xf32>
    %814 = vector.broadcast %813 : vector<16x1xf32> to vector<16x32xf32>
    %815 = arith.subf %805, %814 : vector<16x32xf32>
    %816 = arith.mulf %815, %815 : vector<16x32xf32>
    %cst_293 = arith.constant dense<0.000000e+00> : vector<16xf32>
    %817 = vector.multi_reduction <add>, %816, %cst_293 [1] : vector<16x32xf32> to vector<16xf32>
    %818 = vector.shape_cast %817 : vector<16xf32> to vector<16x1xf32>
    %cst_294 = arith.constant 3.200000e+01 : f32
    %819 = vector.broadcast %cst_294 : f32 to vector<16x1xf32>
    %820 = arith.divf %818, %819 : vector<16x1xf32>
    %cst_295 = arith.constant 9.99999974E-6 : f32
    %821 = vector.broadcast %cst_295 : f32 to vector<16x1xf32>
    %822 = arith.addf %820, %821 : vector<16x1xf32>
    %823 = math.rsqrt %822 : vector<16x1xf32>
    %824 = vector.broadcast %823 : vector<16x1xf32> to vector<16x32xf32>
    %825 = arith.mulf %815, %824 : vector<16x32xf32>
    %826 = vector.broadcast %807 : vector<1x32xf32> to vector<16x32xf32>
    %827 = arith.mulf %825, %826 : vector<16x32xf32>
    %828 = vector.broadcast %809 : vector<1x32xf32> to vector<16x32xf32>
    %829 = arith.addf %827, %828 : vector<16x32xf32>
    %c1_296 = arith.constant 1 : index
    %c0_297 = arith.constant 0 : index
    %c0_298 = arith.constant 0 : index
    %830 = vector.load %arg20[%c1_296, %c0_297, %c0_298] : memref<2x32x32xbf16, #tpu.memory_space<vmem>>, vector<1x32x32xbf16>
    %831 = vector.shape_cast %830 : vector<1x32x32xbf16> to vector<32x32xbf16>
    %c1_299 = arith.constant 1 : index
    %c0_300 = arith.constant 0 : index
    %c0_301 = arith.constant 0 : index
    %832 = vector.load %arg21[%c1_299, %c0_300, %c0_301] : memref<2x1x32xf32, #tpu.memory_space<vmem>>, vector<1x1x32xf32>
    %833 = vector.shape_cast %832 : vector<1x1x32xf32> to vector<1x32xf32>
    %c1_302 = arith.constant 1 : index
    %c0_303 = arith.constant 0 : index
    %c0_304 = arith.constant 0 : index
    %834 = vector.load %arg22[%c1_302, %c0_303, %c0_304] : memref<2x32x64xbf16, #tpu.memory_space<vmem>>, vector<1x32x64xbf16>
    %835 = vector.shape_cast %834 : vector<1x32x64xbf16> to vector<32x64xbf16>
    %c1_305 = arith.constant 1 : index
    %c0_306 = arith.constant 0 : index
    %c0_307 = arith.constant 0 : index
    %836 = vector.load %arg23[%c1_305, %c0_306, %c0_307] : memref<2x1x64xf32, #tpu.memory_space<vmem>>, vector<1x1x64xf32>
    %837 = vector.shape_cast %836 : vector<1x1x64xf32> to vector<1x64xf32>
    %c1_308 = arith.constant 1 : index
    %c0_309 = arith.constant 0 : index
    %c0_310 = arith.constant 0 : index
    %838 = vector.load %arg24[%c1_308, %c0_309, %c0_310] : memref<2x32x32xbf16, #tpu.memory_space<vmem>>, vector<1x32x32xbf16>
    %839 = vector.shape_cast %838 : vector<1x32x32xbf16> to vector<32x32xbf16>
    %c1_311 = arith.constant 1 : index
    %c0_312 = arith.constant 0 : index
    %c0_313 = arith.constant 0 : index
    %840 = vector.load %arg25[%c1_311, %c0_312, %c0_313] : memref<2x1x32xf32, #tpu.memory_space<vmem>>, vector<1x1x32xf32>
    %841 = vector.shape_cast %840 : vector<1x1x32xf32> to vector<1x32xf32>
    %842 = arith.truncf %829 : vector<16x32xf32> to vector<16x32xbf16>
    %cst_314 = arith.constant dense<0.000000e+00> : vector<16x32xf32>
    %843 = tpu.matmul %842, %831, %cst_314 {dimension_numbers = #tpu.dot_dimension_numbers<[1], [0], [0], [1], [0, 0, 1, 1], [], []>} : vector<16x32xbf16>, vector<32x32xbf16>, vector<16x32xf32> -> vector<16x32xf32>
    %844 = vector.broadcast %833 : vector<1x32xf32> to vector<16x32xf32>
    %845 = arith.addf %843, %844 : vector<16x32xf32>
    %846 = arith.truncf %364 : vector<16x32xf32> to vector<16x32xbf16>
    %cst_315 = arith.constant dense<0.000000e+00> : vector<16x64xf32>
    %847 = tpu.matmul %846, %835, %cst_315 {dimension_numbers = #tpu.dot_dimension_numbers<[1], [0], [0], [1], [0, 0, 1, 1], [], []>} : vector<16x32xbf16>, vector<32x64xbf16>, vector<16x64xf32> -> vector<16x64xf32>
    %848 = vector.broadcast %837 : vector<1x64xf32> to vector<16x64xf32>
    %849 = arith.addf %847, %848 : vector<16x64xf32>
    %850 = vector.extract_strided_slice %849 {offsets = [0, 0], sizes = [16, 32], strides = [1, 1]} : vector<16x64xf32> to vector<16x32xf32>
    %851 = vector.extract_strided_slice %849 {offsets = [0, 32], sizes = [16, 32], strides = [1, 1]} : vector<16x64xf32> to vector<16x32xf32>
    %852 = vector.extract_strided_slice %845 {offsets = [0, 0], sizes = [16, 8], strides = [1, 1]} : vector<16x32xf32> to vector<16x8xf32>
    %853 = vector.shape_cast %852 : vector<16x8xf32> to vector<2x8x8xf32>
    %854 = vector.extract_strided_slice %850 {offsets = [0, 0], sizes = [16, 8], strides = [1, 1]} : vector<16x32xf32> to vector<16x8xf32>
    %855 = vector.shape_cast %854 : vector<16x8xf32> to vector<2x8x8xf32>
    %856 = vector.extract_strided_slice %851 {offsets = [0, 0], sizes = [16, 8], strides = [1, 1]} : vector<16x32xf32> to vector<16x8xf32>
    %857 = vector.shape_cast %856 : vector<16x8xf32> to vector<2x8x8xf32>
    %858 = arith.truncf %853 : vector<2x8x8xf32> to vector<2x8x8xbf16>
    %859 = arith.truncf %855 : vector<2x8x8xf32> to vector<2x8x8xbf16>
    "tpu.trace_start"() <{level = 10 : i32, message = "bqf,bkf->bqk"}> : () -> ()
    %cst_316 = arith.constant dense<0.000000e+00> : vector<2x8x8xf32>
    %860 = tpu.matmul %858, %859, %cst_316 {dimension_numbers = #tpu.dot_dimension_numbers<[2], [2], [1], [1], [0, 0, 0, 1, 1, 1], [0], [0]>} : vector<2x8x8xbf16>, vector<2x8x8xbf16>, vector<2x8x8xf32> -> vector<2x8x8xf32>
    "tpu.trace_stop"() : () -> ()
    %cst_317 = arith.constant dense<0xFF800000> : vector<2x8xf32>
    %861 = vector.multi_reduction <maximumf>, %860, %cst_317 [2] : vector<2x8x8xf32> to vector<2x8xf32>
    %862 = vector.shape_cast %861 : vector<2x8xf32> to vector<2x8x1xf32>
    %863 = vector.broadcast %862 : vector<2x8x1xf32> to vector<2x8x8xf32>
    %864 = arith.subf %860, %863 : vector<2x8x8xf32>
    %865 = math.exp %864 : vector<2x8x8xf32>
    %cst_318 = arith.constant dense<0.000000e+00> : vector<2x8xf32>
    %866 = vector.multi_reduction <add>, %865, %cst_318 [2] : vector<2x8x8xf32> to vector<2x8xf32>
    %867 = vector.shape_cast %866 : vector<2x8xf32> to vector<2x8x1xf32>
    %868 = tpu.reciprocal %867 : vector<2x8x1xf32> -> vector<2x8x1xf32>
    %869 = vector.broadcast %868 : vector<2x8x1xf32> to vector<2x8x8xf32>
    %870 = arith.mulf %865, %869 : vector<2x8x8xf32>
    %871 = arith.truncf %870 : vector<2x8x8xf32> to vector<2x8x8xbf16>
    %872 = arith.truncf %857 : vector<2x8x8xf32> to vector<2x8x8xbf16>
    "tpu.trace_start"() <{level = 10 : i32, message = "bqk,bkf->bqf"}> : () -> ()
    %cst_319 = arith.constant dense<0.000000e+00> : vector<2x8x8xf32>
    %873 = tpu.matmul %871, %872, %cst_319 {dimension_numbers = #tpu.dot_dimension_numbers<[2], [1], [1], [2], [0, 0, 0, 1, 1, 2], [0], [0]>} : vector<2x8x8xbf16>, vector<2x8x8xbf16>, vector<2x8x8xf32> -> vector<2x8x8xf32>
    "tpu.trace_stop"() : () -> ()
    %874 = vector.shape_cast %873 : vector<2x8x8xf32> to vector<16x8xf32>
    %875 = vector.extract_strided_slice %845 {offsets = [0, 8], sizes = [16, 8], strides = [1, 1]} : vector<16x32xf32> to vector<16x8xf32>
    %876 = vector.shape_cast %875 : vector<16x8xf32> to vector<2x8x8xf32>
    %877 = vector.extract_strided_slice %850 {offsets = [0, 8], sizes = [16, 8], strides = [1, 1]} : vector<16x32xf32> to vector<16x8xf32>
    %878 = vector.shape_cast %877 : vector<16x8xf32> to vector<2x8x8xf32>
    %879 = vector.extract_strided_slice %851 {offsets = [0, 8], sizes = [16, 8], strides = [1, 1]} : vector<16x32xf32> to vector<16x8xf32>
    %880 = vector.shape_cast %879 : vector<16x8xf32> to vector<2x8x8xf32>
    %881 = arith.truncf %876 : vector<2x8x8xf32> to vector<2x8x8xbf16>
    %882 = arith.truncf %878 : vector<2x8x8xf32> to vector<2x8x8xbf16>
    "tpu.trace_start"() <{level = 10 : i32, message = "bqf,bkf->bqk"}> : () -> ()
    %cst_320 = arith.constant dense<0.000000e+00> : vector<2x8x8xf32>
    %883 = tpu.matmul %881, %882, %cst_320 {dimension_numbers = #tpu.dot_dimension_numbers<[2], [2], [1], [1], [0, 0, 0, 1, 1, 1], [0], [0]>} : vector<2x8x8xbf16>, vector<2x8x8xbf16>, vector<2x8x8xf32> -> vector<2x8x8xf32>
    "tpu.trace_stop"() : () -> ()
    %cst_321 = arith.constant dense<0xFF800000> : vector<2x8xf32>
    %884 = vector.multi_reduction <maximumf>, %883, %cst_321 [2] : vector<2x8x8xf32> to vector<2x8xf32>
    %885 = vector.shape_cast %884 : vector<2x8xf32> to vector<2x8x1xf32>
    %886 = vector.broadcast %885 : vector<2x8x1xf32> to vector<2x8x8xf32>
    %887 = arith.subf %883, %886 : vector<2x8x8xf32>
    %888 = math.exp %887 : vector<2x8x8xf32>
    %cst_322 = arith.constant dense<0.000000e+00> : vector<2x8xf32>
    %889 = vector.multi_reduction <add>, %888, %cst_322 [2] : vector<2x8x8xf32> to vector<2x8xf32>
    %890 = vector.shape_cast %889 : vector<2x8xf32> to vector<2x8x1xf32>
    %891 = tpu.reciprocal %890 : vector<2x8x1xf32> -> vector<2x8x1xf32>
    %892 = vector.broadcast %891 : vector<2x8x1xf32> to vector<2x8x8xf32>
    %893 = arith.mulf %888, %892 : vector<2x8x8xf32>
    %894 = arith.truncf %893 : vector<2x8x8xf32> to vector<2x8x8xbf16>
    %895 = arith.truncf %880 : vector<2x8x8xf32> to vector<2x8x8xbf16>
    "tpu.trace_start"() <{level = 10 : i32, message = "bqk,bkf->bqf"}> : () -> ()
    %cst_323 = arith.constant dense<0.000000e+00> : vector<2x8x8xf32>
    %896 = tpu.matmul %894, %895, %cst_323 {dimension_numbers = #tpu.dot_dimension_numbers<[2], [1], [1], [2], [0, 0, 0, 1, 1, 2], [0], [0]>} : vector<2x8x8xbf16>, vector<2x8x8xbf16>, vector<2x8x8xf32> -> vector<2x8x8xf32>
    "tpu.trace_stop"() : () -> ()
    %897 = vector.shape_cast %896 : vector<2x8x8xf32> to vector<16x8xf32>
    %898 = vector.extract_strided_slice %845 {offsets = [0, 16], sizes = [16, 8], strides = [1, 1]} : vector<16x32xf32> to vector<16x8xf32>
    %899 = vector.shape_cast %898 : vector<16x8xf32> to vector<2x8x8xf32>
    %900 = vector.extract_strided_slice %850 {offsets = [0, 16], sizes = [16, 8], strides = [1, 1]} : vector<16x32xf32> to vector<16x8xf32>
    %901 = vector.shape_cast %900 : vector<16x8xf32> to vector<2x8x8xf32>
    %902 = vector.extract_strided_slice %851 {offsets = [0, 16], sizes = [16, 8], strides = [1, 1]} : vector<16x32xf32> to vector<16x8xf32>
    %903 = vector.shape_cast %902 : vector<16x8xf32> to vector<2x8x8xf32>
    %904 = arith.truncf %899 : vector<2x8x8xf32> to vector<2x8x8xbf16>
    %905 = arith.truncf %901 : vector<2x8x8xf32> to vector<2x8x8xbf16>
    "tpu.trace_start"() <{level = 10 : i32, message = "bqf,bkf->bqk"}> : () -> ()
    %cst_324 = arith.constant dense<0.000000e+00> : vector<2x8x8xf32>
    %906 = tpu.matmul %904, %905, %cst_324 {dimension_numbers = #tpu.dot_dimension_numbers<[2], [2], [1], [1], [0, 0, 0, 1, 1, 1], [0], [0]>} : vector<2x8x8xbf16>, vector<2x8x8xbf16>, vector<2x8x8xf32> -> vector<2x8x8xf32>
    "tpu.trace_stop"() : () -> ()
    %cst_325 = arith.constant dense<0xFF800000> : vector<2x8xf32>
    %907 = vector.multi_reduction <maximumf>, %906, %cst_325 [2] : vector<2x8x8xf32> to vector<2x8xf32>
    %908 = vector.shape_cast %907 : vector<2x8xf32> to vector<2x8x1xf32>
    %909 = vector.broadcast %908 : vector<2x8x1xf32> to vector<2x8x8xf32>
    %910 = arith.subf %906, %909 : vector<2x8x8xf32>
    %911 = math.exp %910 : vector<2x8x8xf32>
    %cst_326 = arith.constant dense<0.000000e+00> : vector<2x8xf32>
    %912 = vector.multi_reduction <add>, %911, %cst_326 [2] : vector<2x8x8xf32> to vector<2x8xf32>
    %913 = vector.shape_cast %912 : vector<2x8xf32> to vector<2x8x1xf32>
    %914 = tpu.reciprocal %913 : vector<2x8x1xf32> -> vector<2x8x1xf32>
    %915 = vector.broadcast %914 : vector<2x8x1xf32> to vector<2x8x8xf32>
    %916 = arith.mulf %911, %915 : vector<2x8x8xf32>
    %917 = arith.truncf %916 : vector<2x8x8xf32> to vector<2x8x8xbf16>
    %918 = arith.truncf %903 : vector<2x8x8xf32> to vector<2x8x8xbf16>
    "tpu.trace_start"() <{level = 10 : i32, message = "bqk,bkf->bqf"}> : () -> ()
    %cst_327 = arith.constant dense<0.000000e+00> : vector<2x8x8xf32>
    %919 = tpu.matmul %917, %918, %cst_327 {dimension_numbers = #tpu.dot_dimension_numbers<[2], [1], [1], [2], [0, 0, 0, 1, 1, 2], [0], [0]>} : vector<2x8x8xbf16>, vector<2x8x8xbf16>, vector<2x8x8xf32> -> vector<2x8x8xf32>
    "tpu.trace_stop"() : () -> ()
    %920 = vector.shape_cast %919 : vector<2x8x8xf32> to vector<16x8xf32>
    %921 = vector.extract_strided_slice %845 {offsets = [0, 24], sizes = [16, 8], strides = [1, 1]} : vector<16x32xf32> to vector<16x8xf32>
    %922 = vector.shape_cast %921 : vector<16x8xf32> to vector<2x8x8xf32>
    %923 = vector.extract_strided_slice %850 {offsets = [0, 24], sizes = [16, 8], strides = [1, 1]} : vector<16x32xf32> to vector<16x8xf32>
    %924 = vector.shape_cast %923 : vector<16x8xf32> to vector<2x8x8xf32>
    %925 = vector.extract_strided_slice %851 {offsets = [0, 24], sizes = [16, 8], strides = [1, 1]} : vector<16x32xf32> to vector<16x8xf32>
    %926 = vector.shape_cast %925 : vector<16x8xf32> to vector<2x8x8xf32>
    %927 = arith.truncf %922 : vector<2x8x8xf32> to vector<2x8x8xbf16>
    %928 = arith.truncf %924 : vector<2x8x8xf32> to vector<2x8x8xbf16>
    "tpu.trace_start"() <{level = 10 : i32, message = "bqf,bkf->bqk"}> : () -> ()
    %cst_328 = arith.constant dense<0.000000e+00> : vector<2x8x8xf32>
    %929 = tpu.matmul %927, %928, %cst_328 {dimension_numbers = #tpu.dot_dimension_numbers<[2], [2], [1], [1], [0, 0, 0, 1, 1, 1], [0], [0]>} : vector<2x8x8xbf16>, vector<2x8x8xbf16>, vector<2x8x8xf32> -> vector<2x8x8xf32>
    "tpu.trace_stop"() : () -> ()
    %cst_329 = arith.constant dense<0xFF800000> : vector<2x8xf32>
    %930 = vector.multi_reduction <maximumf>, %929, %cst_329 [2] : vector<2x8x8xf32> to vector<2x8xf32>
    %931 = vector.shape_cast %930 : vector<2x8xf32> to vector<2x8x1xf32>
    %932 = vector.broadcast %931 : vector<2x8x1xf32> to vector<2x8x8xf32>
    %933 = arith.subf %929, %932 : vector<2x8x8xf32>
    %934 = math.exp %933 : vector<2x8x8xf32>
    %cst_330 = arith.constant dense<0.000000e+00> : vector<2x8xf32>
    %935 = vector.multi_reduction <add>, %934, %cst_330 [2] : vector<2x8x8xf32> to vector<2x8xf32>
    %936 = vector.shape_cast %935 : vector<2x8xf32> to vector<2x8x1xf32>
    %937 = tpu.reciprocal %936 : vector<2x8x1xf32> -> vector<2x8x1xf32>
    %938 = vector.broadcast %937 : vector<2x8x1xf32> to vector<2x8x8xf32>
    %939 = arith.mulf %934, %938 : vector<2x8x8xf32>
    %940 = arith.truncf %939 : vector<2x8x8xf32> to vector<2x8x8xbf16>
    %941 = arith.truncf %926 : vector<2x8x8xf32> to vector<2x8x8xbf16>
    "tpu.trace_start"() <{level = 10 : i32, message = "bqk,bkf->bqf"}> : () -> ()
    %cst_331 = arith.constant dense<0.000000e+00> : vector<2x8x8xf32>
    %942 = tpu.matmul %940, %941, %cst_331 {dimension_numbers = #tpu.dot_dimension_numbers<[2], [1], [1], [2], [0, 0, 0, 1, 1, 2], [0], [0]>} : vector<2x8x8xbf16>, vector<2x8x8xbf16>, vector<2x8x8xf32> -> vector<2x8x8xf32>
    "tpu.trace_stop"() : () -> ()
    %943 = vector.shape_cast %942 : vector<2x8x8xf32> to vector<16x8xf32>
    %944 = tpu.concatenate %874, %897, %920, %943 in 1 : vector<16x8xf32>, vector<16x8xf32>, vector<16x8xf32>, vector<16x8xf32> -> vector<16x32xf32>
    %945 = arith.truncf %944 : vector<16x32xf32> to vector<16x32xbf16>
    %cst_332 = arith.constant dense<0.000000e+00> : vector<16x32xf32>
    %946 = tpu.matmul %945, %839, %cst_332 {dimension_numbers = #tpu.dot_dimension_numbers<[1], [0], [0], [1], [0, 0, 1, 1], [], []>} : vector<16x32xbf16>, vector<32x32xbf16>, vector<16x32xf32> -> vector<16x32xf32>
    %947 = vector.broadcast %841 : vector<1x32xf32> to vector<16x32xf32>
    %948 = arith.addf %946, %947 : vector<16x32xf32>
    %949 = arith.addf %829, %948 : vector<16x32xf32>
    %c1_333 = arith.constant 1 : index
    %c0_334 = arith.constant 0 : index
    %c0_335 = arith.constant 0 : index
    %950 = vector.load %arg32[%c1_333, %c0_334, %c0_335] : memref<2x1x32xf32, #tpu.memory_space<vmem>>, vector<1x1x32xf32>
    %951 = vector.shape_cast %950 : vector<1x1x32xf32> to vector<1x32xf32>
    %c1_336 = arith.constant 1 : index
    %c0_337 = arith.constant 0 : index
    %c0_338 = arith.constant 0 : index
    %952 = vector.load %arg33[%c1_336, %c0_337, %c0_338] : memref<2x1x32xf32, #tpu.memory_space<vmem>>, vector<1x1x32xf32>
    %953 = vector.shape_cast %952 : vector<1x1x32xf32> to vector<1x32xf32>
    %cst_339 = arith.constant dense<0.000000e+00> : vector<16xf32>
    %954 = vector.multi_reduction <add>, %949, %cst_339 [1] : vector<16x32xf32> to vector<16xf32>
    %955 = vector.shape_cast %954 : vector<16xf32> to vector<16x1xf32>
    %cst_340 = arith.constant 3.200000e+01 : f32
    %956 = vector.broadcast %cst_340 : f32 to vector<16x1xf32>
    %957 = arith.divf %955, %956 : vector<16x1xf32>
    %958 = vector.broadcast %957 : vector<16x1xf32> to vector<16x32xf32>
    %959 = arith.subf %949, %958 : vector<16x32xf32>
    %960 = arith.mulf %959, %959 : vector<16x32xf32>
    %cst_341 = arith.constant dense<0.000000e+00> : vector<16xf32>
    %961 = vector.multi_reduction <add>, %960, %cst_341 [1] : vector<16x32xf32> to vector<16xf32>
    %962 = vector.shape_cast %961 : vector<16xf32> to vector<16x1xf32>
    %cst_342 = arith.constant 3.200000e+01 : f32
    %963 = vector.broadcast %cst_342 : f32 to vector<16x1xf32>
    %964 = arith.divf %962, %963 : vector<16x1xf32>
    %cst_343 = arith.constant 9.99999974E-6 : f32
    %965 = vector.broadcast %cst_343 : f32 to vector<16x1xf32>
    %966 = arith.addf %964, %965 : vector<16x1xf32>
    %967 = math.rsqrt %966 : vector<16x1xf32>
    %968 = vector.broadcast %967 : vector<16x1xf32> to vector<16x32xf32>
    %969 = arith.mulf %959, %968 : vector<16x32xf32>
    %970 = vector.broadcast %951 : vector<1x32xf32> to vector<16x32xf32>
    %971 = arith.mulf %969, %970 : vector<16x32xf32>
    %972 = vector.broadcast %953 : vector<1x32xf32> to vector<16x32xf32>
    %973 = arith.addf %971, %972 : vector<16x32xf32>
    %c1_344 = arith.constant 1 : index
    %c0_345 = arith.constant 0 : index
    %c0_346 = arith.constant 0 : index
    %974 = vector.load %arg26[%c1_344, %c0_345, %c0_346] : memref<2x32x64xbf16, #tpu.memory_space<vmem>>, vector<1x32x64xbf16>
    %975 = vector.shape_cast %974 : vector<1x32x64xbf16> to vector<32x64xbf16>
    %c1_347 = arith.constant 1 : index
    %c0_348 = arith.constant 0 : index
    %c0_349 = arith.constant 0 : index
    %976 = vector.load %arg27[%c1_347, %c0_348, %c0_349] : memref<2x1x64xf32, #tpu.memory_space<vmem>>, vector<1x1x64xf32>
    %977 = vector.shape_cast %976 : vector<1x1x64xf32> to vector<1x64xf32>
    %c1_350 = arith.constant 1 : index
    %c0_351 = arith.constant 0 : index
    %c0_352 = arith.constant 0 : index
    %978 = vector.load %arg28[%c1_350, %c0_351, %c0_352] : memref<2x64x32xbf16, #tpu.memory_space<vmem>>, vector<1x64x32xbf16>
    %979 = vector.shape_cast %978 : vector<1x64x32xbf16> to vector<64x32xbf16>
    %c1_353 = arith.constant 1 : index
    %c0_354 = arith.constant 0 : index
    %c0_355 = arith.constant 0 : index
    %980 = vector.load %arg29[%c1_353, %c0_354, %c0_355] : memref<2x1x32xf32, #tpu.memory_space<vmem>>, vector<1x1x32xf32>
    %981 = vector.shape_cast %980 : vector<1x1x32xf32> to vector<1x32xf32>
    %982 = arith.truncf %973 : vector<16x32xf32> to vector<16x32xbf16>
    %cst_356 = arith.constant dense<0.000000e+00> : vector<16x64xf32>
    %983 = tpu.matmul %982, %975, %cst_356 {dimension_numbers = #tpu.dot_dimension_numbers<[1], [0], [0], [1], [0, 0, 1, 1], [], []>} : vector<16x32xbf16>, vector<32x64xbf16>, vector<16x64xf32> -> vector<16x64xf32>
    %984 = vector.broadcast %977 : vector<1x64xf32> to vector<16x64xf32>
    %985 = arith.addf %983, %984 : vector<16x64xf32>
    %cst_357 = arith.constant 0.000000e+00 : f32
    %986 = vector.broadcast %cst_357 : f32 to vector<16x64xf32>
    %987 = arith.maximumf %985, %986 : vector<16x64xf32>
    %988 = arith.truncf %987 : vector<16x64xf32> to vector<16x64xbf16>
    %cst_358 = arith.constant dense<0.000000e+00> : vector<16x32xf32>
    %989 = tpu.matmul %988, %979, %cst_358 {dimension_numbers = #tpu.dot_dimension_numbers<[1], [0], [0], [1], [0, 0, 1, 1], [], []>} : vector<16x64xbf16>, vector<64x32xbf16>, vector<16x32xf32> -> vector<16x32xf32>
    %990 = vector.broadcast %981 : vector<1x32xf32> to vector<16x32xf32>
    %991 = arith.addf %989, %990 : vector<16x32xf32>
    %992 = arith.addf %973, %991 : vector<16x32xf32>
    %c1_359 = arith.constant 1 : index
    %c0_360 = arith.constant 0 : index
    %c0_361 = arith.constant 0 : index
    %993 = vector.load %arg34[%c1_359, %c0_360, %c0_361] : memref<2x1x32xf32, #tpu.memory_space<vmem>>, vector<1x1x32xf32>
    %994 = vector.shape_cast %993 : vector<1x1x32xf32> to vector<1x32xf32>
    %c1_362 = arith.constant 1 : index
    %c0_363 = arith.constant 0 : index
    %c0_364 = arith.constant 0 : index
    %995 = vector.load %arg35[%c1_362, %c0_363, %c0_364] : memref<2x1x32xf32, #tpu.memory_space<vmem>>, vector<1x1x32xf32>
    %996 = vector.shape_cast %995 : vector<1x1x32xf32> to vector<1x32xf32>
    %cst_365 = arith.constant dense<0.000000e+00> : vector<16xf32>
    %997 = vector.multi_reduction <add>, %992, %cst_365 [1] : vector<16x32xf32> to vector<16xf32>
    %998 = vector.shape_cast %997 : vector<16xf32> to vector<16x1xf32>
    %cst_366 = arith.constant 3.200000e+01 : f32
    %999 = vector.broadcast %cst_366 : f32 to vector<16x1xf32>
    %1000 = arith.divf %998, %999 : vector<16x1xf32>
    %1001 = vector.broadcast %1000 : vector<16x1xf32> to vector<16x32xf32>
    %1002 = arith.subf %992, %1001 : vector<16x32xf32>
    %1003 = arith.mulf %1002, %1002 : vector<16x32xf32>
    %cst_367 = arith.constant dense<0.000000e+00> : vector<16xf32>
    %1004 = vector.multi_reduction <add>, %1003, %cst_367 [1] : vector<16x32xf32> to vector<16xf32>
    %1005 = vector.shape_cast %1004 : vector<16xf32> to vector<16x1xf32>
    %cst_368 = arith.constant 3.200000e+01 : f32
    %1006 = vector.broadcast %cst_368 : f32 to vector<16x1xf32>
    %1007 = arith.divf %1005, %1006 : vector<16x1xf32>
    %cst_369 = arith.constant 9.99999974E-6 : f32
    %1008 = vector.broadcast %cst_369 : f32 to vector<16x1xf32>
    %1009 = arith.addf %1007, %1008 : vector<16x1xf32>
    %1010 = math.rsqrt %1009 : vector<16x1xf32>
    %1011 = vector.broadcast %1010 : vector<16x1xf32> to vector<16x32xf32>
    %1012 = arith.mulf %1002, %1011 : vector<16x32xf32>
    %1013 = vector.broadcast %994 : vector<1x32xf32> to vector<16x32xf32>
    %1014 = arith.mulf %1012, %1013 : vector<16x32xf32>
    %1015 = vector.broadcast %996 : vector<1x32xf32> to vector<16x32xf32>
    %1016 = arith.addf %1014, %1015 : vector<16x32xf32>
    %1017 = arith.truncf %1016 : vector<16x32xf32> to vector<16x32xbf16>
    %c0_370 = arith.constant 0 : index
    %c0_371 = arith.constant 0 : index
    %1018 = vector.load %arg36[%c0_370, %c0_371] : memref<32x128xbf16, #tpu.memory_space<vmem>>, vector<32x128xbf16>
    %cst_372 = arith.constant dense<0.000000e+00> : vector<16x128xf32>
    %1019 = tpu.matmul %1017, %1018, %cst_372 {dimension_numbers = #tpu.dot_dimension_numbers<[1], [0], [0], [1], [0, 0, 1, 1], [], []>} : vector<16x32xbf16>, vector<32x128xbf16>, vector<16x128xf32> -> vector<16x128xf32>
    %c0_373 = arith.constant 0 : index
    %c0_374 = arith.constant 0 : index
    %1020 = vector.load %arg37[%c0_373, %c0_374] : memref<1x128xf32, #tpu.memory_space<vmem>>, vector<1x128xf32>
    %1021 = vector.broadcast %1020 : vector<1x128xf32> to vector<16x128xf32>
    %1022 = arith.addf %1019, %1021 : vector<16x128xf32>
    %1023 = vector.shape_cast %1022 : vector<16x128xf32> to vector<2x8x128xf32>
    %c0_375 = arith.constant 0 : index
    %c0_376 = arith.constant 0 : index
    %c0_377 = arith.constant 0 : index
    %1024 = vector.load %arg38[%c0_375, %c0_376, %c0_377] : memref<2x8x128xf32, #tpu.memory_space<vmem>>, vector<2x8x128xf32>
    tpu.vector_store %arg38[%c0_375, %c0_376, %c0_377], %1023 {strides = array<i32>} : memref<2x8x128xf32, #tpu.memory_space<vmem>>, vector<2x8x128xf32>,
    return
  }
  func.func @transform_0(%arg0: i32) -> (i32, i32, i32) {
    %c0_i32 = arith.constant 0 : i32
    %c0_i32_0 = arith.constant 0 : i32
    %c0_i32_1 = arith.constant 0 : i32
    return %arg0, %c0_i32, %c0_i32_0 : i32, i32, i32
  }
  func.func @transform_1(%arg0: i32) -> (i32, i32, i32) {
    %c0_i32 = arith.constant 0 : i32
    %c0_i32_0 = arith.constant 0 : i32
    %c0_i32_1 = arith.constant 0 : i32
    return %arg0, %c0_i32, %c0_i32_0 : i32, i32, i32
  }
  func.func @transform_2(%arg0: i32) -> (i32, i32, i32) {
    %c0_i32 = arith.constant 0 : i32
    %c0_i32_0 = arith.constant 0 : i32
    %c0_i32_1 = arith.constant 0 : i32
    return %arg0, %c0_i32, %c0_i32_0 : i32, i32, i32
  }
  func.func @transform_3(%arg0: i32) -> (i32, i32, i32) {
    %c0_i32 = arith.constant 0 : i32
    %c0_i32_0 = arith.constant 0 : i32
    %c0_i32_1 = arith.constant 0 : i32
    %c0_i32_2 = arith.constant 0 : i32
    return %c0_i32, %c0_i32_0, %c0_i32_1 : i32, i32, i32
  }
  func.func @transform_4(%arg0: i32) -> (i32, i32, i32) {
    %c0_i32 = arith.constant 0 : i32
    %c0_i32_0 = arith.constant 0 : i32
    %c0_i32_1 = arith.constant 0 : i32
    %c0_i32_2 = arith.constant 0 : i32
    return %c0_i32, %c0_i32_0, %c0_i32_1 : i32, i32, i32
  }
  func.func @transform_5(%arg0: i32) -> (i32, i32, i32) {
    %c0_i32 = arith.constant 0 : i32
    %c0_i32_0 = arith.constant 0 : i32
    %c0_i32_1 = arith.constant 0 : i32
    %c0_i32_2 = arith.constant 0 : i32
    return %c0_i32, %c0_i32_0, %c0_i32_1 : i32, i32, i32
  }
  func.func @transform_6(%arg0: i32) -> (i32, i32, i32) {
    %c0_i32 = arith.constant 0 : i32
    %c0_i32_0 = arith.constant 0 : i32
    %c0_i32_1 = arith.constant 0 : i32
    %c0_i32_2 = arith.constant 0 : i32
    return %c0_i32, %c0_i32_0, %c0_i32_1 : i32, i32, i32
  }
  func.func @transform_7(%arg0: i32) -> (i32, i32, i32) {
    %c0_i32 = arith.constant 0 : i32
    %c0_i32_0 = arith.constant 0 : i32
    %c0_i32_1 = arith.constant 0 : i32
    %c0_i32_2 = arith.constant 0 : i32
    return %c0_i32, %c0_i32_0, %c0_i32_1 : i32, i32, i32
  }
  func.func @transform_8(%arg0: i32) -> (i32, i32, i32) {
    %c0_i32 = arith.constant 0 : i32
    %c0_i32_0 = arith.constant 0 : i32
    %c0_i32_1 = arith.constant 0 : i32
    %c0_i32_2 = arith.constant 0 : i32
    return %c0_i32, %c0_i32_0, %c0_i32_1 : i32, i32, i32
  }
  func.func @transform_9(%arg0: i32) -> (i32, i32, i32) {
    %c0_i32 = arith.constant 0 : i32
    %c0_i32_0 = arith.constant 0 : i32
    %c0_i32_1 = arith.constant 0 : i32
    %c0_i32_2 = arith.constant 0 : i32
    return %c0_i32, %c0_i32_0, %c0_i32_1 : i32, i32, i32
  }
  func.func @transform_10(%arg0: i32) -> (i32, i32, i32) {
    %c0_i32 = arith.constant 0 : i32
    %c0_i32_0 = arith.constant 0 : i32
    %c0_i32_1 = arith.constant 0 : i32
    %c0_i32_2 = arith.constant 0 : i32
    return %c0_i32, %c0_i32_0, %c0_i32_1 : i32, i32, i32
  }
  func.func @transform_11(%arg0: i32) -> (i32, i32, i32) {
    %c0_i32 = arith.constant 0 : i32
    %c0_i32_0 = arith.constant 0 : i32
    %c0_i32_1 = arith.constant 0 : i32
    %c0_i32_2 = arith.constant 0 : i32
    return %c0_i32, %c0_i32_0, %c0_i32_1 : i32, i32, i32
  }
  func.func @transform_12(%arg0: i32) -> (i32, i32, i32) {
    %c0_i32 = arith.constant 0 : i32
    %c0_i32_0 = arith.constant 0 : i32
    %c0_i32_1 = arith.constant 0 : i32
    %c0_i32_2 = arith.constant 0 : i32
    return %c0_i32, %c0_i32_0, %c0_i32_1 : i32, i32, i32
  }
  func.func @transform_13(%arg0: i32) -> (i32, i32, i32) {
    %c0_i32 = arith.constant 0 : i32
    %c0_i32_0 = arith.constant 0 : i32
    %c0_i32_1 = arith.constant 0 : i32
    %c0_i32_2 = arith.constant 0 : i32
    return %c0_i32, %c0_i32_0, %c0_i32_1 : i32, i32, i32
  }
  func.func @transform_14(%arg0: i32) -> (i32, i32, i32) {
    %c0_i32 = arith.constant 0 : i32
    %c0_i32_0 = arith.constant 0 : i32
    %c0_i32_1 = arith.constant 0 : i32
    %c0_i32_2 = arith.constant 0 : i32
    return %c0_i32, %c0_i32_0, %c0_i32_1 : i32, i32, i32
  }
  func.func @transform_15(%arg0: i32) -> (i32, i32, i32) {
    %c0_i32 = arith.constant 0 : i32
    %c0_i32_0 = arith.constant 0 : i32
    %c0_i32_1 = arith.constant 0 : i32
    %c0_i32_2 = arith.constant 0 : i32
    return %c0_i32, %c0_i32_0, %c0_i32_1 : i32, i32, i32
  }
  func.func @transform_16(%arg0: i32) -> (i32, i32, i32) {
    %c0_i32 = arith.constant 0 : i32
    %c0_i32_0 = arith.constant 0 : i32
    %c0_i32_1 = arith.constant 0 : i32
    %c0_i32_2 = arith.constant 0 : i32
    return %c0_i32, %c0_i32_0, %c0_i32_1 : i32, i32, i32
  }
  func.func @transform_17(%arg0: i32) -> (i32, i32, i32) {
    %c0_i32 = arith.constant 0 : i32
    %c0_i32_0 = arith.constant 0 : i32
    %c0_i32_1 = arith.constant 0 : i32
    %c0_i32_2 = arith.constant 0 : i32
    return %c0_i32, %c0_i32_0, %c0_i32_1 : i32, i32, i32
  }
  func.func @transform_18(%arg0: i32) -> (i32, i32, i32) {
    %c0_i32 = arith.constant 0 : i32
    %c0_i32_0 = arith.constant 0 : i32
    %c0_i32_1 = arith.constant 0 : i32
    %c0_i32_2 = arith.constant 0 : i32
    return %c0_i32, %c0_i32_0, %c0_i32_1 : i32, i32, i32
  }
  func.func @transform_19(%arg0: i32) -> (i32, i32, i32) {
    %c0_i32 = arith.constant 0 : i32
    %c0_i32_0 = arith.constant 0 : i32
    %c0_i32_1 = arith.constant 0 : i32
    %c0_i32_2 = arith.constant 0 : i32
    return %c0_i32, %c0_i32_0, %c0_i32_1 : i32, i32, i32
  }
  func.func @transform_20(%arg0: i32) -> (i32, i32, i32) {
    %c0_i32 = arith.constant 0 : i32
    %c0_i32_0 = arith.constant 0 : i32
    %c0_i32_1 = arith.constant 0 : i32
    %c0_i32_2 = arith.constant 0 : i32
    return %c0_i32, %c0_i32_0, %c0_i32_1 : i32, i32, i32
  }
  func.func @transform_21(%arg0: i32) -> (i32, i32, i32) {
    %c0_i32 = arith.constant 0 : i32
    %c0_i32_0 = arith.constant 0 : i32
    %c0_i32_1 = arith.constant 0 : i32
    %c0_i32_2 = arith.constant 0 : i32
    return %c0_i32, %c0_i32_0, %c0_i32_1 : i32, i32, i32
  }
  func.func @transform_22(%arg0: i32) -> (i32, i32, i32) {
    %c0_i32 = arith.constant 0 : i32
    %c0_i32_0 = arith.constant 0 : i32
    %c0_i32_1 = arith.constant 0 : i32
    %c0_i32_2 = arith.constant 0 : i32
    return %c0_i32, %c0_i32_0, %c0_i32_1 : i32, i32, i32
  }
  func.func @transform_23(%arg0: i32) -> (i32, i32, i32) {
    %c0_i32 = arith.constant 0 : i32
    %c0_i32_0 = arith.constant 0 : i32
    %c0_i32_1 = arith.constant 0 : i32
    %c0_i32_2 = arith.constant 0 : i32
    return %c0_i32, %c0_i32_0, %c0_i32_1 : i32, i32, i32
  }
  func.func @transform_24(%arg0: i32) -> (i32, i32, i32) {
    %c0_i32 = arith.constant 0 : i32
    %c0_i32_0 = arith.constant 0 : i32
    %c0_i32_1 = arith.constant 0 : i32
    %c0_i32_2 = arith.constant 0 : i32
    return %c0_i32, %c0_i32_0, %c0_i32_1 : i32, i32, i32
  }
  func.func @transform_25(%arg0: i32) -> (i32, i32, i32) {
    %c0_i32 = arith.constant 0 : i32
    %c0_i32_0 = arith.constant 0 : i32
    %c0_i32_1 = arith.constant 0 : i32
    %c0_i32_2 = arith.constant 0 : i32
    return %c0_i32, %c0_i32_0, %c0_i32_1 : i32, i32, i32
  }
  func.func @transform_26(%arg0: i32) -> (i32, i32, i32) {
    %c0_i32 = arith.constant 0 : i32
    %c0_i32_0 = arith.constant 0 : i32
    %c0_i32_1 = arith.constant 0 : i32
    %c0_i32_2 = arith.constant 0 : i32
    return %c0_i32, %c0_i32_0, %c0_i32_1 : i32, i32, i32
  }
  func.func @transform_27(%arg0: i32) -> (i32, i32, i32) {
    %c0_i32 = arith.constant 0 : i32
    %c0_i32_0 = arith.constant 0 : i32
    %c0_i32_1 = arith.constant 0 : i32
    %c0_i32_2 = arith.constant 0 : i32
    return %c0_i32, %c0_i32_0, %c0_i32_1 : i32, i32, i32
  }
  func.func @transform_28(%arg0: i32) -> (i32, i32, i32) {
    %c0_i32 = arith.constant 0 : i32
    %c0_i32_0 = arith.constant 0 : i32
    %c0_i32_1 = arith.constant 0 : i32
    %c0_i32_2 = arith.constant 0 : i32
    return %c0_i32, %c0_i32_0, %c0_i32_1 : i32, i32, i32
  }
  func.func @transform_29(%arg0: i32) -> (i32, i32, i32) {
    %c0_i32 = arith.constant 0 : i32
    %c0_i32_0 = arith.constant 0 : i32
    %c0_i32_1 = arith.constant 0 : i32
    %c0_i32_2 = arith.constant 0 : i32
    return %c0_i32, %c0_i32_0, %c0_i32_1 : i32, i32, i32
  }
  func.func @transform_30(%arg0: i32) -> (i32, i32, i32) {
    %c0_i32 = arith.constant 0 : i32
    %c0_i32_0 = arith.constant 0 : i32
    %c0_i32_1 = arith.constant 0 : i32
    %c0_i32_2 = arith.constant 0 : i32
    return %c0_i32, %c0_i32_0, %c0_i32_1 : i32, i32, i32
  }
  func.func @transform_31(%arg0: i32) -> (i32, i32, i32) {
    %c0_i32 = arith.constant 0 : i32
    %c0_i32_0 = arith.constant 0 : i32
    %c0_i32_1 = arith.constant 0 : i32
    %c0_i32_2 = arith.constant 0 : i32
    return %c0_i32, %c0_i32_0, %c0_i32_1 : i32, i32, i32
  }
  func.func @transform_32(%arg0: i32) -> (i32, i32, i32) {
    %c0_i32 = arith.constant 0 : i32
    %c0_i32_0 = arith.constant 0 : i32
    %c0_i32_1 = arith.constant 0 : i32
    %c0_i32_2 = arith.constant 0 : i32
    return %c0_i32, %c0_i32_0, %c0_i32_1 : i32, i32, i32
  }
  func.func @transform_33(%arg0: i32) -> (i32, i32, i32) {
    %c0_i32 = arith.constant 0 : i32
    %c0_i32_0 = arith.constant 0 : i32
    %c0_i32_1 = arith.constant 0 : i32
    %c0_i32_2 = arith.constant 0 : i32
    return %c0_i32, %c0_i32_0, %c0_i32_1 : i32, i32, i32
  }
  func.func @transform_34(%arg0: i32) -> (i32, i32, i32) {
    %c0_i32 = arith.constant 0 : i32
    %c0_i32_0 = arith.constant 0 : i32
    %c0_i32_1 = arith.constant 0 : i32
    %c0_i32_2 = arith.constant 0 : i32
    return %c0_i32, %c0_i32_0, %c0_i32_1 : i32, i32, i32
  }
  func.func @transform_35(%arg0: i32) -> (i32, i32) {
    %c0_i32 = arith.constant 0 : i32
    %c0_i32_0 = arith.constant 0 : i32
    %c0_i32_1 = arith.constant 0 : i32
    return %c0_i32, %c0_i32_0 : i32, i32
  }
  func.func @transform_36(%arg0: i32) -> (i32, i32) {
    %c0_i32 = arith.constant 0 : i32
    %c0_i32_0 = arith.constant 0 : i32
    %c0_i32_1 = arith.constant 0 : i32
    return %c0_i32, %c0_i32_0 : i32, i32
  }
  func.func @transform_37(%arg0: i32) -> (i32, i32, i32) {
    %c0_i32 = arith.constant 0 : i32
    %c0_i32_0 = arith.constant 0 : i32
    %c0_i32_1 = arith.constant 0 : i32
    return %arg0, %c0_i32, %c0_i32_0 : i32, i32, i32
  }
}

</mosaic_0001>

<llo_original>
// kernel: tpu_custom_call.1
$region0: #{tpu_custom_call.1}
  #allocation0 [shape = 'u32[]', space=smem, size = 0x4, offset = 0x4, fixed_abs, tag = 'smem constant byte address 0x4 - core index']
  #allocation1 [shape = 'u32[144,128]{1,0:T(1,128)}', space=vmem, size = 0x12000, scoped, tag = 'internal scratch']
  %s0 = inlined_call_operand.smem [shape: u32[38], index: -1, kind: input, shape index: {}]
  %s1 = sld [smem:[%s0]]
  %s2 = scalar_lea.smem %s0, 1
  %s3 = sld [smem:[%s2]]
  %s4 = scalar_lea.smem %s0, 2
  %s5 = sld [smem:[%s4]]
  %s6 = scalar_lea.smem %s0, 3
  %s7 = sld [smem:[%s6]]
  %s8 = scalar_lea.smem %s0, 4
  %s9 = sld [smem:[%s8]]
  %s10 = scalar_lea.smem %s0, 5
  %s11 = sld [smem:[%s10]]
  %s12 = scalar_lea.smem %s0, 6
  %s13 = sld [smem:[%s12]]
  %s14 = scalar_lea.smem %s0, 7
  %s15 = sld [smem:[%s14]]
  %s16 = scalar_lea.smem %s0, 8
  %s17 = sld [smem:[%s16]]
  %s18 = scalar_lea.smem %s0, 9
  %s19 = sld [smem:[%s18]]
  %s20 = scalar_lea.smem %s0, 10
  %s21 = sld [smem:[%s20]]
  %s22 = scalar_lea.smem %s0, 11
  %s23 = sld [smem:[%s22]]
  %s24 = scalar_lea.smem %s0, 12
  %s25 = sld [smem:[%s24]]
  %s26 = scalar_lea.smem %s0, 13
  %s27 = sld [smem:[%s26]]
  %s28 = scalar_lea.smem %s0, 14
  %s29 = sld [smem:[%s28]]
  %s30 = scalar_lea.smem %s0, 15
  %s31 = sld [smem:[%s30]]
  %s32 = scalar_lea.smem %s0, 16
  %s33 = sld [smem:[%s32]]
  %s34 = scalar_lea.smem %s0, 17
  %s35 = sld [smem:[%s34]]
  %s36 = scalar_lea.smem %s0, 18
  %s37 = sld [smem:[%s36]]
  %s38 = scalar_lea.smem %s0, 19
  %s39 = sld [smem:[%s38]]
  %s40 = scalar_lea.smem %s0, 20
  %s41 = sld [smem:[%s40]]
  %s42 = scalar_lea.smem %s0, 21
  %s43 = sld [smem:[%s42]]
  %s44 = scalar_lea.smem %s0, 22
  %s45 = sld [smem:[%s44]]
  %s46 = scalar_lea.smem %s0, 23
  %s47 = sld [smem:[%s46]]
  %s48 = scalar_lea.smem %s0, 24
  %s49 = sld [smem:[%s48]]
  %s50 = scalar_lea.smem %s0, 25
  %s51 = sld [smem:[%s50]]
  %s52 = scalar_lea.smem %s0, 26
  %s53 = sld [smem:[%s52]]
  %s54 = scalar_lea.smem %s0, 27
  %s55 = sld [smem:[%s54]]
  %s56 = scalar_lea.smem %s0, 28
  %s57 = sld [smem:[%s56]]
  %s58 = scalar_lea.smem %s0, 29
  %s59 = sld [smem:[%s58]]
  %s60 = scalar_lea.smem %s0, 30
  %s61 = sld [smem:[%s60]]
  %s62 = scalar_lea.smem %s0, 31
  %s63 = sld [smem:[%s62]]
  %s64 = scalar_lea.smem %s0, 32
  %s65 = sld [smem:[%s64]]
  %s66 = scalar_lea.smem %s0, 33
  %s67 = sld [smem:[%s66]]
  %s68 = scalar_lea.smem %s0, 34
  %s69 = sld [smem:[%s68]]
  %s70 = scalar_lea.smem %s0, 35
  %s71 = sld [smem:[%s70]]
  %s72 = scalar_lea.smem %s0, 36
  %s73 = sld [smem:[%s72]]
  %s74 = scalar_lea.smem %s0, 37
  %s75 = sld [smem:[%s74]]
  %s76 = sld [smem:[#allocation0]]
  $region226: #{tpu_custom_call.1} parent=0
    _
  %s78 = ssub.s32 1, %s76
  %s79 = scalar_select 0, %s78, %s76
  $region1: #{tpu_custom_call.1} parent=0
    #allocation2 [shape = 'u8[8192]{0}', space=vmem, size = 0x2000, scoped, tag = 'input window, operand 0, single buffered']
    #allocation3 [shape = 's32[1]{0}', space=sflag, size = 0x4, scoped, tag = 'scoped memory for tpu_custom_call.1']
    #allocation4 [shape = 's32[1]{0}', space=sflag, size = 0x4, scoped, tag = 'scoped memory for tpu_custom_call.1']
    #allocation5 [shape = 'u8[8192]{0}', space=vmem, size = 0x2000, scoped, tag = 'input window, operand 1, single buffered']
    #allocation6 [shape = 's32[1]{0}', space=sflag, size = 0x4, scoped, tag = 'scoped memory for tpu_custom_call.1']
    #allocation7 [shape = 'u8[1024]{0}', space=vmem, size = 0x400, scoped, tag = 'input window, operand 2, single buffered']
    #allocation8 [shape = 'u8[1024]{0}', space=vmem, size = 0x400, scoped, tag = 'input window, operand 4, single buffered']
    #allocation9 [shape = 's32[1]{0}', space=sflag, size = 0x4, scoped, tag = 'scoped memory for tpu_custom_call.1']
    #allocation10 [shape = 'u8[1024]{0}', space=vmem, size = 0x400, scoped, tag = 'input window, operand 6, single buffered']
    #allocation11 [shape = 'u8[1024]{0}', space=vmem, size = 0x400, scoped, tag = 'input window, operand 8, single buffered']
    #allocation12 [shape = 's32[1]{0}', space=sflag, size = 0x4, scoped, tag = 'scoped memory for tpu_custom_call.1']
    #allocation13 [shape = 'u8[1024]{0}', space=vmem, size = 0x400, scoped, tag = 'input window, operand 10, single buffered']
    #allocation14 [shape = 'u8[1024]{0}', space=vmem, size = 0x400, scoped, tag = 'input window, operand 11, single buffered']
    #allocation15 [shape = 's32[1]{0}', space=sflag, size = 0x4, scoped, tag = 'scoped memory for tpu_custom_call.1']
    #allocation16 [shape = 'u8[1024]{0}', space=vmem, size = 0x400, scoped, tag = 'input window, operand 12, single buffered']
    #allocation17 [shape = 'u8[1024]{0}', space=vmem, size = 0x400, scoped, tag = 'input window, operand 13, single buffered']
    #allocation18 [shape = 's32[1]{0}', space=sflag, size = 0x4, scoped, tag = 'scoped memory for tpu_custom_call.1']
    #allocation19 [shape = 'u8[1024]{0}', space=vmem, size = 0x400, scoped, tag = 'input window, operand 14, single buffered']
    #allocation20 [shape = 'u8[1024]{0}', space=vmem, size = 0x400, scoped, tag = 'input window, operand 16, single buffered']
    #allocation21 [shape = 's32[1]{0}', space=sflag, size = 0x4, scoped, tag = 'scoped memory for tpu_custom_call.1']
    #allocation22 [shape = 'u8[1024]{0}', space=vmem, size = 0x400, scoped, tag = 'input window, operand 20, single buffered']
    #allocation23 [shape = 'u8[16384]{0}', space=vmem, size = 0x4000, scoped, tag = 'input window, operand 21, single buffered']
    #allocation24 [shape = 's32[1]{0}', space=sflag, size = 0x4, scoped, tag = 'scoped memory for tpu_custom_call.1']
    #allocation25 [shape = 'u8[1024]{0}', space=vmem, size = 0x400, scoped, tag = 'input window, operand 22, single buffered']
    #allocation26 [shape = 'u8[16384]{0}', space=vmem, size = 0x4000, scoped, tag = 'input window, operand 23, single buffered']
    #allocation27 [shape = 's32[1]{0}', space=sflag, size = 0x4, scoped, tag = 'scoped memory for tpu_custom_call.1']
    #allocation28 [shape = 'u8[16384]{0}', space=vmem, size = 0x4000, scoped, tag = 'input window, operand 25, single buffered']
    #allocation29 [shape = 'u8[8192]{0}', space=vmem, size = 0x2000, scoped, tag = 'output window, operand 0, single buffered']
    %80 = vsyncpa [#allocation3], 0
    %81 = vsyncpa [#allocation6], 0
    %82 = vsyncpa [#allocation9], 0
    %83 = vsyncpa [#allocation12], 0
    %84 = vsyncpa [#allocation15], 0
    %85 = vsyncpa [#allocation18], 0
    %86 = vsyncpa [#allocation21], 0
    %87 = vsyncpa [#allocation24], 0
    %88 = vsyncpa [#allocation27], 0
    %89 = vsyncpa [#allocation4], 0
    // Predicated region
    $region2: #{tpu_custom_call.1} parent=1 // pred_check
      _
    $region3: #{tpu_custom_call.1} parent=1 // pred_check_branch
      %91 = sbr.rel (0) target = $region5
    $region4: #{tpu_custom_call.1} parent=1 // pred_region
      %s93 = ssub.s32 256, 256
      %94 = vsyncadd [#allocation3], %s93
      %s95 = sshll.u32 [#allocation2], 4
      %s96 = int_to_ptr.vmem [resolvable:$true] %s95
      %101 = dma.hbm_to_vmem [thread:$0]  %s1, 256, %s96, [#allocation3], 128, 128, 8
    $region5: #{tpu_custom_call.1} parent=1 // pred_fallthru
      _
    // Predicated region
    $region6: #{tpu_custom_call.1} parent=1 // pred_check
      _
    $region7: #{tpu_custom_call.1} parent=1 // pred_check_branch
      %103 = sbr.rel (0) target = $region9
    $region8: #{tpu_custom_call.1} parent=1 // pred_region
      %s105 = ssub.s32 256, 256
      %106 = vsyncadd [#allocation6], %s105
      %s107 = sshll.u32 [#allocation5], 4
      %s108 = int_to_ptr.vmem [resolvable:$true] %s107
      %113 = dma.hbm_to_vmem [thread:$0]  %s3, 256, %s108, [#allocation6], 128, 128, 8
    $region9: #{tpu_custom_call.1} parent=1 // pred_fallthru
      _
    // Predicated region
    $region10: #{tpu_custom_call.1} parent=1 // pred_check
      _
    $region11: #{tpu_custom_call.1} parent=1 // pred_check_branch
      %115 = sbr.rel (0) target = $region13
    $region12: #{tpu_custom_call.1} parent=1 // pred_region
      %s117 = ssub.s32 32, 32
      %118 = vsyncadd [#allocation6], %s117
      %s119 = sshll.u32 [#allocation7], 4
      %s120 = int_to_ptr.vmem [resolvable:$true] %s119
      %125 = dma.hbm_to_vmem [thread:$0]  %s5, 32, %s120, [#allocation6], 16, 16, 1
    $region13: #{tpu_custom_call.1} parent=1 // pred_fallthru
      _
    // Predicated region
    $region14: #{tpu_custom_call.1} parent=1 // pred_check
      _
    $region15: #{tpu_custom_call.1} parent=1 // pred_check_branch
      %127 = sbr.rel (0) target = $region17
    $region16: #{tpu_custom_call.1} parent=1 // pred_region
      _
    $region17: #{tpu_custom_call.1} parent=1 // pred_fallthru
      _
    // Predicated region
    $region18: #{tpu_custom_call.1} parent=1 // pred_check
      _
    $region19: #{tpu_custom_call.1} parent=1 // pred_check_branch
      %129 = sbr.rel (0) target = $region21
    $region20: #{tpu_custom_call.1} parent=1 // pred_region
      %s131 = ssub.s32 32, 32
      %132 = vsyncadd [#allocation9], %s131
      %s133 = sshll.u32 [#allocation8], 4
      %s134 = int_to_ptr.vmem [resolvable:$true] %s133
      %139 = dma.hbm_to_vmem [thread:$0]  %s9, 32, %s134, [#allocation9], 16, 16, 1
    $region21: #{tpu_custom_call.1} parent=1 // pred_fallthru
      _
    // Predicated region
    $region22: #{tpu_custom_call.1} parent=1 // pred_check
      _
    $region23: #{tpu_custom_call.1} parent=1 // pred_check_branch
      %141 = sbr.rel (0) target = $region25
    $region24: #{tpu_custom_call.1} parent=1 // pred_region
      _
    $region25: #{tpu_custom_call.1} parent=1 // pred_fallthru
      _
    // Predicated region
    $region26: #{tpu_custom_call.1} parent=1 // pred_check
      _
    $region27: #{tpu_custom_call.1} parent=1 // pred_check_branch
      %143 = sbr.rel (0) target = $region29
    $region28: #{tpu_custom_call.1} parent=1 // pred_region
      %s145 = ssub.s32 32, 32
      %146 = vsyncadd [#allocation9], %s145
      %s147 = sshll.u32 [#allocation10], 4
      %s148 = int_to_ptr.vmem [resolvable:$true] %s147
      %153 = dma.hbm_to_vmem [thread:$0]  %s13, 32, %s148, [#allocation9], 16, 16, 1
    $region29: #{tpu_custom_call.1} parent=1 // pred_fallthru
      _
    // Predicated region
    $region30: #{tpu_custom_call.1} parent=1 // pred_check
      _
    $region31: #{tpu_custom_call.1} parent=1 // pred_check_branch
      %155 = sbr.rel (0) target = $region33
    $region32: #{tpu_custom_call.1} parent=1 // pred_region
      _
    $region33: #{tpu_custom_call.1} parent=1 // pred_fallthru
      _
    // Predicated region
    $region34: #{tpu_custom_call.1} parent=1 // pred_check
      _
    $region35: #{tpu_custom_call.1} parent=1 // pred_check_branch
      %157 = sbr.rel (0) target = $region37
    $region36: #{tpu_custom_call.1} parent=1 // pred_region
      %s159 = ssub.s32 32, 32
      %160 = vsyncadd [#allocation12], %s159
      %s161 = sshll.u32 [#allocation11], 4
      %s162 = int_to_ptr.vmem [resolvable:$true] %s161
      %167 = dma.hbm_to_vmem [thread:$0]  %s17, 32, %s162, [#allocation12], 16, 16, 1
    $region37: #{tpu_custom_call.1} parent=1 // pred_fallthru
      _
    // Predicated region
    $region38: #{tpu_custom_call.1} parent=1 // pred_check
      _
    $region39: #{tpu_custom_call.1} parent=1 // pred_check_branch
      %169 = sbr.rel (0) target = $region41
    $region40: #{tpu_custom_call.1} parent=1 // pred_region
      _
    $region41: #{tpu_custom_call.1} parent=1 // pred_fallthru
      _
    // Predicated region
    $region42: #{tpu_custom_call.1} parent=1 // pred_check
      _
    $region43: #{tpu_custom_call.1} parent=1 // pred_check_branch
      %171 = sbr.rel (0) target = $region45
    $region44: #{tpu_custom_call.1} parent=1 // pred_region
      %s173 = ssub.s32 32, 32
      %174 = vsyncadd [#allocation12], %s173
      %s175 = sshll.u32 [#allocation13], 4
      %s176 = int_to_ptr.vmem [resolvable:$true] %s175
      %181 = dma.hbm_to_vmem [thread:$0]  %s21, 32, %s176, [#allocation12], 16, 16, 1
    $region45: #{tpu_custom_call.1} parent=1 // pred_fallthru
      _
    // Predicated region
    $region46: #{tpu_custom_call.1} parent=1 // pred_check
      _
    $region47: #{tpu_custom_call.1} parent=1 // pred_check_branch
      %183 = sbr.rel (0) target = $region49
    $region48: #{tpu_custom_call.1} parent=1 // pred_region
      %s185 = ssub.s32 32, 32
      %186 = vsyncadd [#allocation15], %s185
      %s187 = sshll.u32 [#allocation14], 4
      %s188 = int_to_ptr.vmem [resolvable:$true] %s187
      %193 = dma.hbm_to_vmem [thread:$0]  %s23, 32, %s188, [#allocation15], 16, 16, 1
    $region49: #{tpu_custom_call.1} parent=1 // pred_fallthru
      _
    // Predicated region
    $region50: #{tpu_custom_call.1} parent=1 // pred_check
      _
    $region51: #{tpu_custom_call.1} parent=1 // pred_check_branch
      %195 = sbr.rel (0) target = $region53
    $region52: #{tpu_custom_call.1} parent=1 // pred_region
      %s197 = ssub.s32 32, 32
      %198 = vsyncadd [#allocation15], %s197
      %s199 = sshll.u32 [#allocation16], 4
      %s200 = int_to_ptr.vmem [resolvable:$true] %s199
      %205 = dma.hbm_to_vmem [thread:$0]  %s25, 32, %s200, [#allocation15], 16, 16, 1
    $region53: #{tpu_custom_call.1} parent=1 // pred_fallthru
      _
    // Predicated region
    $region54: #{tpu_custom_call.1} parent=1 // pred_check
      _
    $region55: #{tpu_custom_call.1} parent=1 // pred_check_branch
      %207 = sbr.rel (0) target = $region57
    $region56: #{tpu_custom_call.1} parent=1 // pred_region
      %s209 = ssub.s32 32, 32
      %210 = vsyncadd [#allocation18], %s209
      %s211 = sshll.u32 [#allocation17], 4
      %s212 = int_to_ptr.vmem [resolvable:$true] %s211
      %217 = dma.hbm_to_vmem [thread:$0]  %s27, 32, %s212, [#allocation18], 16, 16, 1
    $region57: #{tpu_custom_call.1} parent=1 // pred_fallthru
      _
    // Predicated region
    $region58: #{tpu_custom_call.1} parent=1 // pred_check
      _
    $region59: #{tpu_custom_call.1} parent=1 // pred_check_branch
      %219 = sbr.rel (0) target = $region61
    $region60: #{tpu_custom_call.1} parent=1 // pred_region
      %s221 = ssub.s32 32, 32
      %222 = vsyncadd [#allocation18], %s221
      %s223 = sshll.u32 [#allocation19], 4
      %s224 = int_to_ptr.vmem [resolvable:$true] %s223
      %229 = dma.hbm_to_vmem [thread:$0]  %s29, 32, %s224, [#allocation18], 16, 16, 1
    $region61: #{tpu_custom_call.1} parent=1 // pred_fallthru
      _
    // Predicated region
    $region62: #{tpu_custom_call.1} parent=1 // pred_check
      _
    $region63: #{tpu_custom_call.1} parent=1 // pred_check_branch
      %231 = sbr.rel (0) target = $region65
    $region64: #{tpu_custom_call.1} parent=1 // pred_region
      _
    $region65: #{tpu_custom_call.1} parent=1 // pred_fallthru
      _
    // Predicated region
    $region66: #{tpu_custom_call.1} parent=1 // pred_check
      _
    $region67: #{tpu_custom_call.1} parent=1 // pred_check_branch
      %233 = sbr.rel (0) target = $region69
    $region68: #{tpu_custom_call.1} parent=1 // pred_region
      %s235 = ssub.s32 32, 32
      %236 = vsyncadd [#allocation21], %s235
      %s237 = sshll.u32 [#allocation20], 4
      %s238 = int_to_ptr.vmem [resolvable:$true] %s237
      %243 = dma.hbm_to_vmem [thread:$0]  %s33, 32, %s238, [#allocation21], 16, 16, 1
    $region69: #{tpu_custom_call.1} parent=1 // pred_fallthru
      _
    // Predicated region
    $region70: #{tpu_custom_call.1} parent=1 // pred_check
      _
    $region71: #{tpu_custom_call.1} parent=1 // pred_check_branch
      %245 = sbr.rel (0) target = $region73
    $region72: #{tpu_custom_call.1} parent=1 // pred_region
      _
    $region73: #{tpu_custom_call.1} parent=1 // pred_fallthru
      _
    // Predicated region
    $region74: #{tpu_custom_call.1} parent=1 // pred_check
      _
    $region75: #{tpu_custom_call.1} parent=1 // pred_check_branch
      %247 = sbr.rel (0) target = $region77
    $region76: #{tpu_custom_call.1} parent=1 // pred_region
      _
    $region77: #{tpu_custom_call.1} parent=1 // pred_fallthru
      _
    // Predicated region
    $region78: #{tpu_custom_call.1} parent=1 // pred_check
      _
    $region79: #{tpu_custom_call.1} parent=1 // pred_check_branch
      %249 = sbr.rel (0) target = $region81
    $region80: #{tpu_custom_call.1} parent=1 // pred_region
      _
    $region81: #{tpu_custom_call.1} parent=1 // pred_fallthru
      _
    // Predicated region
    $region82: #{tpu_custom_call.1} parent=1 // pred_check
      _
    $region83: #{tpu_custom_call.1} parent=1 // pred_check_branch
      %251 = sbr.rel (0) target = $region85
    $region84: #{tpu_custom_call.1} parent=1 // pred_region
      %s253 = ssub.s32 32, 32
      %254 = vsyncadd [#allocation21], %s253
      %s255 = sshll.u32 [#allocation22], 4
      %s256 = int_to_ptr.vmem [resolvable:$true] %s255
      %261 = dma.hbm_to_vmem [thread:$0]  %s41, 32, %s256, [#allocation21], 16, 16, 1
    $region85: #{tpu_custom_call.1} parent=1 // pred_fallthru
      _
    // Predicated region
    $region86: #{tpu_custom_call.1} parent=1 // pred_check
      _
    $region87: #{tpu_custom_call.1} parent=1 // pred_check_branch
      %263 = sbr.rel (0) target = $region89
    $region88: #{tpu_custom_call.1} parent=1 // pred_region
      %s265 = ssub.s32 512, 512
      %266 = vsyncadd [#allocation24], %s265
      %s267 = sshll.u32 [#allocation23], 4
      %s268 = int_to_ptr.vmem [resolvable:$true] %s267
      %273 = dma.hbm_to_vmem [thread:$0]  %s43, 512, %s268, [#allocation24], 64, 64, 4
    $region89: #{tpu_custom_call.1} parent=1 // pred_fallthru
      _
    // Predicated region
    $region90: #{tpu_custom_call.1} parent=1 // pred_check
      _
    $region91: #{tpu_custom_call.1} parent=1 // pred_check_branch
      %275 = sbr.rel (0) target = $region93
    $region92: #{tpu_custom_call.1} parent=1 // pred_region
      %s277 = ssub.s32 32, 32
      %278 = vsyncadd [#allocation24], %s277
      %s279 = sshll.u32 [#allocation25], 4
      %s280 = int_to_ptr.vmem [resolvable:$true] %s279
      %285 = dma.hbm_to_vmem [thread:$0]  %s45, 32, %s280, [#allocation24], 16, 16, 1
    $region93: #{tpu_custom_call.1} parent=1 // pred_fallthru
      _
    // Predicated region
    $region94: #{tpu_custom_call.1} parent=1 // pred_check
      _
    $region95: #{tpu_custom_call.1} parent=1 // pred_check_branch
      %287 = sbr.rel (0) target = $region97
    $region96: #{tpu_custom_call.1} parent=1 // pred_region
      %s289 = ssub.s32 512, 512
      %290 = vsyncadd [#allocation27], %s289
      %s291 = sshll.u32 [#allocation26], 4
      %s292 = int_to_ptr.vmem [resolvable:$true] %s291
      %297 = dma.hbm_to_vmem [thread:$0]  %s47, 512, %s292, [#allocation27], 64, 64, 4
    $region97: #{tpu_custom_call.1} parent=1 // pred_fallthru
      _
    // Predicated region
    $region98: #{tpu_custom_call.1} parent=1 // pred_check
      _
    $region99: #{tpu_custom_call.1} parent=1 // pred_check_branch
      %299 = sbr.rel (0) target = $region101
    $region100: #{tpu_custom_call.1} parent=1 // pred_region
      _
    $region101: #{tpu_custom_call.1} parent=1 // pred_fallthru
      _
    // Predicated region
    $region102: #{tpu_custom_call.1} parent=1 // pred_check
      _
    $region103: #{tpu_custom_call.1} parent=1 // pred_check_branch
      %301 = sbr.rel (0) target = $region105
    $region104: #{tpu_custom_call.1} parent=1 // pred_region
      %s303 = ssub.s32 512, 512
      %304 = vsyncadd [#allocation27], %s303
      %s305 = sshll.u32 [#allocation28], 4
      %s306 = int_to_ptr.vmem [resolvable:$true] %s305
      %311 = dma.hbm_to_vmem [thread:$0]  %s51, 512, %s306, [#allocation27], 64, 64, 4
    $region105: #{tpu_custom_call.1} parent=1 // pred_fallthru
      _
    // Predicated region
    $region106: #{tpu_custom_call.1} parent=1 // pred_check
      _
    $region107: #{tpu_custom_call.1} parent=1 // pred_check_branch
      %313 = sbr.rel (0) target = $region109
    $region108: #{tpu_custom_call.1} parent=1 // pred_region
      _
    $region109: #{tpu_custom_call.1} parent=1 // pred_fallthru
      _
    // Predicated region
    $region110: #{tpu_custom_call.1} parent=1 // pred_check
      _
    $region111: #{tpu_custom_call.1} parent=1 // pred_check_branch
      %315 = sbr.rel (0) target = $region113
    $region112: #{tpu_custom_call.1} parent=1 // pred_region
      _
    $region113: #{tpu_custom_call.1} parent=1 // pred_fallthru
      _
    // Predicated region
    $region114: #{tpu_custom_call.1} parent=1 // pred_check
      _
    $region115: #{tpu_custom_call.1} parent=1 // pred_check_branch
      %317 = sbr.rel (0) target = $region117
    $region116: #{tpu_custom_call.1} parent=1 // pred_region
      _
    $region117: #{tpu_custom_call.1} parent=1 // pred_fallthru
      _
    // Predicated region
    $region118: #{tpu_custom_call.1} parent=1 // pred_check
      _
    $region119: #{tpu_custom_call.1} parent=1 // pred_check_branch
      %319 = sbr.rel (0) target = $region121
    $region120: #{tpu_custom_call.1} parent=1 // pred_region
      _
    $region121: #{tpu_custom_call.1} parent=1 // pred_fallthru
      _
    // Predicated region
    $region122: #{tpu_custom_call.1} parent=1 // pred_check
      _
    $region123: #{tpu_custom_call.1} parent=1 // pred_check_branch
      %321 = sbr.rel (0) target = $region125
    $region124: #{tpu_custom_call.1} parent=1 // pred_region
      _
    $region125: #{tpu_custom_call.1} parent=1 // pred_fallthru
      _
    // Predicated region
    $region126: #{tpu_custom_call.1} parent=1 // pred_check
      _
    $region127: #{tpu_custom_call.1} parent=1 // pred_check_branch
      %323 = sbr.rel (0) target = $region129
    $region128: #{tpu_custom_call.1} parent=1 // pred_region
      _
    $region129: #{tpu_custom_call.1} parent=1 // pred_fallthru
      _
    // Predicated region
    $region130: #{tpu_custom_call.1} parent=1 // pred_check
      _
    $region131: #{tpu_custom_call.1} parent=1 // pred_check_branch
      %325 = sbr.rel (0) target = $region133
    $region132: #{tpu_custom_call.1} parent=1 // pred_region
      _
    $region133: #{tpu_custom_call.1} parent=1 // pred_fallthru
      _
    // Predicated region
    $region134: #{tpu_custom_call.1} parent=1 // pred_check
      _
    $region135: #{tpu_custom_call.1} parent=1 // pred_check_branch
      %327 = sbr.rel (0) target = $region137
    $region136: #{tpu_custom_call.1} parent=1 // pred_region
      _
    $region137: #{tpu_custom_call.1} parent=1 // pred_fallthru
      _
    // Predicated region
    $region138: #{tpu_custom_call.1} parent=1 // pred_check
      _
    $region139: #{tpu_custom_call.1} parent=1 // pred_check_branch
      %329 = sbr.rel (0) target = $region141
    $region140: #{tpu_custom_call.1} parent=1 // pred_region
      _
    $region141: #{tpu_custom_call.1} parent=1 // pred_fallthru
      _
    // Predicated region
    $region142: #{tpu_custom_call.1} parent=1 // pred_check
      _
    $region143: #{tpu_custom_call.1} parent=1 // pred_check_branch
      %331 = sbr.rel (0) target = $region145
    $region144: #{tpu_custom_call.1} parent=1 // pred_region
      _
    $region145: #{tpu_custom_call.1} parent=1 // pred_fallthru
      _
    // Predicated region
    $region146: #{tpu_custom_call.1} parent=1 // pred_check
      _
    $region147: #{tpu_custom_call.1} parent=1 // pred_check_branch
      %333 = sbr.rel (0) target = $region149
    $region148: #{tpu_custom_call.1} parent=1 // pred_region
      _
    $region149: #{tpu_custom_call.1} parent=1 // pred_fallthru
      _
    // Predicated region
    $region150: #{tpu_custom_call.1} parent=1 // pred_check
      _
    $region151: #{tpu_custom_call.1} parent=1 // pred_check_branch
      %335 = sbr.rel (0) target = $region153
    $region152: #{tpu_custom_call.1} parent=1 // pred_region
      %336 = dma.done [#allocation3], 256
    $region153: #{tpu_custom_call.1} parent=1 // pred_fallthru
      _
    // Predicated region
    $region154: #{tpu_custom_call.1} parent=1 // pred_check
      _
    $region155: #{tpu_custom_call.1} parent=1 // pred_check_branch
      %338 = sbr.rel (0) target = $region157
    $region156: #{tpu_custom_call.1} parent=1 // pred_region
      %339 = dma.done [#allocation6], 256
    $region157: #{tpu_custom_call.1} parent=1 // pred_fallthru
      _
    // Predicated region
    $region158: #{tpu_custom_call.1} parent=1 // pred_check
      _
    $region159: #{tpu_custom_call.1} parent=1 // pred_check_branch
      %341 = sbr.rel (0) target = $region161
    $region160: #{tpu_custom_call.1} parent=1 // pred_region
      %342 = dma.done [#allocation6], 32
    $region161: #{tpu_custom_call.1} parent=1 // pred_fallthru
      _
    // Predicated region
    $region162: #{tpu_custom_call.1} parent=1 // pred_check
      _
    $region163: #{tpu_custom_call.1} parent=1 // pred_check_branch
      %344 = sbr.rel (0) target = $region165
    $region164: #{tpu_custom_call.1} parent=1 // pred_region
      %345 = dma.done [#allocation9], 32
    $region165: #{tpu_custom_call.1} parent=1 // pred_fallthru
      _
    // Predicated region
    $region166: #{tpu_custom_call.1} parent=1 // pred_check
      _
    $region167: #{tpu_custom_call.1} parent=1 // pred_check_branch
      %347 = sbr.rel (0) target = $region169
    $region168: #{tpu_custom_call.1} parent=1 // pred_region
      %348 = dma.done [#allocation9], 32
    $region169: #{tpu_custom_call.1} parent=1 // pred_fallthru
      _
    // Predicated region
    $region170: #{tpu_custom_call.1} parent=1 // pred_check
      _
    $region171: #{tpu_custom_call.1} parent=1 // pred_check_branch
      %350 = sbr.rel (0) target = $region173
    $region172: #{tpu_custom_call.1} parent=1 // pred_region
      %351 = dma.done [#allocation12], 32
    $region173: #{tpu_custom_call.1} parent=1 // pred_fallthru
      _
    // Predicated region
    $region174: #{tpu_custom_call.1} parent=1 // pred_check
      _
    $region175: #{tpu_custom_call.1} parent=1 // pred_check_branch
      %353 = sbr.rel (0) target = $region177
    $region176: #{tpu_custom_call.1} parent=1 // pred_region
      %354 = dma.done [#allocation12], 32
    $region177: #{tpu_custom_call.1} parent=1 // pred_fallthru
      _
    // Predicated region
    $region178: #{tpu_custom_call.1} parent=1 // pred_check
      _
    $region179: #{tpu_custom_call.1} parent=1 // pred_check_branch
      %356 = sbr.rel (0) target = $region181
    $region180: #{tpu_custom_call.1} parent=1 // pred_region
      %357 = dma.done [#allocation15], 32
    $region181: #{tpu_custom_call.1} parent=1 // pred_fallthru
      _
    // Predicated region
    $region182: #{tpu_custom_call.1} parent=1 // pred_check
      _
    $region183: #{tpu_custom_call.1} parent=1 // pred_check_branch
      %359 = sbr.rel (0) target = $region185
    $region184: #{tpu_custom_call.1} parent=1 // pred_region
      %360 = dma.done [#allocation15], 32
    $region185: #{tpu_custom_call.1} parent=1 // pred_fallthru
      _
    // Predicated region
    $region186: #{tpu_custom_call.1} parent=1 // pred_check
      _
    $region187: #{tpu_custom_call.1} parent=1 // pred_check_branch
      %362 = sbr.rel (0) target = $region189
    $region188: #{tpu_custom_call.1} parent=1 // pred_region
      %363 = dma.done [#allocation18], 32
    $region189: #{tpu_custom_call.1} parent=1 // pred_fallthru
      _
    // Predicated region
    $region190: #{tpu_custom_call.1} parent=1 // pred_check
      _
    $region191: #{tpu_custom_call.1} parent=1 // pred_check_branch
      %365 = sbr.rel (0) target = $region193
    $region192: #{tpu_custom_call.1} parent=1 // pred_region
      %366 = dma.done [#allocation18], 32
    $region193: #{tpu_custom_call.1} parent=1 // pred_fallthru
      _
    // Predicated region
    $region194: #{tpu_custom_call.1} parent=1 // pred_check
      _
    $region195: #{tpu_custom_call.1} parent=1 // pred_check_branch
      %368 = sbr.rel (0) target = $region197
    $region196: #{tpu_custom_call.1} parent=1 // pred_region
      %369 = dma.done [#allocation21], 32
    $region197: #{tpu_custom_call.1} parent=1 // pred_fallthru
      _
    // Predicated region
    $region198: #{tpu_custom_call.1} parent=1 // pred_check
      _
    $region199: #{tpu_custom_call.1} parent=1 // pred_check_branch
      %371 = sbr.rel (0) target = $region201
    $region200: #{tpu_custom_call.1} parent=1 // pred_region
      %372 = dma.done [#allocation21], 32
    $region201: #{tpu_custom_call.1} parent=1 // pred_fallthru
      _
    // Predicated region
    $region202: #{tpu_custom_call.1} parent=1 // pred_check
      _
    $region203: #{tpu_custom_call.1} parent=1 // pred_check_branch
      %374 = sbr.rel (0) target = $region205
    $region204: #{tpu_custom_call.1} parent=1 // pred_region
      %375 = dma.done [#allocation24], 512
    $region205: #{tpu_custom_call.1} parent=1 // pred_fallthru
      _
    // Predicated region
    $region206: #{tpu_custom_call.1} parent=1 // pred_check
      _
    $region207: #{tpu_custom_call.1} parent=1 // pred_check_branch
      %377 = sbr.rel (0) target = $region209
    $region208: #{tpu_custom_call.1} parent=1 // pred_region
      %378 = dma.done [#allocation24], 32
    $region209: #{tpu_custom_call.1} parent=1 // pred_fallthru
      _
    // Predicated region
    $region210: #{tpu_custom_call.1} parent=1 // pred_check
      _
    $region211: #{tpu_custom_call.1} parent=1 // pred_check_branch
      %380 = sbr.rel (0) target = $region213
    $region212: #{tpu_custom_call.1} parent=1 // pred_region
      %381 = dma.done [#allocation27], 512
    $region213: #{tpu_custom_call.1} parent=1 // pred_fallthru
      _
    // Predicated region
    $region214: #{tpu_custom_call.1} parent=1 // pred_check
      _
    $region215: #{tpu_custom_call.1} parent=1 // pred_check_branch
      %383 = sbr.rel (0) target = $region217
    $region216: #{tpu_custom_call.1} parent=1 // pred_region
      %384 = dma.done [#allocation27], 512
    $region217: #{tpu_custom_call.1} parent=1 // pred_fallthru
      _
    %v386 = vld [vmem:[#allocation7] sm:$0x1]
    %v387 = vld [vmem:[#allocation7 + $0x1] sm:$0x1]
    %v388 = vld [vmem:[#allocation2] sm:$0xff]
    %v389 = vld [vmem:[#allocation2 + $0x8] sm:$0xff]
    %v392 = vlaneseq
    %v393 = vshrl.u32 %v392, 7
    %v394 = vsub.s32 0, %v393
    %v395 = vrot.slane %v386, %v394
    %v396 = vlaneseq
    %v397 = vshrl.u32 %v396, 7
    %v398 = vsub.s32 0, %v397
    %v399 = vrot.slane %v387, %v398
    %v402 = vadd.f32 %v388, %v395
    %v403 = vadd.f32 %v389, %v399
    %v404 = vld [vmem:[%s7] sm:$0xf]
    %v405 = vld [vmem:[%s7 + $0x4] sm:$0xf]
    %v406 = vld [vmem:[%s7 + $0x8] sm:$0xf]
    %v407 = vld [vmem:[%s7 + $0xc] sm:$0xf]
    %v408 = vld [vmem:[#allocation8] sm:$0x1]
    %v409 = vld [vmem:[%s11] sm:$0xf]
    %v410 = vld [vmem:[%s11 + $0x4] sm:$0xf]
    %v411 = vld [vmem:[%s11 + $0x8] sm:$0xf]
    %v412 = vld [vmem:[%s11 + $0xc] sm:$0xf]
    %v413 = vld [vmem:[#allocation10] sm:$0x1]
    %v414 = vpack.c.bf16 %v403, %v402
    %v416 = vlaneseq
    %v417 = vshrl.u32 %v416, 7
    %v418 = vsub.s32 0, %v417
    %v419 = vrot.slane %v408, %v418
    %v425 = vunpack.c.l.b16 %v404
    %v426 = vunpack.c.l.b16 %v405
    %v427 = vunpack.c.l.b16 %v406
    %v428 = vunpack.c.l.b16 %v407
    %v429 = vpack.c.b16 %v426, %v425
    %v430 = vpack.c.b16 %v428, %v427
    %vm433 = vcmask 261120
    %v435 = vsel %vm433, %v414, 0
    %437 = vmatprep.subr.bf16.mxu0 0
    %438 = vmatpush1.bf16.msra.mxu0 %v429
    %439 = vmatprep.subr.bf16.mxu0 0
    %440 = vmatpush1.bf16.msra.mxu0 %v430
    %441 = vmatprep.subr.bf16.mxu0 0
    %442 = vmatpush1.bf16.msra.mxu0 0
    %443 = vmatprep.subr.bf16.mxu0 0
    %444 = vmatpush1.bf16.msra.mxu0 0
    %445 = vmatprep.subr.bf16.mxu0 0
    %446 = vmatpush1.bf16.msra.mxu0 0
    %447 = vmatprep.subr.bf16.mxu0 0
    %448 = vmatpush1.bf16.msra.mxu0 0
    %449 = vmatprep.subr.bf16.mxu0 0
    %450 = vmatpush1.bf16.msra.mxu0 0
    %451 = vmatprep.subr.bf16.mxu0 0
    %452 = vmatpush1.bf16.msra.mxu0 0
    %453 = vmatprep.subr.bf16.mxu0 0
    %454 = vmatpush1.bf16.msra.mxu0 0
    %455 = vmatprep.subr.bf16.mxu0 0
    %456 = vmatpush1.bf16.msra.mxu0 0
    %457 = vmatprep.subr.bf16.mxu0 0
    %458 = vmatpush1.bf16.msra.mxu0 0
    %459 = vmatprep.subr.bf16.mxu0 0
    %460 = vmatpush1.bf16.msra.mxu0 0
    %461 = vmatprep.subr.bf16.mxu0 0
    %462 = vmatpush1.bf16.msra.mxu0 0
    %463 = vmatprep.subr.bf16.mxu0 0
    %464 = vmatpush1.bf16.msra.mxu0 0
    %465 = vmatprep.subr.bf16.mxu0 0
    %466 = vmatpush1.bf16.msra.mxu0 0
    %467 = vmatprep.subr.bf16.mxu0 0
    %468 = vmatpush1.bf16.msra.mxu0 0
    %469 = vmatprep.mubr.bf16.mxu0 0
    %470 = vmatmul.mubr.bf16.gmra.mrb[0].mxu0 %v435
    %v471 = vpop.f32.mrb[0].mxu0
    %v472 = vadd.f32 %v419, %v471
    %v473 = vpop.f32.mrb[0].mxu0
    %v474 = vpop.f32.mrb[0].mxu0
    %v475 = vadd.f32 %v419, %v474
    %v476 = vpop.f32.mrb[0].mxu0
    %477 = vdwg.mxu0
    %v478 = vpack.c.bf16 %v472, %v472
    %v479 = vpack.c.bf16 %v475, %v475
    %481 = vrot.lane.b32.xlu0 %v478, 96
    %v482 = vpop.permute.xlu0 %481
    %vm483 = vcmask 64512
    %v485 = vsel %vm483, %v478, 0
    %v488 = vsel %vm483, %v482, 0
    %490 = vmatprep.subr.bf16.mxu0 0
    %491 = vmatpush1.bf16.xpose.msra.mxu0 %v488
    %492 = vmatprep.subr.bf16.mxu0 0
    %493 = vmatpush1.bf16.xpose.msra.mxu0 0
    %494 = vmatprep.subr.bf16.mxu0 0
    %495 = vmatpush1.bf16.xpose.msra.mxu0 0
    %496 = vmatprep.subr.bf16.mxu0 0
    %497 = vmatpush1.bf16.xpose.msra.mxu0 0
    %498 = vmatprep.subr.bf16.mxu0 0
    %499 = vmatpush1.bf16.xpose.msra.mxu0 0
    %500 = vmatprep.subr.bf16.mxu0 0
    %501 = vmatpush1.bf16.xpose.msra.mxu0 0
    %502 = vmatprep.subr.bf16.mxu0 0
    %503 = vmatpush1.bf16.xpose.msra.mxu0 0
    %504 = vmatprep.subr.bf16.mxu0 0
    %505 = vmatpush1.bf16.xpose.msra.mxu0 0
    %506 = vmatprep.subr.bf16.mxu0 0
    %507 = vmatpush1.bf16.xpose.msra.mxu0 0
    %508 = vmatprep.subr.bf16.mxu0 0
    %509 = vmatpush1.bf16.xpose.msra.mxu0 0
    %510 = vmatprep.subr.bf16.mxu0 0
    %511 = vmatpush1.bf16.xpose.msra.mxu0 0
    %512 = vmatprep.subr.bf16.mxu0 0
    %513 = vmatpush1.bf16.xpose.msra.mxu0 0
    %514 = vmatprep.subr.bf16.mxu0 0
    %515 = vmatpush1.bf16.xpose.msra.mxu0 0
    %516 = vmatprep.subr.bf16.mxu0 0
    %517 = vmatpush1.bf16.xpose.msra.mxu0 0
    %518 = vmatprep.subr.bf16.mxu0 0
    %519 = vmatpush1.bf16.xpose.msra.mxu0 0
    %520 = vmatprep.subr.bf16.mxu0 0
    %521 = vmatpush1.bf16.xpose.msra.mxu0 0
    %522 = vmatprep.mubr.bf16.mxu0 0
    %523 = vmatmul.mubr.bf16.gmra.mrb[0].mxu0 %v485
    %v524 = vpop.f32.mrb[0].mxu0
    %v525 = vadd.f32 0.0, %v524
    %v526 = vpop.f32.mrb[0].mxu0
    %v527 = vpop.f32.mrb[0].mxu0
    %v528 = vpop.f32.mrb[0].mxu0
    %529 = vdwg.mxu0
    %531 = vrot.lane.b32.xlu0 %v479, 96
    %v532 = vpop.permute.xlu0 %531
    %v534 = vsel %vm483, %v479, 0
    %v537 = vsel %vm483, %v532, 0
    %539 = vmatprep.subr.bf16.mxu0 0
    %540 = vmatpush1.bf16.xpose.msra.mxu0 %v537
    %541 = vmatprep.subr.bf16.mxu0 0
    %542 = vmatpush1.bf16.xpose.msra.mxu0 0
    %543 = vmatprep.subr.bf16.mxu0 0
    %544 = vmatpush1.bf16.xpose.msra.mxu0 0
    %545 = vmatprep.subr.bf16.mxu0 0
    %546 = vmatpush1.bf16.xpose.msra.mxu0 0
    %547 = vmatprep.subr.bf16.mxu0 0
    %548 = vmatpush1.bf16.xpose.msra.mxu0 0
    %549 = vmatprep.subr.bf16.mxu0 0
    %550 = vmatpush1.bf16.xpose.msra.mxu0 0
    %551 = vmatprep.subr.bf16.mxu0 0
    %552 = vmatpush1.bf16.xpose.msra.mxu0 0
    %553 = vmatprep.subr.bf16.mxu0 0
    %554 = vmatpush1.bf16.xpose.msra.mxu0 0
    %555 = vmatprep.subr.bf16.mxu0 0
    %556 = vmatpush1.bf16.xpose.msra.mxu0 0
    %557 = vmatprep.subr.bf16.mxu0 0
    %558 = vmatpush1.bf16.xpose.msra.mxu0 0
    %559 = vmatprep.subr.bf16.mxu0 0
    %560 = vmatpush1.bf16.xpose.msra.mxu0 0
    %561 = vmatprep.subr.bf16.mxu0 0
    %562 = vmatpush1.bf16.xpose.msra.mxu0 0
    %563 = vmatprep.subr.bf16.mxu0 0
    %564 = vmatpush1.bf16.xpose.msra.mxu0 0
    %565 = vmatprep.subr.bf16.mxu0 0
    %566 = vmatpush1.bf16.xpose.msra.mxu0 0
    %567 = vmatprep.subr.bf16.mxu0 0
    %568 = vmatpush1.bf16.xpose.msra.mxu0 0
    %569 = vmatprep.subr.bf16.mxu0 0
    %570 = vmatpush1.bf16.xpose.msra.mxu0 0
    %571 = vmatprep.mubr.bf16.mxu0 0
    %572 = vmatmul.mubr.bf16.gmra.mrb[0].mxu0 %v534
    %v573 = vpop.f32.mrb[0].mxu0
    %v574 = vadd.f32 0.0, %v573
    %v575 = vpop.f32.mrb[0].mxu0
    %v576 = vpop.f32.mrb[0].mxu0
    %v577 = vpop.f32.mrb[0].mxu0
    %578 = vdwg.mxu0
    %v579 = vsel %vm483, %v525, -inf
    %580 = vmax.xlane.f32.xlu0 %v579
    %v581 = vpop.xlane.xlu0 %580
    %v582 = vsel %vm483, %v574, -inf
    %583 = vmax.xlane.f32.xlu0 %v582
    %v584 = vpop.xlane.xlu0 %583
    %v585 = vsub.f32 %v525, %v581
    %v586 = vsub.f32 %v574, %v584
    %v587 = vmul.f32 %v585, 1.442695
    %v588 = vpow.pop %v587
    %v589 = vmul.f32 %v586, 1.442695
    %v590 = vpow.pop %v589
    %v591 = vsel %vm483, %v588, 0.0
    %592 = vadd.xlane.f32.xlu0 %v591
    %v593 = vpop.xlane.xlu0 %592
    %v594 = vsel %vm483, %v590, 0.0
    %595 = vadd.xlane.f32.xlu0 %v594
    %v596 = vpop.xlane.xlu0 %595
    %v597 = vrcp.pop %v593
    %v598 = vrcp.pop %v596
    %v599 = vmul.f32 %v588, %v597
    %v600 = vmul.f32 %v590, %v598
    %v601 = vpack.c.bf16 %v599, %v599
    %v602 = vpack.c.bf16 %v600, %v600
    %603 = vrot.lane.b32.xlu0 %v478, 64
    %v604 = vpop.permute.xlu0 %603
    %v606 = vsel %vm483, %v601, 0
    %vm608 = vcmask 1043456
    %v610 = vsel %vm608, %v604, 0
    %612 = vmatprep.subr.bf16.mxu0 0
    %613 = vmatpush1.bf16.msra.mxu0 %v610
    %614 = vmatprep.subr.bf16.mxu0 0
    %615 = vmatpush1.bf16.msra.mxu0 0
    %616 = vmatprep.subr.bf16.mxu0 0
    %617 = vmatpush1.bf16.msra.mxu0 0
    %618 = vmatprep.subr.bf16.mxu0 0
    %619 = vmatpush1.bf16.msra.mxu0 0
    %620 = vmatprep.subr.bf16.mxu0 0
    %621 = vmatpush1.bf16.msra.mxu0 0
    %622 = vmatprep.subr.bf16.mxu0 0
    %623 = vmatpush1.bf16.msra.mxu0 0
    %624 = vmatprep.subr.bf16.mxu0 0
    %625 = vmatpush1.bf16.msra.mxu0 0
    %626 = vmatprep.subr.bf16.mxu0 0
    %627 = vmatpush1.bf16.msra.mxu0 0
    %628 = vmatprep.subr.bf16.mxu0 0
    %629 = vmatpush1.bf16.msra.mxu0 0
    %630 = vmatprep.subr.bf16.mxu0 0
    %631 = vmatpush1.bf16.msra.mxu0 0
    %632 = vmatprep.subr.bf16.mxu0 0
    %633 = vmatpush1.bf16.msra.mxu0 0
    %634 = vmatprep.subr.bf16.mxu0 0
    %635 = vmatpush1.bf16.msra.mxu0 0
    %636 = vmatprep.subr.bf16.mxu0 0
    %637 = vmatpush1.bf16.msra.mxu0 0
    %638 = vmatprep.subr.bf16.mxu0 0
    %639 = vmatpush1.bf16.msra.mxu0 0
    %640 = vmatprep.subr.bf16.mxu0 0
    %641 = vmatpush1.bf16.msra.mxu0 0
    %642 = vmatprep.subr.bf16.mxu0 0
    %643 = vmatpush1.bf16.msra.mxu0 0
    %644 = vmatprep.mubr.bf16.mxu0 0
    %645 = vmatmul.mubr.bf16.gmra.mrb[0].mxu0 %v606
    %v646 = vpop.f32.mrb[0].mxu0
    %v647 = vadd.f32 0.0, %v646
    %v648 = vpop.f32.mrb[0].mxu0
    %v649 = vpop.f32.mrb[0].mxu0
    %v650 = vpop.f32.mrb[0].mxu0
    %651 = vdwg.mxu0
    %652 = vrot.lane.b32.xlu0 %v479, 64
    %v653 = vpop.permute.xlu0 %652
    %v655 = vsel %vm483, %v602, 0
    %v658 = vsel %vm608, %v653, 0
    %660 = vmatprep.subr.bf16.mxu0 0
    %661 = vmatpush1.bf16.msra.mxu0 %v658
    %662 = vmatprep.subr.bf16.mxu0 0
    %663 = vmatpush1.bf16.msra.mxu0 0
    %664 = vmatprep.subr.bf16.mxu0 0
    %665 = vmatpush1.bf16.msra.mxu0 0
    %666 = vmatprep.subr.bf16.mxu0 0
    %667 = vmatpush1.bf16.msra.mxu0 0
    %668 = vmatprep.subr.bf16.mxu0 0
    %669 = vmatpush1.bf16.msra.mxu0 0
    %670 = vmatprep.subr.bf16.mxu0 0
    %671 = vmatpush1.bf16.msra.mxu0 0
    %672 = vmatprep.subr.bf16.mxu0 0
    %673 = vmatpush1.bf16.msra.mxu0 0
    %674 = vmatprep.subr.bf16.mxu0 0
    %675 = vmatpush1.bf16.msra.mxu0 0
    %676 = vmatprep.subr.bf16.mxu0 0
    %677 = vmatpush1.bf16.msra.mxu0 0
    %678 = vmatprep.subr.bf16.mxu0 0
    %679 = vmatpush1.bf16.msra.mxu0 0
    %680 = vmatprep.subr.bf16.mxu0 0
    %681 = vmatpush1.bf16.msra.mxu0 0
    %682 = vmatprep.subr.bf16.mxu0 0
    %683 = vmatpush1.bf16.msra.mxu0 0
    %684 = vmatprep.subr.bf16.mxu0 0
    %685 = vmatpush1.bf16.msra.mxu0 0
    %686 = vmatprep.subr.bf16.mxu0 0
    %687 = vmatpush1.bf16.msra.mxu0 0
    %688 = vmatprep.subr.bf16.mxu0 0
    %689 = vmatpush1.bf16.msra.mxu0 0
    %690 = vmatprep.subr.bf16.mxu0 0
    %691 = vmatpush1.bf16.msra.mxu0 0
    %692 = vmatprep.mubr.bf16.mxu0 0
    %693 = vmatmul.mubr.bf16.gmra.mrb[0].mxu0 %v655
    %v694 = vpop.f32.mrb[0].mxu0
    %v695 = vadd.f32 0.0, %v694
    %v696 = vpop.f32.mrb[0].mxu0
    %v697 = vpop.f32.mrb[0].mxu0
    %v698 = vpop.f32.mrb[0].mxu0
    %699 = vdwg.mxu0
    %700 = vrot.lane.b32.xlu0 %v478, 120
    %v701 = vpop.permute.xlu0 %700
    %702 = vrot.lane.b32.xlu0 %v478, 88
    %v703 = vpop.permute.xlu0 %702
    %v705 = vsel %vm483, %v701, 0
    %v708 = vsel %vm483, %v703, 0
    %710 = vmatprep.subr.bf16.mxu0 0
    %711 = vmatpush1.bf16.xpose.msra.mxu0 %v708
    %712 = vmatprep.subr.bf16.mxu0 0
    %713 = vmatpush1.bf16.xpose.msra.mxu0 0
    %714 = vmatprep.subr.bf16.mxu0 0
    %715 = vmatpush1.bf16.xpose.msra.mxu0 0
    %716 = vmatprep.subr.bf16.mxu0 0
    %717 = vmatpush1.bf16.xpose.msra.mxu0 0
    %718 = vmatprep.subr.bf16.mxu0 0
    %719 = vmatpush1.bf16.xpose.msra.mxu0 0
    %720 = vmatprep.subr.bf16.mxu0 0
    %721 = vmatpush1.bf16.xpose.msra.mxu0 0
    %722 = vmatprep.subr.bf16.mxu0 0
    %723 = vmatpush1.bf16.xpose.msra.mxu0 0
    %724 = vmatprep.subr.bf16.mxu0 0
    %725 = vmatpush1.bf16.xpose.msra.mxu0 0
    %726 = vmatprep.subr.bf16.mxu0 0
    %727 = vmatpush1.bf16.xpose.msra.mxu0 0
    %728 = vmatprep.subr.bf16.mxu0 0
    %729 = vmatpush1.bf16.xpose.msra.mxu0 0
    %730 = vmatprep.subr.bf16.mxu0 0
    %731 = vmatpush1.bf16.xpose.msra.mxu0 0
    %732 = vmatprep.subr.bf16.mxu0 0
    %733 = vmatpush1.bf16.xpose.msra.mxu0 0
    %734 = vmatprep.subr.bf16.mxu0 0
    %735 = vmatpush1.bf16.xpose.msra.mxu0 0
    %736 = vmatprep.subr.bf16.mxu0 0
    %737 = vmatpush1.bf16.xpose.msra.mxu0 0
    %738 = vmatprep.subr.bf16.mxu0 0
    %739 = vmatpush1.bf16.xpose.msra.mxu0 0
    %740 = vmatprep.subr.bf16.mxu0 0
    %741 = vmatpush1.bf16.xpose.msra.mxu0 0
    %742 = vmatprep.mubr.bf16.mxu0 0
    %743 = vmatmul.mubr.bf16.gmra.mrb[0].mxu0 %v705
    %v744 = vpop.f32.mrb[0].mxu0
    %v745 = vadd.f32 0.0, %v744
    %v746 = vpop.f32.mrb[0].mxu0
    %v747 = vpop.f32.mrb[0].mxu0
    %v748 = vpop.f32.mrb[0].mxu0
    %749 = vdwg.mxu0
    %750 = vrot.lane.b32.xlu0 %v479, 120
    %v751 = vpop.permute.xlu0 %750
    %752 = vrot.lane.b32.xlu0 %v479, 88
    %v753 = vpop.permute.xlu0 %752
    %v755 = vsel %vm483, %v751, 0
    %v758 = vsel %vm483, %v753, 0
    %760 = vmatprep.subr.bf16.mxu0 0
    %761 = vmatpush1.bf16.xpose.msra.mxu0 %v758
    %762 = vmatprep.subr.bf16.mxu0 0
    %763 = vmatpush1.bf16.xpose.msra.mxu0 0
    %764 = vmatprep.subr.bf16.mxu0 0
    %765 = vmatpush1.bf16.xpose.msra.mxu0 0
    %766 = vmatprep.subr.bf16.mxu0 0
    %767 = vmatpush1.bf16.xpose.msra.mxu0 0
    %768 = vmatprep.subr.bf16.mxu0 0
    %769 = vmatpush1.bf16.xpose.msra.mxu0 0
    %770 = vmatprep.subr.bf16.mxu0 0
    %771 = vmatpush1.bf16.xpose.msra.mxu0 0
    %772 = vmatprep.subr.bf16.mxu0 0
    %773 = vmatpush1.bf16.xpose.msra.mxu0 0
    %774 = vmatprep.subr.bf16.mxu0 0
    %775 = vmatpush1.bf16.xpose.msra.mxu0 0
    %776 = vmatprep.subr.bf16.mxu0 0
    %777 = vmatpush1.bf16.xpose.msra.mxu0 0
    %778 = vmatprep.subr.bf16.mxu0 0
    %779 = vmatpush1.bf16.xpose.msra.mxu0 0
    %780 = vmatprep.subr.bf16.mxu0 0
    %781 = vmatpush1.bf16.xpose.msra.mxu0 0
    %782 = vmatprep.subr.bf16.mxu0 0
    %783 = vmatpush1.bf16.xpose.msra.mxu0 0
    %784 = vmatprep.subr.bf16.mxu0 0
    %785 = vmatpush1.bf16.xpose.msra.mxu0 0
    %786 = vmatprep.subr.bf16.mxu0 0
    %787 = vmatpush1.bf16.xpose.msra.mxu0 0
    %788 = vmatprep.subr.bf16.mxu0 0
    %789 = vmatpush1.bf16.xpose.msra.mxu0 0
    %790 = vmatprep.subr.bf16.mxu0 0
    %791 = vmatpush1.bf16.xpose.msra.mxu0 0
    %792 = vmatprep.mubr.bf16.mxu0 0
    %793 = vmatmul.mubr.bf16.gmra.mrb[0].mxu0 %v755
    %v794 = vpop.f32.mrb[0].mxu0
    %v795 = vadd.f32 0.0, %v794
    %v796 = vpop.f32.mrb[0].mxu0
    %v797 = vpop.f32.mrb[0].mxu0
    %v798 = vpop.f32.mrb[0].mxu0
    %799 = vdwg.mxu0
    %v800 = vsel %vm483, %v745, -inf
    %801 = vmax.xlane.f32.xlu0 %v800
    %v802 = vpop.xlane.xlu0 %801
    %v803 = vsel %vm483, %v795, -inf
    %804 = vmax.xlane.f32.xlu0 %v803
    %v805 = vpop.xlane.xlu0 %804
    %v806 = vsub.f32 %v745, %v802
    %v807 = vsub.f32 %v795, %v805
    %v808 = vmul.f32 %v806, 1.442695
    %v809 = vpow.pop %v808
    %v810 = vmul.f32 %v807, 1.442695
    %v811 = vpow.pop %v810
    %v812 = vsel %vm483, %v809, 0.0
    %813 = vadd.xlane.f32.xlu0 %v812
    %v814 = vpop.xlane.xlu0 %813
    %v815 = vsel %vm483, %v811, 0.0
    %816 = vadd.xlane.f32.xlu0 %v815
    %v817 = vpop.xlane.xlu0 %816
    %v818 = vrcp.pop %v814
    %v819 = vrcp.pop %v817
    %v820 = vmul.f32 %v809, %v818
    %v821 = vmul.f32 %v811, %v819
    %v822 = vpack.c.bf16 %v820, %v820
    %v823 = vpack.c.bf16 %v821, %v821
    %824 = vrot.lane.b32.xlu0 %v478, 56
    %v825 = vpop.permute.xlu0 %824
    %v827 = vsel %vm483, %v822, 0
    %v830 = vsel %vm608, %v825, 0
    %832 = vmatprep.subr.bf16.mxu0 0
    %833 = vmatpush1.bf16.msra.mxu0 %v830
    %834 = vmatprep.subr.bf16.mxu0 0
    %835 = vmatpush1.bf16.msra.mxu0 0
    %836 = vmatprep.subr.bf16.mxu0 0
    %837 = vmatpush1.bf16.msra.mxu0 0
    %838 = vmatprep.subr.bf16.mxu0 0
    %839 = vmatpush1.bf16.msra.mxu0 0
    %840 = vmatprep.subr.bf16.mxu0 0
    %841 = vmatpush1.bf16.msra.mxu0 0
    %842 = vmatprep.subr.bf16.mxu0 0
    %843 = vmatpush1.bf16.msra.mxu0 0
    %844 = vmatprep.subr.bf16.mxu0 0
    %845 = vmatpush1.bf16.msra.mxu0 0
    %846 = vmatprep.subr.bf16.mxu0 0
    %847 = vmatpush1.bf16.msra.mxu0 0
    %848 = vmatprep.subr.bf16.mxu0 0
    %849 = vmatpush1.bf16.msra.mxu0 0
    %850 = vmatprep.subr.bf16.mxu0 0
    %851 = vmatpush1.bf16.msra.mxu0 0
    %852 = vmatprep.subr.bf16.mxu0 0
    %853 = vmatpush1.bf16.msra.mxu0 0
    %854 = vmatprep.subr.bf16.mxu0 0
    %855 = vmatpush1.bf16.msra.mxu0 0
    %856 = vmatprep.subr.bf16.mxu0 0
    %857 = vmatpush1.bf16.msra.mxu0 0
    %858 = vmatprep.subr.bf16.mxu0 0
    %859 = vmatpush1.bf16.msra.mxu0 0
    %860 = vmatprep.subr.bf16.mxu0 0
    %861 = vmatpush1.bf16.msra.mxu0 0
    %862 = vmatprep.subr.bf16.mxu0 0
    %863 = vmatpush1.bf16.msra.mxu0 0
    %864 = vmatprep.mubr.bf16.mxu0 0
    %865 = vmatmul.mubr.bf16.gmra.mrb[0].mxu0 %v827
    %v866 = vpop.f32.mrb[0].mxu0
    %v867 = vadd.f32 0.0, %v866
    %v868 = vpop.f32.mrb[0].mxu0
    %v869 = vpop.f32.mrb[0].mxu0
    %v870 = vpop.f32.mrb[0].mxu0
    %871 = vdwg.mxu0
    %872 = vrot.lane.b32.xlu0 %v479, 56
    %v873 = vpop.permute.xlu0 %872
    %v875 = vsel %vm483, %v823, 0
    %v878 = vsel %vm608, %v873, 0
    %880 = vmatprep.subr.bf16.mxu0 0
    %881 = vmatpush1.bf16.msra.mxu0 %v878
    %882 = vmatprep.subr.bf16.mxu0 0
    %883 = vmatpush1.bf16.msra.mxu0 0
    %884 = vmatprep.subr.bf16.mxu0 0
    %885 = vmatpush1.bf16.msra.mxu0 0
    %886 = vmatprep.subr.bf16.mxu0 0
    %887 = vmatpush1.bf16.msra.mxu0 0
    %888 = vmatprep.subr.bf16.mxu0 0
    %889 = vmatpush1.bf16.msra.mxu0 0
    %890 = vmatprep.subr.bf16.mxu0 0
    %891 = vmatpush1.bf16.msra.mxu0 0
    %892 = vmatprep.subr.bf16.mxu0 0
    %893 = vmatpush1.bf16.msra.mxu0 0
    %894 = vmatprep.subr.bf16.mxu0 0
    %895 = vmatpush1.bf16.msra.mxu0 0
    %896 = vmatprep.subr.bf16.mxu0 0
    %897 = vmatpush1.bf16.msra.mxu0 0
    %898 = vmatprep.subr.bf16.mxu0 0
    %899 = vmatpush1.bf16.msra.mxu0 0
    %900 = vmatprep.subr.bf16.mxu0 0
    %901 = vmatpush1.bf16.msra.mxu0 0
    %902 = vmatprep.subr.bf16.mxu0 0
    %903 = vmatpush1.bf16.msra.mxu0 0
    %904 = vmatprep.subr.bf16.mxu0 0
    %905 = vmatpush1.bf16.msra.mxu0 0
    %906 = vmatprep.subr.bf16.mxu0 0
    %907 = vmatpush1.bf16.msra.mxu0 0
    %908 = vmatprep.subr.bf16.mxu0 0
    %909 = vmatpush1.bf16.msra.mxu0 0
    %910 = vmatprep.subr.bf16.mxu0 0
    %911 = vmatpush1.bf16.msra.mxu0 0
    %912 = vmatprep.mubr.bf16.mxu0 0
    %913 = vmatmul.mubr.bf16.gmra.mrb[0].mxu0 %v875
    %v914 = vpop.f32.mrb[0].mxu0
    %v915 = vadd.f32 0.0, %v914
    %v916 = vpop.f32.mrb[0].mxu0
    %v917 = vpop.f32.mrb[0].mxu0
    %v918 = vpop.f32.mrb[0].mxu0
    %919 = vdwg.mxu0
    %920 = vrot.lane.b32.xlu0 %v478, 112
    %v921 = vpop.permute.xlu0 %920
    %922 = vrot.lane.b32.xlu0 %v478, 80
    %v923 = vpop.permute.xlu0 %922
    %v925 = vsel %vm483, %v921, 0
    %v928 = vsel %vm483, %v923, 0
    %930 = vmatprep.subr.bf16.mxu0 0
    %931 = vmatpush1.bf16.xpose.msra.mxu0 %v928
    %932 = vmatprep.subr.bf16.mxu0 0
    %933 = vmatpush1.bf16.xpose.msra.mxu0 0
    %934 = vmatprep.subr.bf16.mxu0 0
    %935 = vmatpush1.bf16.xpose.msra.mxu0 0
    %936 = vmatprep.subr.bf16.mxu0 0
    %937 = vmatpush1.bf16.xpose.msra.mxu0 0
    %938 = vmatprep.subr.bf16.mxu0 0
    %939 = vmatpush1.bf16.xpose.msra.mxu0 0
    %940 = vmatprep.subr.bf16.mxu0 0
    %941 = vmatpush1.bf16.xpose.msra.mxu0 0
    %942 = vmatprep.subr.bf16.mxu0 0
    %943 = vmatpush1.bf16.xpose.msra.mxu0 0
    %944 = vmatprep.subr.bf16.mxu0 0
    %945 = vmatpush1.bf16.xpose.msra.mxu0 0
    %946 = vmatprep.subr.bf16.mxu0 0
    %947 = vmatpush1.bf16.xpose.msra.mxu0 0
    %948 = vmatprep.subr.bf16.mxu0 0
    %949 = vmatpush1.bf16.xpose.msra.mxu0 0
    %950 = vmatprep.subr.bf16.mxu0 0
    %951 = vmatpush1.bf16.xpose.msra.mxu0 0
    %952 = vmatprep.subr.bf16.mxu0 0
    %953 = vmatpush1.bf16.xpose.msra.mxu0 0
    %954 = vmatprep.subr.bf16.mxu0 0
    %955 = vmatpush1.bf16.xpose.msra.mxu0 0
    %956 = vmatprep.subr.bf16.mxu0 0
    %957 = vmatpush1.bf16.xpose.msra.mxu0 0
    %958 = vmatprep.subr.bf16.mxu0 0
    %959 = vmatpush1.bf16.xpose.msra.mxu0 0
    %960 = vmatprep.subr.bf16.mxu0 0
    %961 = vmatpush1.bf16.xpose.msra.mxu0 0
    %962 = vmatprep.mubr.bf16.mxu0 0
    %963 = vmatmul.mubr.bf16.gmra.mrb[0].mxu0 %v925
    %v964 = vpop.f32.mrb[0].mxu0
    %v965 = vadd.f32 0.0, %v964
    %v966 = vpop.f32.mrb[0].mxu0
    %v967 = vpop.f32.mrb[0].mxu0
    %v968 = vpop.f32.mrb[0].mxu0
    %969 = vdwg.mxu0
    %970 = vrot.lane.b32.xlu0 %v479, 112
    %v971 = vpop.permute.xlu0 %970
    %972 = vrot.lane.b32.xlu0 %v479, 80
    %v973 = vpop.permute.xlu0 %972
    %v975 = vsel %vm483, %v971, 0
    %v978 = vsel %vm483, %v973, 0
    %980 = vmatprep.subr.bf16.mxu0 0
    %981 = vmatpush1.bf16.xpose.msra.mxu0 %v978
    %982 = vmatprep.subr.bf16.mxu0 0
    %983 = vmatpush1.bf16.xpose.msra.mxu0 0
    %984 = vmatprep.subr.bf16.mxu0 0
    %985 = vmatpush1.bf16.xpose.msra.mxu0 0
    %986 = vmatprep.subr.bf16.mxu0 0
    %987 = vmatpush1.bf16.xpose.msra.mxu0 0
    %988 = vmatprep.subr.bf16.mxu0 0
    %989 = vmatpush1.bf16.xpose.msra.mxu0 0
    %990 = vmatprep.subr.bf16.mxu0 0
    %991 = vmatpush1.bf16.xpose.msra.mxu0 0
    %992 = vmatprep.subr.bf16.mxu0 0
    %993 = vmatpush1.bf16.xpose.msra.mxu0 0
    %994 = vmatprep.subr.bf16.mxu0 0
    %995 = vmatpush1.bf16.xpose.msra.mxu0 0
    %996 = vmatprep.subr.bf16.mxu0 0
    %997 = vmatpush1.bf16.xpose.msra.mxu0 0
    %998 = vmatprep.subr.bf16.mxu0 0
    %999 = vmatpush1.bf16.xpose.msra.mxu0 0
    %1000 = vmatprep.subr.bf16.mxu0 0
    %1001 = vmatpush1.bf16.xpose.msra.mxu0 0
    %1002 = vmatprep.subr.bf16.mxu0 0
    %1003 = vmatpush1.bf16.xpose.msra.mxu0 0
    %1004 = vmatprep.subr.bf16.mxu0 0
    %1005 = vmatpush1.bf16.xpose.msra.mxu0 0
    %1006 = vmatprep.subr.bf16.mxu0 0
    %1007 = vmatpush1.bf16.xpose.msra.mxu0 0
    %1008 = vmatprep.subr.bf16.mxu0 0
    %1009 = vmatpush1.bf16.xpose.msra.mxu0 0
    %1010 = vmatprep.subr.bf16.mxu0 0
    %1011 = vmatpush1.bf16.xpose.msra.mxu0 0
    %1012 = vmatprep.mubr.bf16.mxu0 0
    %1013 = vmatmul.mubr.bf16.gmra.mrb[0].mxu0 %v975
    %v1014 = vpop.f32.mrb[0].mxu0
    %v1015 = vadd.f32 0.0, %v1014
    %v1016 = vpop.f32.mrb[0].mxu0
    %v1017 = vpop.f32.mrb[0].mxu0
    %v1018 = vpop.f32.mrb[0].mxu0
    %1019 = vdwg.mxu0
    %v1020 = vsel %vm483, %v965, -inf
    %1021 = vmax.xlane.f32.xlu0 %v1020
    %v1022 = vpop.xlane.xlu0 %1021
    %v1023 = vsel %vm483, %v1015, -inf
    %1024 = vmax.xlane.f32.xlu0 %v1023
    %v1025 = vpop.xlane.xlu0 %1024
    %v1026 = vsub.f32 %v965, %v1022
    %v1027 = vsub.f32 %v1015, %v1025
    %v1028 = vmul.f32 %v1026, 1.442695
    %v1029 = vpow.pop %v1028
    %v1030 = vmul.f32 %v1027, 1.442695
    %v1031 = vpow.pop %v1030
    %v1032 = vsel %vm483, %v1029, 0.0
    %1033 = vadd.xlane.f32.xlu0 %v1032
    %v1034 = vpop.xlane.xlu0 %1033
    %v1035 = vsel %vm483, %v1031, 0.0
    %1036 = vadd.xlane.f32.xlu0 %v1035
    %v1037 = vpop.xlane.xlu0 %1036
    %v1038 = vrcp.pop %v1034
    %v1039 = vrcp.pop %v1037
    %v1040 = vmul.f32 %v1029, %v1038
    %v1041 = vmul.f32 %v1031, %v1039
    %v1042 = vpack.c.bf16 %v1040, %v1040
    %v1043 = vpack.c.bf16 %v1041, %v1041
    %1044 = vrot.lane.b32.xlu0 %v478, 48
    %v1045 = vpop.permute.xlu0 %1044
    %v1047 = vsel %vm483, %v1042, 0
    %v1050 = vsel %vm608, %v1045, 0
    %1052 = vmatprep.subr.bf16.mxu0 0
    %1053 = vmatpush1.bf16.msra.mxu0 %v1050
    %1054 = vmatprep.subr.bf16.mxu0 0
    %1055 = vmatpush1.bf16.msra.mxu0 0
    %1056 = vmatprep.subr.bf16.mxu0 0
    %1057 = vmatpush1.bf16.msra.mxu0 0
    %1058 = vmatprep.subr.bf16.mxu0 0
    %1059 = vmatpush1.bf16.msra.mxu0 0
    %1060 = vmatprep.subr.bf16.mxu0 0
    %1061 = vmatpush1.bf16.msra.mxu0 0
    %1062 = vmatprep.subr.bf16.mxu0 0
    %1063 = vmatpush1.bf16.msra.mxu0 0
    %1064 = vmatprep.subr.bf16.mxu0 0
    %1065 = vmatpush1.bf16.msra.mxu0 0
    %1066 = vmatprep.subr.bf16.mxu0 0
    %1067 = vmatpush1.bf16.msra.mxu0 0
    %1068 = vmatprep.subr.bf16.mxu0 0
    %1069 = vmatpush1.bf16.msra.mxu0 0
    %1070 = vmatprep.subr.bf16.mxu0 0
    %1071 = vmatpush1.bf16.msra.mxu0 0
    %1072 = vmatprep.subr.bf16.mxu0 0
    %1073 = vmatpush1.bf16.msra.mxu0 0
    %1074 = vmatprep.subr.bf16.mxu0 0
    %1075 = vmatpush1.bf16.msra.mxu0 0
    %1076 = vmatprep.subr.bf16.mxu0 0
    %1077 = vmatpush1.bf16.msra.mxu0 0
    %1078 = vmatprep.subr.bf16.mxu0 0
    %1079 = vmatpush1.bf16.msra.mxu0 0
    %1080 = vmatprep.subr.bf16.mxu0 0
    %1081 = vmatpush1.bf16.msra.mxu0 0
    %1082 = vmatprep.subr.bf16.mxu0 0
    %1083 = vmatpush1.bf16.msra.mxu0 0
    %1084 = vmatprep.mubr.bf16.mxu0 0
    %1085 = vmatmul.mubr.bf16.gmra.mrb[0].mxu0 %v1047
    %v1086 = vpop.f32.mrb[0].mxu0
    %v1087 = vadd.f32 0.0, %v1086
    %v1088 = vpop.f32.mrb[0].mxu0
    %v1089 = vpop.f32.mrb[0].mxu0
    %v1090 = vpop.f32.mrb[0].mxu0
    %1091 = vdwg.mxu0
    %1092 = vrot.lane.b32.xlu0 %v479, 48
    %v1093 = vpop.permute.xlu0 %1092
    %v1095 = vsel %vm483, %v1043, 0
    %v1098 = vsel %vm608, %v1093, 0
    %1100 = vmatprep.subr.bf16.mxu0 0
    %1101 = vmatpush1.bf16.msra.mxu0 %v1098
    %1102 = vmatprep.subr.bf16.mxu0 0
    %1103 = vmatpush1.bf16.msra.mxu0 0
    %1104 = vmatprep.subr.bf16.mxu0 0
    %1105 = vmatpush1.bf16.msra.mxu0 0
    %1106 = vmatprep.subr.bf16.mxu0 0
    %1107 = vmatpush1.bf16.msra.mxu0 0
    %1108 = vmatprep.subr.bf16.mxu0 0
    %1109 = vmatpush1.bf16.msra.mxu0 0
    %1110 = vmatprep.subr.bf16.mxu0 0
    %1111 = vmatpush1.bf16.msra.mxu0 0
    %1112 = vmatprep.subr.bf16.mxu0 0
    %1113 = vmatpush1.bf16.msra.mxu0 0
    %1114 = vmatprep.subr.bf16.mxu0 0
    %1115 = vmatpush1.bf16.msra.mxu0 0
    %1116 = vmatprep.subr.bf16.mxu0 0
    %1117 = vmatpush1.bf16.msra.mxu0 0
    %1118 = vmatprep.subr.bf16.mxu0 0
    %1119 = vmatpush1.bf16.msra.mxu0 0
    %1120 = vmatprep.subr.bf16.mxu0 0
    %1121 = vmatpush1.bf16.msra.mxu0 0
    %1122 = vmatprep.subr.bf16.mxu0 0
    %1123 = vmatpush1.bf16.msra.mxu0 0
    %1124 = vmatprep.subr.bf16.mxu0 0
    %1125 = vmatpush1.bf16.msra.mxu0 0
    %1126 = vmatprep.subr.bf16.mxu0 0
    %1127 = vmatpush1.bf16.msra.mxu0 0
    %1128 = vmatprep.subr.bf16.mxu0 0
    %1129 = vmatpush1.bf16.msra.mxu0 0
    %1130 = vmatprep.subr.bf16.mxu0 0
    %1131 = vmatpush1.bf16.msra.mxu0 0
    %1132 = vmatprep.mubr.bf16.mxu0 0
    %1133 = vmatmul.mubr.bf16.gmra.mrb[0].mxu0 %v1095
    %v1134 = vpop.f32.mrb[0].mxu0
    %v1135 = vadd.f32 0.0, %v1134
    %v1136 = vpop.f32.mrb[0].mxu0
    %v1137 = vpop.f32.mrb[0].mxu0
    %v1138 = vpop.f32.mrb[0].mxu0
    %1139 = vdwg.mxu0
    %1140 = vrot.lane.b32.xlu0 %v478, 104
    %v1141 = vpop.permute.xlu0 %1140
    %1142 = vrot.lane.b32.xlu0 %v478, 72
    %v1143 = vpop.permute.xlu0 %1142
    %v1145 = vsel %vm483, %v1141, 0
    %v1148 = vsel %vm483, %v1143, 0
    %1150 = vmatprep.subr.bf16.mxu0 0
    %1151 = vmatpush1.bf16.xpose.msra.mxu0 %v1148
    %1152 = vmatprep.subr.bf16.mxu0 0
    %1153 = vmatpush1.bf16.xpose.msra.mxu0 0
    %1154 = vmatprep.subr.bf16.mxu0 0
    %1155 = vmatpush1.bf16.xpose.msra.mxu0 0
    %1156 = vmatprep.subr.bf16.mxu0 0
    %1157 = vmatpush1.bf16.xpose.msra.mxu0 0
    %1158 = vmatprep.subr.bf16.mxu0 0
    %1159 = vmatpush1.bf16.xpose.msra.mxu0 0
    %1160 = vmatprep.subr.bf16.mxu0 0
    %1161 = vmatpush1.bf16.xpose.msra.mxu0 0
    %1162 = vmatprep.subr.bf16.mxu0 0
    %1163 = vmatpush1.bf16.xpose.msra.mxu0 0
    %1164 = vmatprep.subr.bf16.mxu0 0
    %1165 = vmatpush1.bf16.xpose.msra.mxu0 0
    %1166 = vmatprep.subr.bf16.mxu0 0
    %1167 = vmatpush1.bf16.xpose.msra.mxu0 0
    %1168 = vmatprep.subr.bf16.mxu0 0
    %1169 = vmatpush1.bf16.xpose.msra.mxu0 0
    %1170 = vmatprep.subr.bf16.mxu0 0
    %1171 = vmatpush1.bf16.xpose.msra.mxu0 0
    %1172 = vmatprep.subr.bf16.mxu0 0
    %1173 = vmatpush1.bf16.xpose.msra.mxu0 0
    %1174 = vmatprep.subr.bf16.mxu0 0
    %1175 = vmatpush1.bf16.xpose.msra.mxu0 0
    %1176 = vmatprep.subr.bf16.mxu0 0
    %1177 = vmatpush1.bf16.xpose.msra.mxu0 0
    %1178 = vmatprep.subr.bf16.mxu0 0
    %1179 = vmatpush1.bf16.xpose.msra.mxu0 0
    %1180 = vmatprep.subr.bf16.mxu0 0
    %1181 = vmatpush1.bf16.xpose.msra.mxu0 0
    %1182 = vmatprep.mubr.bf16.mxu0 0
    %1183 = vmatmul.mubr.bf16.gmra.mrb[0].mxu0 %v1145
    %v1184 = vpop.f32.mrb[0].mxu0
    %v1185 = vadd.f32 0.0, %v1184
    %v1186 = vpop.f32.mrb[0].mxu0
    %v1187 = vpop.f32.mrb[0].mxu0
    %v1188 = vpop.f32.mrb[0].mxu0
    %1189 = vdwg.mxu0
    %1190 = vrot.lane.b32.xlu0 %v479, 104
    %v1191 = vpop.permute.xlu0 %1190
    %1192 = vrot.lane.b32.xlu0 %v479, 72
    %v1193 = vpop.permute.xlu0 %1192
    %v1195 = vsel %vm483, %v1191, 0
    %v1198 = vsel %vm483, %v1193, 0
    %1200 = vmatprep.subr.bf16.mxu0 0
    %1201 = vmatpush1.bf16.xpose.msra.mxu0 %v1198
    %1202 = vmatprep.subr.bf16.mxu0 0
    %1203 = vmatpush1.bf16.xpose.msra.mxu0 0
    %1204 = vmatprep.subr.bf16.mxu0 0
    %1205 = vmatpush1.bf16.xpose.msra.mxu0 0
    %1206 = vmatprep.subr.bf16.mxu0 0
    %1207 = vmatpush1.bf16.xpose.msra.mxu0 0
    %1208 = vmatprep.subr.bf16.mxu0 0
    %1209 = vmatpush1.bf16.xpose.msra.mxu0 0
    %1210 = vmatprep.subr.bf16.mxu0 0
    %1211 = vmatpush1.bf16.xpose.msra.mxu0 0
    %1212 = vmatprep.subr.bf16.mxu0 0
    %1213 = vmatpush1.bf16.xpose.msra.mxu0 0
    %1214 = vmatprep.subr.bf16.mxu0 0
    %1215 = vmatpush1.bf16.xpose.msra.mxu0 0
    %1216 = vmatprep.subr.bf16.mxu0 0
    %1217 = vmatpush1.bf16.xpose.msra.mxu0 0
    %1218 = vmatprep.subr.bf16.mxu0 0
    %1219 = vmatpush1.bf16.xpose.msra.mxu0 0
    %1220 = vmatprep.subr.bf16.mxu0 0
    %1221 = vmatpush1.bf16.xpose.msra.mxu0 0
    %1222 = vmatprep.subr.bf16.mxu0 0
    %1223 = vmatpush1.bf16.xpose.msra.mxu0 0
    %1224 = vmatprep.subr.bf16.mxu0 0
    %1225 = vmatpush1.bf16.xpose.msra.mxu0 0
    %1226 = vmatprep.subr.bf16.mxu0 0
    %1227 = vmatpush1.bf16.xpose.msra.mxu0 0
    %1228 = vmatprep.subr.bf16.mxu0 0
    %1229 = vmatpush1.bf16.xpose.msra.mxu0 0
    %1230 = vmatprep.subr.bf16.mxu0 0
    %1231 = vmatpush1.bf16.xpose.msra.mxu0 0
    %1232 = vmatprep.mubr.bf16.mxu0 0
    %1233 = vmatmul.mubr.bf16.gmra.mrb[0].mxu0 %v1195
    %v1234 = vpop.f32.mrb[0].mxu0
    %v1235 = vadd.f32 0.0, %v1234
    %v1236 = vpop.f32.mrb[0].mxu0
    %v1237 = vpop.f32.mrb[0].mxu0
    %v1238 = vpop.f32.mrb[0].mxu0
    %1239 = vdwg.mxu0
    %v1240 = vsel %vm483, %v1185, -inf
    %1241 = vmax.xlane.f32.xlu0 %v1240
    %v1242 = vpop.xlane.xlu0 %1241
    %v1243 = vsel %vm483, %v1235, -inf
    %1244 = vmax.xlane.f32.xlu0 %v1243
    %v1245 = vpop.xlane.xlu0 %1244
    %v1246 = vsub.f32 %v1185, %v1242
    %v1247 = vsub.f32 %v1235, %v1245
    %v1248 = vmul.f32 %v1246, 1.442695
    %v1249 = vpow.pop %v1248
    %v1250 = vmul.f32 %v1247, 1.442695
    %v1251 = vpow.pop %v1250
    %v1252 = vsel %vm483, %v1249, 0.0
    %1253 = vadd.xlane.f32.xlu0 %v1252
    %v1254 = vpop.xlane.xlu0 %1253
    %v1255 = vsel %vm483, %v1251, 0.0
    %1256 = vadd.xlane.f32.xlu0 %v1255
    %v1257 = vpop.xlane.xlu0 %1256
    %v1258 = vrcp.pop %v1254
    %v1259 = vrcp.pop %v1257
    %v1260 = vmul.f32 %v1249, %v1258
    %v1261 = vmul.f32 %v1251, %v1259
    %v1262 = vpack.c.bf16 %v1260, %v1260
    %v1263 = vpack.c.bf16 %v1261, %v1261
    %1264 = vrot.lane.b32.xlu0 %v478, 40
    %v1265 = vpop.permute.xlu0 %1264
    %v1267 = vsel %vm483, %v1262, 0
    %v1270 = vsel %vm608, %v1265, 0
    %1272 = vmatprep.subr.bf16.mxu0 0
    %1273 = vmatpush1.bf16.msra.mxu0 %v1270
    %1274 = vmatprep.subr.bf16.mxu0 0
    %1275 = vmatpush1.bf16.msra.mxu0 0
    %1276 = vmatprep.subr.bf16.mxu0 0
    %1277 = vmatpush1.bf16.msra.mxu0 0
    %1278 = vmatprep.subr.bf16.mxu0 0
    %1279 = vmatpush1.bf16.msra.mxu0 0
    %1280 = vmatprep.subr.bf16.mxu0 0
    %1281 = vmatpush1.bf16.msra.mxu0 0
    %1282 = vmatprep.subr.bf16.mxu0 0
    %1283 = vmatpush1.bf16.msra.mxu0 0
    %1284 = vmatprep.subr.bf16.mxu0 0
    %1285 = vmatpush1.bf16.msra.mxu0 0
    %1286 = vmatprep.subr.bf16.mxu0 0
    %1287 = vmatpush1.bf16.msra.mxu0 0
    %1288 = vmatprep.subr.bf16.mxu0 0
    %1289 = vmatpush1.bf16.msra.mxu0 0
    %1290 = vmatprep.subr.bf16.mxu0 0
    %1291 = vmatpush1.bf16.msra.mxu0 0
    %1292 = vmatprep.subr.bf16.mxu0 0
    %1293 = vmatpush1.bf16.msra.mxu0 0
    %1294 = vmatprep.subr.bf16.mxu0 0
    %1295 = vmatpush1.bf16.msra.mxu0 0
    %1296 = vmatprep.subr.bf16.mxu0 0
    %1297 = vmatpush1.bf16.msra.mxu0 0
    %1298 = vmatprep.subr.bf16.mxu0 0
    %1299 = vmatpush1.bf16.msra.mxu0 0
    %1300 = vmatprep.subr.bf16.mxu0 0
    %1301 = vmatpush1.bf16.msra.mxu0 0
    %1302 = vmatprep.subr.bf16.mxu0 0
    %1303 = vmatpush1.bf16.msra.mxu0 0
    %1304 = vmatprep.mubr.bf16.mxu0 0
    %1305 = vmatmul.mubr.bf16.gmra.mrb[0].mxu0 %v1267
    %v1306 = vpop.f32.mrb[0].mxu0
    %v1307 = vadd.f32 0.0, %v1306
    %v1308 = vpop.f32.mrb[0].mxu0
    %v1309 = vpop.f32.mrb[0].mxu0
    %v1310 = vpop.f32.mrb[0].mxu0
    %1311 = vdwg.mxu0
    %1312 = vrot.lane.b32.xlu0 %v479, 40
    %v1313 = vpop.permute.xlu0 %1312
    %v1315 = vsel %vm483, %v1263, 0
    %v1318 = vsel %vm608, %v1313, 0
    %1320 = vmatprep.subr.bf16.mxu0 0
    %1321 = vmatpush1.bf16.msra.mxu0 %v1318
    %1322 = vmatprep.subr.bf16.mxu0 0
    %1323 = vmatpush1.bf16.msra.mxu0 0
    %1324 = vmatprep.subr.bf16.mxu0 0
    %1325 = vmatpush1.bf16.msra.mxu0 0
    %1326 = vmatprep.subr.bf16.mxu0 0
    %1327 = vmatpush1.bf16.msra.mxu0 0
    %1328 = vmatprep.subr.bf16.mxu0 0
    %1329 = vmatpush1.bf16.msra.mxu0 0
    %1330 = vmatprep.subr.bf16.mxu0 0
    %1331 = vmatpush1.bf16.msra.mxu0 0
    %1332 = vmatprep.subr.bf16.mxu0 0
    %1333 = vmatpush1.bf16.msra.mxu0 0
    %1334 = vmatprep.subr.bf16.mxu0 0
    %1335 = vmatpush1.bf16.msra.mxu0 0
    %1336 = vmatprep.subr.bf16.mxu0 0
    %1337 = vmatpush1.bf16.msra.mxu0 0
    %1338 = vmatprep.subr.bf16.mxu0 0
    %1339 = vmatpush1.bf16.msra.mxu0 0
    %1340 = vmatprep.subr.bf16.mxu0 0
    %1341 = vmatpush1.bf16.msra.mxu0 0
    %1342 = vmatprep.subr.bf16.mxu0 0
    %1343 = vmatpush1.bf16.msra.mxu0 0
    %1344 = vmatprep.subr.bf16.mxu0 0
    %1345 = vmatpush1.bf16.msra.mxu0 0
    %1346 = vmatprep.subr.bf16.mxu0 0
    %1347 = vmatpush1.bf16.msra.mxu0 0
    %1348 = vmatprep.subr.bf16.mxu0 0
    %1349 = vmatpush1.bf16.msra.mxu0 0
    %1350 = vmatprep.subr.bf16.mxu0 0
    %1351 = vmatpush1.bf16.msra.mxu0 0
    %1352 = vmatprep.mubr.bf16.mxu0 0
    %1353 = vmatmul.mubr.bf16.gmra.mrb[0].mxu0 %v1315
    %v1354 = vpop.f32.mrb[0].mxu0
    %v1355 = vadd.f32 0.0, %v1354
    %v1356 = vpop.f32.mrb[0].mxu0
    %v1357 = vpop.f32.mrb[0].mxu0
    %v1358 = vpop.f32.mrb[0].mxu0
    %1359 = vdwg.mxu0
    %1362 = vrot.lane.b32.xlu0 %v867, 8
    %v1363 = vpop.permute.xlu0 %1362
    %1364 = vrot.lane.b32.xlu0 %v915, 8
    %v1365 = vpop.permute.xlu0 %1364
    %1370 = vrot.lane.b32.xlu0 %v1087, 16
    %v1371 = vpop.permute.xlu0 %1370
    %1372 = vrot.lane.b32.xlu0 %v1135, 16
    %v1373 = vpop.permute.xlu0 %1372
    %1378 = vrot.lane.b32.xlu0 %v1307, 24
    %v1379 = vpop.permute.xlu0 %1378
    %1380 = vrot.lane.b32.xlu0 %v1355, 24
    %v1381 = vpop.permute.xlu0 %1380
    %v1384 = vsel %vm483, %v647, %v1363
    %v1385 = vsel %vm483, %v695, %v1365
    %vm1386 = vcmask 130048
    %v1387 = vsel %vm1386, %v1384, %v1371
    %v1388 = vsel %vm1386, %v1385, %v1373
    %vm1389 = vcmask 195584
    %v1390 = vsel %vm1389, %v1387, %v1379
    %v1391 = vsel %vm1389, %v1388, %v1381
    %v1392 = vpack.c.bf16 %v1391, %v1390
    %v1394 = vlaneseq
    %v1395 = vshrl.u32 %v1394, 7
    %v1396 = vsub.s32 0, %v1395
    %v1397 = vrot.slane %v413, %v1396
    %v1403 = vunpack.c.l.b16 %v409
    %v1404 = vunpack.c.l.b16 %v410
    %v1405 = vunpack.c.l.b16 %v411
    %v1406 = vunpack.c.l.b16 %v412
    %v1407 = vpack.c.b16 %v1404, %v1403
    %v1408 = vpack.c.b16 %v1406, %v1405
    %v1412 = vsel %vm433, %v1392, 0
    %1414 = vmatprep.subr.bf16.mxu0 0
    %1415 = vmatpush1.bf16.msra.mxu0 %v1407
    %1416 = vmatprep.subr.bf16.mxu0 0
    %1417 = vmatpush1.bf16.msra.mxu0 %v1408
    %1418 = vmatprep.subr.bf16.mxu0 0
    %1419 = vmatpush1.bf16.msra.mxu0 0
    %1420 = vmatprep.subr.bf16.mxu0 0
    %1421 = vmatpush1.bf16.msra.mxu0 0
    %1422 = vmatprep.subr.bf16.mxu0 0
    %1423 = vmatpush1.bf16.msra.mxu0 0
    %1424 = vmatprep.subr.bf16.mxu0 0
    %1425 = vmatpush1.bf16.msra.mxu0 0
    %1426 = vmatprep.subr.bf16.mxu0 0
    %1427 = vmatpush1.bf16.msra.mxu0 0
    %1428 = vmatprep.subr.bf16.mxu0 0
    %1429 = vmatpush1.bf16.msra.mxu0 0
    %1430 = vmatprep.subr.bf16.mxu0 0
    %1431 = vmatpush1.bf16.msra.mxu0 0
    %1432 = vmatprep.subr.bf16.mxu0 0
    %1433 = vmatpush1.bf16.msra.mxu0 0
    %1434 = vmatprep.subr.bf16.mxu0 0
    %1435 = vmatpush1.bf16.msra.mxu0 0
    %1436 = vmatprep.subr.bf16.mxu0 0
    %1437 = vmatpush1.bf16.msra.mxu0 0
    %1438 = vmatprep.subr.bf16.mxu0 0
    %1439 = vmatpush1.bf16.msra.mxu0 0
    %1440 = vmatprep.subr.bf16.mxu0 0
    %1441 = vmatpush1.bf16.msra.mxu0 0
    %1442 = vmatprep.subr.bf16.mxu0 0
    %1443 = vmatpush1.bf16.msra.mxu0 0
    %1444 = vmatprep.subr.bf16.mxu0 0
    %1445 = vmatpush1.bf16.msra.mxu0 0
    %1446 = vmatprep.mubr.bf16.mxu0 0
    %1447 = vmatmul.mubr.bf16.gmra.mrb[0].mxu0 %v1412
    %v1448 = vpop.f32.mrb[0].mxu0
    %v1449 = vadd.f32 %v1397, %v1448
    %v1450 = vpop.f32.mrb[0].mxu0
    %v1451 = vpop.f32.mrb[0].mxu0
    %v1452 = vadd.f32 %v1397, %v1451
    %v1453 = vpop.f32.mrb[0].mxu0
    %1454 = vdwg.mxu0
    %v1455 = vadd.f32 %v402, %v1449
    %v1456 = vadd.f32 %v403, %v1452
    %v1457 = vld [vmem:[#allocation14] sm:$0x1]
    %v1458 = vld [vmem:[#allocation16] sm:$0x1]
    %v1459 = vsel %vm433, %v1455, 0.0
    %1460 = vadd.xlane.f32.xlu0 %v1459
    %v1461 = vpop.xlane.xlu0 %1460
    %v1462 = vsel %vm433, %v1456, 0.0
    %1463 = vadd.xlane.f32.xlu0 %v1462
    %v1464 = vpop.xlane.xlu0 %1463
    %v1465 = vrcp.pop 32.0
    %v1466 = vmul.f32 %v1461, %v1465
    %v1467 = vmul.f32 %v1464, %v1465
    %v1468 = vsub.f32 %v1455, %v1466
    %v1469 = vsub.f32 %v1456, %v1467
    %v1470 = vmul.f32 %v1468, %v1468
    %v1471 = vmul.f32 %v1469, %v1469
    %v1472 = vsel %vm433, %v1470, 0.0
    %1473 = vadd.xlane.f32.xlu0 %v1472
    %v1474 = vpop.xlane.xlu0 %1473
    %v1475 = vsel %vm433, %v1471, 0.0
    %1476 = vadd.xlane.f32.xlu0 %v1475
    %v1477 = vpop.xlane.xlu0 %1476
    %v1478 = vmul.f32 %v1474, %v1465
    %v1479 = vmul.f32 %v1477, %v1465
    %v1480 = vadd.f32 %v1478, 1e-05
    %v1481 = vadd.f32 %v1479, 1e-05
    %v1482 = vrsqrt.pop %v1480
    %v1483 = vrsqrt.pop %v1481
    %v1484 = vmul.f32 %v1468, %v1482
    %v1485 = vmul.f32 %v1469, %v1483
    %v1487 = vlaneseq
    %v1488 = vshrl.u32 %v1487, 7
    %v1489 = vsub.s32 0, %v1488
    %v1490 = vrot.slane %v1457, %v1489
    %v1492 = vmul.f32 %v1484, %v1490
    %v1493 = vmul.f32 %v1485, %v1490
    %v1495 = vlaneseq
    %v1496 = vshrl.u32 %v1495, 7
    %v1497 = vsub.s32 0, %v1496
    %v1498 = vrot.slane %v1458, %v1497
    %v1500 = vadd.f32 %v1492, %v1498
    %v1501 = vadd.f32 %v1493, %v1498
    %v1502 = vld [vmem:[%s15] sm:$0xf]
    %v1503 = vld [vmem:[%s15 + $0x4] sm:$0xf]
    %v1504 = vld [vmem:[%s15 + $0x8] sm:$0xf]
    %v1505 = vld [vmem:[%s15 + $0xc] sm:$0xf]
    %v1506 = vld [vmem:[#allocation11] sm:$0x1]
    %v1507 = vld [vmem:[%s19] sm:$0xf]
    %v1508 = vld [vmem:[%s19 + $0x4] sm:$0xf]
    %v1509 = vld [vmem:[%s19 + $0x8] sm:$0xf]
    %v1510 = vld [vmem:[%s19 + $0xc] sm:$0xf]
    %v1511 = vld [vmem:[%s19 + $0x10] sm:$0xf]
    %v1512 = vld [vmem:[%s19 + $0x14] sm:$0xf]
    %v1513 = vld [vmem:[%s19 + $0x18] sm:$0xf]
    %v1514 = vld [vmem:[%s19 + $0x1c] sm:$0xf]
    %v1515 = vld [vmem:[#allocation13] sm:$0x1]
    %v1516 = vpack.c.bf16 %v1501, %v1500
    %v1518 = vlaneseq
    %v1519 = vshrl.u32 %v1518, 7
    %v1520 = vsub.s32 0, %v1519
    %v1521 = vrot.slane %v1506, %v1520
    %v1527 = vunpack.c.l.b16 %v1502
    %v1528 = vunpack.c.l.b16 %v1503
    %v1529 = vunpack.c.l.b16 %v1504
    %v1530 = vunpack.c.l.b16 %v1505
    %v1531 = vpack.c.b16 %v1528, %v1527
    %v1532 = vpack.c.b16 %v1530, %v1529
    %v1536 = vsel %vm433, %v1516, 0
    %1538 = vmatprep.subr.bf16.mxu0 0
    %1539 = vmatpush1.bf16.msra.mxu0 %v1531
    %1540 = vmatprep.subr.bf16.mxu0 0
    %1541 = vmatpush1.bf16.msra.mxu0 %v1532
    %1542 = vmatprep.subr.bf16.mxu0 0
    %1543 = vmatpush1.bf16.msra.mxu0 0
    %1544 = vmatprep.subr.bf16.mxu0 0
    %1545 = vmatpush1.bf16.msra.mxu0 0
    %1546 = vmatprep.subr.bf16.mxu0 0
    %1547 = vmatpush1.bf16.msra.mxu0 0
    %1548 = vmatprep.subr.bf16.mxu0 0
    %1549 = vmatpush1.bf16.msra.mxu0 0
    %1550 = vmatprep.subr.bf16.mxu0 0
    %1551 = vmatpush1.bf16.msra.mxu0 0
    %1552 = vmatprep.subr.bf16.mxu0 0
    %1553 = vmatpush1.bf16.msra.mxu0 0
    %1554 = vmatprep.subr.bf16.mxu0 0
    %1555 = vmatpush1.bf16.msra.mxu0 0
    %1556 = vmatprep.subr.bf16.mxu0 0
    %1557 = vmatpush1.bf16.msra.mxu0 0
    %1558 = vmatprep.subr.bf16.mxu0 0
    %1559 = vmatpush1.bf16.msra.mxu0 0
    %1560 = vmatprep.subr.bf16.mxu0 0
    %1561 = vmatpush1.bf16.msra.mxu0 0
    %1562 = vmatprep.subr.bf16.mxu0 0
    %1563 = vmatpush1.bf16.msra.mxu0 0
    %1564 = vmatprep.subr.bf16.mxu0 0
    %1565 = vmatpush1.bf16.msra.mxu0 0
    %1566 = vmatprep.subr.bf16.mxu0 0
    %1567 = vmatpush1.bf16.msra.mxu0 0
    %1568 = vmatprep.subr.bf16.mxu0 0
    %1569 = vmatpush1.bf16.msra.mxu0 0
    %1570 = vmatprep.mubr.bf16.mxu0 0
    %1571 = vmatmul.mubr.bf16.gmra.mrb[0].mxu0 %v1536
    %v1572 = vpop.f32.mrb[0].mxu0
    %v1573 = vadd.f32 %v1521, %v1572
    %v1574 = vpop.f32.mrb[0].mxu0
    %v1575 = vpop.f32.mrb[0].mxu0
    %v1576 = vadd.f32 %v1521, %v1575
    %v1577 = vpop.f32.mrb[0].mxu0
    %1578 = vdwg.mxu0
    %v1579 = vmax.f32 %v1573, 0.0
    %v1580 = vmax.f32 %v1576, 0.0
    %v1581 = vpack.c.bf16 %v1580, %v1579
    %v1583 = vlaneseq
    %v1584 = vshrl.u32 %v1583, 7
    %v1585 = vsub.s32 0, %v1584
    %v1586 = vrot.slane %v1515, %v1585
    %v1596 = vunpack.c.l.b16 %v1507
    %v1597 = vunpack.c.l.b16 %v1508
    %v1598 = vunpack.c.l.b16 %v1509
    %v1599 = vunpack.c.l.b16 %v1510
    %v1600 = vunpack.c.l.b16 %v1511
    %v1601 = vunpack.c.l.b16 %v1512
    %v1602 = vunpack.c.l.b16 %v1513
    %v1603 = vunpack.c.l.b16 %v1514
    %v1604 = vpack.c.b16 %v1597, %v1596
    %v1605 = vpack.c.b16 %v1599, %v1598
    %v1606 = vpack.c.b16 %v1601, %v1600
    %v1607 = vpack.c.b16 %v1603, %v1602
    %vm1612 = vcmask 523264
    %v1614 = vsel %vm1612, %v1581, 0
    %1616 = vmatprep.subr.bf16.mxu0 0
    %1617 = vmatpush1.bf16.msra.mxu0 %v1604
    %1618 = vmatprep.subr.bf16.mxu0 0
    %1619 = vmatpush1.bf16.msra.mxu0 %v1605
    %1620 = vmatprep.subr.bf16.mxu0 0
    %1621 = vmatpush1.bf16.msra.mxu0 %v1606
    %1622 = vmatprep.subr.bf16.mxu0 0
    %1623 = vmatpush1.bf16.msra.mxu0 %v1607
    %1624 = vmatprep.subr.bf16.mxu0 0
    %1625 = vmatpush1.bf16.msra.mxu0 0
    %1626 = vmatprep.subr.bf16.mxu0 0
    %1627 = vmatpush1.bf16.msra.mxu0 0
    %1628 = vmatprep.subr.bf16.mxu0 0
    %1629 = vmatpush1.bf16.msra.mxu0 0
    %1630 = vmatprep.subr.bf16.mxu0 0
    %1631 = vmatpush1.bf16.msra.mxu0 0
    %1632 = vmatprep.subr.bf16.mxu0 0
    %1633 = vmatpush1.bf16.msra.mxu0 0
    %1634 = vmatprep.subr.bf16.mxu0 0
    %1635 = vmatpush1.bf16.msra.mxu0 0
    %1636 = vmatprep.subr.bf16.mxu0 0
    %1637 = vmatpush1.bf16.msra.mxu0 0
    %1638 = vmatprep.subr.bf16.mxu0 0
    %1639 = vmatpush1.bf16.msra.mxu0 0
    %1640 = vmatprep.subr.bf16.mxu0 0
    %1641 = vmatpush1.bf16.msra.mxu0 0
    %1642 = vmatprep.subr.bf16.mxu0 0
    %1643 = vmatpush1.bf16.msra.mxu0 0
    %1644 = vmatprep.subr.bf16.mxu0 0
    %1645 = vmatpush1.bf16.msra.mxu0 0
    %1646 = vmatprep.subr.bf16.mxu0 0
    %1647 = vmatpush1.bf16.msra.mxu0 0
    %1648 = vmatprep.mubr.bf16.mxu0 0
    %1649 = vmatmul.mubr.bf16.gmra.mrb[0].mxu0 %v1614
    %v1650 = vpop.f32.mrb[0].mxu0
    %v1651 = vadd.f32 %v1586, %v1650
    %v1652 = vpop.f32.mrb[0].mxu0
    %v1653 = vpop.f32.mrb[0].mxu0
    %v1654 = vadd.f32 %v1586, %v1653
    %v1655 = vpop.f32.mrb[0].mxu0
    %1656 = vdwg.mxu0
    %v1657 = vadd.f32 %v1500, %v1651
    %v1658 = vadd.f32 %v1501, %v1654
    %v1659 = vld [vmem:[#allocation17] sm:$0x1]
    %v1660 = vld [vmem:[#allocation19] sm:$0x1]
    %v1661 = vsel %vm433, %v1657, 0.0
    %1662 = vadd.xlane.f32.xlu0 %v1661
    %v1663 = vpop.xlane.xlu0 %1662
    %v1664 = vsel %vm433, %v1658, 0.0
    %1665 = vadd.xlane.f32.xlu0 %v1664
    %v1666 = vpop.xlane.xlu0 %1665
    %v1667 = vmul.f32 %v1663, %v1465
    %v1668 = vmul.f32 %v1666, %v1465
    %v1669 = vsub.f32 %v1657, %v1667
    %v1670 = vsub.f32 %v1658, %v1668
    %v1671 = vmul.f32 %v1669, %v1669
    %v1672 = vmul.f32 %v1670, %v1670
    %v1673 = vsel %vm433, %v1671, 0.0
    %1674 = vadd.xlane.f32.xlu0 %v1673
    %v1675 = vpop.xlane.xlu0 %1674
    %v1676 = vsel %vm433, %v1672, 0.0
    %1677 = vadd.xlane.f32.xlu0 %v1676
    %v1678 = vpop.xlane.xlu0 %1677
    %v1679 = vmul.f32 %v1675, %v1465
    %v1680 = vmul.f32 %v1678, %v1465
    %v1681 = vadd.f32 %v1679, 1e-05
    %v1682 = vadd.f32 %v1680, 1e-05
    %v1683 = vrsqrt.pop %v1681
    %v1684 = vrsqrt.pop %v1682
    %v1685 = vmul.f32 %v1669, %v1683
    %v1686 = vmul.f32 %v1670, %v1684
    %v1688 = vlaneseq
    %v1689 = vshrl.u32 %v1688, 7
    %v1690 = vsub.s32 0, %v1689
    %v1691 = vrot.slane %v1659, %v1690
    %v1693 = vmul.f32 %v1685, %v1691
    %v1694 = vmul.f32 %v1686, %v1691
    %v1696 = vlaneseq
    %v1697 = vshrl.u32 %v1696, 7
    %v1698 = vsub.s32 0, %v1697
    %v1699 = vrot.slane %v1660, %v1698
    %v1701 = vadd.f32 %v1693, %v1699
    %v1702 = vadd.f32 %v1694, %v1699
    %s1703 = scalar_lea.vmem %s7, 16
    %v1704 = vld [vmem:[%s1703] sm:$0xf]
    %v1705 = vld [vmem:[%s1703 + $0x4] sm:$0xf]
    %v1706 = vld [vmem:[%s1703 + $0x8] sm:$0xf]
    %v1707 = vld [vmem:[%s1703 + $0xc] sm:$0xf]
    %s1708 = scalar_lea.vmem [#allocation8], 1
    %v1709 = vld [vmem:[%s1708] sm:$0x1]
    %s1710 = scalar_lea.vmem %s11, 16
    %v1711 = vld [vmem:[%s1710] sm:$0xf]
    %v1712 = vld [vmem:[%s1710 + $0x4] sm:$0xf]
    %v1713 = vld [vmem:[%s1710 + $0x8] sm:$0xf]
    %v1714 = vld [vmem:[%s1710 + $0xc] sm:$0xf]
    %s1715 = scalar_lea.vmem [#allocation10], 1
    %v1716 = vld [vmem:[%s1715] sm:$0x1]
    %v1717 = vpack.c.bf16 %v1702, %v1701
    %v1719 = vlaneseq
    %v1720 = vshrl.u32 %v1719, 7
    %v1721 = vsub.s32 0, %v1720
    %v1722 = vrot.slane %v1709, %v1721
    %v1728 = vunpack.c.l.b16 %v1704
    %v1729 = vunpack.c.l.b16 %v1705
    %v1730 = vunpack.c.l.b16 %v1706
    %v1731 = vunpack.c.l.b16 %v1707
    %v1732 = vpack.c.b16 %v1729, %v1728
    %v1733 = vpack.c.b16 %v1731, %v1730
    %v1737 = vsel %vm433, %v1717, 0
    %1739 = vmatprep.subr.bf16.mxu0 0
    %1740 = vmatpush1.bf16.msra.mxu0 %v1732
    %1741 = vmatprep.subr.bf16.mxu0 0
    %1742 = vmatpush1.bf16.msra.mxu0 %v1733
    %1743 = vmatprep.subr.bf16.mxu0 0
    %1744 = vmatpush1.bf16.msra.mxu0 0
    %1745 = vmatprep.subr.bf16.mxu0 0
    %1746 = vmatpush1.bf16.msra.mxu0 0
    %1747 = vmatprep.subr.bf16.mxu0 0
    %1748 = vmatpush1.bf16.msra.mxu0 0
    %1749 = vmatprep.subr.bf16.mxu0 0
    %1750 = vmatpush1.bf16.msra.mxu0 0
    %1751 = vmatprep.subr.bf16.mxu0 0
    %1752 = vmatpush1.bf16.msra.mxu0 0
    %1753 = vmatprep.subr.bf16.mxu0 0
    %1754 = vmatpush1.bf16.msra.mxu0 0
    %1755 = vmatprep.subr.bf16.mxu0 0
    %1756 = vmatpush1.bf16.msra.mxu0 0
    %1757 = vmatprep.subr.bf16.mxu0 0
    %1758 = vmatpush1.bf16.msra.mxu0 0
    %1759 = vmatprep.subr.bf16.mxu0 0
    %1760 = vmatpush1.bf16.msra.mxu0 0
    %1761 = vmatprep.subr.bf16.mxu0 0
    %1762 = vmatpush1.bf16.msra.mxu0 0
    %1763 = vmatprep.subr.bf16.mxu0 0
    %1764 = vmatpush1.bf16.msra.mxu0 0
    %1765 = vmatprep.subr.bf16.mxu0 0
    %1766 = vmatpush1.bf16.msra.mxu0 0
    %1767 = vmatprep.subr.bf16.mxu0 0
    %1768 = vmatpush1.bf16.msra.mxu0 0
    %1769 = vmatprep.subr.bf16.mxu0 0
    %1770 = vmatpush1.bf16.msra.mxu0 0
    %1771 = vmatprep.mubr.bf16.mxu0 0
    %1772 = vmatmul.mubr.bf16.gmra.mrb[0].mxu0 %v1737
    %v1773 = vpop.f32.mrb[0].mxu0
    %v1774 = vadd.f32 %v1722, %v1773
    %v1775 = vpop.f32.mrb[0].mxu0
    %v1776 = vpop.f32.mrb[0].mxu0
    %v1777 = vadd.f32 %v1722, %v1776
    %v1778 = vpop.f32.mrb[0].mxu0
    %1779 = vdwg.mxu0
    %v1780 = vpack.c.bf16 %v1774, %v1774
    %v1781 = vpack.c.bf16 %v1777, %v1777
    %1783 = vrot.lane.b32.xlu0 %v1780, 96
    %v1784 = vpop.permute.xlu0 %1783
    %v1786 = vsel %vm483, %v1780, 0
    %v1789 = vsel %vm483, %v1784, 0
    %1791 = vmatprep.subr.bf16.mxu0 0
    %1792 = vmatpush1.bf16.xpose.msra.mxu0 %v1789
    %1793 = vmatprep.subr.bf16.mxu0 0
    %1794 = vmatpush1.bf16.xpose.msra.mxu0 0
    %1795 = vmatprep.subr.bf16.mxu0 0
    %1796 = vmatpush1.bf16.xpose.msra.mxu0 0
    %1797 = vmatprep.subr.bf16.mxu0 0
    %1798 = vmatpush1.bf16.xpose.msra.mxu0 0
    %1799 = vmatprep.subr.bf16.mxu0 0
    %1800 = vmatpush1.bf16.xpose.msra.mxu0 0
    %1801 = vmatprep.subr.bf16.mxu0 0
    %1802 = vmatpush1.bf16.xpose.msra.mxu0 0
    %1803 = vmatprep.subr.bf16.mxu0 0
    %1804 = vmatpush1.bf16.xpose.msra.mxu0 0
    %1805 = vmatprep.subr.bf16.mxu0 0
    %1806 = vmatpush1.bf16.xpose.msra.mxu0 0
    %1807 = vmatprep.subr.bf16.mxu0 0
    %1808 = vmatpush1.bf16.xpose.msra.mxu0 0
    %1809 = vmatprep.subr.bf16.mxu0 0
    %1810 = vmatpush1.bf16.xpose.msra.mxu0 0
    %1811 = vmatprep.subr.bf16.mxu0 0
    %1812 = vmatpush1.bf16.xpose.msra.mxu0 0
    %1813 = vmatprep.subr.bf16.mxu0 0
    %1814 = vmatpush1.bf16.xpose.msra.mxu0 0
    %1815 = vmatprep.subr.bf16.mxu0 0
    %1816 = vmatpush1.bf16.xpose.msra.mxu0 0
    %1817 = vmatprep.subr.bf16.mxu0 0
    %1818 = vmatpush1.bf16.xpose.msra.mxu0 0
    %1819 = vmatprep.subr.bf16.mxu0 0
    %1820 = vmatpush1.bf16.xpose.msra.mxu0 0
    %1821 = vmatprep.subr.bf16.mxu0 0
    %1822 = vmatpush1.bf16.xpose.msra.mxu0 0
    %1823 = vmatprep.mubr.bf16.mxu0 0
    %1824 = vmatmul.mubr.bf16.gmra.mrb[0].mxu0 %v1786
    %v1825 = vpop.f32.mrb[0].mxu0
    %v1826 = vadd.f32 0.0, %v1825
    %v1827 = vpop.f32.mrb[0].mxu0
    %v1828 = vpop.f32.mrb[0].mxu0
    %v1829 = vpop.f32.mrb[0].mxu0
    %1830 = vdwg.mxu0
    %1832 = vrot.lane.b32.xlu0 %v1781, 96
    %v1833 = vpop.permute.xlu0 %1832
    %v1835 = vsel %vm483, %v1781, 0
    %v1838 = vsel %vm483, %v1833, 0
    %1840 = vmatprep.subr.bf16.mxu0 0
    %1841 = vmatpush1.bf16.xpose.msra.mxu0 %v1838
    %1842 = vmatprep.subr.bf16.mxu0 0
    %1843 = vmatpush1.bf16.xpose.msra.mxu0 0
    %1844 = vmatprep.subr.bf16.mxu0 0
    %1845 = vmatpush1.bf16.xpose.msra.mxu0 0
    %1846 = vmatprep.subr.bf16.mxu0 0
    %1847 = vmatpush1.bf16.xpose.msra.mxu0 0
    %1848 = vmatprep.subr.bf16.mxu0 0
    %1849 = vmatpush1.bf16.xpose.msra.mxu0 0
    %1850 = vmatprep.subr.bf16.mxu0 0
    %1851 = vmatpush1.bf16.xpose.msra.mxu0 0
    %1852 = vmatprep.subr.bf16.mxu0 0
    %1853 = vmatpush1.bf16.xpose.msra.mxu0 0
    %1854 = vmatprep.subr.bf16.mxu0 0
    %1855 = vmatpush1.bf16.xpose.msra.mxu0 0
    %1856 = vmatprep.subr.bf16.mxu0 0
    %1857 = vmatpush1.bf16.xpose.msra.mxu0 0
    %1858 = vmatprep.subr.bf16.mxu0 0
    %1859 = vmatpush1.bf16.xpose.msra.mxu0 0
    %1860 = vmatprep.subr.bf16.mxu0 0
    %1861 = vmatpush1.bf16.xpose.msra.mxu0 0
    %1862 = vmatprep.subr.bf16.mxu0 0
    %1863 = vmatpush1.bf16.xpose.msra.mxu0 0
    %1864 = vmatprep.subr.bf16.mxu0 0
    %1865 = vmatpush1.bf16.xpose.msra.mxu0 0
    %1866 = vmatprep.subr.bf16.mxu0 0
    %1867 = vmatpush1.bf16.xpose.msra.mxu0 0
    %1868 = vmatprep.subr.bf16.mxu0 0
    %1869 = vmatpush1.bf16.xpose.msra.mxu0 0
    %1870 = vmatprep.subr.bf16.mxu0 0
    %1871 = vmatpush1.bf16.xpose.msra.mxu0 0
    %1872 = vmatprep.mubr.bf16.mxu0 0
    %1873 = vmatmul.mubr.bf16.gmra.mrb[0].mxu0 %v1835
    %v1874 = vpop.f32.mrb[0].mxu0
    %v1875 = vadd.f32 0.0, %v1874
    %v1876 = vpop.f32.mrb[0].mxu0
    %v1877 = vpop.f32.mrb[0].mxu0
    %v1878 = vpop.f32.mrb[0].mxu0
    %1879 = vdwg.mxu0
    %v1880 = vsel %vm483, %v1826, -inf
    %1881 = vmax.xlane.f32.xlu0 %v1880
    %v1882 = vpop.xlane.xlu0 %1881
    %v1883 = vsel %vm483, %v1875, -inf
    %1884 = vmax.xlane.f32.xlu0 %v1883
    %v1885 = vpop.xlane.xlu0 %1884
    %v1886 = vsub.f32 %v1826, %v1882
    %v1887 = vsub.f32 %v1875, %v1885
    %v1888 = vmul.f32 %v1886, 1.442695
    %v1889 = vpow.pop %v1888
    %v1890 = vmul.f32 %v1887, 1.442695
    %v1891 = vpow.pop %v1890
    %v1892 = vsel %vm483, %v1889, 0.0
    %1893 = vadd.xlane.f32.xlu0 %v1892
    %v1894 = vpop.xlane.xlu0 %1893
    %v1895 = vsel %vm483, %v1891, 0.0
    %1896 = vadd.xlane.f32.xlu0 %v1895
    %v1897 = vpop.xlane.xlu0 %1896
    %v1898 = vrcp.pop %v1894
    %v1899 = vrcp.pop %v1897
    %v1900 = vmul.f32 %v1889, %v1898
    %v1901 = vmul.f32 %v1891, %v1899
    %v1902 = vpack.c.bf16 %v1900, %v1900
    %v1903 = vpack.c.bf16 %v1901, %v1901
    %1904 = vrot.lane.b32.xlu0 %v1780, 64
    %v1905 = vpop.permute.xlu0 %1904
    %v1907 = vsel %vm483, %v1902, 0
    %v1910 = vsel %vm608, %v1905, 0
    %1912 = vmatprep.subr.bf16.mxu0 0
    %1913 = vmatpush1.bf16.msra.mxu0 %v1910
    %1914 = vmatprep.subr.bf16.mxu0 0
    %1915 = vmatpush1.bf16.msra.mxu0 0
    %1916 = vmatprep.subr.bf16.mxu0 0
    %1917 = vmatpush1.bf16.msra.mxu0 0
    %1918 = vmatprep.subr.bf16.mxu0 0
    %1919 = vmatpush1.bf16.msra.mxu0 0
    %1920 = vmatprep.subr.bf16.mxu0 0
    %1921 = vmatpush1.bf16.msra.mxu0 0
    %1922 = vmatprep.subr.bf16.mxu0 0
    %1923 = vmatpush1.bf16.msra.mxu0 0
    %1924 = vmatprep.subr.bf16.mxu0 0
    %1925 = vmatpush1.bf16.msra.mxu0 0
    %1926 = vmatprep.subr.bf16.mxu0 0
    %1927 = vmatpush1.bf16.msra.mxu0 0
    %1928 = vmatprep.subr.bf16.mxu0 0
    %1929 = vmatpush1.bf16.msra.mxu0 0
    %1930 = vmatprep.subr.bf16.mxu0 0
    %1931 = vmatpush1.bf16.msra.mxu0 0
    %1932 = vmatprep.subr.bf16.mxu0 0
    %1933 = vmatpush1.bf16.msra.mxu0 0
    %1934 = vmatprep.subr.bf16.mxu0 0
    %1935 = vmatpush1.bf16.msra.mxu0 0
    %1936 = vmatprep.subr.bf16.mxu0 0
    %1937 = vmatpush1.bf16.msra.mxu0 0
    %1938 = vmatprep.subr.bf16.mxu0 0
    %1939 = vmatpush1.bf16.msra.mxu0 0
    %1940 = vmatprep.subr.bf16.mxu0 0
    %1941 = vmatpush1.bf16.msra.mxu0 0
    %1942 = vmatprep.subr.bf16.mxu0 0
    %1943 = vmatpush1.bf16.msra.mxu0 0
    %1944 = vmatprep.mubr.bf16.mxu0 0
    %1945 = vmatmul.mubr.bf16.gmra.mrb[0].mxu0 %v1907
    %v1946 = vpop.f32.mrb[0].mxu0
    %v1947 = vadd.f32 0.0, %v1946
    %v1948 = vpop.f32.mrb[0].mxu0
    %v1949 = vpop.f32.mrb[0].mxu0
    %v1950 = vpop.f32.mrb[0].mxu0
    %1951 = vdwg.mxu0
    %1952 = vrot.lane.b32.xlu0 %v1781, 64
    %v1953 = vpop.permute.xlu0 %1952
    %v1955 = vsel %vm483, %v1903, 0
    %v1958 = vsel %vm608, %v1953, 0
    %1960 = vmatprep.subr.bf16.mxu0 0
    %1961 = vmatpush1.bf16.msra.mxu0 %v1958
    %1962 = vmatprep.subr.bf16.mxu0 0
    %1963 = vmatpush1.bf16.msra.mxu0 0
    %1964 = vmatprep.subr.bf16.mxu0 0
    %1965 = vmatpush1.bf16.msra.mxu0 0
    %1966 = vmatprep.subr.bf16.mxu0 0
    %1967 = vmatpush1.bf16.msra.mxu0 0
    %1968 = vmatprep.subr.bf16.mxu0 0
    %1969 = vmatpush1.bf16.msra.mxu0 0
    %1970 = vmatprep.subr.bf16.mxu0 0
    %1971 = vmatpush1.bf16.msra.mxu0 0
    %1972 = vmatprep.subr.bf16.mxu0 0
    %1973 = vmatpush1.bf16.msra.mxu0 0
    %1974 = vmatprep.subr.bf16.mxu0 0
    %1975 = vmatpush1.bf16.msra.mxu0 0
    %1976 = vmatprep.subr.bf16.mxu0 0
    %1977 = vmatpush1.bf16.msra.mxu0 0
    %1978 = vmatprep.subr.bf16.mxu0 0
    %1979 = vmatpush1.bf16.msra.mxu0 0
    %1980 = vmatprep.subr.bf16.mxu0 0
    %1981 = vmatpush1.bf16.msra.mxu0 0
    %1982 = vmatprep.subr.bf16.mxu0 0
    %1983 = vmatpush1.bf16.msra.mxu0 0
    %1984 = vmatprep.subr.bf16.mxu0 0
    %1985 = vmatpush1.bf16.msra.mxu0 0
    %1986 = vmatprep.subr.bf16.mxu0 0
    %1987 = vmatpush1.bf16.msra.mxu0 0
    %1988 = vmatprep.subr.bf16.mxu0 0
    %1989 = vmatpush1.bf16.msra.mxu0 0
    %1990 = vmatprep.subr.bf16.mxu0 0
    %1991 = vmatpush1.bf16.msra.mxu0 0
    %1992 = vmatprep.mubr.bf16.mxu0 0
    %1993 = vmatmul.mubr.bf16.gmra.mrb[0].mxu0 %v1955
    %v1994 = vpop.f32.mrb[0].mxu0
    %v1995 = vadd.f32 0.0, %v1994
    %v1996 = vpop.f32.mrb[0].mxu0
    %v1997 = vpop.f32.mrb[0].mxu0
    %v1998 = vpop.f32.mrb[0].mxu0
    %1999 = vdwg.mxu0
    %2000 = vrot.lane.b32.xlu0 %v1780, 120
    %v2001 = vpop.permute.xlu0 %2000
    %2002 = vrot.lane.b32.xlu0 %v1780, 88
    %v2003 = vpop.permute.xlu0 %2002
    %v2005 = vsel %vm483, %v2001, 0
    %v2008 = vsel %vm483, %v2003, 0
    %2010 = vmatprep.subr.bf16.mxu0 0
    %2011 = vmatpush1.bf16.xpose.msra.mxu0 %v2008
    %2012 = vmatprep.subr.bf16.mxu0 0
    %2013 = vmatpush1.bf16.xpose.msra.mxu0 0
    %2014 = vmatprep.subr.bf16.mxu0 0
    %2015 = vmatpush1.bf16.xpose.msra.mxu0 0
    %2016 = vmatprep.subr.bf16.mxu0 0
    %2017 = vmatpush1.bf16.xpose.msra.mxu0 0
    %2018 = vmatprep.subr.bf16.mxu0 0
    %2019 = vmatpush1.bf16.xpose.msra.mxu0 0
    %2020 = vmatprep.subr.bf16.mxu0 0
    %2021 = vmatpush1.bf16.xpose.msra.mxu0 0
    %2022 = vmatprep.subr.bf16.mxu0 0
    %2023 = vmatpush1.bf16.xpose.msra.mxu0 0
    %2024 = vmatprep.subr.bf16.mxu0 0
    %2025 = vmatpush1.bf16.xpose.msra.mxu0 0
    %2026 = vmatprep.subr.bf16.mxu0 0
    %2027 = vmatpush1.bf16.xpose.msra.mxu0 0
    %2028 = vmatprep.subr.bf16.mxu0 0
    %2029 = vmatpush1.bf16.xpose.msra.mxu0 0
    %2030 = vmatprep.subr.bf16.mxu0 0
    %2031 = vmatpush1.bf16.xpose.msra.mxu0 0
    %2032 = vmatprep.subr.bf16.mxu0 0
    %2033 = vmatpush1.bf16.xpose.msra.mxu0 0
    %2034 = vmatprep.subr.bf16.mxu0 0
    %2035 = vmatpush1.bf16.xpose.msra.mxu0 0
    %2036 = vmatprep.subr.bf16.mxu0 0
    %2037 = vmatpush1.bf16.xpose.msra.mxu0 0
    %2038 = vmatprep.subr.bf16.mxu0 0
    %2039 = vmatpush1.bf16.xpose.msra.mxu0 0
    %2040 = vmatprep.subr.bf16.mxu0 0
    %2041 = vmatpush1.bf16.xpose.msra.mxu0 0
    %2042 = vmatprep.mubr.bf16.mxu0 0
    %2043 = vmatmul.mubr.bf16.gmra.mrb[0].mxu0 %v2005
    %v2044 = vpop.f32.mrb[0].mxu0
    %v2045 = vadd.f32 0.0, %v2044
    %v2046 = vpop.f32.mrb[0].mxu0
    %v2047 = vpop.f32.mrb[0].mxu0
    %v2048 = vpop.f32.mrb[0].mxu0
    %2049 = vdwg.mxu0
    %2050 = vrot.lane.b32.xlu0 %v1781, 120
    %v2051 = vpop.permute.xlu0 %2050
    %2052 = vrot.lane.b32.xlu0 %v1781, 88
    %v2053 = vpop.permute.xlu0 %2052
    %v2055 = vsel %vm483, %v2051, 0
    %v2058 = vsel %vm483, %v2053, 0
    %2060 = vmatprep.subr.bf16.mxu0 0
    %2061 = vmatpush1.bf16.xpose.msra.mxu0 %v2058
    %2062 = vmatprep.subr.bf16.mxu0 0
    %2063 = vmatpush1.bf16.xpose.msra.mxu0 0
    %2064 = vmatprep.subr.bf16.mxu0 0
    %2065 = vmatpush1.bf16.xpose.msra.mxu0 0
    %2066 = vmatprep.subr.bf16.mxu0 0
    %2067 = vmatpush1.bf16.xpose.msra.mxu0 0
    %2068 = vmatprep.subr.bf16.mxu0 0
    %2069 = vmatpush1.bf16.xpose.msra.mxu0 0
    %2070 = vmatprep.subr.bf16.mxu0 0
    %2071 = vmatpush1.bf16.xpose.msra.mxu0 0
    %2072 = vmatprep.subr.bf16.mxu0 0
    %2073 = vmatpush1.bf16.xpose.msra.mxu0 0
    %2074 = vmatprep.subr.bf16.mxu0 0
    %2075 = vmatpush1.bf16.xpose.msra.mxu0 0
    %2076 = vmatprep.subr.bf16.mxu0 0
    %2077 = vmatpush1.bf16.xpose.msra.mxu0 0
    %2078 = vmatprep.subr.bf16.mxu0 0
    %2079 = vmatpush1.bf16.xpose.msra.mxu0 0
    %2080 = vmatprep.subr.bf16.mxu0 0
    %2081 = vmatpush1.bf16.xpose.msra.mxu0 0
    %2082 = vmatprep.subr.bf16.mxu0 0
    %2083 = vmatpush1.bf16.xpose.msra.mxu0 0
    %2084 = vmatprep.subr.bf16.mxu0 0
    %2085 = vmatpush1.bf16.xpose.msra.mxu0 0
    %2086 = vmatprep.subr.bf16.mxu0 0
    %2087 = vmatpush1.bf16.xpose.msra.mxu0 0
    %2088 = vmatprep.subr.bf16.mxu0 0
    %2089 = vmatpush1.bf16.xpose.msra.mxu0 0
    %2090 = vmatprep.subr.bf16.mxu0 0
    %2091 = vmatpush1.bf16.xpose.msra.mxu0 0
    %2092 = vmatprep.mubr.bf16.mxu0 0
    %2093 = vmatmul.mubr.bf16.gmra.mrb[0].mxu0 %v2055
    %v2094 = vpop.f32.mrb[0].mxu0
    %v2095 = vadd.f32 0.0, %v2094
    %v2096 = vpop.f32.mrb[0].mxu0
    %v2097 = vpop.f32.mrb[0].mxu0
    %v2098 = vpop.f32.mrb[0].mxu0
    %2099 = vdwg.mxu0
    %v2100 = vsel %vm483, %v2045, -inf
    %2101 = vmax.xlane.f32.xlu0 %v2100
    %v2102 = vpop.xlane.xlu0 %2101
    %v2103 = vsel %vm483, %v2095, -inf
    %2104 = vmax.xlane.f32.xlu0 %v2103
    %v2105 = vpop.xlane.xlu0 %2104
    %v2106 = vsub.f32 %v2045, %v2102
    %v2107 = vsub.f32 %v2095, %v2105
    %v2108 = vmul.f32 %v2106, 1.442695
    %v2109 = vpow.pop %v2108
    %v2110 = vmul.f32 %v2107, 1.442695
    %v2111 = vpow.pop %v2110
    %v2112 = vsel %vm483, %v2109, 0.0
    %2113 = vadd.xlane.f32.xlu0 %v2112
    %v2114 = vpop.xlane.xlu0 %2113
    %v2115 = vsel %vm483, %v2111, 0.0
    %2116 = vadd.xlane.f32.xlu0 %v2115
    %v2117 = vpop.xlane.xlu0 %2116
    %v2118 = vrcp.pop %v2114
    %v2119 = vrcp.pop %v2117
    %v2120 = vmul.f32 %v2109, %v2118
    %v2121 = vmul.f32 %v2111, %v2119
    %v2122 = vpack.c.bf16 %v2120, %v2120
    %v2123 = vpack.c.bf16 %v2121, %v2121
    %2124 = vrot.lane.b32.xlu0 %v1780, 56
    %v2125 = vpop.permute.xlu0 %2124
    %v2127 = vsel %vm483, %v2122, 0
    %v2130 = vsel %vm608, %v2125, 0
    %2132 = vmatprep.subr.bf16.mxu0 0
    %2133 = vmatpush1.bf16.msra.mxu0 %v2130
    %2134 = vmatprep.subr.bf16.mxu0 0
    %2135 = vmatpush1.bf16.msra.mxu0 0
    %2136 = vmatprep.subr.bf16.mxu0 0
    %2137 = vmatpush1.bf16.msra.mxu0 0
    %2138 = vmatprep.subr.bf16.mxu0 0
    %2139 = vmatpush1.bf16.msra.mxu0 0
    %2140 = vmatprep.subr.bf16.mxu0 0
    %2141 = vmatpush1.bf16.msra.mxu0 0
    %2142 = vmatprep.subr.bf16.mxu0 0
    %2143 = vmatpush1.bf16.msra.mxu0 0
    %2144 = vmatprep.subr.bf16.mxu0 0
    %2145 = vmatpush1.bf16.msra.mxu0 0
    %2146 = vmatprep.subr.bf16.mxu0 0
    %2147 = vmatpush1.bf16.msra.mxu0 0
    %2148 = vmatprep.subr.bf16.mxu0 0
    %2149 = vmatpush1.bf16.msra.mxu0 0
    %2150 = vmatprep.subr.bf16.mxu0 0
    %2151 = vmatpush1.bf16.msra.mxu0 0
    %2152 = vmatprep.subr.bf16.mxu0 0
    %2153 = vmatpush1.bf16.msra.mxu0 0
    %2154 = vmatprep.subr.bf16.mxu0 0
    %2155 = vmatpush1.bf16.msra.mxu0 0
    %2156 = vmatprep.subr.bf16.mxu0 0
    %2157 = vmatpush1.bf16.msra.mxu0 0
    %2158 = vmatprep.subr.bf16.mxu0 0
    %2159 = vmatpush1.bf16.msra.mxu0 0
    %2160 = vmatprep.subr.bf16.mxu0 0
    %2161 = vmatpush1.bf16.msra.mxu0 0
    %2162 = vmatprep.subr.bf16.mxu0 0
    %2163 = vmatpush1.bf16.msra.mxu0 0
    %2164 = vmatprep.mubr.bf16.mxu0 0
    %2165 = vmatmul.mubr.bf16.gmra.mrb[0].mxu0 %v2127
    %v2166 = vpop.f32.mrb[0].mxu0
    %v2167 = vadd.f32 0.0, %v2166
    %v2168 = vpop.f32.mrb[0].mxu0
    %v2169 = vpop.f32.mrb[0].mxu0
    %v2170 = vpop.f32.mrb[0].mxu0
    %2171 = vdwg.mxu0
    %2172 = vrot.lane.b32.xlu0 %v1781, 56
    %v2173 = vpop.permute.xlu0 %2172
    %v2175 = vsel %vm483, %v2123, 0
    %v2178 = vsel %vm608, %v2173, 0
    %2180 = vmatprep.subr.bf16.mxu0 0
    %2181 = vmatpush1.bf16.msra.mxu0 %v2178
    %2182 = vmatprep.subr.bf16.mxu0 0
    %2183 = vmatpush1.bf16.msra.mxu0 0
    %2184 = vmatprep.subr.bf16.mxu0 0
    %2185 = vmatpush1.bf16.msra.mxu0 0
    %2186 = vmatprep.subr.bf16.mxu0 0
    %2187 = vmatpush1.bf16.msra.mxu0 0
    %2188 = vmatprep.subr.bf16.mxu0 0
    %2189 = vmatpush1.bf16.msra.mxu0 0
    %2190 = vmatprep.subr.bf16.mxu0 0
    %2191 = vmatpush1.bf16.msra.mxu0 0
    %2192 = vmatprep.subr.bf16.mxu0 0
    %2193 = vmatpush1.bf16.msra.mxu0 0
    %2194 = vmatprep.subr.bf16.mxu0 0
    %2195 = vmatpush1.bf16.msra.mxu0 0
    %2196 = vmatprep.subr.bf16.mxu0 0
    %2197 = vmatpush1.bf16.msra.mxu0 0
    %2198 = vmatprep.subr.bf16.mxu0 0
    %2199 = vmatpush1.bf16.msra.mxu0 0
    %2200 = vmatprep.subr.bf16.mxu0 0
    %2201 = vmatpush1.bf16.msra.mxu0 0
    %2202 = vmatprep.subr.bf16.mxu0 0
    %2203 = vmatpush1.bf16.msra.mxu0 0
    %2204 = vmatprep.subr.bf16.mxu0 0
    %2205 = vmatpush1.bf16.msra.mxu0 0
    %2206 = vmatprep.subr.bf16.mxu0 0
    %2207 = vmatpush1.bf16.msra.mxu0 0
    %2208 = vmatprep.subr.bf16.mxu0 0
    %2209 = vmatpush1.bf16.msra.mxu0 0
    %2210 = vmatprep.subr.bf16.mxu0 0
    %2211 = vmatpush1.bf16.msra.mxu0 0
    %2212 = vmatprep.mubr.bf16.mxu0 0
    %2213 = vmatmul.mubr.bf16.gmra.mrb[0].mxu0 %v2175
    %v2214 = vpop.f32.mrb[0].mxu0
    %v2215 = vadd.f32 0.0, %v2214
    %v2216 = vpop.f32.mrb[0].mxu0
    %v2217 = vpop.f32.mrb[0].mxu0
    %v2218 = vpop.f32.mrb[0].mxu0
    %2219 = vdwg.mxu0
    %2220 = vrot.lane.b32.xlu0 %v1780, 112
    %v2221 = vpop.permute.xlu0 %2220
    %2222 = vrot.lane.b32.xlu0 %v1780, 80
    %v2223 = vpop.permute.xlu0 %2222
    %v2225 = vsel %vm483, %v2221, 0
    %v2228 = vsel %vm483, %v2223, 0
    %2230 = vmatprep.subr.bf16.mxu0 0
    %2231 = vmatpush1.bf16.xpose.msra.mxu0 %v2228
    %2232 = vmatprep.subr.bf16.mxu0 0
    %2233 = vmatpush1.bf16.xpose.msra.mxu0 0
    %2234 = vmatprep.subr.bf16.mxu0 0
    %2235 = vmatpush1.bf16.xpose.msra.mxu0 0
    %2236 = vmatprep.subr.bf16.mxu0 0
    %2237 = vmatpush1.bf16.xpose.msra.mxu0 0
    %2238 = vmatprep.subr.bf16.mxu0 0
    %2239 = vmatpush1.bf16.xpose.msra.mxu0 0
    %2240 = vmatprep.subr.bf16.mxu0 0
    %2241 = vmatpush1.bf16.xpose.msra.mxu0 0
    %2242 = vmatprep.subr.bf16.mxu0 0
    %2243 = vmatpush1.bf16.xpose.msra.mxu0 0
    %2244 = vmatprep.subr.bf16.mxu0 0
    %2245 = vmatpush1.bf16.xpose.msra.mxu0 0
    %2246 = vmatprep.subr.bf16.mxu0 0
    %2247 = vmatpush1.bf16.xpose.msra.mxu0 0
    %2248 = vmatprep.subr.bf16.mxu0 0
    %2249 = vmatpush1.bf16.xpose.msra.mxu0 0
    %2250 = vmatprep.subr.bf16.mxu0 0
    %2251 = vmatpush1.bf16.xpose.msra.mxu0 0
    %2252 = vmatprep.subr.bf16.mxu0 0
    %2253 = vmatpush1.bf16.xpose.msra.mxu0 0
    %2254 = vmatprep.subr.bf16.mxu0 0
    %2255 = vmatpush1.bf16.xpose.msra.mxu0 0
    %2256 = vmatprep.subr.bf16.mxu0 0
    %2257 = vmatpush1.bf16.xpose.msra.mxu0 0
    %2258 = vmatprep.subr.bf16.mxu0 0
    %2259 = vmatpush1.bf16.xpose.msra.mxu0 0
    %2260 = vmatprep.subr.bf16.mxu0 0
    %2261 = vmatpush1.bf16.xpose.msra.mxu0 0
    %2262 = vmatprep.mubr.bf16.mxu0 0
    %2263 = vmatmul.mubr.bf16.gmra.mrb[0].mxu0 %v2225
    %v2264 = vpop.f32.mrb[0].mxu0
    %v2265 = vadd.f32 0.0, %v2264
    %v2266 = vpop.f32.mrb[0].mxu0
    %v2267 = vpop.f32.mrb[0].mxu0
    %v2268 = vpop.f32.mrb[0].mxu0
    %2269 = vdwg.mxu0
    %2270 = vrot.lane.b32.xlu0 %v1781, 112
    %v2271 = vpop.permute.xlu0 %2270
    %2272 = vrot.lane.b32.xlu0 %v1781, 80
    %v2273 = vpop.permute.xlu0 %2272
    %v2275 = vsel %vm483, %v2271, 0
    %v2278 = vsel %vm483, %v2273, 0
    %2280 = vmatprep.subr.bf16.mxu0 0
    %2281 = vmatpush1.bf16.xpose.msra.mxu0 %v2278
    %2282 = vmatprep.subr.bf16.mxu0 0
    %2283 = vmatpush1.bf16.xpose.msra.mxu0 0
    %2284 = vmatprep.subr.bf16.mxu0 0
    %2285 = vmatpush1.bf16.xpose.msra.mxu0 0
    %2286 = vmatprep.subr.bf16.mxu0 0
    %2287 = vmatpush1.bf16.xpose.msra.mxu0 0
    %2288 = vmatprep.subr.bf16.mxu0 0
    %2289 = vmatpush1.bf16.xpose.msra.mxu0 0
    %2290 = vmatprep.subr.bf16.mxu0 0
    %2291 = vmatpush1.bf16.xpose.msra.mxu0 0
    %2292 = vmatprep.subr.bf16.mxu0 0
    %2293 = vmatpush1.bf16.xpose.msra.mxu0 0
    %2294 = vmatprep.subr.bf16.mxu0 0
    %2295 = vmatpush1.bf16.xpose.msra.mxu0 0
    %2296 = vmatprep.subr.bf16.mxu0 0
    %2297 = vmatpush1.bf16.xpose.msra.mxu0 0
    %2298 = vmatprep.subr.bf16.mxu0 0
    %2299 = vmatpush1.bf16.xpose.msra.mxu0 0
    %2300 = vmatprep.subr.bf16.mxu0 0
    %2301 = vmatpush1.bf16.xpose.msra.mxu0 0
    %2302 = vmatprep.subr.bf16.mxu0 0
    %2303 = vmatpush1.bf16.xpose.msra.mxu0 0
    %2304 = vmatprep.subr.bf16.mxu0 0
    %2305 = vmatpush1.bf16.xpose.msra.mxu0 0
    %2306 = vmatprep.subr.bf16.mxu0 0
    %2307 = vmatpush1.bf16.xpose.msra.mxu0 0
    %2308 = vmatprep.subr.bf16.mxu0 0
    %2309 = vmatpush1.bf16.xpose.msra.mxu0 0
    %2310 = vmatprep.subr.bf16.mxu0 0
    %2311 = vmatpush1.bf16.xpose.msra.mxu0 0
    %2312 = vmatprep.mubr.bf16.mxu0 0
    %2313 = vmatmul.mubr.bf16.gmra.mrb[0].mxu0 %v2275
    %v2314 = vpop.f32.mrb[0].mxu0
    %v2315 = vadd.f32 0.0, %v2314
    %v2316 = vpop.f32.mrb[0].mxu0
    %v2317 = vpop.f32.mrb[0].mxu0
    %v2318 = vpop.f32.mrb[0].mxu0
    %2319 = vdwg.mxu0
    %v2320 = vsel %vm483, %v2265, -inf
    %2321 = vmax.xlane.f32.xlu0 %v2320
    %v2322 = vpop.xlane.xlu0 %2321
    %v2323 = vsel %vm483, %v2315, -inf
    %2324 = vmax.xlane.f32.xlu0 %v2323
    %v2325 = vpop.xlane.xlu0 %2324
    %v2326 = vsub.f32 %v2265, %v2322
    %v2327 = vsub.f32 %v2315, %v2325
    %v2328 = vmul.f32 %v2326, 1.442695
    %v2329 = vpow.pop %v2328
    %v2330 = vmul.f32 %v2327, 1.442695
    %v2331 = vpow.pop %v2330
    %v2332 = vsel %vm483, %v2329, 0.0
    %2333 = vadd.xlane.f32.xlu0 %v2332
    %v2334 = vpop.xlane.xlu0 %2333
    %v2335 = vsel %vm483, %v2331, 0.0
    %2336 = vadd.xlane.f32.xlu0 %v2335
    %v2337 = vpop.xlane.xlu0 %2336
    %v2338 = vrcp.pop %v2334
    %v2339 = vrcp.pop %v2337
    %v2340 = vmul.f32 %v2329, %v2338
    %v2341 = vmul.f32 %v2331, %v2339
    %v2342 = vpack.c.bf16 %v2340, %v2340
    %v2343 = vpack.c.bf16 %v2341, %v2341
    %2344 = vrot.lane.b32.xlu0 %v1780, 48
    %v2345 = vpop.permute.xlu0 %2344
    %v2347 = vsel %vm483, %v2342, 0
    %v2350 = vsel %vm608, %v2345, 0
    %2352 = vmatprep.subr.bf16.mxu0 0
    %2353 = vmatpush1.bf16.msra.mxu0 %v2350
    %2354 = vmatprep.subr.bf16.mxu0 0
    %2355 = vmatpush1.bf16.msra.mxu0 0
    %2356 = vmatprep.subr.bf16.mxu0 0
    %2357 = vmatpush1.bf16.msra.mxu0 0
    %2358 = vmatprep.subr.bf16.mxu0 0
    %2359 = vmatpush1.bf16.msra.mxu0 0
    %2360 = vmatprep.subr.bf16.mxu0 0
    %2361 = vmatpush1.bf16.msra.mxu0 0
    %2362 = vmatprep.subr.bf16.mxu0 0
    %2363 = vmatpush1.bf16.msra.mxu0 0
    %2364 = vmatprep.subr.bf16.mxu0 0
    %2365 = vmatpush1.bf16.msra.mxu0 0
    %2366 = vmatprep.subr.bf16.mxu0 0
    %2367 = vmatpush1.bf16.msra.mxu0 0
    %2368 = vmatprep.subr.bf16.mxu0 0
    %2369 = vmatpush1.bf16.msra.mxu0 0
    %2370 = vmatprep.subr.bf16.mxu0 0
    %2371 = vmatpush1.bf16.msra.mxu0 0
    %2372 = vmatprep.subr.bf16.mxu0 0
    %2373 = vmatpush1.bf16.msra.mxu0 0
    %2374 = vmatprep.subr.bf16.mxu0 0
    %2375 = vmatpush1.bf16.msra.mxu0 0
    %2376 = vmatprep.subr.bf16.mxu0 0
    %2377 = vmatpush1.bf16.msra.mxu0 0
    %2378 = vmatprep.subr.bf16.mxu0 0
    %2379 = vmatpush1.bf16.msra.mxu0 0
    %2380 = vmatprep.subr.bf16.mxu0 0
    %2381 = vmatpush1.bf16.msra.mxu0 0
    %2382 = vmatprep.subr.bf16.mxu0 0
    %2383 = vmatpush1.bf16.msra.mxu0 0
    %2384 = vmatprep.mubr.bf16.mxu0 0
    %2385 = vmatmul.mubr.bf16.gmra.mrb[0].mxu0 %v2347
    %v2386 = vpop.f32.mrb[0].mxu0
    %v2387 = vadd.f32 0.0, %v2386
    %v2388 = vpop.f32.mrb[0].mxu0
    %v2389 = vpop.f32.mrb[0].mxu0
    %v2390 = vpop.f32.mrb[0].mxu0
    %2391 = vdwg.mxu0
    %2392 = vrot.lane.b32.xlu0 %v1781, 48
    %v2393 = vpop.permute.xlu0 %2392
    %v2395 = vsel %vm483, %v2343, 0
    %v2398 = vsel %vm608, %v2393, 0
    %2400 = vmatprep.subr.bf16.mxu0 0
    %2401 = vmatpush1.bf16.msra.mxu0 %v2398
    %2402 = vmatprep.subr.bf16.mxu0 0
    %2403 = vmatpush1.bf16.msra.mxu0 0
    %2404 = vmatprep.subr.bf16.mxu0 0
    %2405 = vmatpush1.bf16.msra.mxu0 0
    %2406 = vmatprep.subr.bf16.mxu0 0
    %2407 = vmatpush1.bf16.msra.mxu0 0
    %2408 = vmatprep.subr.bf16.mxu0 0
    %2409 = vmatpush1.bf16.msra.mxu0 0
    %2410 = vmatprep.subr.bf16.mxu0 0
    %2411 = vmatpush1.bf16.msra.mxu0 0
    %2412 = vmatprep.subr.bf16.mxu0 0
    %2413 = vmatpush1.bf16.msra.mxu0 0
    %2414 = vmatprep.subr.bf16.mxu0 0
    %2415 = vmatpush1.bf16.msra.mxu0 0
    %2416 = vmatprep.subr.bf16.mxu0 0
    %2417 = vmatpush1.bf16.msra.mxu0 0
    %2418 = vmatprep.subr.bf16.mxu0 0
    %2419 = vmatpush1.bf16.msra.mxu0 0
    %2420 = vmatprep.subr.bf16.mxu0 0
    %2421 = vmatpush1.bf16.msra.mxu0 0
    %2422 = vmatprep.subr.bf16.mxu0 0
    %2423 = vmatpush1.bf16.msra.mxu0 0
    %2424 = vmatprep.subr.bf16.mxu0 0
    %2425 = vmatpush1.bf16.msra.mxu0 0
    %2426 = vmatprep.subr.bf16.mxu0 0
    %2427 = vmatpush1.bf16.msra.mxu0 0
    %2428 = vmatprep.subr.bf16.mxu0 0
    %2429 = vmatpush1.bf16.msra.mxu0 0
    %2430 = vmatprep.subr.bf16.mxu0 0
    %2431 = vmatpush1.bf16.msra.mxu0 0
    %2432 = vmatprep.mubr.bf16.mxu0 0
    %2433 = vmatmul.mubr.bf16.gmra.mrb[0].mxu0 %v2395
    %v2434 = vpop.f32.mrb[0].mxu0
    %v2435 = vadd.f32 0.0, %v2434
    %v2436 = vpop.f32.mrb[0].mxu0
    %v2437 = vpop.f32.mrb[0].mxu0
    %v2438 = vpop.f32.mrb[0].mxu0
    %2439 = vdwg.mxu0
    %2440 = vrot.lane.b32.xlu0 %v1780, 104
    %v2441 = vpop.permute.xlu0 %2440
    %2442 = vrot.lane.b32.xlu0 %v1780, 72
    %v2443 = vpop.permute.xlu0 %2442
    %v2445 = vsel %vm483, %v2441, 0
    %v2448 = vsel %vm483, %v2443, 0
    %2450 = vmatprep.subr.bf16.mxu0 0
    %2451 = vmatpush1.bf16.xpose.msra.mxu0 %v2448
    %2452 = vmatprep.subr.bf16.mxu0 0
    %2453 = vmatpush1.bf16.xpose.msra.mxu0 0
    %2454 = vmatprep.subr.bf16.mxu0 0
    %2455 = vmatpush1.bf16.xpose.msra.mxu0 0
    %2456 = vmatprep.subr.bf16.mxu0 0
    %2457 = vmatpush1.bf16.xpose.msra.mxu0 0
    %2458 = vmatprep.subr.bf16.mxu0 0
    %2459 = vmatpush1.bf16.xpose.msra.mxu0 0
    %2460 = vmatprep.subr.bf16.mxu0 0
    %2461 = vmatpush1.bf16.xpose.msra.mxu0 0
    %2462 = vmatprep.subr.bf16.mxu0 0
    %2463 = vmatpush1.bf16.xpose.msra.mxu0 0
    %2464 = vmatprep.subr.bf16.mxu0 0
    %2465 = vmatpush1.bf16.xpose.msra.mxu0 0
    %2466 = vmatprep.subr.bf16.mxu0 0
    %2467 = vmatpush1.bf16.xpose.msra.mxu0 0
    %2468 = vmatprep.subr.bf16.mxu0 0
    %2469 = vmatpush1.bf16.xpose.msra.mxu0 0
    %2470 = vmatprep.subr.bf16.mxu0 0
    %2471 = vmatpush1.bf16.xpose.msra.mxu0 0
    %2472 = vmatprep.subr.bf16.mxu0 0
    %2473 = vmatpush1.bf16.xpose.msra.mxu0 0
    %2474 = vmatprep.subr.bf16.mxu0 0
    %2475 = vmatpush1.bf16.xpose.msra.mxu0 0
    %2476 = vmatprep.subr.bf16.mxu0 0
    %2477 = vmatpush1.bf16.xpose.msra.mxu0 0
    %2478 = vmatprep.subr.bf16.mxu0 0
    %2479 = vmatpush1.bf16.xpose.msra.mxu0 0
    %2480 = vmatprep.subr.bf16.mxu0 0
    %2481 = vmatpush1.bf16.xpose.msra.mxu0 0
    %2482 = vmatprep.mubr.bf16.mxu0 0
    %2483 = vmatmul.mubr.bf16.gmra.mrb[0].mxu0 %v2445
    %v2484 = vpop.f32.mrb[0].mxu0
    %v2485 = vadd.f32 0.0, %v2484
    %v2486 = vpop.f32.mrb[0].mxu0
    %v2487 = vpop.f32.mrb[0].mxu0
    %v2488 = vpop.f32.mrb[0].mxu0
    %2489 = vdwg.mxu0
    %2490 = vrot.lane.b32.xlu0 %v1781, 104
    %v2491 = vpop.permute.xlu0 %2490
    %2492 = vrot.lane.b32.xlu0 %v1781, 72
    %v2493 = vpop.permute.xlu0 %2492
    %v2495 = vsel %vm483, %v2491, 0
    %v2498 = vsel %vm483, %v2493, 0
    %2500 = vmatprep.subr.bf16.mxu0 0
    %2501 = vmatpush1.bf16.xpose.msra.mxu0 %v2498
    %2502 = vmatprep.subr.bf16.mxu0 0
    %2503 = vmatpush1.bf16.xpose.msra.mxu0 0
    %2504 = vmatprep.subr.bf16.mxu0 0
    %2505 = vmatpush1.bf16.xpose.msra.mxu0 0
    %2506 = vmatprep.subr.bf16.mxu0 0
    %2507 = vmatpush1.bf16.xpose.msra.mxu0 0
    %2508 = vmatprep.subr.bf16.mxu0 0
    %2509 = vmatpush1.bf16.xpose.msra.mxu0 0
    %2510 = vmatprep.subr.bf16.mxu0 0
    %2511 = vmatpush1.bf16.xpose.msra.mxu0 0
    %2512 = vmatprep.subr.bf16.mxu0 0
    %2513 = vmatpush1.bf16.xpose.msra.mxu0 0
    %2514 = vmatprep.subr.bf16.mxu0 0
    %2515 = vmatpush1.bf16.xpose.msra.mxu0 0
    %2516 = vmatprep.subr.bf16.mxu0 0
    %2517 = vmatpush1.bf16.xpose.msra.mxu0 0
    %2518 = vmatprep.subr.bf16.mxu0 0
    %2519 = vmatpush1.bf16.xpose.msra.mxu0 0
    %2520 = vmatprep.subr.bf16.mxu0 0
    %2521 = vmatpush1.bf16.xpose.msra.mxu0 0
    %2522 = vmatprep.subr.bf16.mxu0 0
    %2523 = vmatpush1.bf16.xpose.msra.mxu0 0
    %2524 = vmatprep.subr.bf16.mxu0 0
    %2525 = vmatpush1.bf16.xpose.msra.mxu0 0
    %2526 = vmatprep.subr.bf16.mxu0 0
    %2527 = vmatpush1.bf16.xpose.msra.mxu0 0
    %2528 = vmatprep.subr.bf16.mxu0 0
    %2529 = vmatpush1.bf16.xpose.msra.mxu0 0
    %2530 = vmatprep.subr.bf16.mxu0 0
    %2531 = vmatpush1.bf16.xpose.msra.mxu0 0
    %2532 = vmatprep.mubr.bf16.mxu0 0
    %2533 = vmatmul.mubr.bf16.gmra.mrb[0].mxu0 %v2495
    %v2534 = vpop.f32.mrb[0].mxu0
    %v2535 = vadd.f32 0.0, %v2534
    %v2536 = vpop.f32.mrb[0].mxu0
    %v2537 = vpop.f32.mrb[0].mxu0
    %v2538 = vpop.f32.mrb[0].mxu0
    %2539 = vdwg.mxu0
    %v2540 = vsel %vm483, %v2485, -inf
    %2541 = vmax.xlane.f32.xlu0 %v2540
    %v2542 = vpop.xlane.xlu0 %2541
    %v2543 = vsel %vm483, %v2535, -inf
    %2544 = vmax.xlane.f32.xlu0 %v2543
    %v2545 = vpop.xlane.xlu0 %2544
    %v2546 = vsub.f32 %v2485, %v2542
    %v2547 = vsub.f32 %v2535, %v2545
    %v2548 = vmul.f32 %v2546, 1.442695
    %v2549 = vpow.pop %v2548
    %v2550 = vmul.f32 %v2547, 1.442695
    %v2551 = vpow.pop %v2550
    %v2552 = vsel %vm483, %v2549, 0.0
    %2553 = vadd.xlane.f32.xlu0 %v2552
    %v2554 = vpop.xlane.xlu0 %2553
    %v2555 = vsel %vm483, %v2551, 0.0
    %2556 = vadd.xlane.f32.xlu0 %v2555
    %v2557 = vpop.xlane.xlu0 %2556
    %v2558 = vrcp.pop %v2554
    %v2559 = vrcp.pop %v2557
    %v2560 = vmul.f32 %v2549, %v2558
    %v2561 = vmul.f32 %v2551, %v2559
    %v2562 = vpack.c.bf16 %v2560, %v2560
    %v2563 = vpack.c.bf16 %v2561, %v2561
    %2564 = vrot.lane.b32.xlu0 %v1780, 40
    %v2565 = vpop.permute.xlu0 %2564
    %v2567 = vsel %vm483, %v2562, 0
    %v2570 = vsel %vm608, %v2565, 0
    %2572 = vmatprep.subr.bf16.mxu0 0
    %2573 = vmatpush1.bf16.msra.mxu0 %v2570
    %2574 = vmatprep.subr.bf16.mxu0 0
    %2575 = vmatpush1.bf16.msra.mxu0 0
    %2576 = vmatprep.subr.bf16.mxu0 0
    %2577 = vmatpush1.bf16.msra.mxu0 0
    %2578 = vmatprep.subr.bf16.mxu0 0
    %2579 = vmatpush1.bf16.msra.mxu0 0
    %2580 = vmatprep.subr.bf16.mxu0 0
    %2581 = vmatpush1.bf16.msra.mxu0 0
    %2582 = vmatprep.subr.bf16.mxu0 0
    %2583 = vmatpush1.bf16.msra.mxu0 0
    %2584 = vmatprep.subr.bf16.mxu0 0
    %2585 = vmatpush1.bf16.msra.mxu0 0
    %2586 = vmatprep.subr.bf16.mxu0 0
    %2587 = vmatpush1.bf16.msra.mxu0 0
    %2588 = vmatprep.subr.bf16.mxu0 0
    %2589 = vmatpush1.bf16.msra.mxu0 0
    %2590 = vmatprep.subr.bf16.mxu0 0
    %2591 = vmatpush1.bf16.msra.mxu0 0
    %2592 = vmatprep.subr.bf16.mxu0 0
    %2593 = vmatpush1.bf16.msra.mxu0 0
    %2594 = vmatprep.subr.bf16.mxu0 0
    %2595 = vmatpush1.bf16.msra.mxu0 0
    %2596 = vmatprep.subr.bf16.mxu0 0
    %2597 = vmatpush1.bf16.msra.mxu0 0
    %2598 = vmatprep.subr.bf16.mxu0 0
    %2599 = vmatpush1.bf16.msra.mxu0 0
    %2600 = vmatprep.subr.bf16.mxu0 0
    %2601 = vmatpush1.bf16.msra.mxu0 0
    %2602 = vmatprep.subr.bf16.mxu0 0
    %2603 = vmatpush1.bf16.msra.mxu0 0
    %2604 = vmatprep.mubr.bf16.mxu0 0
    %2605 = vmatmul.mubr.bf16.gmra.mrb[0].mxu0 %v2567
    %v2606 = vpop.f32.mrb[0].mxu0
    %v2607 = vadd.f32 0.0, %v2606
    %v2608 = vpop.f32.mrb[0].mxu0
    %v2609 = vpop.f32.mrb[0].mxu0
    %v2610 = vpop.f32.mrb[0].mxu0
    %2611 = vdwg.mxu0
    %2612 = vrot.lane.b32.xlu0 %v1781, 40
    %v2613 = vpop.permute.xlu0 %2612
    %v2615 = vsel %vm483, %v2563, 0
    %v2618 = vsel %vm608, %v2613, 0
    %2620 = vmatprep.subr.bf16.mxu0 0
    %2621 = vmatpush1.bf16.msra.mxu0 %v2618
    %2622 = vmatprep.subr.bf16.mxu0 0
    %2623 = vmatpush1.bf16.msra.mxu0 0
    %2624 = vmatprep.subr.bf16.mxu0 0
    %2625 = vmatpush1.bf16.msra.mxu0 0
    %2626 = vmatprep.subr.bf16.mxu0 0
    %2627 = vmatpush1.bf16.msra.mxu0 0
    %2628 = vmatprep.subr.bf16.mxu0 0
    %2629 = vmatpush1.bf16.msra.mxu0 0
    %2630 = vmatprep.subr.bf16.mxu0 0
    %2631 = vmatpush1.bf16.msra.mxu0 0
    %2632 = vmatprep.subr.bf16.mxu0 0
    %2633 = vmatpush1.bf16.msra.mxu0 0
    %2634 = vmatprep.subr.bf16.mxu0 0
    %2635 = vmatpush1.bf16.msra.mxu0 0
    %2636 = vmatprep.subr.bf16.mxu0 0
    %2637 = vmatpush1.bf16.msra.mxu0 0
    %2638 = vmatprep.subr.bf16.mxu0 0
    %2639 = vmatpush1.bf16.msra.mxu0 0
    %2640 = vmatprep.subr.bf16.mxu0 0
    %2641 = vmatpush1.bf16.msra.mxu0 0
    %2642 = vmatprep.subr.bf16.mxu0 0
    %2643 = vmatpush1.bf16.msra.mxu0 0
    %2644 = vmatprep.subr.bf16.mxu0 0
    %2645 = vmatpush1.bf16.msra.mxu0 0
    %2646 = vmatprep.subr.bf16.mxu0 0
    %2647 = vmatpush1.bf16.msra.mxu0 0
    %2648 = vmatprep.subr.bf16.mxu0 0
    %2649 = vmatpush1.bf16.msra.mxu0 0
    %2650 = vmatprep.subr.bf16.mxu0 0
    %2651 = vmatpush1.bf16.msra.mxu0 0
    %2652 = vmatprep.mubr.bf16.mxu0 0
    %2653 = vmatmul.mubr.bf16.gmra.mrb[0].mxu0 %v2615
    %v2654 = vpop.f32.mrb[0].mxu0
    %v2655 = vadd.f32 0.0, %v2654
    %v2656 = vpop.f32.mrb[0].mxu0
    %v2657 = vpop.f32.mrb[0].mxu0
    %v2658 = vpop.f32.mrb[0].mxu0
    %2659 = vdwg.mxu0
    %2662 = vrot.lane.b32.xlu0 %v2167, 8
    %v2663 = vpop.permute.xlu0 %2662
    %2664 = vrot.lane.b32.xlu0 %v2215, 8
    %v2665 = vpop.permute.xlu0 %2664
    %2670 = vrot.lane.b32.xlu0 %v2387, 16
    %v2671 = vpop.permute.xlu0 %2670
    %2672 = vrot.lane.b32.xlu0 %v2435, 16
    %v2673 = vpop.permute.xlu0 %2672
    %2678 = vrot.lane.b32.xlu0 %v2607, 24
    %v2679 = vpop.permute.xlu0 %2678
    %2680 = vrot.lane.b32.xlu0 %v2655, 24
    %v2681 = vpop.permute.xlu0 %2680
    %v2684 = vsel %vm483, %v1947, %v2663
    %v2685 = vsel %vm483, %v1995, %v2665
    %v2686 = vsel %vm1386, %v2684, %v2671
    %v2687 = vsel %vm1386, %v2685, %v2673
    %v2688 = vsel %vm1389, %v2686, %v2679
    %v2689 = vsel %vm1389, %v2687, %v2681
    %v2690 = vpack.c.bf16 %v2689, %v2688
    %v2692 = vlaneseq
    %v2693 = vshrl.u32 %v2692, 7
    %v2694 = vsub.s32 0, %v2693
    %v2695 = vrot.slane %v1716, %v2694
    %v2701 = vunpack.c.l.b16 %v1711
    %v2702 = vunpack.c.l.b16 %v1712
    %v2703 = vunpack.c.l.b16 %v1713
    %v2704 = vunpack.c.l.b16 %v1714
    %v2705 = vpack.c.b16 %v2702, %v2701
    %v2706 = vpack.c.b16 %v2704, %v2703
    %v2710 = vsel %vm433, %v2690, 0
    %2712 = vmatprep.subr.bf16.mxu0 0
    %2713 = vmatpush1.bf16.msra.mxu0 %v2705
    %2714 = vmatprep.subr.bf16.mxu0 0
    %2715 = vmatpush1.bf16.msra.mxu0 %v2706
    %2716 = vmatprep.subr.bf16.mxu0 0
    %2717 = vmatpush1.bf16.msra.mxu0 0
    %2718 = vmatprep.subr.bf16.mxu0 0
    %2719 = vmatpush1.bf16.msra.mxu0 0
    %2720 = vmatprep.subr.bf16.mxu0 0
    %2721 = vmatpush1.bf16.msra.mxu0 0
    %2722 = vmatprep.subr.bf16.mxu0 0
    %2723 = vmatpush1.bf16.msra.mxu0 0
    %2724 = vmatprep.subr.bf16.mxu0 0
    %2725 = vmatpush1.bf16.msra.mxu0 0
    %2726 = vmatprep.subr.bf16.mxu0 0
    %2727 = vmatpush1.bf16.msra.mxu0 0
    %2728 = vmatprep.subr.bf16.mxu0 0
    %2729 = vmatpush1.bf16.msra.mxu0 0
    %2730 = vmatprep.subr.bf16.mxu0 0
    %2731 = vmatpush1.bf16.msra.mxu0 0
    %2732 = vmatprep.subr.bf16.mxu0 0
    %2733 = vmatpush1.bf16.msra.mxu0 0
    %2734 = vmatprep.subr.bf16.mxu0 0
    %2735 = vmatpush1.bf16.msra.mxu0 0
    %2736 = vmatprep.subr.bf16.mxu0 0
    %2737 = vmatpush1.bf16.msra.mxu0 0
    %2738 = vmatprep.subr.bf16.mxu0 0
    %2739 = vmatpush1.bf16.msra.mxu0 0
    %2740 = vmatprep.subr.bf16.mxu0 0
    %2741 = vmatpush1.bf16.msra.mxu0 0
    %2742 = vmatprep.subr.bf16.mxu0 0
    %2743 = vmatpush1.bf16.msra.mxu0 0
    %2744 = vmatprep.mubr.bf16.mxu0 0
    %2745 = vmatmul.mubr.bf16.gmra.mrb[0].mxu0 %v2710
    %v2746 = vpop.f32.mrb[0].mxu0
    %v2747 = vadd.f32 %v2695, %v2746
    %v2748 = vpop.f32.mrb[0].mxu0
    %v2749 = vpop.f32.mrb[0].mxu0
    %v2750 = vadd.f32 %v2695, %v2749
    %v2751 = vpop.f32.mrb[0].mxu0
    %2752 = vdwg.mxu0
    %v2753 = vadd.f32 %v1701, %v2747
    %v2754 = vadd.f32 %v1702, %v2750
    %s2755 = scalar_lea.vmem [#allocation14], 1
    %v2756 = vld [vmem:[%s2755] sm:$0x1]
    %s2757 = scalar_lea.vmem [#allocation16], 1
    %v2758 = vld [vmem:[%s2757] sm:$0x1]
    %v2759 = vsel %vm433, %v2753, 0.0
    %2760 = vadd.xlane.f32.xlu0 %v2759
    %v2761 = vpop.xlane.xlu0 %2760
    %v2762 = vsel %vm433, %v2754, 0.0
    %2763 = vadd.xlane.f32.xlu0 %v2762
    %v2764 = vpop.xlane.xlu0 %2763
    %v2765 = vmul.f32 %v2761, %v1465
    %v2766 = vmul.f32 %v2764, %v1465
    %v2767 = vsub.f32 %v2753, %v2765
    %v2768 = vsub.f32 %v2754, %v2766
    %v2769 = vmul.f32 %v2767, %v2767
    %v2770 = vmul.f32 %v2768, %v2768
    %v2771 = vsel %vm433, %v2769, 0.0
    %2772 = vadd.xlane.f32.xlu0 %v2771
    %v2773 = vpop.xlane.xlu0 %2772
    %v2774 = vsel %vm433, %v2770, 0.0
    %2775 = vadd.xlane.f32.xlu0 %v2774
    %v2776 = vpop.xlane.xlu0 %2775
    %v2777 = vmul.f32 %v2773, %v1465
    %v2778 = vmul.f32 %v2776, %v1465
    %v2779 = vadd.f32 %v2777, 1e-05
    %v2780 = vadd.f32 %v2778, 1e-05
    %v2781 = vrsqrt.pop %v2779
    %v2782 = vrsqrt.pop %v2780
    %v2783 = vmul.f32 %v2767, %v2781
    %v2784 = vmul.f32 %v2768, %v2782
    %v2786 = vlaneseq
    %v2787 = vshrl.u32 %v2786, 7
    %v2788 = vsub.s32 0, %v2787
    %v2789 = vrot.slane %v2756, %v2788
    %v2791 = vmul.f32 %v2783, %v2789
    %v2792 = vmul.f32 %v2784, %v2789
    %v2794 = vlaneseq
    %v2795 = vshrl.u32 %v2794, 7
    %v2796 = vsub.s32 0, %v2795
    %v2797 = vrot.slane %v2758, %v2796
    %v2799 = vadd.f32 %v2791, %v2797
    %v2800 = vadd.f32 %v2792, %v2797
    %s2801 = scalar_lea.vmem %s15, 16
    %v2802 = vld [vmem:[%s2801] sm:$0xf]
    %v2803 = vld [vmem:[%s2801 + $0x4] sm:$0xf]
    %v2804 = vld [vmem:[%s2801 + $0x8] sm:$0xf]
    %v2805 = vld [vmem:[%s2801 + $0xc] sm:$0xf]
    %s2806 = scalar_lea.vmem [#allocation11], 1
    %v2807 = vld [vmem:[%s2806] sm:$0x1]
    %s2808 = scalar_lea.vmem %s19, 32
    %v2809 = vld [vmem:[%s2808] sm:$0xf]
    %v2810 = vld [vmem:[%s2808 + $0x4] sm:$0xf]
    %v2811 = vld [vmem:[%s2808 + $0x8] sm:$0xf]
    %v2812 = vld [vmem:[%s2808 + $0xc] sm:$0xf]
    %v2813 = vld [vmem:[%s2808 + $0x10] sm:$0xf]
    %v2814 = vld [vmem:[%s2808 + $0x14] sm:$0xf]
    %v2815 = vld [vmem:[%s2808 + $0x18] sm:$0xf]
    %v2816 = vld [vmem:[%s2808 + $0x1c] sm:$0xf]
    %s2817 = scalar_lea.vmem [#allocation13], 1
    %v2818 = vld [vmem:[%s2817] sm:$0x1]
    %v2819 = vpack.c.bf16 %v2800, %v2799
    %v2821 = vlaneseq
    %v2822 = vshrl.u32 %v2821, 7
    %v2823 = vsub.s32 0, %v2822
    %v2824 = vrot.slane %v2807, %v2823
    %v2830 = vunpack.c.l.b16 %v2802
    %v2831 = vunpack.c.l.b16 %v2803
    %v2832 = vunpack.c.l.b16 %v2804
    %v2833 = vunpack.c.l.b16 %v2805
    %v2834 = vpack.c.b16 %v2831, %v2830
    %v2835 = vpack.c.b16 %v2833, %v2832
    %v2839 = vsel %vm433, %v2819, 0
    %2841 = vmatprep.subr.bf16.mxu0 0
    %2842 = vmatpush1.bf16.msra.mxu0 %v2834
    %2843 = vmatprep.subr.bf16.mxu0 0
    %2844 = vmatpush1.bf16.msra.mxu0 %v2835
    %2845 = vmatprep.subr.bf16.mxu0 0
    %2846 = vmatpush1.bf16.msra.mxu0 0
    %2847 = vmatprep.subr.bf16.mxu0 0
    %2848 = vmatpush1.bf16.msra.mxu0 0
    %2849 = vmatprep.subr.bf16.mxu0 0
    %2850 = vmatpush1.bf16.msra.mxu0 0
    %2851 = vmatprep.subr.bf16.mxu0 0
    %2852 = vmatpush1.bf16.msra.mxu0 0
    %2853 = vmatprep.subr.bf16.mxu0 0
    %2854 = vmatpush1.bf16.msra.mxu0 0
    %2855 = vmatprep.subr.bf16.mxu0 0
    %2856 = vmatpush1.bf16.msra.mxu0 0
    %2857 = vmatprep.subr.bf16.mxu0 0
    %2858 = vmatpush1.bf16.msra.mxu0 0
    %2859 = vmatprep.subr.bf16.mxu0 0
    %2860 = vmatpush1.bf16.msra.mxu0 0
    %2861 = vmatprep.subr.bf16.mxu0 0
    %2862 = vmatpush1.bf16.msra.mxu0 0
    %2863 = vmatprep.subr.bf16.mxu0 0
    %2864 = vmatpush1.bf16.msra.mxu0 0
    %2865 = vmatprep.subr.bf16.mxu0 0
    %2866 = vmatpush1.bf16.msra.mxu0 0
    %2867 = vmatprep.subr.bf16.mxu0 0
    %2868 = vmatpush1.bf16.msra.mxu0 0
    %2869 = vmatprep.subr.bf16.mxu0 0
    %2870 = vmatpush1.bf16.msra.mxu0 0
    %2871 = vmatprep.subr.bf16.mxu0 0
    %2872 = vmatpush1.bf16.msra.mxu0 0
    %2873 = vmatprep.mubr.bf16.mxu0 0
    %2874 = vmatmul.mubr.bf16.gmra.mrb[0].mxu0 %v2839
    %v2875 = vpop.f32.mrb[0].mxu0
    %v2876 = vadd.f32 %v2824, %v2875
    %v2877 = vpop.f32.mrb[0].mxu0
    %v2878 = vpop.f32.mrb[0].mxu0
    %v2879 = vadd.f32 %v2824, %v2878
    %v2880 = vpop.f32.mrb[0].mxu0
    %2881 = vdwg.mxu0
    %v2882 = vmax.f32 %v2876, 0.0
    %v2883 = vmax.f32 %v2879, 0.0
    %v2884 = vpack.c.bf16 %v2883, %v2882
    %v2886 = vlaneseq
    %v2887 = vshrl.u32 %v2886, 7
    %v2888 = vsub.s32 0, %v2887
    %v2889 = vrot.slane %v2818, %v2888
    %v2899 = vunpack.c.l.b16 %v2809
    %v2900 = vunpack.c.l.b16 %v2810
    %v2901 = vunpack.c.l.b16 %v2811
    %v2902 = vunpack.c.l.b16 %v2812
    %v2903 = vunpack.c.l.b16 %v2813
    %v2904 = vunpack.c.l.b16 %v2814
    %v2905 = vunpack.c.l.b16 %v2815
    %v2906 = vunpack.c.l.b16 %v2816
    %v2907 = vpack.c.b16 %v2900, %v2899
    %v2908 = vpack.c.b16 %v2902, %v2901
    %v2909 = vpack.c.b16 %v2904, %v2903
    %v2910 = vpack.c.b16 %v2906, %v2905
    %v2916 = vsel %vm1612, %v2884, 0
    %2918 = vmatprep.subr.bf16.mxu0 0
    %2919 = vmatpush1.bf16.msra.mxu0 %v2907
    %2920 = vmatprep.subr.bf16.mxu0 0
    %2921 = vmatpush1.bf16.msra.mxu0 %v2908
    %2922 = vmatprep.subr.bf16.mxu0 0
    %2923 = vmatpush1.bf16.msra.mxu0 %v2909
    %2924 = vmatprep.subr.bf16.mxu0 0
    %2925 = vmatpush1.bf16.msra.mxu0 %v2910
    %2926 = vmatprep.subr.bf16.mxu0 0
    %2927 = vmatpush1.bf16.msra.mxu0 0
    %2928 = vmatprep.subr.bf16.mxu0 0
    %2929 = vmatpush1.bf16.msra.mxu0 0
    %2930 = vmatprep.subr.bf16.mxu0 0
    %2931 = vmatpush1.bf16.msra.mxu0 0
    %2932 = vmatprep.subr.bf16.mxu0 0
    %2933 = vmatpush1.bf16.msra.mxu0 0
    %2934 = vmatprep.subr.bf16.mxu0 0
    %2935 = vmatpush1.bf16.msra.mxu0 0
    %2936 = vmatprep.subr.bf16.mxu0 0
    %2937 = vmatpush1.bf16.msra.mxu0 0
    %2938 = vmatprep.subr.bf16.mxu0 0
    %2939 = vmatpush1.bf16.msra.mxu0 0
    %2940 = vmatprep.subr.bf16.mxu0 0
    %2941 = vmatpush1.bf16.msra.mxu0 0
    %2942 = vmatprep.subr.bf16.mxu0 0
    %2943 = vmatpush1.bf16.msra.mxu0 0
    %2944 = vmatprep.subr.bf16.mxu0 0
    %2945 = vmatpush1.bf16.msra.mxu0 0
    %2946 = vmatprep.subr.bf16.mxu0 0
    %2947 = vmatpush1.bf16.msra.mxu0 0
    %2948 = vmatprep.subr.bf16.mxu0 0
    %2949 = vmatpush1.bf16.msra.mxu0 0
    %2950 = vmatprep.mubr.bf16.mxu0 0
    %2951 = vmatmul.mubr.bf16.gmra.mrb[0].mxu0 %v2916
    %v2952 = vpop.f32.mrb[0].mxu0
    %v2953 = vadd.f32 %v2889, %v2952
    %v2954 = vpop.f32.mrb[0].mxu0
    %v2955 = vpop.f32.mrb[0].mxu0
    %v2956 = vadd.f32 %v2889, %v2955
    %v2957 = vpop.f32.mrb[0].mxu0
    %2958 = vdwg.mxu0
    %v2959 = vadd.f32 %v2799, %v2953
    %v2960 = vadd.f32 %v2800, %v2956
    %s2961 = scalar_lea.vmem [#allocation17], 1
    %v2962 = vld [vmem:[%s2961] sm:$0x1]
    %s2963 = scalar_lea.vmem [#allocation19], 1
    %v2964 = vld [vmem:[%s2963] sm:$0x1]
    %v2965 = vsel %vm433, %v2959, 0.0
    %2966 = vadd.xlane.f32.xlu0 %v2965
    %v2967 = vpop.xlane.xlu0 %2966
    %v2968 = vsel %vm433, %v2960, 0.0
    %2969 = vadd.xlane.f32.xlu0 %v2968
    %v2970 = vpop.xlane.xlu0 %2969
    %v2971 = vmul.f32 %v2967, %v1465
    %v2972 = vmul.f32 %v2970, %v1465
    %v2973 = vsub.f32 %v2959, %v2971
    %v2974 = vsub.f32 %v2960, %v2972
    %v2975 = vmul.f32 %v2973, %v2973
    %v2976 = vmul.f32 %v2974, %v2974
    %v2977 = vsel %vm433, %v2975, 0.0
    %2978 = vadd.xlane.f32.xlu0 %v2977
    %v2979 = vpop.xlane.xlu0 %2978
    %v2980 = vsel %vm433, %v2976, 0.0
    %2981 = vadd.xlane.f32.xlu0 %v2980
    %v2982 = vpop.xlane.xlu0 %2981
    %v2983 = vmul.f32 %v2979, %v1465
    %v2984 = vmul.f32 %v2982, %v1465
    %v2985 = vadd.f32 %v2983, 1e-05
    %v2986 = vadd.f32 %v2984, 1e-05
    %v2987 = vrsqrt.pop %v2985
    %v2988 = vrsqrt.pop %v2986
    %v2989 = vmul.f32 %v2973, %v2987
    %v2990 = vmul.f32 %v2974, %v2988
    %v2992 = vlaneseq
    %v2993 = vshrl.u32 %v2992, 7
    %v2994 = vsub.s32 0, %v2993
    %v2995 = vrot.slane %v2962, %v2994
    %v2997 = vmul.f32 %v2989, %v2995
    %v2998 = vmul.f32 %v2990, %v2995
    %v3000 = vlaneseq
    %v3001 = vshrl.u32 %v3000, 7
    %v3002 = vsub.s32 0, %v3001
    %v3003 = vrot.slane %v2964, %v3002
    %v3005 = vadd.f32 %v2997, %v3003
    %v3006 = vadd.f32 %v2998, %v3003
    %v3007 = vld [vmem:[#allocation5] sm:$0xff]
    %v3008 = vld [vmem:[#allocation5 + $0x8] sm:$0xff]
    %v3009 = vadd.f32 %v3007, %v395
    %v3010 = vadd.f32 %v3008, %v399
    %v3011 = vld [vmem:[%s31] sm:$0xf]
    %v3012 = vld [vmem:[%s31 + $0x4] sm:$0xf]
    %v3013 = vld [vmem:[%s31 + $0x8] sm:$0xf]
    %v3014 = vld [vmem:[%s31 + $0xc] sm:$0xf]
    %v3015 = vld [vmem:[#allocation20] sm:$0x1]
    %v3016 = vld [vmem:[%s35] sm:$0xf]
    %v3017 = vld [vmem:[%s35 + $0x4] sm:$0xf]
    %v3018 = vld [vmem:[%s35 + $0x8] sm:$0xf]
    %v3019 = vld [vmem:[%s35 + $0xc] sm:$0xf]
    %v3020 = vld [vmem:[%s37] sm:$0x1]
    %v3021 = vpack.c.bf16 %v3010, %v3009
    %v3023 = vlaneseq
    %v3024 = vshrl.u32 %v3023, 7
    %v3025 = vsub.s32 0, %v3024
    %v3026 = vrot.slane %v3015, %v3025
    %v3032 = vunpack.c.l.b16 %v3011
    %v3033 = vunpack.c.l.b16 %v3012
    %v3034 = vunpack.c.l.b16 %v3013
    %v3035 = vunpack.c.l.b16 %v3014
    %v3036 = vpack.c.b16 %v3033, %v3032
    %v3037 = vpack.c.b16 %v3035, %v3034
    %v3041 = vsel %vm433, %v3021, 0
    %3043 = vmatprep.subr.bf16.mxu0 0
    %3044 = vmatpush1.bf16.msra.mxu0 %v3036
    %3045 = vmatprep.subr.bf16.mxu0 0
    %3046 = vmatpush1.bf16.msra.mxu0 %v3037
    %3047 = vmatprep.subr.bf16.mxu0 0
    %3048 = vmatpush1.bf16.msra.mxu0 0
    %3049 = vmatprep.subr.bf16.mxu0 0
    %3050 = vmatpush1.bf16.msra.mxu0 0
    %3051 = vmatprep.subr.bf16.mxu0 0
    %3052 = vmatpush1.bf16.msra.mxu0 0
    %3053 = vmatprep.subr.bf16.mxu0 0
    %3054 = vmatpush1.bf16.msra.mxu0 0
    %3055 = vmatprep.subr.bf16.mxu0 0
    %3056 = vmatpush1.bf16.msra.mxu0 0
    %3057 = vmatprep.subr.bf16.mxu0 0
    %3058 = vmatpush1.bf16.msra.mxu0 0
    %3059 = vmatprep.subr.bf16.mxu0 0
    %3060 = vmatpush1.bf16.msra.mxu0 0
    %3061 = vmatprep.subr.bf16.mxu0 0
    %3062 = vmatpush1.bf16.msra.mxu0 0
    %3063 = vmatprep.subr.bf16.mxu0 0
    %3064 = vmatpush1.bf16.msra.mxu0 0
    %3065 = vmatprep.subr.bf16.mxu0 0
    %3066 = vmatpush1.bf16.msra.mxu0 0
    %3067 = vmatprep.subr.bf16.mxu0 0
    %3068 = vmatpush1.bf16.msra.mxu0 0
    %3069 = vmatprep.subr.bf16.mxu0 0
    %3070 = vmatpush1.bf16.msra.mxu0 0
    %3071 = vmatprep.subr.bf16.mxu0 0
    %3072 = vmatpush1.bf16.msra.mxu0 0
    %3073 = vmatprep.subr.bf16.mxu0 0
    %3074 = vmatpush1.bf16.msra.mxu0 0
    %3075 = vmatprep.mubr.bf16.mxu0 0
    %3076 = vmatmul.mubr.bf16.gmra.mrb[0].mxu0 %v3041
    %v3077 = vpop.f32.mrb[0].mxu0
    %v3078 = vadd.f32 %v3026, %v3077
    %v3079 = vpop.f32.mrb[0].mxu0
    %v3080 = vpop.f32.mrb[0].mxu0
    %v3081 = vadd.f32 %v3026, %v3080
    %v3082 = vpop.f32.mrb[0].mxu0
    %3083 = vdwg.mxu0
    %v3084 = vpack.c.bf16 %v3078, %v3078
    %v3085 = vpack.c.bf16 %v3081, %v3081
    %3087 = vrot.lane.b32.xlu0 %v3084, 96
    %v3088 = vpop.permute.xlu0 %3087
    %v3090 = vsel %vm483, %v3084, 0
    %v3093 = vsel %vm483, %v3088, 0
    %3095 = vmatprep.subr.bf16.mxu0 0
    %3096 = vmatpush1.bf16.xpose.msra.mxu0 %v3093
    %3097 = vmatprep.subr.bf16.mxu0 0
    %3098 = vmatpush1.bf16.xpose.msra.mxu0 0
    %3099 = vmatprep.subr.bf16.mxu0 0
    %3100 = vmatpush1.bf16.xpose.msra.mxu0 0
    %3101 = vmatprep.subr.bf16.mxu0 0
    %3102 = vmatpush1.bf16.xpose.msra.mxu0 0
    %3103 = vmatprep.subr.bf16.mxu0 0
    %3104 = vmatpush1.bf16.xpose.msra.mxu0 0
    %3105 = vmatprep.subr.bf16.mxu0 0
    %3106 = vmatpush1.bf16.xpose.msra.mxu0 0
    %3107 = vmatprep.subr.bf16.mxu0 0
    %3108 = vmatpush1.bf16.xpose.msra.mxu0 0
    %3109 = vmatprep.subr.bf16.mxu0 0
    %3110 = vmatpush1.bf16.xpose.msra.mxu0 0
    %3111 = vmatprep.subr.bf16.mxu0 0
    %3112 = vmatpush1.bf16.xpose.msra.mxu0 0
    %3113 = vmatprep.subr.bf16.mxu0 0
    %3114 = vmatpush1.bf16.xpose.msra.mxu0 0
    %3115 = vmatprep.subr.bf16.mxu0 0
    %3116 = vmatpush1.bf16.xpose.msra.mxu0 0
    %3117 = vmatprep.subr.bf16.mxu0 0
    %3118 = vmatpush1.bf16.xpose.msra.mxu0 0
    %3119 = vmatprep.subr.bf16.mxu0 0
    %3120 = vmatpush1.bf16.xpose.msra.mxu0 0
    %3121 = vmatprep.subr.bf16.mxu0 0
    %3122 = vmatpush1.bf16.xpose.msra.mxu0 0
    %3123 = vmatprep.subr.bf16.mxu0 0
    %3124 = vmatpush1.bf16.xpose.msra.mxu0 0
    %3125 = vmatprep.subr.bf16.mxu0 0
    %3126 = vmatpush1.bf16.xpose.msra.mxu0 0
    %3127 = vmatprep.mubr.bf16.mxu0 0
    %3128 = vmatmul.mubr.bf16.gmra.mrb[0].mxu0 %v3090
    %v3129 = vpop.f32.mrb[0].mxu0
    %v3130 = vadd.f32 0.0, %v3129
    %v3131 = vpop.f32.mrb[0].mxu0
    %v3132 = vpop.f32.mrb[0].mxu0
    %v3133 = vpop.f32.mrb[0].mxu0
    %3134 = vdwg.mxu0
    %3136 = vrot.lane.b32.xlu0 %v3085, 96
    %v3137 = vpop.permute.xlu0 %3136
    %v3139 = vsel %vm483, %v3085, 0
    %v3142 = vsel %vm483, %v3137, 0
    %3144 = vmatprep.subr.bf16.mxu0 0
    %3145 = vmatpush1.bf16.xpose.msra.mxu0 %v3142
    %3146 = vmatprep.subr.bf16.mxu0 0
    %3147 = vmatpush1.bf16.xpose.msra.mxu0 0
    %3148 = vmatprep.subr.bf16.mxu0 0
    %3149 = vmatpush1.bf16.xpose.msra.mxu0 0
    %3150 = vmatprep.subr.bf16.mxu0 0
    %3151 = vmatpush1.bf16.xpose.msra.mxu0 0
    %3152 = vmatprep.subr.bf16.mxu0 0
    %3153 = vmatpush1.bf16.xpose.msra.mxu0 0
    %3154 = vmatprep.subr.bf16.mxu0 0
    %3155 = vmatpush1.bf16.xpose.msra.mxu0 0
    %3156 = vmatprep.subr.bf16.mxu0 0
    %3157 = vmatpush1.bf16.xpose.msra.mxu0 0
    %3158 = vmatprep.subr.bf16.mxu0 0
    %3159 = vmatpush1.bf16.xpose.msra.mxu0 0
    %3160 = vmatprep.subr.bf16.mxu0 0
    %3161 = vmatpush1.bf16.xpose.msra.mxu0 0
    %3162 = vmatprep.subr.bf16.mxu0 0
    %3163 = vmatpush1.bf16.xpose.msra.mxu0 0
    %3164 = vmatprep.subr.bf16.mxu0 0
    %3165 = vmatpush1.bf16.xpose.msra.mxu0 0
    %3166 = vmatprep.subr.bf16.mxu0 0
    %3167 = vmatpush1.bf16.xpose.msra.mxu0 0
    %3168 = vmatprep.subr.bf16.mxu0 0
    %3169 = vmatpush1.bf16.xpose.msra.mxu0 0
    %3170 = vmatprep.subr.bf16.mxu0 0
    %3171 = vmatpush1.bf16.xpose.msra.mxu0 0
    %3172 = vmatprep.subr.bf16.mxu0 0
    %3173 = vmatpush1.bf16.xpose.msra.mxu0 0
    %3174 = vmatprep.subr.bf16.mxu0 0
    %3175 = vmatpush1.bf16.xpose.msra.mxu0 0
    %3176 = vmatprep.mubr.bf16.mxu0 0
    %3177 = vmatmul.mubr.bf16.gmra.mrb[0].mxu0 %v3139
    %v3178 = vpop.f32.mrb[0].mxu0
    %v3179 = vadd.f32 0.0, %v3178
    %v3180 = vpop.f32.mrb[0].mxu0
    %v3181 = vpop.f32.mrb[0].mxu0
    %v3182 = vpop.f32.mrb[0].mxu0
    %3183 = vdwg.mxu0
    %v3184 = vsel %vm483, %v3130, -inf
    %3185 = vmax.xlane.f32.xlu0 %v3184
    %v3186 = vpop.xlane.xlu0 %3185
    %v3187 = vsel %vm483, %v3179, -inf
    %3188 = vmax.xlane.f32.xlu0 %v3187
    %v3189 = vpop.xlane.xlu0 %3188
    %v3190 = vsub.f32 %v3130, %v3186
    %v3191 = vsub.f32 %v3179, %v3189
    %v3192 = vmul.f32 %v3190, 1.442695
    %v3193 = vpow.pop %v3192
    %v3194 = vmul.f32 %v3191, 1.442695
    %v3195 = vpow.pop %v3194
    %v3196 = vsel %vm483, %v3193, 0.0
    %3197 = vadd.xlane.f32.xlu0 %v3196
    %v3198 = vpop.xlane.xlu0 %3197
    %v3199 = vsel %vm483, %v3195, 0.0
    %3200 = vadd.xlane.f32.xlu0 %v3199
    %v3201 = vpop.xlane.xlu0 %3200
    %v3202 = vrcp.pop %v3198
    %v3203 = vrcp.pop %v3201
    %v3204 = vmul.f32 %v3193, %v3202
    %v3205 = vmul.f32 %v3195, %v3203
    %v3206 = vpack.c.bf16 %v3204, %v3204
    %v3207 = vpack.c.bf16 %v3205, %v3205
    %3208 = vrot.lane.b32.xlu0 %v3084, 64
    %v3209 = vpop.permute.xlu0 %3208
    %v3211 = vsel %vm483, %v3206, 0
    %v3214 = vsel %vm608, %v3209, 0
    %3216 = vmatprep.subr.bf16.mxu0 0
    %3217 = vmatpush1.bf16.msra.mxu0 %v3214
    %3218 = vmatprep.subr.bf16.mxu0 0
    %3219 = vmatpush1.bf16.msra.mxu0 0
    %3220 = vmatprep.subr.bf16.mxu0 0
    %3221 = vmatpush1.bf16.msra.mxu0 0
    %3222 = vmatprep.subr.bf16.mxu0 0
    %3223 = vmatpush1.bf16.msra.mxu0 0
    %3224 = vmatprep.subr.bf16.mxu0 0
    %3225 = vmatpush1.bf16.msra.mxu0 0
    %3226 = vmatprep.subr.bf16.mxu0 0
    %3227 = vmatpush1.bf16.msra.mxu0 0
    %3228 = vmatprep.subr.bf16.mxu0 0
    %3229 = vmatpush1.bf16.msra.mxu0 0
    %3230 = vmatprep.subr.bf16.mxu0 0
    %3231 = vmatpush1.bf16.msra.mxu0 0
    %3232 = vmatprep.subr.bf16.mxu0 0
    %3233 = vmatpush1.bf16.msra.mxu0 0
    %3234 = vmatprep.subr.bf16.mxu0 0
    %3235 = vmatpush1.bf16.msra.mxu0 0
    %3236 = vmatprep.subr.bf16.mxu0 0
    %3237 = vmatpush1.bf16.msra.mxu0 0
    %3238 = vmatprep.subr.bf16.mxu0 0
    %3239 = vmatpush1.bf16.msra.mxu0 0
    %3240 = vmatprep.subr.bf16.mxu0 0
    %3241 = vmatpush1.bf16.msra.mxu0 0
    %3242 = vmatprep.subr.bf16.mxu0 0
    %3243 = vmatpush1.bf16.msra.mxu0 0
    %3244 = vmatprep.subr.bf16.mxu0 0
    %3245 = vmatpush1.bf16.msra.mxu0 0
    %3246 = vmatprep.subr.bf16.mxu0 0
    %3247 = vmatpush1.bf16.msra.mxu0 0
    %3248 = vmatprep.mubr.bf16.mxu0 0
    %3249 = vmatmul.mubr.bf16.gmra.mrb[0].mxu0 %v3211
    %v3250 = vpop.f32.mrb[0].mxu0
    %v3251 = vadd.f32 0.0, %v3250
    %v3252 = vpop.f32.mrb[0].mxu0
    %v3253 = vpop.f32.mrb[0].mxu0
    %v3254 = vpop.f32.mrb[0].mxu0
    %3255 = vdwg.mxu0
    %3256 = vrot.lane.b32.xlu0 %v3085, 64
    %v3257 = vpop.permute.xlu0 %3256
    %v3259 = vsel %vm483, %v3207, 0
    %v3262 = vsel %vm608, %v3257, 0
    %3264 = vmatprep.subr.bf16.mxu0 0
    %3265 = vmatpush1.bf16.msra.mxu0 %v3262
    %3266 = vmatprep.subr.bf16.mxu0 0
    %3267 = vmatpush1.bf16.msra.mxu0 0
    %3268 = vmatprep.subr.bf16.mxu0 0
    %3269 = vmatpush1.bf16.msra.mxu0 0
    %3270 = vmatprep.subr.bf16.mxu0 0
    %3271 = vmatpush1.bf16.msra.mxu0 0
    %3272 = vmatprep.subr.bf16.mxu0 0
    %3273 = vmatpush1.bf16.msra.mxu0 0
    %3274 = vmatprep.subr.bf16.mxu0 0
    %3275 = vmatpush1.bf16.msra.mxu0 0
    %3276 = vmatprep.subr.bf16.mxu0 0
    %3277 = vmatpush1.bf16.msra.mxu0 0
    %3278 = vmatprep.subr.bf16.mxu0 0
    %3279 = vmatpush1.bf16.msra.mxu0 0
    %3280 = vmatprep.subr.bf16.mxu0 0
    %3281 = vmatpush1.bf16.msra.mxu0 0
    %3282 = vmatprep.subr.bf16.mxu0 0
    %3283 = vmatpush1.bf16.msra.mxu0 0
    %3284 = vmatprep.subr.bf16.mxu0 0
    %3285 = vmatpush1.bf16.msra.mxu0 0
    %3286 = vmatprep.subr.bf16.mxu0 0
    %3287 = vmatpush1.bf16.msra.mxu0 0
    %3288 = vmatprep.subr.bf16.mxu0 0
    %3289 = vmatpush1.bf16.msra.mxu0 0
    %3290 = vmatprep.subr.bf16.mxu0 0
    %3291 = vmatpush1.bf16.msra.mxu0 0
    %3292 = vmatprep.subr.bf16.mxu0 0
    %3293 = vmatpush1.bf16.msra.mxu0 0
    %3294 = vmatprep.subr.bf16.mxu0 0
    %3295 = vmatpush1.bf16.msra.mxu0 0
    %3296 = vmatprep.mubr.bf16.mxu0 0
    %3297 = vmatmul.mubr.bf16.gmra.mrb[0].mxu0 %v3259
    %v3298 = vpop.f32.mrb[0].mxu0
    %v3299 = vadd.f32 0.0, %v3298
    %v3300 = vpop.f32.mrb[0].mxu0
    %v3301 = vpop.f32.mrb[0].mxu0
    %v3302 = vpop.f32.mrb[0].mxu0
    %3303 = vdwg.mxu0
    %3304 = vrot.lane.b32.xlu0 %v3084, 120
    %v3305 = vpop.permute.xlu0 %3304
    %3306 = vrot.lane.b32.xlu0 %v3084, 88
    %v3307 = vpop.permute.xlu0 %3306
    %v3309 = vsel %vm483, %v3305, 0
    %v3312 = vsel %vm483, %v3307, 0
    %3314 = vmatprep.subr.bf16.mxu0 0
    %3315 = vmatpush1.bf16.xpose.msra.mxu0 %v3312
    %3316 = vmatprep.subr.bf16.mxu0 0
    %3317 = vmatpush1.bf16.xpose.msra.mxu0 0
    %3318 = vmatprep.subr.bf16.mxu0 0
    %3319 = vmatpush1.bf16.xpose.msra.mxu0 0
    %3320 = vmatprep.subr.bf16.mxu0 0
    %3321 = vmatpush1.bf16.xpose.msra.mxu0 0
    %3322 = vmatprep.subr.bf16.mxu0 0
    %3323 = vmatpush1.bf16.xpose.msra.mxu0 0
    %3324 = vmatprep.subr.bf16.mxu0 0
    %3325 = vmatpush1.bf16.xpose.msra.mxu0 0
    %3326 = vmatprep.subr.bf16.mxu0 0
    %3327 = vmatpush1.bf16.xpose.msra.mxu0 0
    %3328 = vmatprep.subr.bf16.mxu0 0
    %3329 = vmatpush1.bf16.xpose.msra.mxu0 0
    %3330 = vmatprep.subr.bf16.mxu0 0
    %3331 = vmatpush1.bf16.xpose.msra.mxu0 0
    %3332 = vmatprep.subr.bf16.mxu0 0
    %3333 = vmatpush1.bf16.xpose.msra.mxu0 0
    %3334 = vmatprep.subr.bf16.mxu0 0
    %3335 = vmatpush1.bf16.xpose.msra.mxu0 0
    %3336 = vmatprep.subr.bf16.mxu0 0
    %3337 = vmatpush1.bf16.xpose.msra.mxu0 0
    %3338 = vmatprep.subr.bf16.mxu0 0
    %3339 = vmatpush1.bf16.xpose.msra.mxu0 0
    %3340 = vmatprep.subr.bf16.mxu0 0
    %3341 = vmatpush1.bf16.xpose.msra.mxu0 0
    %3342 = vmatprep.subr.bf16.mxu0 0
    %3343 = vmatpush1.bf16.xpose.msra.mxu0 0
    %3344 = vmatprep.subr.bf16.mxu0 0
    %3345 = vmatpush1.bf16.xpose.msra.mxu0 0
    %3346 = vmatprep.mubr.bf16.mxu0 0
    %3347 = vmatmul.mubr.bf16.gmra.mrb[0].mxu0 %v3309
    %v3348 = vpop.f32.mrb[0].mxu0
    %v3349 = vadd.f32 0.0, %v3348
    %v3350 = vpop.f32.mrb[0].mxu0
    %v3351 = vpop.f32.mrb[0].mxu0
    %v3352 = vpop.f32.mrb[0].mxu0
    %3353 = vdwg.mxu0
    %3354 = vrot.lane.b32.xlu0 %v3085, 120
    %v3355 = vpop.permute.xlu0 %3354
    %3356 = vrot.lane.b32.xlu0 %v3085, 88
    %v3357 = vpop.permute.xlu0 %3356
    %v3359 = vsel %vm483, %v3355, 0
    %v3362 = vsel %vm483, %v3357, 0
    %3364 = vmatprep.subr.bf16.mxu0 0
    %3365 = vmatpush1.bf16.xpose.msra.mxu0 %v3362
    %3366 = vmatprep.subr.bf16.mxu0 0
    %3367 = vmatpush1.bf16.xpose.msra.mxu0 0
    %3368 = vmatprep.subr.bf16.mxu0 0
    %3369 = vmatpush1.bf16.xpose.msra.mxu0 0
    %3370 = vmatprep.subr.bf16.mxu0 0
    %3371 = vmatpush1.bf16.xpose.msra.mxu0 0
    %3372 = vmatprep.subr.bf16.mxu0 0
    %3373 = vmatpush1.bf16.xpose.msra.mxu0 0
    %3374 = vmatprep.subr.bf16.mxu0 0
    %3375 = vmatpush1.bf16.xpose.msra.mxu0 0
    %3376 = vmatprep.subr.bf16.mxu0 0
    %3377 = vmatpush1.bf16.xpose.msra.mxu0 0
    %3378 = vmatprep.subr.bf16.mxu0 0
    %3379 = vmatpush1.bf16.xpose.msra.mxu0 0
    %3380 = vmatprep.subr.bf16.mxu0 0
    %3381 = vmatpush1.bf16.xpose.msra.mxu0 0
    %3382 = vmatprep.subr.bf16.mxu0 0
    %3383 = vmatpush1.bf16.xpose.msra.mxu0 0
    %3384 = vmatprep.subr.bf16.mxu0 0
    %3385 = vmatpush1.bf16.xpose.msra.mxu0 0
    %3386 = vmatprep.subr.bf16.mxu0 0
    %3387 = vmatpush1.bf16.xpose.msra.mxu0 0
    %3388 = vmatprep.subr.bf16.mxu0 0
    %3389 = vmatpush1.bf16.xpose.msra.mxu0 0
    %3390 = vmatprep.subr.bf16.mxu0 0
    %3391 = vmatpush1.bf16.xpose.msra.mxu0 0
    %3392 = vmatprep.subr.bf16.mxu0 0
    %3393 = vmatpush1.bf16.xpose.msra.mxu0 0
    %3394 = vmatprep.subr.bf16.mxu0 0
    %3395 = vmatpush1.bf16.xpose.msra.mxu0 0
    %3396 = vmatprep.mubr.bf16.mxu0 0
    %3397 = vmatmul.mubr.bf16.gmra.mrb[0].mxu0 %v3359
    %v3398 = vpop.f32.mrb[0].mxu0
    %v3399 = vadd.f32 0.0, %v3398
    %v3400 = vpop.f32.mrb[0].mxu0
    %v3401 = vpop.f32.mrb[0].mxu0
    %v3402 = vpop.f32.mrb[0].mxu0
    %3403 = vdwg.mxu0
    %v3404 = vsel %vm483, %v3349, -inf
    %3405 = vmax.xlane.f32.xlu0 %v3404
    %v3406 = vpop.xlane.xlu0 %3405
    %v3407 = vsel %vm483, %v3399, -inf
    %3408 = vmax.xlane.f32.xlu0 %v3407
    %v3409 = vpop.xlane.xlu0 %3408
    %v3410 = vsub.f32 %v3349, %v3406
    %v3411 = vsub.f32 %v3399, %v3409
    %v3412 = vmul.f32 %v3410, 1.442695
    %v3413 = vpow.pop %v3412
    %v3414 = vmul.f32 %v3411, 1.442695
    %v3415 = vpow.pop %v3414
    %v3416 = vsel %vm483, %v3413, 0.0
    %3417 = vadd.xlane.f32.xlu0 %v3416
    %v3418 = vpop.xlane.xlu0 %3417
    %v3419 = vsel %vm483, %v3415, 0.0
    %3420 = vadd.xlane.f32.xlu0 %v3419
    %v3421 = vpop.xlane.xlu0 %3420
    %v3422 = vrcp.pop %v3418
    %v3423 = vrcp.pop %v3421
    %v3424 = vmul.f32 %v3413, %v3422
    %v3425 = vmul.f32 %v3415, %v3423
    %v3426 = vpack.c.bf16 %v3424, %v3424
    %v3427 = vpack.c.bf16 %v3425, %v3425
    %3428 = vrot.lane.b32.xlu0 %v3084, 56
    %v3429 = vpop.permute.xlu0 %3428
    %v3431 = vsel %vm483, %v3426, 0
    %v3434 = vsel %vm608, %v3429, 0
    %3436 = vmatprep.subr.bf16.mxu0 0
    %3437 = vmatpush1.bf16.msra.mxu0 %v3434
    %3438 = vmatprep.subr.bf16.mxu0 0
    %3439 = vmatpush1.bf16.msra.mxu0 0
    %3440 = vmatprep.subr.bf16.mxu0 0
    %3441 = vmatpush1.bf16.msra.mxu0 0
    %3442 = vmatprep.subr.bf16.mxu0 0
    %3443 = vmatpush1.bf16.msra.mxu0 0
    %3444 = vmatprep.subr.bf16.mxu0 0
    %3445 = vmatpush1.bf16.msra.mxu0 0
    %3446 = vmatprep.subr.bf16.mxu0 0
    %3447 = vmatpush1.bf16.msra.mxu0 0
    %3448 = vmatprep.subr.bf16.mxu0 0
    %3449 = vmatpush1.bf16.msra.mxu0 0
    %3450 = vmatprep.subr.bf16.mxu0 0
    %3451 = vmatpush1.bf16.msra.mxu0 0
    %3452 = vmatprep.subr.bf16.mxu0 0
    %3453 = vmatpush1.bf16.msra.mxu0 0
    %3454 = vmatprep.subr.bf16.mxu0 0
    %3455 = vmatpush1.bf16.msra.mxu0 0
    %3456 = vmatprep.subr.bf16.mxu0 0
    %3457 = vmatpush1.bf16.msra.mxu0 0
    %3458 = vmatprep.subr.bf16.mxu0 0
    %3459 = vmatpush1.bf16.msra.mxu0 0
    %3460 = vmatprep.subr.bf16.mxu0 0
    %3461 = vmatpush1.bf16.msra.mxu0 0
    %3462 = vmatprep.subr.bf16.mxu0 0
    %3463 = vmatpush1.bf16.msra.mxu0 0
    %3464 = vmatprep.subr.bf16.mxu0 0
    %3465 = vmatpush1.bf16.msra.mxu0 0
    %3466 = vmatprep.subr.bf16.mxu0 0
    %3467 = vmatpush1.bf16.msra.mxu0 0
    %3468 = vmatprep.mubr.bf16.mxu0 0
    %3469 = vmatmul.mubr.bf16.gmra.mrb[0].mxu0 %v3431
    %v3470 = vpop.f32.mrb[0].mxu0
    %v3471 = vadd.f32 0.0, %v3470
    %v3472 = vpop.f32.mrb[0].mxu0
    %v3473 = vpop.f32.mrb[0].mxu0
    %v3474 = vpop.f32.mrb[0].mxu0
    %3475 = vdwg.mxu0
    %3476 = vrot.lane.b32.xlu0 %v3085, 56
    %v3477 = vpop.permute.xlu0 %3476
    %v3479 = vsel %vm483, %v3427, 0
    %v3482 = vsel %vm608, %v3477, 0
    %3484 = vmatprep.subr.bf16.mxu0 0
    %3485 = vmatpush1.bf16.msra.mxu0 %v3482
    %3486 = vmatprep.subr.bf16.mxu0 0
    %3487 = vmatpush1.bf16.msra.mxu0 0
    %3488 = vmatprep.subr.bf16.mxu0 0
    %3489 = vmatpush1.bf16.msra.mxu0 0
    %3490 = vmatprep.subr.bf16.mxu0 0
    %3491 = vmatpush1.bf16.msra.mxu0 0
    %3492 = vmatprep.subr.bf16.mxu0 0
    %3493 = vmatpush1.bf16.msra.mxu0 0
    %3494 = vmatprep.subr.bf16.mxu0 0
    %3495 = vmatpush1.bf16.msra.mxu0 0
    %3496 = vmatprep.subr.bf16.mxu0 0
    %3497 = vmatpush1.bf16.msra.mxu0 0
    %3498 = vmatprep.subr.bf16.mxu0 0
    %3499 = vmatpush1.bf16.msra.mxu0 0
    %3500 = vmatprep.subr.bf16.mxu0 0
    %3501 = vmatpush1.bf16.msra.mxu0 0
    %3502 = vmatprep.subr.bf16.mxu0 0
    %3503 = vmatpush1.bf16.msra.mxu0 0
    %3504 = vmatprep.subr.bf16.mxu0 0
    %3505 = vmatpush1.bf16.msra.mxu0 0
    %3506 = vmatprep.subr.bf16.mxu0 0
    %3507 = vmatpush1.bf16.msra.mxu0 0
    %3508 = vmatprep.subr.bf16.mxu0 0
    %3509 = vmatpush1.bf16.msra.mxu0 0
    %3510 = vmatprep.subr.bf16.mxu0 0
    %3511 = vmatpush1.bf16.msra.mxu0 0
    %3512 = vmatprep.subr.bf16.mxu0 0
    %3513 = vmatpush1.bf16.msra.mxu0 0
    %3514 = vmatprep.subr.bf16.mxu0 0
    %3515 = vmatpush1.bf16.msra.mxu0 0
    %3516 = vmatprep.mubr.bf16.mxu0 0
    %3517 = vmatmul.mubr.bf16.gmra.mrb[0].mxu0 %v3479
    %v3518 = vpop.f32.mrb[0].mxu0
    %v3519 = vadd.f32 0.0, %v3518
    %v3520 = vpop.f32.mrb[0].mxu0
    %v3521 = vpop.f32.mrb[0].mxu0
    %v3522 = vpop.f32.mrb[0].mxu0
    %3523 = vdwg.mxu0
    %3524 = vrot.lane.b32.xlu0 %v3084, 112
    %v3525 = vpop.permute.xlu0 %3524
    %3526 = vrot.lane.b32.xlu0 %v3084, 80
    %v3527 = vpop.permute.xlu0 %3526
    %v3529 = vsel %vm483, %v3525, 0
    %v3532 = vsel %vm483, %v3527, 0
    %3534 = vmatprep.subr.bf16.mxu0 0
    %3535 = vmatpush1.bf16.xpose.msra.mxu0 %v3532
    %3536 = vmatprep.subr.bf16.mxu0 0
    %3537 = vmatpush1.bf16.xpose.msra.mxu0 0
    %3538 = vmatprep.subr.bf16.mxu0 0
    %3539 = vmatpush1.bf16.xpose.msra.mxu0 0
    %3540 = vmatprep.subr.bf16.mxu0 0
    %3541 = vmatpush1.bf16.xpose.msra.mxu0 0
    %3542 = vmatprep.subr.bf16.mxu0 0
    %3543 = vmatpush1.bf16.xpose.msra.mxu0 0
    %3544 = vmatprep.subr.bf16.mxu0 0
    %3545 = vmatpush1.bf16.xpose.msra.mxu0 0
    %3546 = vmatprep.subr.bf16.mxu0 0
    %3547 = vmatpush1.bf16.xpose.msra.mxu0 0
    %3548 = vmatprep.subr.bf16.mxu0 0
    %3549 = vmatpush1.bf16.xpose.msra.mxu0 0
    %3550 = vmatprep.subr.bf16.mxu0 0
    %3551 = vmatpush1.bf16.xpose.msra.mxu0 0
    %3552 = vmatprep.subr.bf16.mxu0 0
    %3553 = vmatpush1.bf16.xpose.msra.mxu0 0
    %3554 = vmatprep.subr.bf16.mxu0 0
    %3555 = vmatpush1.bf16.xpose.msra.mxu0 0
    %3556 = vmatprep.subr.bf16.mxu0 0
    %3557 = vmatpush1.bf16.xpose.msra.mxu0 0
    %3558 = vmatprep.subr.bf16.mxu0 0
    %3559 = vmatpush1.bf16.xpose.msra.mxu0 0
    %3560 = vmatprep.subr.bf16.mxu0 0
    %3561 = vmatpush1.bf16.xpose.msra.mxu0 0
    %3562 = vmatprep.subr.bf16.mxu0 0
    %3563 = vmatpush1.bf16.xpose.msra.mxu0 0
    %3564 = vmatprep.subr.bf16.mxu0 0
    %3565 = vmatpush1.bf16.xpose.msra.mxu0 0
    %3566 = vmatprep.mubr.bf16.mxu0 0
    %3567 = vmatmul.mubr.bf16.gmra.mrb[0].mxu0 %v3529
    %v3568 = vpop.f32.mrb[0].mxu0
    %v3569 = vadd.f32 0.0, %v3568
    %v3570 = vpop.f32.mrb[0].mxu0
    %v3571 = vpop.f32.mrb[0].mxu0
    %v3572 = vpop.f32.mrb[0].mxu0
    %3573 = vdwg.mxu0
    %3574 = vrot.lane.b32.xlu0 %v3085, 112
    %v3575 = vpop.permute.xlu0 %3574
    %3576 = vrot.lane.b32.xlu0 %v3085, 80
    %v3577 = vpop.permute.xlu0 %3576
    %v3579 = vsel %vm483, %v3575, 0
    %v3582 = vsel %vm483, %v3577, 0
    %3584 = vmatprep.subr.bf16.mxu0 0
    %3585 = vmatpush1.bf16.xpose.msra.mxu0 %v3582
    %3586 = vmatprep.subr.bf16.mxu0 0
    %3587 = vmatpush1.bf16.xpose.msra.mxu0 0
    %3588 = vmatprep.subr.bf16.mxu0 0
    %3589 = vmatpush1.bf16.xpose.msra.mxu0 0
    %3590 = vmatprep.subr.bf16.mxu0 0
    %3591 = vmatpush1.bf16.xpose.msra.mxu0 0
    %3592 = vmatprep.subr.bf16.mxu0 0
    %3593 = vmatpush1.bf16.xpose.msra.mxu0 0
    %3594 = vmatprep.subr.bf16.mxu0 0
    %3595 = vmatpush1.bf16.xpose.msra.mxu0 0
    %3596 = vmatprep.subr.bf16.mxu0 0
    %3597 = vmatpush1.bf16.xpose.msra.mxu0 0
    %3598 = vmatprep.subr.bf16.mxu0 0
    %3599 = vmatpush1.bf16.xpose.msra.mxu0 0
    %3600 = vmatprep.subr.bf16.mxu0 0
    %3601 = vmatpush1.bf16.xpose.msra.mxu0 0
    %3602 = vmatprep.subr.bf16.mxu0 0
    %3603 = vmatpush1.bf16.xpose.msra.mxu0 0
    %3604 = vmatprep.subr.bf16.mxu0 0
    %3605 = vmatpush1.bf16.xpose.msra.mxu0 0
    %3606 = vmatprep.subr.bf16.mxu0 0
    %3607 = vmatpush1.bf16.xpose.msra.mxu0 0
    %3608 = vmatprep.subr.bf16.mxu0 0
    %3609 = vmatpush1.bf16.xpose.msra.mxu0 0
    %3610 = vmatprep.subr.bf16.mxu0 0
    %3611 = vmatpush1.bf16.xpose.msra.mxu0 0
    %3612 = vmatprep.subr.bf16.mxu0 0
    %3613 = vmatpush1.bf16.xpose.msra.mxu0 0
    %3614 = vmatprep.subr.bf16.mxu0 0
    %3615 = vmatpush1.bf16.xpose.msra.mxu0 0
    %3616 = vmatprep.mubr.bf16.mxu0 0
    %3617 = vmatmul.mubr.bf16.gmra.mrb[0].mxu0 %v3579
    %v3618 = vpop.f32.mrb[0].mxu0
    %v3619 = vadd.f32 0.0, %v3618
    %v3620 = vpop.f32.mrb[0].mxu0
    %v3621 = vpop.f32.mrb[0].mxu0
    %v3622 = vpop.f32.mrb[0].mxu0
    %3623 = vdwg.mxu0
    %v3624 = vsel %vm483, %v3569, -inf
    %3625 = vmax.xlane.f32.xlu0 %v3624
    %v3626 = vpop.xlane.xlu0 %3625
    %v3627 = vsel %vm483, %v3619, -inf
    %3628 = vmax.xlane.f32.xlu0 %v3627
    %v3629 = vpop.xlane.xlu0 %3628
    %v3630 = vsub.f32 %v3569, %v3626
    %v3631 = vsub.f32 %v3619, %v3629
    %v3632 = vmul.f32 %v3630, 1.442695
    %v3633 = vpow.pop %v3632
    %v3634 = vmul.f32 %v3631, 1.442695
    %v3635 = vpow.pop %v3634
    %v3636 = vsel %vm483, %v3633, 0.0
    %3637 = vadd.xlane.f32.xlu0 %v3636
    %v3638 = vpop.xlane.xlu0 %3637
    %v3639 = vsel %vm483, %v3635, 0.0
    %3640 = vadd.xlane.f32.xlu0 %v3639
    %v3641 = vpop.xlane.xlu0 %3640
    %v3642 = vrcp.pop %v3638
    %v3643 = vrcp.pop %v3641
    %v3644 = vmul.f32 %v3633, %v3642
    %v3645 = vmul.f32 %v3635, %v3643
    %v3646 = vpack.c.bf16 %v3644, %v3644
    %v3647 = vpack.c.bf16 %v3645, %v3645
    %3648 = vrot.lane.b32.xlu0 %v3084, 48
    %v3649 = vpop.permute.xlu0 %3648
    %v3651 = vsel %vm483, %v3646, 0
    %v3654 = vsel %vm608, %v3649, 0
    %3656 = vmatprep.subr.bf16.mxu0 0
    %3657 = vmatpush1.bf16.msra.mxu0 %v3654
    %3658 = vmatprep.subr.bf16.mxu0 0
    %3659 = vmatpush1.bf16.msra.mxu0 0
    %3660 = vmatprep.subr.bf16.mxu0 0
    %3661 = vmatpush1.bf16.msra.mxu0 0
    %3662 = vmatprep.subr.bf16.mxu0 0
    %3663 = vmatpush1.bf16.msra.mxu0 0
    %3664 = vmatprep.subr.bf16.mxu0 0
    %3665 = vmatpush1.bf16.msra.mxu0 0
    %3666 = vmatprep.subr.bf16.mxu0 0
    %3667 = vmatpush1.bf16.msra.mxu0 0
    %3668 = vmatprep.subr.bf16.mxu0 0
    %3669 = vmatpush1.bf16.msra.mxu0 0
    %3670 = vmatprep.subr.bf16.mxu0 0
    %3671 = vmatpush1.bf16.msra.mxu0 0
    %3672 = vmatprep.subr.bf16.mxu0 0
    %3673 = vmatpush1.bf16.msra.mxu0 0
    %3674 = vmatprep.subr.bf16.mxu0 0
    %3675 = vmatpush1.bf16.msra.mxu0 0
    %3676 = vmatprep.subr.bf16.mxu0 0
    %3677 = vmatpush1.bf16.msra.mxu0 0
    %3678 = vmatprep.subr.bf16.mxu0 0
    %3679 = vmatpush1.bf16.msra.mxu0 0
    %3680 = vmatprep.subr.bf16.mxu0 0
    %3681 = vmatpush1.bf16.msra.mxu0 0
    %3682 = vmatprep.subr.bf16.mxu0 0
    %3683 = vmatpush1.bf16.msra.mxu0 0
    %3684 = vmatprep.subr.bf16.mxu0 0
    %3685 = vmatpush1.bf16.msra.mxu0 0
    %3686 = vmatprep.subr.bf16.mxu0 0
    %3687 = vmatpush1.bf16.msra.mxu0 0
    %3688 = vmatprep.mubr.bf16.mxu0 0
    %3689 = vmatmul.mubr.bf16.gmra.mrb[0].mxu0 %v3651
    %v3690 = vpop.f32.mrb[0].mxu0
    %v3691 = vadd.f32 0.0, %v3690
    %v3692 = vpop.f32.mrb[0].mxu0
    %v3693 = vpop.f32.mrb[0].mxu0
    %v3694 = vpop.f32.mrb[0].mxu0
    %3695 = vdwg.mxu0
    %3696 = vrot.lane.b32.xlu0 %v3085, 48
    %v3697 = vpop.permute.xlu0 %3696
    %v3699 = vsel %vm483, %v3647, 0
    %v3702 = vsel %vm608, %v3697, 0
    %3704 = vmatprep.subr.bf16.mxu0 0
    %3705 = vmatpush1.bf16.msra.mxu0 %v3702
    %3706 = vmatprep.subr.bf16.mxu0 0
    %3707 = vmatpush1.bf16.msra.mxu0 0
    %3708 = vmatprep.subr.bf16.mxu0 0
    %3709 = vmatpush1.bf16.msra.mxu0 0
    %3710 = vmatprep.subr.bf16.mxu0 0
    %3711 = vmatpush1.bf16.msra.mxu0 0
    %3712 = vmatprep.subr.bf16.mxu0 0
    %3713 = vmatpush1.bf16.msra.mxu0 0
    %3714 = vmatprep.subr.bf16.mxu0 0
    %3715 = vmatpush1.bf16.msra.mxu0 0
    %3716 = vmatprep.subr.bf16.mxu0 0
    %3717 = vmatpush1.bf16.msra.mxu0 0
    %3718 = vmatprep.subr.bf16.mxu0 0
    %3719 = vmatpush1.bf16.msra.mxu0 0
    %3720 = vmatprep.subr.bf16.mxu0 0
    %3721 = vmatpush1.bf16.msra.mxu0 0
    %3722 = vmatprep.subr.bf16.mxu0 0
    %3723 = vmatpush1.bf16.msra.mxu0 0
    %3724 = vmatprep.subr.bf16.mxu0 0
    %3725 = vmatpush1.bf16.msra.mxu0 0
    %3726 = vmatprep.subr.bf16.mxu0 0
    %3727 = vmatpush1.bf16.msra.mxu0 0
    %3728 = vmatprep.subr.bf16.mxu0 0
    %3729 = vmatpush1.bf16.msra.mxu0 0
    %3730 = vmatprep.subr.bf16.mxu0 0
    %3731 = vmatpush1.bf16.msra.mxu0 0
    %3732 = vmatprep.subr.bf16.mxu0 0
    %3733 = vmatpush1.bf16.msra.mxu0 0
    %3734 = vmatprep.subr.bf16.mxu0 0
    %3735 = vmatpush1.bf16.msra.mxu0 0
    %3736 = vmatprep.mubr.bf16.mxu0 0
    %3737 = vmatmul.mubr.bf16.gmra.mrb[0].mxu0 %v3699
    %v3738 = vpop.f32.mrb[0].mxu0
    %v3739 = vadd.f32 0.0, %v3738
    %v3740 = vpop.f32.mrb[0].mxu0
    %v3741 = vpop.f32.mrb[0].mxu0
    %v3742 = vpop.f32.mrb[0].mxu0
    %3743 = vdwg.mxu0
    %3744 = vrot.lane.b32.xlu0 %v3084, 104
    %v3745 = vpop.permute.xlu0 %3744
    %3746 = vrot.lane.b32.xlu0 %v3084, 72
    %v3747 = vpop.permute.xlu0 %3746
    %v3749 = vsel %vm483, %v3745, 0
    %v3752 = vsel %vm483, %v3747, 0
    %3754 = vmatprep.subr.bf16.mxu0 0
    %3755 = vmatpush1.bf16.xpose.msra.mxu0 %v3752
    %3756 = vmatprep.subr.bf16.mxu0 0
    %3757 = vmatpush1.bf16.xpose.msra.mxu0 0
    %3758 = vmatprep.subr.bf16.mxu0 0
    %3759 = vmatpush1.bf16.xpose.msra.mxu0 0
    %3760 = vmatprep.subr.bf16.mxu0 0
    %3761 = vmatpush1.bf16.xpose.msra.mxu0 0
    %3762 = vmatprep.subr.bf16.mxu0 0
    %3763 = vmatpush1.bf16.xpose.msra.mxu0 0
    %3764 = vmatprep.subr.bf16.mxu0 0
    %3765 = vmatpush1.bf16.xpose.msra.mxu0 0
    %3766 = vmatprep.subr.bf16.mxu0 0
    %3767 = vmatpush1.bf16.xpose.msra.mxu0 0
    %3768 = vmatprep.subr.bf16.mxu0 0
    %3769 = vmatpush1.bf16.xpose.msra.mxu0 0
    %3770 = vmatprep.subr.bf16.mxu0 0
    %3771 = vmatpush1.bf16.xpose.msra.mxu0 0
    %3772 = vmatprep.subr.bf16.mxu0 0
    %3773 = vmatpush1.bf16.xpose.msra.mxu0 0
    %3774 = vmatprep.subr.bf16.mxu0 0
    %3775 = vmatpush1.bf16.xpose.msra.mxu0 0
    %3776 = vmatprep.subr.bf16.mxu0 0
    %3777 = vmatpush1.bf16.xpose.msra.mxu0 0
    %3778 = vmatprep.subr.bf16.mxu0 0
    %3779 = vmatpush1.bf16.xpose.msra.mxu0 0
    %3780 = vmatprep.subr.bf16.mxu0 0
    %3781 = vmatpush1.bf16.xpose.msra.mxu0 0
    %3782 = vmatprep.subr.bf16.mxu0 0
    %3783 = vmatpush1.bf16.xpose.msra.mxu0 0
    %3784 = vmatprep.subr.bf16.mxu0 0
    %3785 = vmatpush1.bf16.xpose.msra.mxu0 0
    %3786 = vmatprep.mubr.bf16.mxu0 0
    %3787 = vmatmul.mubr.bf16.gmra.mrb[0].mxu0 %v3749
    %v3788 = vpop.f32.mrb[0].mxu0
    %v3789 = vadd.f32 0.0, %v3788
    %v3790 = vpop.f32.mrb[0].mxu0
    %v3791 = vpop.f32.mrb[0].mxu0
    %v3792 = vpop.f32.mrb[0].mxu0
    %3793 = vdwg.mxu0
    %3794 = vrot.lane.b32.xlu0 %v3085, 104
    %v3795 = vpop.permute.xlu0 %3794
    %3796 = vrot.lane.b32.xlu0 %v3085, 72
    %v3797 = vpop.permute.xlu0 %3796
    %v3799 = vsel %vm483, %v3795, 0
    %v3802 = vsel %vm483, %v3797, 0
    %3804 = vmatprep.subr.bf16.mxu0 0
    %3805 = vmatpush1.bf16.xpose.msra.mxu0 %v3802
    %3806 = vmatprep.subr.bf16.mxu0 0
    %3807 = vmatpush1.bf16.xpose.msra.mxu0 0
    %3808 = vmatprep.subr.bf16.mxu0 0
    %3809 = vmatpush1.bf16.xpose.msra.mxu0 0
    %3810 = vmatprep.subr.bf16.mxu0 0
    %3811 = vmatpush1.bf16.xpose.msra.mxu0 0
    %3812 = vmatprep.subr.bf16.mxu0 0
    %3813 = vmatpush1.bf16.xpose.msra.mxu0 0
    %3814 = vmatprep.subr.bf16.mxu0 0
    %3815 = vmatpush1.bf16.xpose.msra.mxu0 0
    %3816 = vmatprep.subr.bf16.mxu0 0
    %3817 = vmatpush1.bf16.xpose.msra.mxu0 0
    %3818 = vmatprep.subr.bf16.mxu0 0
    %3819 = vmatpush1.bf16.xpose.msra.mxu0 0
    %3820 = vmatprep.subr.bf16.mxu0 0
    %3821 = vmatpush1.bf16.xpose.msra.mxu0 0
    %3822 = vmatprep.subr.bf16.mxu0 0
    %3823 = vmatpush1.bf16.xpose.msra.mxu0 0
    %3824 = vmatprep.subr.bf16.mxu0 0
    %3825 = vmatpush1.bf16.xpose.msra.mxu0 0
    %3826 = vmatprep.subr.bf16.mxu0 0
    %3827 = vmatpush1.bf16.xpose.msra.mxu0 0
    %3828 = vmatprep.subr.bf16.mxu0 0
    %3829 = vmatpush1.bf16.xpose.msra.mxu0 0
    %3830 = vmatprep.subr.bf16.mxu0 0
    %3831 = vmatpush1.bf16.xpose.msra.mxu0 0
    %3832 = vmatprep.subr.bf16.mxu0 0
    %3833 = vmatpush1.bf16.xpose.msra.mxu0 0
    %3834 = vmatprep.subr.bf16.mxu0 0
    %3835 = vmatpush1.bf16.xpose.msra.mxu0 0
    %3836 = vmatprep.mubr.bf16.mxu0 0
    %3837 = vmatmul.mubr.bf16.gmra.mrb[0].mxu0 %v3799
    %v3838 = vpop.f32.mrb[0].mxu0
    %v3839 = vadd.f32 0.0, %v3838
    %v3840 = vpop.f32.mrb[0].mxu0
    %v3841 = vpop.f32.mrb[0].mxu0
    %v3842 = vpop.f32.mrb[0].mxu0
    %3843 = vdwg.mxu0
    %v3844 = vsel %vm483, %v3789, -inf
    %3845 = vmax.xlane.f32.xlu0 %v3844
    %v3846 = vpop.xlane.xlu0 %3845
    %v3847 = vsel %vm483, %v3839, -inf
    %3848 = vmax.xlane.f32.xlu0 %v3847
    %v3849 = vpop.xlane.xlu0 %3848
    %v3850 = vsub.f32 %v3789, %v3846
    %v3851 = vsub.f32 %v3839, %v3849
    %v3852 = vmul.f32 %v3850, 1.442695
    %v3853 = vpow.pop %v3852
    %v3854 = vmul.f32 %v3851, 1.442695
    %v3855 = vpow.pop %v3854
    %v3856 = vsel %vm483, %v3853, 0.0
    %3857 = vadd.xlane.f32.xlu0 %v3856
    %v3858 = vpop.xlane.xlu0 %3857
    %v3859 = vsel %vm483, %v3855, 0.0
    %3860 = vadd.xlane.f32.xlu0 %v3859
    %v3861 = vpop.xlane.xlu0 %3860
    %v3862 = vrcp.pop %v3858
    %v3863 = vrcp.pop %v3861
    %v3864 = vmul.f32 %v3853, %v3862
    %v3865 = vmul.f32 %v3855, %v3863
    %v3866 = vpack.c.bf16 %v3864, %v3864
    %v3867 = vpack.c.bf16 %v3865, %v3865
    %3868 = vrot.lane.b32.xlu0 %v3084, 40
    %v3869 = vpop.permute.xlu0 %3868
    %v3871 = vsel %vm483, %v3866, 0
    %v3874 = vsel %vm608, %v3869, 0
    %3876 = vmatprep.subr.bf16.mxu0 0
    %3877 = vmatpush1.bf16.msra.mxu0 %v3874
    %3878 = vmatprep.subr.bf16.mxu0 0
    %3879 = vmatpush1.bf16.msra.mxu0 0
    %3880 = vmatprep.subr.bf16.mxu0 0
    %3881 = vmatpush1.bf16.msra.mxu0 0
    %3882 = vmatprep.subr.bf16.mxu0 0
    %3883 = vmatpush1.bf16.msra.mxu0 0
    %3884 = vmatprep.subr.bf16.mxu0 0
    %3885 = vmatpush1.bf16.msra.mxu0 0
    %3886 = vmatprep.subr.bf16.mxu0 0
    %3887 = vmatpush1.bf16.msra.mxu0 0
    %3888 = vmatprep.subr.bf16.mxu0 0
    %3889 = vmatpush1.bf16.msra.mxu0 0
    %3890 = vmatprep.subr.bf16.mxu0 0
    %3891 = vmatpush1.bf16.msra.mxu0 0
    %3892 = vmatprep.subr.bf16.mxu0 0
    %3893 = vmatpush1.bf16.msra.mxu0 0
    %3894 = vmatprep.subr.bf16.mxu0 0
    %3895 = vmatpush1.bf16.msra.mxu0 0
    %3896 = vmatprep.subr.bf16.mxu0 0
    %3897 = vmatpush1.bf16.msra.mxu0 0
    %3898 = vmatprep.subr.bf16.mxu0 0
    %3899 = vmatpush1.bf16.msra.mxu0 0
    %3900 = vmatprep.subr.bf16.mxu0 0
    %3901 = vmatpush1.bf16.msra.mxu0 0
    %3902 = vmatprep.subr.bf16.mxu0 0
    %3903 = vmatpush1.bf16.msra.mxu0 0
    %3904 = vmatprep.subr.bf16.mxu0 0
    %3905 = vmatpush1.bf16.msra.mxu0 0
    %3906 = vmatprep.subr.bf16.mxu0 0
    %3907 = vmatpush1.bf16.msra.mxu0 0
    %3908 = vmatprep.mubr.bf16.mxu0 0
    %3909 = vmatmul.mubr.bf16.gmra.mrb[0].mxu0 %v3871
    %v3910 = vpop.f32.mrb[0].mxu0
    %v3911 = vadd.f32 0.0, %v3910
    %v3912 = vpop.f32.mrb[0].mxu0
    %v3913 = vpop.f32.mrb[0].mxu0
    %v3914 = vpop.f32.mrb[0].mxu0
    %3915 = vdwg.mxu0
    %3916 = vrot.lane.b32.xlu0 %v3085, 40
    %v3917 = vpop.permute.xlu0 %3916
    %v3919 = vsel %vm483, %v3867, 0
    %v3922 = vsel %vm608, %v3917, 0
    %3924 = vmatprep.subr.bf16.mxu0 0
    %3925 = vmatpush1.bf16.msra.mxu0 %v3922
    %3926 = vmatprep.subr.bf16.mxu0 0
    %3927 = vmatpush1.bf16.msra.mxu0 0
    %3928 = vmatprep.subr.bf16.mxu0 0
    %3929 = vmatpush1.bf16.msra.mxu0 0
    %3930 = vmatprep.subr.bf16.mxu0 0
    %3931 = vmatpush1.bf16.msra.mxu0 0
    %3932 = vmatprep.subr.bf16.mxu0 0
    %3933 = vmatpush1.bf16.msra.mxu0 0
    %3934 = vmatprep.subr.bf16.mxu0 0
    %3935 = vmatpush1.bf16.msra.mxu0 0
    %3936 = vmatprep.subr.bf16.mxu0 0
    %3937 = vmatpush1.bf16.msra.mxu0 0
    %3938 = vmatprep.subr.bf16.mxu0 0
    %3939 = vmatpush1.bf16.msra.mxu0 0
    %3940 = vmatprep.subr.bf16.mxu0 0
    %3941 = vmatpush1.bf16.msra.mxu0 0
    %3942 = vmatprep.subr.bf16.mxu0 0
    %3943 = vmatpush1.bf16.msra.mxu0 0
    %3944 = vmatprep.subr.bf16.mxu0 0
    %3945 = vmatpush1.bf16.msra.mxu0 0
    %3946 = vmatprep.subr.bf16.mxu0 0
    %3947 = vmatpush1.bf16.msra.mxu0 0
    %3948 = vmatprep.subr.bf16.mxu0 0
    %3949 = vmatpush1.bf16.msra.mxu0 0
    %3950 = vmatprep.subr.bf16.mxu0 0
    %3951 = vmatpush1.bf16.msra.mxu0 0
    %3952 = vmatprep.subr.bf16.mxu0 0
    %3953 = vmatpush1.bf16.msra.mxu0 0
    %3954 = vmatprep.subr.bf16.mxu0 0
    %3955 = vmatpush1.bf16.msra.mxu0 0
    %3956 = vmatprep.mubr.bf16.mxu0 0
    %3957 = vmatmul.mubr.bf16.gmra.mrb[0].mxu0 %v3919
    %v3958 = vpop.f32.mrb[0].mxu0
    %v3959 = vadd.f32 0.0, %v3958
    %v3960 = vpop.f32.mrb[0].mxu0
    %v3961 = vpop.f32.mrb[0].mxu0
    %v3962 = vpop.f32.mrb[0].mxu0
    %3963 = vdwg.mxu0
    %3966 = vrot.lane.b32.xlu0 %v3471, 8
    %v3967 = vpop.permute.xlu0 %3966
    %3968 = vrot.lane.b32.xlu0 %v3519, 8
    %v3969 = vpop.permute.xlu0 %3968
    %3974 = vrot.lane.b32.xlu0 %v3691, 16
    %v3975 = vpop.permute.xlu0 %3974
    %3976 = vrot.lane.b32.xlu0 %v3739, 16
    %v3977 = vpop.permute.xlu0 %3976
    %3982 = vrot.lane.b32.xlu0 %v3911, 24
    %v3983 = vpop.permute.xlu0 %3982
    %3984 = vrot.lane.b32.xlu0 %v3959, 24
    %v3985 = vpop.permute.xlu0 %3984
    %v3988 = vsel %vm483, %v3251, %v3967
    %v3989 = vsel %vm483, %v3299, %v3969
    %v3990 = vsel %vm1386, %v3988, %v3975
    %v3991 = vsel %vm1386, %v3989, %v3977
    %v3992 = vsel %vm1389, %v3990, %v3983
    %v3993 = vsel %vm1389, %v3991, %v3985
    %v3994 = vpack.c.bf16 %v3993, %v3992
    %v3996 = vlaneseq
    %v3997 = vshrl.u32 %v3996, 7
    %v3998 = vsub.s32 0, %v3997
    %v3999 = vrot.slane %v3020, %v3998
    %v4005 = vunpack.c.l.b16 %v3016
    %v4006 = vunpack.c.l.b16 %v3017
    %v4007 = vunpack.c.l.b16 %v3018
    %v4008 = vunpack.c.l.b16 %v3019
    %v4009 = vpack.c.b16 %v4006, %v4005
    %v4010 = vpack.c.b16 %v4008, %v4007
    %v4014 = vsel %vm433, %v3994, 0
    %4016 = vmatprep.subr.bf16.mxu0 0
    %4017 = vmatpush1.bf16.msra.mxu0 %v4009
    %4018 = vmatprep.subr.bf16.mxu0 0
    %4019 = vmatpush1.bf16.msra.mxu0 %v4010
    %4020 = vmatprep.subr.bf16.mxu0 0
    %4021 = vmatpush1.bf16.msra.mxu0 0
    %4022 = vmatprep.subr.bf16.mxu0 0
    %4023 = vmatpush1.bf16.msra.mxu0 0
    %4024 = vmatprep.subr.bf16.mxu0 0
    %4025 = vmatpush1.bf16.msra.mxu0 0
    %4026 = vmatprep.subr.bf16.mxu0 0
    %4027 = vmatpush1.bf16.msra.mxu0 0
    %4028 = vmatprep.subr.bf16.mxu0 0
    %4029 = vmatpush1.bf16.msra.mxu0 0
    %4030 = vmatprep.subr.bf16.mxu0 0
    %4031 = vmatpush1.bf16.msra.mxu0 0
    %4032 = vmatprep.subr.bf16.mxu0 0
    %4033 = vmatpush1.bf16.msra.mxu0 0
    %4034 = vmatprep.subr.bf16.mxu0 0
    %4035 = vmatpush1.bf16.msra.mxu0 0
    %4036 = vmatprep.subr.bf16.mxu0 0
    %4037 = vmatpush1.bf16.msra.mxu0 0
    %4038 = vmatprep.subr.bf16.mxu0 0
    %4039 = vmatpush1.bf16.msra.mxu0 0
    %4040 = vmatprep.subr.bf16.mxu0 0
    %4041 = vmatpush1.bf16.msra.mxu0 0
    %4042 = vmatprep.subr.bf16.mxu0 0
    %4043 = vmatpush1.bf16.msra.mxu0 0
    %4044 = vmatprep.subr.bf16.mxu0 0
    %4045 = vmatpush1.bf16.msra.mxu0 0
    %4046 = vmatprep.subr.bf16.mxu0 0
    %4047 = vmatpush1.bf16.msra.mxu0 0
    %4048 = vmatprep.mubr.bf16.mxu0 0
    %4049 = vmatmul.mubr.bf16.gmra.mrb[0].mxu0 %v4014
    %v4050 = vpop.f32.mrb[0].mxu0
    %v4051 = vadd.f32 %v3999, %v4050
    %v4052 = vpop.f32.mrb[0].mxu0
    %v4053 = vpop.f32.mrb[0].mxu0
    %v4054 = vadd.f32 %v3999, %v4053
    %v4055 = vpop.f32.mrb[0].mxu0
    %4056 = vdwg.mxu0
    %v4057 = vadd.f32 %v3009, %v4051
    %v4058 = vadd.f32 %v3010, %v4054
    %v4059 = vld [vmem:[%s59] sm:$0x1]
    %v4060 = vld [vmem:[%s61] sm:$0x1]
    %v4061 = vsel %vm433, %v4057, 0.0
    %4062 = vadd.xlane.f32.xlu0 %v4061
    %v4063 = vpop.xlane.xlu0 %4062
    %v4064 = vsel %vm433, %v4058, 0.0
    %4065 = vadd.xlane.f32.xlu0 %v4064
    %v4066 = vpop.xlane.xlu0 %4065
    %v4067 = vmul.f32 %v4063, %v1465
    %v4068 = vmul.f32 %v4066, %v1465
    %v4069 = vsub.f32 %v4057, %v4067
    %v4070 = vsub.f32 %v4058, %v4068
    %v4071 = vmul.f32 %v4069, %v4069
    %v4072 = vmul.f32 %v4070, %v4070
    %v4073 = vsel %vm433, %v4071, 0.0
    %4074 = vadd.xlane.f32.xlu0 %v4073
    %v4075 = vpop.xlane.xlu0 %4074
    %v4076 = vsel %vm433, %v4072, 0.0
    %4077 = vadd.xlane.f32.xlu0 %v4076
    %v4078 = vpop.xlane.xlu0 %4077
    %v4079 = vmul.f32 %v4075, %v1465
    %v4080 = vmul.f32 %v4078, %v1465
    %v4081 = vadd.f32 %v4079, 1e-05
    %v4082 = vadd.f32 %v4080, 1e-05
    %v4083 = vrsqrt.pop %v4081
    %v4084 = vrsqrt.pop %v4082
    %v4085 = vmul.f32 %v4069, %v4083
    %v4086 = vmul.f32 %v4070, %v4084
    %v4088 = vlaneseq
    %v4089 = vshrl.u32 %v4088, 7
    %v4090 = vsub.s32 0, %v4089
    %v4091 = vrot.slane %v4059, %v4090
    %v4093 = vmul.f32 %v4085, %v4091
    %v4094 = vmul.f32 %v4086, %v4091
    %v4096 = vlaneseq
    %v4097 = vshrl.u32 %v4096, 7
    %v4098 = vsub.s32 0, %v4097
    %v4099 = vrot.slane %v4060, %v4098
    %v4101 = vadd.f32 %v4093, %v4099
    %v4102 = vadd.f32 %v4094, %v4099
    %v4103 = vld [vmem:[%s39] sm:$0xf]
    %v4104 = vld [vmem:[%s39 + $0x4] sm:$0xf]
    %v4105 = vld [vmem:[%s39 + $0x8] sm:$0xf]
    %v4106 = vld [vmem:[%s39 + $0xc] sm:$0xf]
    %v4107 = vld [vmem:[#allocation22] sm:$0x1]
    %v4108 = vld [vmem:[#allocation23] sm:$0xf]
    %v4109 = vld [vmem:[#allocation23 + $0x4] sm:$0xf]
    %v4110 = vld [vmem:[#allocation23 + $0x8] sm:$0xf]
    %v4111 = vld [vmem:[#allocation23 + $0xc] sm:$0xf]
    %v4112 = vld [vmem:[#allocation25] sm:$0x1]
    %v4113 = vld [vmem:[#allocation26] sm:$0xf]
    %v4114 = vld [vmem:[#allocation26 + $0x4] sm:$0xf]
    %v4115 = vld [vmem:[#allocation26 + $0x8] sm:$0xf]
    %v4116 = vld [vmem:[#allocation26 + $0xc] sm:$0xf]
    %v4117 = vld [vmem:[%s49] sm:$0x1]
    %v4118 = vpack.c.bf16 %v4102, %v4101
    %v4120 = vlaneseq
    %v4121 = vshrl.u32 %v4120, 7
    %v4122 = vsub.s32 0, %v4121
    %v4123 = vrot.slane %v4107, %v4122
    %v4129 = vunpack.c.l.b16 %v4103
    %v4130 = vunpack.c.l.b16 %v4104
    %v4131 = vunpack.c.l.b16 %v4105
    %v4132 = vunpack.c.l.b16 %v4106
    %v4133 = vpack.c.b16 %v4130, %v4129
    %v4134 = vpack.c.b16 %v4132, %v4131
    %v4138 = vsel %vm433, %v4118, 0
    %4140 = vmatprep.subr.bf16.mxu0 0
    %4141 = vmatpush1.bf16.msra.mxu0 %v4133
    %4142 = vmatprep.subr.bf16.mxu0 0
    %4143 = vmatpush1.bf16.msra.mxu0 %v4134
    %4144 = vmatprep.subr.bf16.mxu0 0
    %4145 = vmatpush1.bf16.msra.mxu0 0
    %4146 = vmatprep.subr.bf16.mxu0 0
    %4147 = vmatpush1.bf16.msra.mxu0 0
    %4148 = vmatprep.subr.bf16.mxu0 0
    %4149 = vmatpush1.bf16.msra.mxu0 0
    %4150 = vmatprep.subr.bf16.mxu0 0
    %4151 = vmatpush1.bf16.msra.mxu0 0
    %4152 = vmatprep.subr.bf16.mxu0 0
    %4153 = vmatpush1.bf16.msra.mxu0 0
    %4154 = vmatprep.subr.bf16.mxu0 0
    %4155 = vmatpush1.bf16.msra.mxu0 0
    %4156 = vmatprep.subr.bf16.mxu0 0
    %4157 = vmatpush1.bf16.msra.mxu0 0
    %4158 = vmatprep.subr.bf16.mxu0 0
    %4159 = vmatpush1.bf16.msra.mxu0 0
    %4160 = vmatprep.subr.bf16.mxu0 0
    %4161 = vmatpush1.bf16.msra.mxu0 0
    %4162 = vmatprep.subr.bf16.mxu0 0
    %4163 = vmatpush1.bf16.msra.mxu0 0
    %4164 = vmatprep.subr.bf16.mxu0 0
    %4165 = vmatpush1.bf16.msra.mxu0 0
    %4166 = vmatprep.subr.bf16.mxu0 0
    %4167 = vmatpush1.bf16.msra.mxu0 0
    %4168 = vmatprep.subr.bf16.mxu0 0
    %4169 = vmatpush1.bf16.msra.mxu0 0
    %4170 = vmatprep.subr.bf16.mxu0 0
    %4171 = vmatpush1.bf16.msra.mxu0 0
    %4172 = vmatprep.mubr.bf16.mxu0 0
    %4173 = vmatmul.mubr.bf16.gmra.mrb[0].mxu0 %v4138
    %v4174 = vpop.f32.mrb[0].mxu0
    %v4175 = vadd.f32 %v4123, %v4174
    %v4176 = vpop.f32.mrb[0].mxu0
    %v4177 = vpop.f32.mrb[0].mxu0
    %v4178 = vadd.f32 %v4123, %v4177
    %v4179 = vpop.f32.mrb[0].mxu0
    %4180 = vdwg.mxu0
    %v4181 = vpack.c.bf16 %v3006, %v3005
    %v4183 = vlaneseq
    %v4184 = vshrl.u32 %v4183, 7
    %v4185 = vsub.s32 0, %v4184
    %v4186 = vrot.slane %v4112, %v4185
    %v4192 = vunpack.c.l.b16 %v4108
    %v4193 = vunpack.c.l.b16 %v4109
    %v4194 = vunpack.c.l.b16 %v4110
    %v4195 = vunpack.c.l.b16 %v4111
    %v4196 = vpack.c.b16 %v4193, %v4192
    %v4197 = vpack.c.b16 %v4195, %v4194
    %v4201 = vsel %vm433, %v4181, 0
    %4203 = vmatprep.subr.bf16.mxu0 0
    %4204 = vmatpush1.bf16.msra.mxu0 %v4196
    %4205 = vmatprep.subr.bf16.mxu0 0
    %4206 = vmatpush1.bf16.msra.mxu0 %v4197
    %4207 = vmatprep.subr.bf16.mxu0 0
    %4208 = vmatpush1.bf16.msra.mxu0 0
    %4209 = vmatprep.subr.bf16.mxu0 0
    %4210 = vmatpush1.bf16.msra.mxu0 0
    %4211 = vmatprep.subr.bf16.mxu0 0
    %4212 = vmatpush1.bf16.msra.mxu0 0
    %4213 = vmatprep.subr.bf16.mxu0 0
    %4214 = vmatpush1.bf16.msra.mxu0 0
    %4215 = vmatprep.subr.bf16.mxu0 0
    %4216 = vmatpush1.bf16.msra.mxu0 0
    %4217 = vmatprep.subr.bf16.mxu0 0
    %4218 = vmatpush1.bf16.msra.mxu0 0
    %4219 = vmatprep.subr.bf16.mxu0 0
    %4220 = vmatpush1.bf16.msra.mxu0 0
    %4221 = vmatprep.subr.bf16.mxu0 0
    %4222 = vmatpush1.bf16.msra.mxu0 0
    %4223 = vmatprep.subr.bf16.mxu0 0
    %4224 = vmatpush1.bf16.msra.mxu0 0
    %4225 = vmatprep.subr.bf16.mxu0 0
    %4226 = vmatpush1.bf16.msra.mxu0 0
    %4227 = vmatprep.subr.bf16.mxu0 0
    %4228 = vmatpush1.bf16.msra.mxu0 0
    %4229 = vmatprep.subr.bf16.mxu0 0
    %4230 = vmatpush1.bf16.msra.mxu0 0
    %4231 = vmatprep.subr.bf16.mxu0 0
    %4232 = vmatpush1.bf16.msra.mxu0 0
    %4233 = vmatprep.subr.bf16.mxu0 0
    %4234 = vmatpush1.bf16.msra.mxu0 0
    %4235 = vmatprep.mubr.bf16.mxu0 0
    %4236 = vmatmul.mubr.bf16.gmra.mrb[0].mxu0 %v4201
    %v4237 = vpop.f32.mrb[0].mxu0
    %v4238 = vadd.f32 %v4186, %v4237
    %v4239 = vpop.f32.mrb[0].mxu0
    %v4240 = vpop.f32.mrb[0].mxu0
    %v4241 = vadd.f32 %v4186, %v4240
    %v4242 = vpop.f32.mrb[0].mxu0
    %4243 = vdwg.mxu0
    %v4244 = vpack.c.bf16 %v4175, %v4175
    %v4245 = vpack.c.bf16 %v4178, %v4178
    %v4246 = vpack.c.bf16 %v4238, %v4238
    %v4247 = vpack.c.bf16 %v4241, %v4241
    %v4249 = vsel %vm483, %v4244, 0
    %v4252 = vsel %vm483, %v4246, 0
    %4254 = vmatprep.subr.bf16.mxu0 0
    %4255 = vmatpush1.bf16.xpose.msra.mxu0 %v4252
    %4256 = vmatprep.subr.bf16.mxu0 0
    %4257 = vmatpush1.bf16.xpose.msra.mxu0 0
    %4258 = vmatprep.subr.bf16.mxu0 0
    %4259 = vmatpush1.bf16.xpose.msra.mxu0 0
    %4260 = vmatprep.subr.bf16.mxu0 0
    %4261 = vmatpush1.bf16.xpose.msra.mxu0 0
    %4262 = vmatprep.subr.bf16.mxu0 0
    %4263 = vmatpush1.bf16.xpose.msra.mxu0 0
    %4264 = vmatprep.subr.bf16.mxu0 0
    %4265 = vmatpush1.bf16.xpose.msra.mxu0 0
    %4266 = vmatprep.subr.bf16.mxu0 0
    %4267 = vmatpush1.bf16.xpose.msra.mxu0 0
    %4268 = vmatprep.subr.bf16.mxu0 0
    %4269 = vmatpush1.bf16.xpose.msra.mxu0 0
    %4270 = vmatprep.subr.bf16.mxu0 0
    %4271 = vmatpush1.bf16.xpose.msra.mxu0 0
    %4272 = vmatprep.subr.bf16.mxu0 0
    %4273 = vmatpush1.bf16.xpose.msra.mxu0 0
    %4274 = vmatprep.subr.bf16.mxu0 0
    %4275 = vmatpush1.bf16.xpose.msra.mxu0 0
    %4276 = vmatprep.subr.bf16.mxu0 0
    %4277 = vmatpush1.bf16.xpose.msra.mxu0 0
    %4278 = vmatprep.subr.bf16.mxu0 0
    %4279 = vmatpush1.bf16.xpose.msra.mxu0 0
    %4280 = vmatprep.subr.bf16.mxu0 0
    %4281 = vmatpush1.bf16.xpose.msra.mxu0 0
    %4282 = vmatprep.subr.bf16.mxu0 0
    %4283 = vmatpush1.bf16.xpose.msra.mxu0 0
    %4284 = vmatprep.subr.bf16.mxu0 0
    %4285 = vmatpush1.bf16.xpose.msra.mxu0 0
    %4286 = vmatprep.mubr.bf16.mxu0 0
    %4287 = vmatmul.mubr.bf16.gmra.mrb[0].mxu0 %v4249
    %v4288 = vpop.f32.mrb[0].mxu0
    %v4289 = vadd.f32 0.0, %v4288
    %v4290 = vpop.f32.mrb[0].mxu0
    %v4291 = vpop.f32.mrb[0].mxu0
    %v4292 = vpop.f32.mrb[0].mxu0
    %4293 = vdwg.mxu0
    %v4295 = vsel %vm483, %v4245, 0
    %v4298 = vsel %vm483, %v4247, 0
    %4300 = vmatprep.subr.bf16.mxu0 0
    %4301 = vmatpush1.bf16.xpose.msra.mxu0 %v4298
    %4302 = vmatprep.subr.bf16.mxu0 0
    %4303 = vmatpush1.bf16.xpose.msra.mxu0 0
    %4304 = vmatprep.subr.bf16.mxu0 0
    %4305 = vmatpush1.bf16.xpose.msra.mxu0 0
    %4306 = vmatprep.subr.bf16.mxu0 0
    %4307 = vmatpush1.bf16.xpose.msra.mxu0 0
    %4308 = vmatprep.subr.bf16.mxu0 0
    %4309 = vmatpush1.bf16.xpose.msra.mxu0 0
    %4310 = vmatprep.subr.bf16.mxu0 0
    %4311 = vmatpush1.bf16.xpose.msra.mxu0 0
    %4312 = vmatprep.subr.bf16.mxu0 0
    %4313 = vmatpush1.bf16.xpose.msra.mxu0 0
    %4314 = vmatprep.subr.bf16.mxu0 0
    %4315 = vmatpush1.bf16.xpose.msra.mxu0 0
    %4316 = vmatprep.subr.bf16.mxu0 0
    %4317 = vmatpush1.bf16.xpose.msra.mxu0 0
    %4318 = vmatprep.subr.bf16.mxu0 0
    %4319 = vmatpush1.bf16.xpose.msra.mxu0 0
    %4320 = vmatprep.subr.bf16.mxu0 0
    %4321 = vmatpush1.bf16.xpose.msra.mxu0 0
    %4322 = vmatprep.subr.bf16.mxu0 0
    %4323 = vmatpush1.bf16.xpose.msra.mxu0 0
    %4324 = vmatprep.subr.bf16.mxu0 0
    %4325 = vmatpush1.bf16.xpose.msra.mxu0 0
    %4326 = vmatprep.subr.bf16.mxu0 0
    %4327 = vmatpush1.bf16.xpose.msra.mxu0 0
    %4328 = vmatprep.subr.bf16.mxu0 0
    %4329 = vmatpush1.bf16.xpose.msra.mxu0 0
    %4330 = vmatprep.subr.bf16.mxu0 0
    %4331 = vmatpush1.bf16.xpose.msra.mxu0 0
    %4332 = vmatprep.mubr.bf16.mxu0 0
    %4333 = vmatmul.mubr.bf16.gmra.mrb[0].mxu0 %v4295
    %v4334 = vpop.f32.mrb[0].mxu0
    %v4335 = vadd.f32 0.0, %v4334
    %v4336 = vpop.f32.mrb[0].mxu0
    %v4337 = vpop.f32.mrb[0].mxu0
    %v4338 = vpop.f32.mrb[0].mxu0
    %4339 = vdwg.mxu0
    %v4340 = vsel %vm483, %v4289, -inf
    %4341 = vmax.xlane.f32.xlu0 %v4340
    %v4342 = vpop.xlane.xlu0 %4341
    %v4343 = vsel %vm483, %v4335, -inf
    %4344 = vmax.xlane.f32.xlu0 %v4343
    %v4345 = vpop.xlane.xlu0 %4344
    %v4346 = vsub.f32 %v4289, %v4342
    %v4347 = vsub.f32 %v4335, %v4345
    %v4348 = vmul.f32 %v4346, 1.442695
    %v4349 = vpow.pop %v4348
    %v4350 = vmul.f32 %v4347, 1.442695
    %v4351 = vpow.pop %v4350
    %v4352 = vsel %vm483, %v4349, 0.0
    %4353 = vadd.xlane.f32.xlu0 %v4352
    %v4354 = vpop.xlane.xlu0 %4353
    %v4355 = vsel %vm483, %v4351, 0.0
    %4356 = vadd.xlane.f32.xlu0 %v4355
    %v4357 = vpop.xlane.xlu0 %4356
    %v4358 = vrcp.pop %v4354
    %v4359 = vrcp.pop %v4357
    %v4360 = vmul.f32 %v4349, %v4358
    %v4361 = vmul.f32 %v4351, %v4359
    %v4362 = vpack.c.bf16 %v4360, %v4360
    %v4363 = vpack.c.bf16 %v4361, %v4361
    %4365 = vrot.lane.b32.xlu0 %v4246, 96
    %v4366 = vpop.permute.xlu0 %4365
    %v4368 = vsel %vm483, %v4362, 0
    %v4371 = vsel %vm608, %v4366, 0
    %4373 = vmatprep.subr.bf16.mxu0 0
    %4374 = vmatpush1.bf16.msra.mxu0 %v4371
    %4375 = vmatprep.subr.bf16.mxu0 0
    %4376 = vmatpush1.bf16.msra.mxu0 0
    %4377 = vmatprep.subr.bf16.mxu0 0
    %4378 = vmatpush1.bf16.msra.mxu0 0
    %4379 = vmatprep.subr.bf16.mxu0 0
    %4380 = vmatpush1.bf16.msra.mxu0 0
    %4381 = vmatprep.subr.bf16.mxu0 0
    %4382 = vmatpush1.bf16.msra.mxu0 0
    %4383 = vmatprep.subr.bf16.mxu0 0
    %4384 = vmatpush1.bf16.msra.mxu0 0
    %4385 = vmatprep.subr.bf16.mxu0 0
    %4386 = vmatpush1.bf16.msra.mxu0 0
    %4387 = vmatprep.subr.bf16.mxu0 0
    %4388 = vmatpush1.bf16.msra.mxu0 0
    %4389 = vmatprep.subr.bf16.mxu0 0
    %4390 = vmatpush1.bf16.msra.mxu0 0
    %4391 = vmatprep.subr.bf16.mxu0 0
    %4392 = vmatpush1.bf16.msra.mxu0 0
    %4393 = vmatprep.subr.bf16.mxu0 0
    %4394 = vmatpush1.bf16.msra.mxu0 0
    %4395 = vmatprep.subr.bf16.mxu0 0
    %4396 = vmatpush1.bf16.msra.mxu0 0
    %4397 = vmatprep.subr.bf16.mxu0 0
    %4398 = vmatpush1.bf16.msra.mxu0 0
    %4399 = vmatprep.subr.bf16.mxu0 0
    %4400 = vmatpush1.bf16.msra.mxu0 0
    %4401 = vmatprep.subr.bf16.mxu0 0
    %4402 = vmatpush1.bf16.msra.mxu0 0
    %4403 = vmatprep.subr.bf16.mxu0 0
    %4404 = vmatpush1.bf16.msra.mxu0 0
    %4405 = vmatprep.mubr.bf16.mxu0 0
    %4406 = vmatmul.mubr.bf16.gmra.mrb[0].mxu0 %v4368
    %v4407 = vpop.f32.mrb[0].mxu0
    %v4408 = vadd.f32 0.0, %v4407
    %v4409 = vpop.f32.mrb[0].mxu0
    %v4410 = vpop.f32.mrb[0].mxu0
    %v4411 = vpop.f32.mrb[0].mxu0
    %4412 = vdwg.mxu0
    %4414 = vrot.lane.b32.xlu0 %v4247, 96
    %v4415 = vpop.permute.xlu0 %4414
    %v4417 = vsel %vm483, %v4363, 0
    %v4420 = vsel %vm608, %v4415, 0
    %4422 = vmatprep.subr.bf16.mxu0 0
    %4423 = vmatpush1.bf16.msra.mxu0 %v4420
    %4424 = vmatprep.subr.bf16.mxu0 0
    %4425 = vmatpush1.bf16.msra.mxu0 0
    %4426 = vmatprep.subr.bf16.mxu0 0
    %4427 = vmatpush1.bf16.msra.mxu0 0
    %4428 = vmatprep.subr.bf16.mxu0 0
    %4429 = vmatpush1.bf16.msra.mxu0 0
    %4430 = vmatprep.subr.bf16.mxu0 0
    %4431 = vmatpush1.bf16.msra.mxu0 0
    %4432 = vmatprep.subr.bf16.mxu0 0
    %4433 = vmatpush1.bf16.msra.mxu0 0
    %4434 = vmatprep.subr.bf16.mxu0 0
    %4435 = vmatpush1.bf16.msra.mxu0 0
    %4436 = vmatprep.subr.bf16.mxu0 0
    %4437 = vmatpush1.bf16.msra.mxu0 0
    %4438 = vmatprep.subr.bf16.mxu0 0
    %4439 = vmatpush1.bf16.msra.mxu0 0
    %4440 = vmatprep.subr.bf16.mxu0 0
    %4441 = vmatpush1.bf16.msra.mxu0 0
    %4442 = vmatprep.subr.bf16.mxu0 0
    %4443 = vmatpush1.bf16.msra.mxu0 0
    %4444 = vmatprep.subr.bf16.mxu0 0
    %4445 = vmatpush1.bf16.msra.mxu0 0
    %4446 = vmatprep.subr.bf16.mxu0 0
    %4447 = vmatpush1.bf16.msra.mxu0 0
    %4448 = vmatprep.subr.bf16.mxu0 0
    %4449 = vmatpush1.bf16.msra.mxu0 0
    %4450 = vmatprep.subr.bf16.mxu0 0
    %4451 = vmatpush1.bf16.msra.mxu0 0
    %4452 = vmatprep.subr.bf16.mxu0 0
    %4453 = vmatpush1.bf16.msra.mxu0 0
    %4454 = vmatprep.mubr.bf16.mxu0 0
    %4455 = vmatmul.mubr.bf16.gmra.mrb[0].mxu0 %v4417
    %v4456 = vpop.f32.mrb[0].mxu0
    %v4457 = vadd.f32 0.0, %v4456
    %v4458 = vpop.f32.mrb[0].mxu0
    %v4459 = vpop.f32.mrb[0].mxu0
    %v4460 = vpop.f32.mrb[0].mxu0
    %4461 = vdwg.mxu0
    %4463 = vrot.lane.b32.xlu0 %v4244, 120
    %v4464 = vpop.permute.xlu0 %4463
    %4465 = vrot.lane.b32.xlu0 %v4246, 120
    %v4466 = vpop.permute.xlu0 %4465
    %v4468 = vsel %vm483, %v4464, 0
    %v4471 = vsel %vm483, %v4466, 0
    %4473 = vmatprep.subr.bf16.mxu0 0
    %4474 = vmatpush1.bf16.xpose.msra.mxu0 %v4471
    %4475 = vmatprep.subr.bf16.mxu0 0
    %4476 = vmatpush1.bf16.xpose.msra.mxu0 0
    %4477 = vmatprep.subr.bf16.mxu0 0
    %4478 = vmatpush1.bf16.xpose.msra.mxu0 0
    %4479 = vmatprep.subr.bf16.mxu0 0
    %4480 = vmatpush1.bf16.xpose.msra.mxu0 0
    %4481 = vmatprep.subr.bf16.mxu0 0
    %4482 = vmatpush1.bf16.xpose.msra.mxu0 0
    %4483 = vmatprep.subr.bf16.mxu0 0
    %4484 = vmatpush1.bf16.xpose.msra.mxu0 0
    %4485 = vmatprep.subr.bf16.mxu0 0
    %4486 = vmatpush1.bf16.xpose.msra.mxu0 0
    %4487 = vmatprep.subr.bf16.mxu0 0
    %4488 = vmatpush1.bf16.xpose.msra.mxu0 0
    %4489 = vmatprep.subr.bf16.mxu0 0
    %4490 = vmatpush1.bf16.xpose.msra.mxu0 0
    %4491 = vmatprep.subr.bf16.mxu0 0
    %4492 = vmatpush1.bf16.xpose.msra.mxu0 0
    %4493 = vmatprep.subr.bf16.mxu0 0
    %4494 = vmatpush1.bf16.xpose.msra.mxu0 0
    %4495 = vmatprep.subr.bf16.mxu0 0
    %4496 = vmatpush1.bf16.xpose.msra.mxu0 0
    %4497 = vmatprep.subr.bf16.mxu0 0
    %4498 = vmatpush1.bf16.xpose.msra.mxu0 0
    %4499 = vmatprep.subr.bf16.mxu0 0
    %4500 = vmatpush1.bf16.xpose.msra.mxu0 0
    %4501 = vmatprep.subr.bf16.mxu0 0
    %4502 = vmatpush1.bf16.xpose.msra.mxu0 0
    %4503 = vmatprep.subr.bf16.mxu0 0
    %4504 = vmatpush1.bf16.xpose.msra.mxu0 0
    %4505 = vmatprep.mubr.bf16.mxu0 0
    %4506 = vmatmul.mubr.bf16.gmra.mrb[0].mxu0 %v4468
    %v4507 = vpop.f32.mrb[0].mxu0
    %v4508 = vadd.f32 0.0, %v4507
    %v4509 = vpop.f32.mrb[0].mxu0
    %v4510 = vpop.f32.mrb[0].mxu0
    %v4511 = vpop.f32.mrb[0].mxu0
    %4512 = vdwg.mxu0
    %4514 = vrot.lane.b32.xlu0 %v4245, 120
    %v4515 = vpop.permute.xlu0 %4514
    %4516 = vrot.lane.b32.xlu0 %v4247, 120
    %v4517 = vpop.permute.xlu0 %4516
    %v4519 = vsel %vm483, %v4515, 0
    %v4522 = vsel %vm483, %v4517, 0
    %4524 = vmatprep.subr.bf16.mxu0 0
    %4525 = vmatpush1.bf16.xpose.msra.mxu0 %v4522
    %4526 = vmatprep.subr.bf16.mxu0 0
    %4527 = vmatpush1.bf16.xpose.msra.mxu0 0
    %4528 = vmatprep.subr.bf16.mxu0 0
    %4529 = vmatpush1.bf16.xpose.msra.mxu0 0
    %4530 = vmatprep.subr.bf16.mxu0 0
    %4531 = vmatpush1.bf16.xpose.msra.mxu0 0
    %4532 = vmatprep.subr.bf16.mxu0 0
    %4533 = vmatpush1.bf16.xpose.msra.mxu0 0
    %4534 = vmatprep.subr.bf16.mxu0 0
    %4535 = vmatpush1.bf16.xpose.msra.mxu0 0
    %4536 = vmatprep.subr.bf16.mxu0 0
    %4537 = vmatpush1.bf16.xpose.msra.mxu0 0
    %4538 = vmatprep.subr.bf16.mxu0 0
    %4539 = vmatpush1.bf16.xpose.msra.mxu0 0
    %4540 = vmatprep.subr.bf16.mxu0 0
    %4541 = vmatpush1.bf16.xpose.msra.mxu0 0
    %4542 = vmatprep.subr.bf16.mxu0 0
    %4543 = vmatpush1.bf16.xpose.msra.mxu0 0
    %4544 = vmatprep.subr.bf16.mxu0 0
    %4545 = vmatpush1.bf16.xpose.msra.mxu0 0
    %4546 = vmatprep.subr.bf16.mxu0 0
    %4547 = vmatpush1.bf16.xpose.msra.mxu0 0
    %4548 = vmatprep.subr.bf16.mxu0 0
    %4549 = vmatpush1.bf16.xpose.msra.mxu0 0
    %4550 = vmatprep.subr.bf16.mxu0 0
    %4551 = vmatpush1.bf16.xpose.msra.mxu0 0
    %4552 = vmatprep.subr.bf16.mxu0 0
    %4553 = vmatpush1.bf16.xpose.msra.mxu0 0
    %4554 = vmatprep.subr.bf16.mxu0 0
    %4555 = vmatpush1.bf16.xpose.msra.mxu0 0
    %4556 = vmatprep.mubr.bf16.mxu0 0
    %4557 = vmatmul.mubr.bf16.gmra.mrb[0].mxu0 %v4519
    %v4558 = vpop.f32.mrb[0].mxu0
    %v4559 = vadd.f32 0.0, %v4558
    %v4560 = vpop.f32.mrb[0].mxu0
    %v4561 = vpop.f32.mrb[0].mxu0
    %v4562 = vpop.f32.mrb[0].mxu0
    %4563 = vdwg.mxu0
    %v4564 = vsel %vm483, %v4508, -inf
    %4565 = vmax.xlane.f32.xlu0 %v4564
    %v4566 = vpop.xlane.xlu0 %4565
    %v4567 = vsel %vm483, %v4559, -inf
    %4568 = vmax.xlane.f32.xlu0 %v4567
    %v4569 = vpop.xlane.xlu0 %4568
    %v4570 = vsub.f32 %v4508, %v4566
    %v4571 = vsub.f32 %v4559, %v4569
    %v4572 = vmul.f32 %v4570, 1.442695
    %v4573 = vpow.pop %v4572
    %v4574 = vmul.f32 %v4571, 1.442695
    %v4575 = vpow.pop %v4574
    %v4576 = vsel %vm483, %v4573, 0.0
    %4577 = vadd.xlane.f32.xlu0 %v4576
    %v4578 = vpop.xlane.xlu0 %4577
    %v4579 = vsel %vm483, %v4575, 0.0
    %4580 = vadd.xlane.f32.xlu0 %v4579
    %v4581 = vpop.xlane.xlu0 %4580
    %v4582 = vrcp.pop %v4578
    %v4583 = vrcp.pop %v4581
    %v4584 = vmul.f32 %v4573, %v4582
    %v4585 = vmul.f32 %v4575, %v4583
    %v4586 = vpack.c.bf16 %v4584, %v4584
    %v4587 = vpack.c.bf16 %v4585, %v4585
    %4588 = vrot.lane.b32.xlu0 %v4246, 88
    %v4589 = vpop.permute.xlu0 %4588
    %v4591 = vsel %vm483, %v4586, 0
    %v4594 = vsel %vm608, %v4589, 0
    %4596 = vmatprep.subr.bf16.mxu0 0
    %4597 = vmatpush1.bf16.msra.mxu0 %v4594
    %4598 = vmatprep.subr.bf16.mxu0 0
    %4599 = vmatpush1.bf16.msra.mxu0 0
    %4600 = vmatprep.subr.bf16.mxu0 0
    %4601 = vmatpush1.bf16.msra.mxu0 0
    %4602 = vmatprep.subr.bf16.mxu0 0
    %4603 = vmatpush1.bf16.msra.mxu0 0
    %4604 = vmatprep.subr.bf16.mxu0 0
    %4605 = vmatpush1.bf16.msra.mxu0 0
    %4606 = vmatprep.subr.bf16.mxu0 0
    %4607 = vmatpush1.bf16.msra.mxu0 0
    %4608 = vmatprep.subr.bf16.mxu0 0
    %4609 = vmatpush1.bf16.msra.mxu0 0
    %4610 = vmatprep.subr.bf16.mxu0 0
    %4611 = vmatpush1.bf16.msra.mxu0 0
    %4612 = vmatprep.subr.bf16.mxu0 0
    %4613 = vmatpush1.bf16.msra.mxu0 0
    %4614 = vmatprep.subr.bf16.mxu0 0
    %4615 = vmatpush1.bf16.msra.mxu0 0
    %4616 = vmatprep.subr.bf16.mxu0 0
    %4617 = vmatpush1.bf16.msra.mxu0 0
    %4618 = vmatprep.subr.bf16.mxu0 0
    %4619 = vmatpush1.bf16.msra.mxu0 0
    %4620 = vmatprep.subr.bf16.mxu0 0
    %4621 = vmatpush1.bf16.msra.mxu0 0
    %4622 = vmatprep.subr.bf16.mxu0 0
    %4623 = vmatpush1.bf16.msra.mxu0 0
    %4624 = vmatprep.subr.bf16.mxu0 0
    %4625 = vmatpush1.bf16.msra.mxu0 0
    %4626 = vmatprep.subr.bf16.mxu0 0
    %4627 = vmatpush1.bf16.msra.mxu0 0
    %4628 = vmatprep.mubr.bf16.mxu0 0
    %4629 = vmatmul.mubr.bf16.gmra.mrb[0].mxu0 %v4591
    %v4630 = vpop.f32.mrb[0].mxu0
    %v4631 = vadd.f32 0.0, %v4630
    %v4632 = vpop.f32.mrb[0].mxu0
    %v4633 = vpop.f32.mrb[0].mxu0
    %v4634 = vpop.f32.mrb[0].mxu0
    %4635 = vdwg.mxu0
    %4636 = vrot.lane.b32.xlu0 %v4247, 88
    %v4637 = vpop.permute.xlu0 %4636
    %v4639 = vsel %vm483, %v4587, 0
    %v4642 = vsel %vm608, %v4637, 0
    %4644 = vmatprep.subr.bf16.mxu0 0
    %4645 = vmatpush1.bf16.msra.mxu0 %v4642
    %4646 = vmatprep.subr.bf16.mxu0 0
    %4647 = vmatpush1.bf16.msra.mxu0 0
    %4648 = vmatprep.subr.bf16.mxu0 0
    %4649 = vmatpush1.bf16.msra.mxu0 0
    %4650 = vmatprep.subr.bf16.mxu0 0
    %4651 = vmatpush1.bf16.msra.mxu0 0
    %4652 = vmatprep.subr.bf16.mxu0 0
    %4653 = vmatpush1.bf16.msra.mxu0 0
    %4654 = vmatprep.subr.bf16.mxu0 0
    %4655 = vmatpush1.bf16.msra.mxu0 0
    %4656 = vmatprep.subr.bf16.mxu0 0
    %4657 = vmatpush1.bf16.msra.mxu0 0
    %4658 = vmatprep.subr.bf16.mxu0 0
    %4659 = vmatpush1.bf16.msra.mxu0 0
    %4660 = vmatprep.subr.bf16.mxu0 0
    %4661 = vmatpush1.bf16.msra.mxu0 0
    %4662 = vmatprep.subr.bf16.mxu0 0
    %4663 = vmatpush1.bf16.msra.mxu0 0
    %4664 = vmatprep.subr.bf16.mxu0 0
    %4665 = vmatpush1.bf16.msra.mxu0 0
    %4666 = vmatprep.subr.bf16.mxu0 0
    %4667 = vmatpush1.bf16.msra.mxu0 0
    %4668 = vmatprep.subr.bf16.mxu0 0
    %4669 = vmatpush1.bf16.msra.mxu0 0
    %4670 = vmatprep.subr.bf16.mxu0 0
    %4671 = vmatpush1.bf16.msra.mxu0 0
    %4672 = vmatprep.subr.bf16.mxu0 0
    %4673 = vmatpush1.bf16.msra.mxu0 0
    %4674 = vmatprep.subr.bf16.mxu0 0
    %4675 = vmatpush1.bf16.msra.mxu0 0
    %4676 = vmatprep.mubr.bf16.mxu0 0
    %4677 = vmatmul.mubr.bf16.gmra.mrb[0].mxu0 %v4639
    %v4678 = vpop.f32.mrb[0].mxu0
    %v4679 = vadd.f32 0.0, %v4678
    %v4680 = vpop.f32.mrb[0].mxu0
    %v4681 = vpop.f32.mrb[0].mxu0
    %v4682 = vpop.f32.mrb[0].mxu0
    %4683 = vdwg.mxu0
    %4684 = vrot.lane.b32.xlu0 %v4244, 112
    %v4685 = vpop.permute.xlu0 %4684
    %4686 = vrot.lane.b32.xlu0 %v4246, 112
    %v4687 = vpop.permute.xlu0 %4686
    %v4689 = vsel %vm483, %v4685, 0
    %v4692 = vsel %vm483, %v4687, 0
    %4694 = vmatprep.subr.bf16.mxu0 0
    %4695 = vmatpush1.bf16.xpose.msra.mxu0 %v4692
    %4696 = vmatprep.subr.bf16.mxu0 0
    %4697 = vmatpush1.bf16.xpose.msra.mxu0 0
    %4698 = vmatprep.subr.bf16.mxu0 0
    %4699 = vmatpush1.bf16.xpose.msra.mxu0 0
    %4700 = vmatprep.subr.bf16.mxu0 0
    %4701 = vmatpush1.bf16.xpose.msra.mxu0 0
    %4702 = vmatprep.subr.bf16.mxu0 0
    %4703 = vmatpush1.bf16.xpose.msra.mxu0 0
    %4704 = vmatprep.subr.bf16.mxu0 0
    %4705 = vmatpush1.bf16.xpose.msra.mxu0 0
    %4706 = vmatprep.subr.bf16.mxu0 0
    %4707 = vmatpush1.bf16.xpose.msra.mxu0 0
    %4708 = vmatprep.subr.bf16.mxu0 0
    %4709 = vmatpush1.bf16.xpose.msra.mxu0 0
    %4710 = vmatprep.subr.bf16.mxu0 0
    %4711 = vmatpush1.bf16.xpose.msra.mxu0 0
    %4712 = vmatprep.subr.bf16.mxu0 0
    %4713 = vmatpush1.bf16.xpose.msra.mxu0 0
    %4714 = vmatprep.subr.bf16.mxu0 0
    %4715 = vmatpush1.bf16.xpose.msra.mxu0 0
    %4716 = vmatprep.subr.bf16.mxu0 0
    %4717 = vmatpush1.bf16.xpose.msra.mxu0 0
    %4718 = vmatprep.subr.bf16.mxu0 0
    %4719 = vmatpush1.bf16.xpose.msra.mxu0 0
    %4720 = vmatprep.subr.bf16.mxu0 0
    %4721 = vmatpush1.bf16.xpose.msra.mxu0 0
    %4722 = vmatprep.subr.bf16.mxu0 0
    %4723 = vmatpush1.bf16.xpose.msra.mxu0 0
    %4724 = vmatprep.subr.bf16.mxu0 0
    %4725 = vmatpush1.bf16.xpose.msra.mxu0 0
    %4726 = vmatprep.mubr.bf16.mxu0 0
    %4727 = vmatmul.mubr.bf16.gmra.mrb[0].mxu0 %v4689
    %v4728 = vpop.f32.mrb[0].mxu0
    %v4729 = vadd.f32 0.0, %v4728
    %v4730 = vpop.f32.mrb[0].mxu0
    %v4731 = vpop.f32.mrb[0].mxu0
    %v4732 = vpop.f32.mrb[0].mxu0
    %4733 = vdwg.mxu0
    %4734 = vrot.lane.b32.xlu0 %v4245, 112
    %v4735 = vpop.permute.xlu0 %4734
    %4736 = vrot.lane.b32.xlu0 %v4247, 112
    %v4737 = vpop.permute.xlu0 %4736
    %v4739 = vsel %vm483, %v4735, 0
    %v4742 = vsel %vm483, %v4737, 0
    %4744 = vmatprep.subr.bf16.mxu0 0
    %4745 = vmatpush1.bf16.xpose.msra.mxu0 %v4742
    %4746 = vmatprep.subr.bf16.mxu0 0
    %4747 = vmatpush1.bf16.xpose.msra.mxu0 0
    %4748 = vmatprep.subr.bf16.mxu0 0
    %4749 = vmatpush1.bf16.xpose.msra.mxu0 0
    %4750 = vmatprep.subr.bf16.mxu0 0
    %4751 = vmatpush1.bf16.xpose.msra.mxu0 0
    %4752 = vmatprep.subr.bf16.mxu0 0
    %4753 = vmatpush1.bf16.xpose.msra.mxu0 0
    %4754 = vmatprep.subr.bf16.mxu0 0
    %4755 = vmatpush1.bf16.xpose.msra.mxu0 0
    %4756 = vmatprep.subr.bf16.mxu0 0
    %4757 = vmatpush1.bf16.xpose.msra.mxu0 0
    %4758 = vmatprep.subr.bf16.mxu0 0
    %4759 = vmatpush1.bf16.xpose.msra.mxu0 0
    %4760 = vmatprep.subr.bf16.mxu0 0
    %4761 = vmatpush1.bf16.xpose.msra.mxu0 0
    %4762 = vmatprep.subr.bf16.mxu0 0
    %4763 = vmatpush1.bf16.xpose.msra.mxu0 0
    %4764 = vmatprep.subr.bf16.mxu0 0
    %4765 = vmatpush1.bf16.xpose.msra.mxu0 0
    %4766 = vmatprep.subr.bf16.mxu0 0
    %4767 = vmatpush1.bf16.xpose.msra.mxu0 0
    %4768 = vmatprep.subr.bf16.mxu0 0
    %4769 = vmatpush1.bf16.xpose.msra.mxu0 0
    %4770 = vmatprep.subr.bf16.mxu0 0
    %4771 = vmatpush1.bf16.xpose.msra.mxu0 0
    %4772 = vmatprep.subr.bf16.mxu0 0
    %4773 = vmatpush1.bf16.xpose.msra.mxu0 0
    %4774 = vmatprep.subr.bf16.mxu0 0
    %4775 = vmatpush1.bf16.xpose.msra.mxu0 0
    %4776 = vmatprep.mubr.bf16.mxu0 0
    %4777 = vmatmul.mubr.bf16.gmra.mrb[0].mxu0 %v4739
    %v4778 = vpop.f32.mrb[0].mxu0
    %v4779 = vadd.f32 0.0, %v4778
    %v4780 = vpop.f32.mrb[0].mxu0
    %v4781 = vpop.f32.mrb[0].mxu0
    %v4782 = vpop.f32.mrb[0].mxu0
    %4783 = vdwg.mxu0
    %v4784 = vsel %vm483, %v4729, -inf
    %4785 = vmax.xlane.f32.xlu0 %v4784
    %v4786 = vpop.xlane.xlu0 %4785
    %v4787 = vsel %vm483, %v4779, -inf
    %4788 = vmax.xlane.f32.xlu0 %v4787
    %v4789 = vpop.xlane.xlu0 %4788
    %v4790 = vsub.f32 %v4729, %v4786
    %v4791 = vsub.f32 %v4779, %v4789
    %v4792 = vmul.f32 %v4790, 1.442695
    %v4793 = vpow.pop %v4792
    %v4794 = vmul.f32 %v4791, 1.442695
    %v4795 = vpow.pop %v4794
    %v4796 = vsel %vm483, %v4793, 0.0
    %4797 = vadd.xlane.f32.xlu0 %v4796
    %v4798 = vpop.xlane.xlu0 %4797
    %v4799 = vsel %vm483, %v4795, 0.0
    %4800 = vadd.xlane.f32.xlu0 %v4799
    %v4801 = vpop.xlane.xlu0 %4800
    %v4802 = vrcp.pop %v4798
    %v4803 = vrcp.pop %v4801
    %v4804 = vmul.f32 %v4793, %v4802
    %v4805 = vmul.f32 %v4795, %v4803
    %v4806 = vpack.c.bf16 %v4804, %v4804
    %v4807 = vpack.c.bf16 %v4805, %v4805
    %4808 = vrot.lane.b32.xlu0 %v4246, 80
    %v4809 = vpop.permute.xlu0 %4808
    %v4811 = vsel %vm483, %v4806, 0
    %v4814 = vsel %vm608, %v4809, 0
    %4816 = vmatprep.subr.bf16.mxu0 0
    %4817 = vmatpush1.bf16.msra.mxu0 %v4814
    %4818 = vmatprep.subr.bf16.mxu0 0
    %4819 = vmatpush1.bf16.msra.mxu0 0
    %4820 = vmatprep.subr.bf16.mxu0 0
    %4821 = vmatpush1.bf16.msra.mxu0 0
    %4822 = vmatprep.subr.bf16.mxu0 0
    %4823 = vmatpush1.bf16.msra.mxu0 0
    %4824 = vmatprep.subr.bf16.mxu0 0
    %4825 = vmatpush1.bf16.msra.mxu0 0
    %4826 = vmatprep.subr.bf16.mxu0 0
    %4827 = vmatpush1.bf16.msra.mxu0 0
    %4828 = vmatprep.subr.bf16.mxu0 0
    %4829 = vmatpush1.bf16.msra.mxu0 0
    %4830 = vmatprep.subr.bf16.mxu0 0
    %4831 = vmatpush1.bf16.msra.mxu0 0
    %4832 = vmatprep.subr.bf16.mxu0 0
    %4833 = vmatpush1.bf16.msra.mxu0 0
    %4834 = vmatprep.subr.bf16.mxu0 0
    %4835 = vmatpush1.bf16.msra.mxu0 0
    %4836 = vmatprep.subr.bf16.mxu0 0
    %4837 = vmatpush1.bf16.msra.mxu0 0
    %4838 = vmatprep.subr.bf16.mxu0 0
    %4839 = vmatpush1.bf16.msra.mxu0 0
    %4840 = vmatprep.subr.bf16.mxu0 0
    %4841 = vmatpush1.bf16.msra.mxu0 0
    %4842 = vmatprep.subr.bf16.mxu0 0
    %4843 = vmatpush1.bf16.msra.mxu0 0
    %4844 = vmatprep.subr.bf16.mxu0 0
    %4845 = vmatpush1.bf16.msra.mxu0 0
    %4846 = vmatprep.subr.bf16.mxu0 0
    %4847 = vmatpush1.bf16.msra.mxu0 0
    %4848 = vmatprep.mubr.bf16.mxu0 0
    %4849 = vmatmul.mubr.bf16.gmra.mrb[0].mxu0 %v4811
    %v4850 = vpop.f32.mrb[0].mxu0
    %v4851 = vadd.f32 0.0, %v4850
    %v4852 = vpop.f32.mrb[0].mxu0
    %v4853 = vpop.f32.mrb[0].mxu0
    %v4854 = vpop.f32.mrb[0].mxu0
    %4855 = vdwg.mxu0
    %4856 = vrot.lane.b32.xlu0 %v4247, 80
    %v4857 = vpop.permute.xlu0 %4856
    %v4859 = vsel %vm483, %v4807, 0
    %v4862 = vsel %vm608, %v4857, 0
    %4864 = vmatprep.subr.bf16.mxu0 0
    %4865 = vmatpush1.bf16.msra.mxu0 %v4862
    %4866 = vmatprep.subr.bf16.mxu0 0
    %4867 = vmatpush1.bf16.msra.mxu0 0
    %4868 = vmatprep.subr.bf16.mxu0 0
    %4869 = vmatpush1.bf16.msra.mxu0 0
    %4870 = vmatprep.subr.bf16.mxu0 0
    %4871 = vmatpush1.bf16.msra.mxu0 0
    %4872 = vmatprep.subr.bf16.mxu0 0
    %4873 = vmatpush1.bf16.msra.mxu0 0
    %4874 = vmatprep.subr.bf16.mxu0 0
    %4875 = vmatpush1.bf16.msra.mxu0 0
    %4876 = vmatprep.subr.bf16.mxu0 0
    %4877 = vmatpush1.bf16.msra.mxu0 0
    %4878 = vmatprep.subr.bf16.mxu0 0
    %4879 = vmatpush1.bf16.msra.mxu0 0
    %4880 = vmatprep.subr.bf16.mxu0 0
    %4881 = vmatpush1.bf16.msra.mxu0 0
    %4882 = vmatprep.subr.bf16.mxu0 0
    %4883 = vmatpush1.bf16.msra.mxu0 0
    %4884 = vmatprep.subr.bf16.mxu0 0
    %4885 = vmatpush1.bf16.msra.mxu0 0
    %4886 = vmatprep.subr.bf16.mxu0 0
    %4887 = vmatpush1.bf16.msra.mxu0 0
    %4888 = vmatprep.subr.bf16.mxu0 0
    %4889 = vmatpush1.bf16.msra.mxu0 0
    %4890 = vmatprep.subr.bf16.mxu0 0
    %4891 = vmatpush1.bf16.msra.mxu0 0
    %4892 = vmatprep.subr.bf16.mxu0 0
    %4893 = vmatpush1.bf16.msra.mxu0 0
    %4894 = vmatprep.subr.bf16.mxu0 0
    %4895 = vmatpush1.bf16.msra.mxu0 0
    %4896 = vmatprep.mubr.bf16.mxu0 0
    %4897 = vmatmul.mubr.bf16.gmra.mrb[0].mxu0 %v4859
    %v4898 = vpop.f32.mrb[0].mxu0
    %v4899 = vadd.f32 0.0, %v4898
    %v4900 = vpop.f32.mrb[0].mxu0
    %v4901 = vpop.f32.mrb[0].mxu0
    %v4902 = vpop.f32.mrb[0].mxu0
    %4903 = vdwg.mxu0
    %4904 = vrot.lane.b32.xlu0 %v4244, 104
    %v4905 = vpop.permute.xlu0 %4904
    %4906 = vrot.lane.b32.xlu0 %v4246, 104
    %v4907 = vpop.permute.xlu0 %4906
    %v4909 = vsel %vm483, %v4905, 0
    %v4912 = vsel %vm483, %v4907, 0
    %4914 = vmatprep.subr.bf16.mxu0 0
    %4915 = vmatpush1.bf16.xpose.msra.mxu0 %v4912
    %4916 = vmatprep.subr.bf16.mxu0 0
    %4917 = vmatpush1.bf16.xpose.msra.mxu0 0
    %4918 = vmatprep.subr.bf16.mxu0 0
    %4919 = vmatpush1.bf16.xpose.msra.mxu0 0
    %4920 = vmatprep.subr.bf16.mxu0 0
    %4921 = vmatpush1.bf16.xpose.msra.mxu0 0
    %4922 = vmatprep.subr.bf16.mxu0 0
    %4923 = vmatpush1.bf16.xpose.msra.mxu0 0
    %4924 = vmatprep.subr.bf16.mxu0 0
    %4925 = vmatpush1.bf16.xpose.msra.mxu0 0
    %4926 = vmatprep.subr.bf16.mxu0 0
    %4927 = vmatpush1.bf16.xpose.msra.mxu0 0
    %4928 = vmatprep.subr.bf16.mxu0 0
    %4929 = vmatpush1.bf16.xpose.msra.mxu0 0
    %4930 = vmatprep.subr.bf16.mxu0 0
    %4931 = vmatpush1.bf16.xpose.msra.mxu0 0
    %4932 = vmatprep.subr.bf16.mxu0 0
    %4933 = vmatpush1.bf16.xpose.msra.mxu0 0
    %4934 = vmatprep.subr.bf16.mxu0 0
    %4935 = vmatpush1.bf16.xpose.msra.mxu0 0
    %4936 = vmatprep.subr.bf16.mxu0 0
    %4937 = vmatpush1.bf16.xpose.msra.mxu0 0
    %4938 = vmatprep.subr.bf16.mxu0 0
    %4939 = vmatpush1.bf16.xpose.msra.mxu0 0
    %4940 = vmatprep.subr.bf16.mxu0 0
    %4941 = vmatpush1.bf16.xpose.msra.mxu0 0
    %4942 = vmatprep.subr.bf16.mxu0 0
    %4943 = vmatpush1.bf16.xpose.msra.mxu0 0
    %4944 = vmatprep.subr.bf16.mxu0 0
    %4945 = vmatpush1.bf16.xpose.msra.mxu0 0
    %4946 = vmatprep.mubr.bf16.mxu0 0
    %4947 = vmatmul.mubr.bf16.gmra.mrb[0].mxu0 %v4909
    %v4948 = vpop.f32.mrb[0].mxu0
    %v4949 = vadd.f32 0.0, %v4948
    %v4950 = vpop.f32.mrb[0].mxu0
    %v4951 = vpop.f32.mrb[0].mxu0
    %v4952 = vpop.f32.mrb[0].mxu0
    %4953 = vdwg.mxu0
    %4954 = vrot.lane.b32.xlu0 %v4245, 104
    %v4955 = vpop.permute.xlu0 %4954
    %4956 = vrot.lane.b32.xlu0 %v4247, 104
    %v4957 = vpop.permute.xlu0 %4956
    %v4959 = vsel %vm483, %v4955, 0
    %v4962 = vsel %vm483, %v4957, 0
    %4964 = vmatprep.subr.bf16.mxu0 0
    %4965 = vmatpush1.bf16.xpose.msra.mxu0 %v4962
    %4966 = vmatprep.subr.bf16.mxu0 0
    %4967 = vmatpush1.bf16.xpose.msra.mxu0 0
    %4968 = vmatprep.subr.bf16.mxu0 0
    %4969 = vmatpush1.bf16.xpose.msra.mxu0 0
    %4970 = vmatprep.subr.bf16.mxu0 0
    %4971 = vmatpush1.bf16.xpose.msra.mxu0 0
    %4972 = vmatprep.subr.bf16.mxu0 0
    %4973 = vmatpush1.bf16.xpose.msra.mxu0 0
    %4974 = vmatprep.subr.bf16.mxu0 0
    %4975 = vmatpush1.bf16.xpose.msra.mxu0 0
    %4976 = vmatprep.subr.bf16.mxu0 0
    %4977 = vmatpush1.bf16.xpose.msra.mxu0 0
    %4978 = vmatprep.subr.bf16.mxu0 0
    %4979 = vmatpush1.bf16.xpose.msra.mxu0 0
    %4980 = vmatprep.subr.bf16.mxu0 0
    %4981 = vmatpush1.bf16.xpose.msra.mxu0 0
    %4982 = vmatprep.subr.bf16.mxu0 0
    %4983 = vmatpush1.bf16.xpose.msra.mxu0 0
    %4984 = vmatprep.subr.bf16.mxu0 0
    %4985 = vmatpush1.bf16.xpose.msra.mxu0 0
    %4986 = vmatprep.subr.bf16.mxu0 0
    %4987 = vmatpush1.bf16.xpose.msra.mxu0 0
    %4988 = vmatprep.subr.bf16.mxu0 0
    %4989 = vmatpush1.bf16.xpose.msra.mxu0 0
    %4990 = vmatprep.subr.bf16.mxu0 0
    %4991 = vmatpush1.bf16.xpose.msra.mxu0 0
    %4992 = vmatprep.subr.bf16.mxu0 0
    %4993 = vmatpush1.bf16.xpose.msra.mxu0 0
    %4994 = vmatprep.subr.bf16.mxu0 0
    %4995 = vmatpush1.bf16.xpose.msra.mxu0 0
    %4996 = vmatprep.mubr.bf16.mxu0 0
    %4997 = vmatmul.mubr.bf16.gmra.mrb[0].mxu0 %v4959
    %v4998 = vpop.f32.mrb[0].mxu0
    %v4999 = vadd.f32 0.0, %v4998
    %v5000 = vpop.f32.mrb[0].mxu0
    %v5001 = vpop.f32.mrb[0].mxu0
    %v5002 = vpop.f32.mrb[0].mxu0
    %5003 = vdwg.mxu0
    %v5004 = vsel %vm483, %v4949, -inf
    %5005 = vmax.xlane.f32.xlu0 %v5004
    %v5006 = vpop.xlane.xlu0 %5005
    %v5007 = vsel %vm483, %v4999, -inf
    %5008 = vmax.xlane.f32.xlu0 %v5007
    %v5009 = vpop.xlane.xlu0 %5008
    %v5010 = vsub.f32 %v4949, %v5006
    %v5011 = vsub.f32 %v4999, %v5009
    %v5012 = vmul.f32 %v5010, 1.442695
    %v5013 = vpow.pop %v5012
    %v5014 = vmul.f32 %v5011, 1.442695
    %v5015 = vpow.pop %v5014
    %v5016 = vsel %vm483, %v5013, 0.0
    %5017 = vadd.xlane.f32.xlu0 %v5016
    %v5018 = vpop.xlane.xlu0 %5017
    %v5019 = vsel %vm483, %v5015, 0.0
    %5020 = vadd.xlane.f32.xlu0 %v5019
    %v5021 = vpop.xlane.xlu0 %5020
    %v5022 = vrcp.pop %v5018
    %v5023 = vrcp.pop %v5021
    %v5024 = vmul.f32 %v5013, %v5022
    %v5025 = vmul.f32 %v5015, %v5023
    %v5026 = vpack.c.bf16 %v5024, %v5024
    %v5027 = vpack.c.bf16 %v5025, %v5025
    %5028 = vrot.lane.b32.xlu0 %v4246, 72
    %v5029 = vpop.permute.xlu0 %5028
    %v5031 = vsel %vm483, %v5026, 0
    %v5034 = vsel %vm608, %v5029, 0
    %5036 = vmatprep.subr.bf16.mxu0 0
    %5037 = vmatpush1.bf16.msra.mxu0 %v5034
    %5038 = vmatprep.subr.bf16.mxu0 0
    %5039 = vmatpush1.bf16.msra.mxu0 0
    %5040 = vmatprep.subr.bf16.mxu0 0
    %5041 = vmatpush1.bf16.msra.mxu0 0
    %5042 = vmatprep.subr.bf16.mxu0 0
    %5043 = vmatpush1.bf16.msra.mxu0 0
    %5044 = vmatprep.subr.bf16.mxu0 0
    %5045 = vmatpush1.bf16.msra.mxu0 0
    %5046 = vmatprep.subr.bf16.mxu0 0
    %5047 = vmatpush1.bf16.msra.mxu0 0
    %5048 = vmatprep.subr.bf16.mxu0 0
    %5049 = vmatpush1.bf16.msra.mxu0 0
    %5050 = vmatprep.subr.bf16.mxu0 0
    %5051 = vmatpush1.bf16.msra.mxu0 0
    %5052 = vmatprep.subr.bf16.mxu0 0
    %5053 = vmatpush1.bf16.msra.mxu0 0
    %5054 = vmatprep.subr.bf16.mxu0 0
    %5055 = vmatpush1.bf16.msra.mxu0 0
    %5056 = vmatprep.subr.bf16.mxu0 0
    %5057 = vmatpush1.bf16.msra.mxu0 0
    %5058 = vmatprep.subr.bf16.mxu0 0
    %5059 = vmatpush1.bf16.msra.mxu0 0
    %5060 = vmatprep.subr.bf16.mxu0 0
    %5061 = vmatpush1.bf16.msra.mxu0 0
    %5062 = vmatprep.subr.bf16.mxu0 0
    %5063 = vmatpush1.bf16.msra.mxu0 0
    %5064 = vmatprep.subr.bf16.mxu0 0
    %5065 = vmatpush1.bf16.msra.mxu0 0
    %5066 = vmatprep.subr.bf16.mxu0 0
    %5067 = vmatpush1.bf16.msra.mxu0 0
    %5068 = vmatprep.mubr.bf16.mxu0 0
    %5069 = vmatmul.mubr.bf16.gmra.mrb[0].mxu0 %v5031
    %v5070 = vpop.f32.mrb[0].mxu0
    %v5071 = vadd.f32 0.0, %v5070
    %v5072 = vpop.f32.mrb[0].mxu0
    %v5073 = vpop.f32.mrb[0].mxu0
    %v5074 = vpop.f32.mrb[0].mxu0
    %5075 = vdwg.mxu0
    %5076 = vrot.lane.b32.xlu0 %v4247, 72
    %v5077 = vpop.permute.xlu0 %5076
    %v5079 = vsel %vm483, %v5027, 0
    %v5082 = vsel %vm608, %v5077, 0
    %5084 = vmatprep.subr.bf16.mxu0 0
    %5085 = vmatpush1.bf16.msra.mxu0 %v5082
    %5086 = vmatprep.subr.bf16.mxu0 0
    %5087 = vmatpush1.bf16.msra.mxu0 0
    %5088 = vmatprep.subr.bf16.mxu0 0
    %5089 = vmatpush1.bf16.msra.mxu0 0
    %5090 = vmatprep.subr.bf16.mxu0 0
    %5091 = vmatpush1.bf16.msra.mxu0 0
    %5092 = vmatprep.subr.bf16.mxu0 0
    %5093 = vmatpush1.bf16.msra.mxu0 0
    %5094 = vmatprep.subr.bf16.mxu0 0
    %5095 = vmatpush1.bf16.msra.mxu0 0
    %5096 = vmatprep.subr.bf16.mxu0 0
    %5097 = vmatpush1.bf16.msra.mxu0 0
    %5098 = vmatprep.subr.bf16.mxu0 0
    %5099 = vmatpush1.bf16.msra.mxu0 0
    %5100 = vmatprep.subr.bf16.mxu0 0
    %5101 = vmatpush1.bf16.msra.mxu0 0
    %5102 = vmatprep.subr.bf16.mxu0 0
    %5103 = vmatpush1.bf16.msra.mxu0 0
    %5104 = vmatprep.subr.bf16.mxu0 0
    %5105 = vmatpush1.bf16.msra.mxu0 0
    %5106 = vmatprep.subr.bf16.mxu0 0
    %5107 = vmatpush1.bf16.msra.mxu0 0
    %5108 = vmatprep.subr.bf16.mxu0 0
    %5109 = vmatpush1.bf16.msra.mxu0 0
    %5110 = vmatprep.subr.bf16.mxu0 0
    %5111 = vmatpush1.bf16.msra.mxu0 0
    %5112 = vmatprep.subr.bf16.mxu0 0
    %5113 = vmatpush1.bf16.msra.mxu0 0
    %5114 = vmatprep.subr.bf16.mxu0 0
    %5115 = vmatpush1.bf16.msra.mxu0 0
    %5116 = vmatprep.mubr.bf16.mxu0 0
    %5117 = vmatmul.mubr.bf16.gmra.mrb[0].mxu0 %v5079
    %v5118 = vpop.f32.mrb[0].mxu0
    %v5119 = vadd.f32 0.0, %v5118
    %v5120 = vpop.f32.mrb[0].mxu0
    %v5121 = vpop.f32.mrb[0].mxu0
    %v5122 = vpop.f32.mrb[0].mxu0
    %5123 = vdwg.mxu0
    %5126 = vrot.lane.b32.xlu0 %v4631, 8
    %v5127 = vpop.permute.xlu0 %5126
    %5128 = vrot.lane.b32.xlu0 %v4679, 8
    %v5129 = vpop.permute.xlu0 %5128
    %5134 = vrot.lane.b32.xlu0 %v4851, 16
    %v5135 = vpop.permute.xlu0 %5134
    %5136 = vrot.lane.b32.xlu0 %v4899, 16
    %v5137 = vpop.permute.xlu0 %5136
    %5142 = vrot.lane.b32.xlu0 %v5071, 24
    %v5143 = vpop.permute.xlu0 %5142
    %5144 = vrot.lane.b32.xlu0 %v5119, 24
    %v5145 = vpop.permute.xlu0 %5144
    %v5148 = vsel %vm483, %v4408, %v5127
    %v5149 = vsel %vm483, %v4457, %v5129
    %v5150 = vsel %vm1386, %v5148, %v5135
    %v5151 = vsel %vm1386, %v5149, %v5137
    %v5152 = vsel %vm1389, %v5150, %v5143
    %v5153 = vsel %vm1389, %v5151, %v5145
    %v5154 = vpack.c.bf16 %v5153, %v5152
    %v5156 = vlaneseq
    %v5157 = vshrl.u32 %v5156, 7
    %v5158 = vsub.s32 0, %v5157
    %v5159 = vrot.slane %v4117, %v5158
    %v5165 = vunpack.c.l.b16 %v4113
    %v5166 = vunpack.c.l.b16 %v4114
    %v5167 = vunpack.c.l.b16 %v4115
    %v5168 = vunpack.c.l.b16 %v4116
    %v5169 = vpack.c.b16 %v5166, %v5165
    %v5170 = vpack.c.b16 %v5168, %v5167
    %v5174 = vsel %vm433, %v5154, 0
    %5176 = vmatprep.subr.bf16.mxu0 0
    %5177 = vmatpush1.bf16.msra.mxu0 %v5169
    %5178 = vmatprep.subr.bf16.mxu0 0
    %5179 = vmatpush1.bf16.msra.mxu0 %v5170
    %5180 = vmatprep.subr.bf16.mxu0 0
    %5181 = vmatpush1.bf16.msra.mxu0 0
    %5182 = vmatprep.subr.bf16.mxu0 0
    %5183 = vmatpush1.bf16.msra.mxu0 0
    %5184 = vmatprep.subr.bf16.mxu0 0
    %5185 = vmatpush1.bf16.msra.mxu0 0
    %5186 = vmatprep.subr.bf16.mxu0 0
    %5187 = vmatpush1.bf16.msra.mxu0 0
    %5188 = vmatprep.subr.bf16.mxu0 0
    %5189 = vmatpush1.bf16.msra.mxu0 0
    %5190 = vmatprep.subr.bf16.mxu0 0
    %5191 = vmatpush1.bf16.msra.mxu0 0
    %5192 = vmatprep.subr.bf16.mxu0 0
    %5193 = vmatpush1.bf16.msra.mxu0 0
    %5194 = vmatprep.subr.bf16.mxu0 0
    %5195 = vmatpush1.bf16.msra.mxu0 0
    %5196 = vmatprep.subr.bf16.mxu0 0
    %5197 = vmatpush1.bf16.msra.mxu0 0
    %5198 = vmatprep.subr.bf16.mxu0 0
    %5199 = vmatpush1.bf16.msra.mxu0 0
    %5200 = vmatprep.subr.bf16.mxu0 0
    %5201 = vmatpush1.bf16.msra.mxu0 0
    %5202 = vmatprep.subr.bf16.mxu0 0
    %5203 = vmatpush1.bf16.msra.mxu0 0
    %5204 = vmatprep.subr.bf16.mxu0 0
    %5205 = vmatpush1.bf16.msra.mxu0 0
    %5206 = vmatprep.subr.bf16.mxu0 0
    %5207 = vmatpush1.bf16.msra.mxu0 0
    %5208 = vmatprep.mubr.bf16.mxu0 0
    %5209 = vmatmul.mubr.bf16.gmra.mrb[0].mxu0 %v5174
    %v5210 = vpop.f32.mrb[0].mxu0
    %v5211 = vadd.f32 %v5159, %v5210
    %v5212 = vpop.f32.mrb[0].mxu0
    %v5213 = vpop.f32.mrb[0].mxu0
    %v5214 = vadd.f32 %v5159, %v5213
    %v5215 = vpop.f32.mrb[0].mxu0
    %5216 = vdwg.mxu0
    %v5217 = vadd.f32 %v4101, %v5211
    %v5218 = vadd.f32 %v4102, %v5214
    %v5219 = vld [vmem:[%s63] sm:$0x1]
    %v5220 = vld [vmem:[%s65] sm:$0x1]
    %v5221 = vsel %vm433, %v5217, 0.0
    %5222 = vadd.xlane.f32.xlu0 %v5221
    %v5223 = vpop.xlane.xlu0 %5222
    %v5224 = vsel %vm433, %v5218, 0.0
    %5225 = vadd.xlane.f32.xlu0 %v5224
    %v5226 = vpop.xlane.xlu0 %5225
    %v5227 = vmul.f32 %v5223, %v1465
    %v5228 = vmul.f32 %v5226, %v1465
    %v5229 = vsub.f32 %v5217, %v5227
    %v5230 = vsub.f32 %v5218, %v5228
    %v5231 = vmul.f32 %v5229, %v5229
    %v5232 = vmul.f32 %v5230, %v5230
    %v5233 = vsel %vm433, %v5231, 0.0
    %5234 = vadd.xlane.f32.xlu0 %v5233
    %v5235 = vpop.xlane.xlu0 %5234
    %v5236 = vsel %vm433, %v5232, 0.0
    %5237 = vadd.xlane.f32.xlu0 %v5236
    %v5238 = vpop.xlane.xlu0 %5237
    %v5239 = vmul.f32 %v5235, %v1465
    %v5240 = vmul.f32 %v5238, %v1465
    %v5241 = vadd.f32 %v5239, 1e-05
    %v5242 = vadd.f32 %v5240, 1e-05
    %v5243 = vrsqrt.pop %v5241
    %v5244 = vrsqrt.pop %v5242
    %v5245 = vmul.f32 %v5229, %v5243
    %v5246 = vmul.f32 %v5230, %v5244
    %v5248 = vlaneseq
    %v5249 = vshrl.u32 %v5248, 7
    %v5250 = vsub.s32 0, %v5249
    %v5251 = vrot.slane %v5219, %v5250
    %v5253 = vmul.f32 %v5245, %v5251
    %v5254 = vmul.f32 %v5246, %v5251
    %v5256 = vlaneseq
    %v5257 = vshrl.u32 %v5256, 7
    %v5258 = vsub.s32 0, %v5257
    %v5259 = vrot.slane %v5220, %v5258
    %v5261 = vadd.f32 %v5253, %v5259
    %v5262 = vadd.f32 %v5254, %v5259
    %v5263 = vld [vmem:[#allocation28] sm:$0xf]
    %v5264 = vld [vmem:[#allocation28 + $0x4] sm:$0xf]
    %v5265 = vld [vmem:[#allocation28 + $0x8] sm:$0xf]
    %v5266 = vld [vmem:[#allocation28 + $0xc] sm:$0xf]
    %v5267 = vld [vmem:[%s53] sm:$0x1]
    %v5268 = vld [vmem:[%s55] sm:$0xf]
    %v5269 = vld [vmem:[%s55 + $0x4] sm:$0xf]
    %v5270 = vld [vmem:[%s55 + $0x8] sm:$0xf]
    %v5271 = vld [vmem:[%s55 + $0xc] sm:$0xf]
    %v5272 = vld [vmem:[%s55 + $0x10] sm:$0xf]
    %v5273 = vld [vmem:[%s55 + $0x14] sm:$0xf]
    %v5274 = vld [vmem:[%s55 + $0x18] sm:$0xf]
    %v5275 = vld [vmem:[%s55 + $0x1c] sm:$0xf]
    %v5276 = vld [vmem:[%s57] sm:$0x1]
    %v5277 = vpack.c.bf16 %v5262, %v5261
    %v5279 = vlaneseq
    %v5280 = vshrl.u32 %v5279, 7
    %v5281 = vsub.s32 0, %v5280
    %v5282 = vrot.slane %v5267, %v5281
    %v5288 = vunpack.c.l.b16 %v5263
    %v5289 = vunpack.c.l.b16 %v5264
    %v5290 = vunpack.c.l.b16 %v5265
    %v5291 = vunpack.c.l.b16 %v5266
    %v5292 = vpack.c.b16 %v5289, %v5288
    %v5293 = vpack.c.b16 %v5291, %v5290
    %v5297 = vsel %vm433, %v5277, 0
    %5299 = vmatprep.subr.bf16.mxu0 0
    %5300 = vmatpush1.bf16.msra.mxu0 %v5292
    %5301 = vmatprep.subr.bf16.mxu0 0
    %5302 = vmatpush1.bf16.msra.mxu0 %v5293
    %5303 = vmatprep.subr.bf16.mxu0 0
    %5304 = vmatpush1.bf16.msra.mxu0 0
    %5305 = vmatprep.subr.bf16.mxu0 0
    %5306 = vmatpush1.bf16.msra.mxu0 0
    %5307 = vmatprep.subr.bf16.mxu0 0
    %5308 = vmatpush1.bf16.msra.mxu0 0
    %5309 = vmatprep.subr.bf16.mxu0 0
    %5310 = vmatpush1.bf16.msra.mxu0 0
    %5311 = vmatprep.subr.bf16.mxu0 0
    %5312 = vmatpush1.bf16.msra.mxu0 0
    %5313 = vmatprep.subr.bf16.mxu0 0
    %5314 = vmatpush1.bf16.msra.mxu0 0
    %5315 = vmatprep.subr.bf16.mxu0 0
    %5316 = vmatpush1.bf16.msra.mxu0 0
    %5317 = vmatprep.subr.bf16.mxu0 0
    %5318 = vmatpush1.bf16.msra.mxu0 0
    %5319 = vmatprep.subr.bf16.mxu0 0
    %5320 = vmatpush1.bf16.msra.mxu0 0
    %5321 = vmatprep.subr.bf16.mxu0 0
    %5322 = vmatpush1.bf16.msra.mxu0 0
    %5323 = vmatprep.subr.bf16.mxu0 0
    %5324 = vmatpush1.bf16.msra.mxu0 0
    %5325 = vmatprep.subr.bf16.mxu0 0
    %5326 = vmatpush1.bf16.msra.mxu0 0
    %5327 = vmatprep.subr.bf16.mxu0 0
    %5328 = vmatpush1.bf16.msra.mxu0 0
    %5329 = vmatprep.subr.bf16.mxu0 0
    %5330 = vmatpush1.bf16.msra.mxu0 0
    %5331 = vmatprep.mubr.bf16.mxu0 0
    %5332 = vmatmul.mubr.bf16.gmra.mrb[0].mxu0 %v5297
    %v5333 = vpop.f32.mrb[0].mxu0
    %v5334 = vadd.f32 %v5282, %v5333
    %v5335 = vpop.f32.mrb[0].mxu0
    %v5336 = vpop.f32.mrb[0].mxu0
    %v5337 = vadd.f32 %v5282, %v5336
    %v5338 = vpop.f32.mrb[0].mxu0
    %5339 = vdwg.mxu0
    %v5340 = vmax.f32 %v5334, 0.0
    %v5341 = vmax.f32 %v5337, 0.0
    %v5342 = vpack.c.bf16 %v5341, %v5340
    %v5344 = vlaneseq
    %v5345 = vshrl.u32 %v5344, 7
    %v5346 = vsub.s32 0, %v5345
    %v5347 = vrot.slane %v5276, %v5346
    %v5357 = vunpack.c.l.b16 %v5268
    %v5358 = vunpack.c.l.b16 %v5269
    %v5359 = vunpack.c.l.b16 %v5270
    %v5360 = vunpack.c.l.b16 %v5271
    %v5361 = vunpack.c.l.b16 %v5272
    %v5362 = vunpack.c.l.b16 %v5273
    %v5363 = vunpack.c.l.b16 %v5274
    %v5364 = vunpack.c.l.b16 %v5275
    %v5365 = vpack.c.b16 %v5358, %v5357
    %v5366 = vpack.c.b16 %v5360, %v5359
    %v5367 = vpack.c.b16 %v5362, %v5361
    %v5368 = vpack.c.b16 %v5364, %v5363
    %v5374 = vsel %vm1612, %v5342, 0
    %5376 = vmatprep.subr.bf16.mxu0 0
    %5377 = vmatpush1.bf16.msra.mxu0 %v5365
    %5378 = vmatprep.subr.bf16.mxu0 0
    %5379 = vmatpush1.bf16.msra.mxu0 %v5366
    %5380 = vmatprep.subr.bf16.mxu0 0
    %5381 = vmatpush1.bf16.msra.mxu0 %v5367
    %5382 = vmatprep.subr.bf16.mxu0 0
    %5383 = vmatpush1.bf16.msra.mxu0 %v5368
    %5384 = vmatprep.subr.bf16.mxu0 0
    %5385 = vmatpush1.bf16.msra.mxu0 0
    %5386 = vmatprep.subr.bf16.mxu0 0
    %5387 = vmatpush1.bf16.msra.mxu0 0
    %5388 = vmatprep.subr.bf16.mxu0 0
    %5389 = vmatpush1.bf16.msra.mxu0 0
    %5390 = vmatprep.subr.bf16.mxu0 0
    %5391 = vmatpush1.bf16.msra.mxu0 0
    %5392 = vmatprep.subr.bf16.mxu0 0
    %5393 = vmatpush1.bf16.msra.mxu0 0
    %5394 = vmatprep.subr.bf16.mxu0 0
    %5395 = vmatpush1.bf16.msra.mxu0 0
    %5396 = vmatprep.subr.bf16.mxu0 0
    %5397 = vmatpush1.bf16.msra.mxu0 0
    %5398 = vmatprep.subr.bf16.mxu0 0
    %5399 = vmatpush1.bf16.msra.mxu0 0
    %5400 = vmatprep.subr.bf16.mxu0 0
    %5401 = vmatpush1.bf16.msra.mxu0 0
    %5402 = vmatprep.subr.bf16.mxu0 0
    %5403 = vmatpush1.bf16.msra.mxu0 0
    %5404 = vmatprep.subr.bf16.mxu0 0
    %5405 = vmatpush1.bf16.msra.mxu0 0
    %5406 = vmatprep.subr.bf16.mxu0 0
    %5407 = vmatpush1.bf16.msra.mxu0 0
    %5408 = vmatprep.mubr.bf16.mxu0 0
    %5409 = vmatmul.mubr.bf16.gmra.mrb[0].mxu0 %v5374
    %v5410 = vpop.f32.mrb[0].mxu0
    %v5411 = vadd.f32 %v5347, %v5410
    %v5412 = vpop.f32.mrb[0].mxu0
    %v5413 = vpop.f32.mrb[0].mxu0
    %v5414 = vadd.f32 %v5347, %v5413
    %v5415 = vpop.f32.mrb[0].mxu0
    %5416 = vdwg.mxu0
    %v5417 = vadd.f32 %v5261, %v5411
    %v5418 = vadd.f32 %v5262, %v5414
    %v5419 = vld [vmem:[%s67] sm:$0x1]
    %v5420 = vld [vmem:[%s69] sm:$0x1]
    %v5421 = vsel %vm433, %v5417, 0.0
    %5422 = vadd.xlane.f32.xlu0 %v5421
    %v5423 = vpop.xlane.xlu0 %5422
    %v5424 = vsel %vm433, %v5418, 0.0
    %5425 = vadd.xlane.f32.xlu0 %v5424
    %v5426 = vpop.xlane.xlu0 %5425
    %v5427 = vmul.f32 %v5423, %v1465
    %v5428 = vmul.f32 %v5426, %v1465
    %v5429 = vsub.f32 %v5417, %v5427
    %v5430 = vsub.f32 %v5418, %v5428
    %v5431 = vmul.f32 %v5429, %v5429
    %v5432 = vmul.f32 %v5430, %v5430
    %v5433 = vsel %vm433, %v5431, 0.0
    %5434 = vadd.xlane.f32.xlu0 %v5433
    %v5435 = vpop.xlane.xlu0 %5434
    %v5436 = vsel %vm433, %v5432, 0.0
    %5437 = vadd.xlane.f32.xlu0 %v5436
    %v5438 = vpop.xlane.xlu0 %5437
    %v5439 = vmul.f32 %v5435, %v1465
    %v5440 = vmul.f32 %v5438, %v1465
    %v5441 = vadd.f32 %v5439, 1e-05
    %v5442 = vadd.f32 %v5440, 1e-05
    %v5443 = vrsqrt.pop %v5441
    %v5444 = vrsqrt.pop %v5442
    %v5445 = vmul.f32 %v5429, %v5443
    %v5446 = vmul.f32 %v5430, %v5444
    %v5448 = vlaneseq
    %v5449 = vshrl.u32 %v5448, 7
    %v5450 = vsub.s32 0, %v5449
    %v5451 = vrot.slane %v5419, %v5450
    %v5453 = vmul.f32 %v5445, %v5451
    %v5454 = vmul.f32 %v5446, %v5451
    %v5456 = vlaneseq
    %v5457 = vshrl.u32 %v5456, 7
    %v5458 = vsub.s32 0, %v5457
    %v5459 = vrot.slane %v5420, %v5458
    %v5461 = vadd.f32 %v5453, %v5459
    %v5462 = vadd.f32 %v5454, %v5459
    %s5463 = scalar_lea.vmem %s31, 16
    %v5464 = vld [vmem:[%s5463] sm:$0xf]
    %v5465 = vld [vmem:[%s5463 + $0x4] sm:$0xf]
    %v5466 = vld [vmem:[%s5463 + $0x8] sm:$0xf]
    %v5467 = vld [vmem:[%s5463 + $0xc] sm:$0xf]
    %s5468 = scalar_lea.vmem [#allocation20], 1
    %v5469 = vld [vmem:[%s5468] sm:$0x1]
    %s5470 = scalar_lea.vmem %s35, 16
    %v5471 = vld [vmem:[%s5470] sm:$0xf]
    %v5472 = vld [vmem:[%s5470 + $0x4] sm:$0xf]
    %v5473 = vld [vmem:[%s5470 + $0x8] sm:$0xf]
    %v5474 = vld [vmem:[%s5470 + $0xc] sm:$0xf]
    %s5475 = scalar_lea.vmem %s37, 1
    %v5476 = vld [vmem:[%s5475] sm:$0x1]
    %v5477 = vpack.c.bf16 %v5462, %v5461
    %v5479 = vlaneseq
    %v5480 = vshrl.u32 %v5479, 7
    %v5481 = vsub.s32 0, %v5480
    %v5482 = vrot.slane %v5469, %v5481
    %v5488 = vunpack.c.l.b16 %v5464
    %v5489 = vunpack.c.l.b16 %v5465
    %v5490 = vunpack.c.l.b16 %v5466
    %v5491 = vunpack.c.l.b16 %v5467
    %v5492 = vpack.c.b16 %v5489, %v5488
    %v5493 = vpack.c.b16 %v5491, %v5490
    %v5497 = vsel %vm433, %v5477, 0
    %5499 = vmatprep.subr.bf16.mxu0 0
    %5500 = vmatpush1.bf16.msra.mxu0 %v5492
    %5501 = vmatprep.subr.bf16.mxu0 0
    %5502 = vmatpush1.bf16.msra.mxu0 %v5493
    %5503 = vmatprep.subr.bf16.mxu0 0
    %5504 = vmatpush1.bf16.msra.mxu0 0
    %5505 = vmatprep.subr.bf16.mxu0 0
    %5506 = vmatpush1.bf16.msra.mxu0 0
    %5507 = vmatprep.subr.bf16.mxu0 0
    %5508 = vmatpush1.bf16.msra.mxu0 0
    %5509 = vmatprep.subr.bf16.mxu0 0
    %5510 = vmatpush1.bf16.msra.mxu0 0
    %5511 = vmatprep.subr.bf16.mxu0 0
    %5512 = vmatpush1.bf16.msra.mxu0 0
    %5513 = vmatprep.subr.bf16.mxu0 0
    %5514 = vmatpush1.bf16.msra.mxu0 0
    %5515 = vmatprep.subr.bf16.mxu0 0
    %5516 = vmatpush1.bf16.msra.mxu0 0
    %5517 = vmatprep.subr.bf16.mxu0 0
    %5518 = vmatpush1.bf16.msra.mxu0 0
    %5519 = vmatprep.subr.bf16.mxu0 0
    %5520 = vmatpush1.bf16.msra.mxu0 0
    %5521 = vmatprep.subr.bf16.mxu0 0
    %5522 = vmatpush1.bf16.msra.mxu0 0
    %5523 = vmatprep.subr.bf16.mxu0 0
    %5524 = vmatpush1.bf16.msra.mxu0 0
    %5525 = vmatprep.subr.bf16.mxu0 0
    %5526 = vmatpush1.bf16.msra.mxu0 0
    %5527 = vmatprep.subr.bf16.mxu0 0
    %5528 = vmatpush1.bf16.msra.mxu0 0
    %5529 = vmatprep.subr.bf16.mxu0 0
    %5530 = vmatpush1.bf16.msra.mxu0 0
    %5531 = vmatprep.mubr.bf16.mxu0 0
    %5532 = vmatmul.mubr.bf16.gmra.mrb[0].mxu0 %v5497
    %v5533 = vpop.f32.mrb[0].mxu0
    %v5534 = vadd.f32 %v5482, %v5533
    %v5535 = vpop.f32.mrb[0].mxu0
    %v5536 = vpop.f32.mrb[0].mxu0
    %v5537 = vadd.f32 %v5482, %v5536
    %v5538 = vpop.f32.mrb[0].mxu0
    %5539 = vdwg.mxu0
    %v5540 = vpack.c.bf16 %v5534, %v5534
    %v5541 = vpack.c.bf16 %v5537, %v5537
    %5543 = vrot.lane.b32.xlu0 %v5540, 96
    %v5544 = vpop.permute.xlu0 %5543
    %v5546 = vsel %vm483, %v5540, 0
    %v5549 = vsel %vm483, %v5544, 0
    %5551 = vmatprep.subr.bf16.mxu0 0
    %5552 = vmatpush1.bf16.xpose.msra.mxu0 %v5549
    %5553 = vmatprep.subr.bf16.mxu0 0
    %5554 = vmatpush1.bf16.xpose.msra.mxu0 0
    %5555 = vmatprep.subr.bf16.mxu0 0
    %5556 = vmatpush1.bf16.xpose.msra.mxu0 0
    %5557 = vmatprep.subr.bf16.mxu0 0
    %5558 = vmatpush1.bf16.xpose.msra.mxu0 0
    %5559 = vmatprep.subr.bf16.mxu0 0
    %5560 = vmatpush1.bf16.xpose.msra.mxu0 0
    %5561 = vmatprep.subr.bf16.mxu0 0
    %5562 = vmatpush1.bf16.xpose.msra.mxu0 0
    %5563 = vmatprep.subr.bf16.mxu0 0
    %5564 = vmatpush1.bf16.xpose.msra.mxu0 0
    %5565 = vmatprep.subr.bf16.mxu0 0
    %5566 = vmatpush1.bf16.xpose.msra.mxu0 0
    %5567 = vmatprep.subr.bf16.mxu0 0
    %5568 = vmatpush1.bf16.xpose.msra.mxu0 0
    %5569 = vmatprep.subr.bf16.mxu0 0
    %5570 = vmatpush1.bf16.xpose.msra.mxu0 0
    %5571 = vmatprep.subr.bf16.mxu0 0
    %5572 = vmatpush1.bf16.xpose.msra.mxu0 0
    %5573 = vmatprep.subr.bf16.mxu0 0
    %5574 = vmatpush1.bf16.xpose.msra.mxu0 0
    %5575 = vmatprep.subr.bf16.mxu0 0
    %5576 = vmatpush1.bf16.xpose.msra.mxu0 0
    %5577 = vmatprep.subr.bf16.mxu0 0
    %5578 = vmatpush1.bf16.xpose.msra.mxu0 0
    %5579 = vmatprep.subr.bf16.mxu0 0
    %5580 = vmatpush1.bf16.xpose.msra.mxu0 0
    %5581 = vmatprep.subr.bf16.mxu0 0
    %5582 = vmatpush1.bf16.xpose.msra.mxu0 0
    %5583 = vmatprep.mubr.bf16.mxu0 0
    %5584 = vmatmul.mubr.bf16.gmra.mrb[0].mxu0 %v5546
    %v5585 = vpop.f32.mrb[0].mxu0
    %v5586 = vadd.f32 0.0, %v5585
    %v5587 = vpop.f32.mrb[0].mxu0
    %v5588 = vpop.f32.mrb[0].mxu0
    %v5589 = vpop.f32.mrb[0].mxu0
    %5590 = vdwg.mxu0
    %5592 = vrot.lane.b32.xlu0 %v5541, 96
    %v5593 = vpop.permute.xlu0 %5592
    %v5595 = vsel %vm483, %v5541, 0
    %v5598 = vsel %vm483, %v5593, 0
    %5600 = vmatprep.subr.bf16.mxu0 0
    %5601 = vmatpush1.bf16.xpose.msra.mxu0 %v5598
    %5602 = vmatprep.subr.bf16.mxu0 0
    %5603 = vmatpush1.bf16.xpose.msra.mxu0 0
    %5604 = vmatprep.subr.bf16.mxu0 0
    %5605 = vmatpush1.bf16.xpose.msra.mxu0 0
    %5606 = vmatprep.subr.bf16.mxu0 0
    %5607 = vmatpush1.bf16.xpose.msra.mxu0 0
    %5608 = vmatprep.subr.bf16.mxu0 0
    %5609 = vmatpush1.bf16.xpose.msra.mxu0 0
    %5610 = vmatprep.subr.bf16.mxu0 0
    %5611 = vmatpush1.bf16.xpose.msra.mxu0 0
    %5612 = vmatprep.subr.bf16.mxu0 0
    %5613 = vmatpush1.bf16.xpose.msra.mxu0 0
    %5614 = vmatprep.subr.bf16.mxu0 0
    %5615 = vmatpush1.bf16.xpose.msra.mxu0 0
    %5616 = vmatprep.subr.bf16.mxu0 0
    %5617 = vmatpush1.bf16.xpose.msra.mxu0 0
    %5618 = vmatprep.subr.bf16.mxu0 0
    %5619 = vmatpush1.bf16.xpose.msra.mxu0 0
    %5620 = vmatprep.subr.bf16.mxu0 0
    %5621 = vmatpush1.bf16.xpose.msra.mxu0 0
    %5622 = vmatprep.subr.bf16.mxu0 0
    %5623 = vmatpush1.bf16.xpose.msra.mxu0 0
    %5624 = vmatprep.subr.bf16.mxu0 0
    %5625 = vmatpush1.bf16.xpose.msra.mxu0 0
    %5626 = vmatprep.subr.bf16.mxu0 0
    %5627 = vmatpush1.bf16.xpose.msra.mxu0 0
    %5628 = vmatprep.subr.bf16.mxu0 0
    %5629 = vmatpush1.bf16.xpose.msra.mxu0 0
    %5630 = vmatprep.subr.bf16.mxu0 0
    %5631 = vmatpush1.bf16.xpose.msra.mxu0 0
    %5632 = vmatprep.mubr.bf16.mxu0 0
    %5633 = vmatmul.mubr.bf16.gmra.mrb[0].mxu0 %v5595
    %v5634 = vpop.f32.mrb[0].mxu0
    %v5635 = vadd.f32 0.0, %v5634
    %v5636 = vpop.f32.mrb[0].mxu0
    %v5637 = vpop.f32.mrb[0].mxu0
    %v5638 = vpop.f32.mrb[0].mxu0
    %5639 = vdwg.mxu0
    %v5640 = vsel %vm483, %v5586, -inf
    %5641 = vmax.xlane.f32.xlu0 %v5640
    %v5642 = vpop.xlane.xlu0 %5641
    %v5643 = vsel %vm483, %v5635, -inf
    %5644 = vmax.xlane.f32.xlu0 %v5643
    %v5645 = vpop.xlane.xlu0 %5644
    %v5646 = vsub.f32 %v5586, %v5642
    %v5647 = vsub.f32 %v5635, %v5645
    %v5648 = vmul.f32 %v5646, 1.442695
    %v5649 = vpow.pop %v5648
    %v5650 = vmul.f32 %v5647, 1.442695
    %v5651 = vpow.pop %v5650
    %v5652 = vsel %vm483, %v5649, 0.0
    %5653 = vadd.xlane.f32.xlu0 %v5652
    %v5654 = vpop.xlane.xlu0 %5653
    %v5655 = vsel %vm483, %v5651, 0.0
    %5656 = vadd.xlane.f32.xlu0 %v5655
    %v5657 = vpop.xlane.xlu0 %5656
    %v5658 = vrcp.pop %v5654
    %v5659 = vrcp.pop %v5657
    %v5660 = vmul.f32 %v5649, %v5658
    %v5661 = vmul.f32 %v5651, %v5659
    %v5662 = vpack.c.bf16 %v5660, %v5660
    %v5663 = vpack.c.bf16 %v5661, %v5661
    %5664 = vrot.lane.b32.xlu0 %v5540, 64
    %v5665 = vpop.permute.xlu0 %5664
    %v5667 = vsel %vm483, %v5662, 0
    %v5670 = vsel %vm608, %v5665, 0
    %5672 = vmatprep.subr.bf16.mxu0 0
    %5673 = vmatpush1.bf16.msra.mxu0 %v5670
    %5674 = vmatprep.subr.bf16.mxu0 0
    %5675 = vmatpush1.bf16.msra.mxu0 0
    %5676 = vmatprep.subr.bf16.mxu0 0
    %5677 = vmatpush1.bf16.msra.mxu0 0
    %5678 = vmatprep.subr.bf16.mxu0 0
    %5679 = vmatpush1.bf16.msra.mxu0 0
    %5680 = vmatprep.subr.bf16.mxu0 0
    %5681 = vmatpush1.bf16.msra.mxu0 0
    %5682 = vmatprep.subr.bf16.mxu0 0
    %5683 = vmatpush1.bf16.msra.mxu0 0
    %5684 = vmatprep.subr.bf16.mxu0 0
    %5685 = vmatpush1.bf16.msra.mxu0 0
    %5686 = vmatprep.subr.bf16.mxu0 0
    %5687 = vmatpush1.bf16.msra.mxu0 0
    %5688 = vmatprep.subr.bf16.mxu0 0
    %5689 = vmatpush1.bf16.msra.mxu0 0
    %5690 = vmatprep.subr.bf16.mxu0 0
    %5691 = vmatpush1.bf16.msra.mxu0 0
    %5692 = vmatprep.subr.bf16.mxu0 0
    %5693 = vmatpush1.bf16.msra.mxu0 0
    %5694 = vmatprep.subr.bf16.mxu0 0
    %5695 = vmatpush1.bf16.msra.mxu0 0
    %5696 = vmatprep.subr.bf16.mxu0 0
    %5697 = vmatpush1.bf16.msra.mxu0 0
    %5698 = vmatprep.subr.bf16.mxu0 0
    %5699 = vmatpush1.bf16.msra.mxu0 0
    %5700 = vmatprep.subr.bf16.mxu0 0
    %5701 = vmatpush1.bf16.msra.mxu0 0
    %5702 = vmatprep.subr.bf16.mxu0 0
    %5703 = vmatpush1.bf16.msra.mxu0 0
    %5704 = vmatprep.mubr.bf16.mxu0 0
    %5705 = vmatmul.mubr.bf16.gmra.mrb[0].mxu0 %v5667
    %v5706 = vpop.f32.mrb[0].mxu0
    %v5707 = vadd.f32 0.0, %v5706
    %v5708 = vpop.f32.mrb[0].mxu0
    %v5709 = vpop.f32.mrb[0].mxu0
    %v5710 = vpop.f32.mrb[0].mxu0
    %5711 = vdwg.mxu0
    %5712 = vrot.lane.b32.xlu0 %v5541, 64
    %v5713 = vpop.permute.xlu0 %5712
    %v5715 = vsel %vm483, %v5663, 0
    %v5718 = vsel %vm608, %v5713, 0
    %5720 = vmatprep.subr.bf16.mxu0 0
    %5721 = vmatpush1.bf16.msra.mxu0 %v5718
    %5722 = vmatprep.subr.bf16.mxu0 0
    %5723 = vmatpush1.bf16.msra.mxu0 0
    %5724 = vmatprep.subr.bf16.mxu0 0
    %5725 = vmatpush1.bf16.msra.mxu0 0
    %5726 = vmatprep.subr.bf16.mxu0 0
    %5727 = vmatpush1.bf16.msra.mxu0 0
    %5728 = vmatprep.subr.bf16.mxu0 0
    %5729 = vmatpush1.bf16.msra.mxu0 0
    %5730 = vmatprep.subr.bf16.mxu0 0
    %5731 = vmatpush1.bf16.msra.mxu0 0
    %5732 = vmatprep.subr.bf16.mxu0 0
    %5733 = vmatpush1.bf16.msra.mxu0 0
    %5734 = vmatprep.subr.bf16.mxu0 0
    %5735 = vmatpush1.bf16.msra.mxu0 0
    %5736 = vmatprep.subr.bf16.mxu0 0
    %5737 = vmatpush1.bf16.msra.mxu0 0
    %5738 = vmatprep.subr.bf16.mxu0 0
    %5739 = vmatpush1.bf16.msra.mxu0 0
    %5740 = vmatprep.subr.bf16.mxu0 0
    %5741 = vmatpush1.bf16.msra.mxu0 0
    %5742 = vmatprep.subr.bf16.mxu0 0
    %5743 = vmatpush1.bf16.msra.mxu0 0
    %5744 = vmatprep.subr.bf16.mxu0 0
    %5745 = vmatpush1.bf16.msra.mxu0 0
    %5746 = vmatprep.subr.bf16.mxu0 0
    %5747 = vmatpush1.bf16.msra.mxu0 0
    %5748 = vmatprep.subr.bf16.mxu0 0
    %5749 = vmatpush1.bf16.msra.mxu0 0
    %5750 = vmatprep.subr.bf16.mxu0 0
    %5751 = vmatpush1.bf16.msra.mxu0 0
    %5752 = vmatprep.mubr.bf16.mxu0 0
    %5753 = vmatmul.mubr.bf16.gmra.mrb[0].mxu0 %v5715
    %v5754 = vpop.f32.mrb[0].mxu0
    %v5755 = vadd.f32 0.0, %v5754
    %v5756 = vpop.f32.mrb[0].mxu0
    %v5757 = vpop.f32.mrb[0].mxu0
    %v5758 = vpop.f32.mrb[0].mxu0
    %5759 = vdwg.mxu0
    %5760 = vrot.lane.b32.xlu0 %v5540, 120
    %v5761 = vpop.permute.xlu0 %5760
    %5762 = vrot.lane.b32.xlu0 %v5540, 88
    %v5763 = vpop.permute.xlu0 %5762
    %v5765 = vsel %vm483, %v5761, 0
    %v5768 = vsel %vm483, %v5763, 0
    %5770 = vmatprep.subr.bf16.mxu0 0
    %5771 = vmatpush1.bf16.xpose.msra.mxu0 %v5768
    %5772 = vmatprep.subr.bf16.mxu0 0
    %5773 = vmatpush1.bf16.xpose.msra.mxu0 0
    %5774 = vmatprep.subr.bf16.mxu0 0
    %5775 = vmatpush1.bf16.xpose.msra.mxu0 0
    %5776 = vmatprep.subr.bf16.mxu0 0
    %5777 = vmatpush1.bf16.xpose.msra.mxu0 0
    %5778 = vmatprep.subr.bf16.mxu0 0
    %5779 = vmatpush1.bf16.xpose.msra.mxu0 0
    %5780 = vmatprep.subr.bf16.mxu0 0
    %5781 = vmatpush1.bf16.xpose.msra.mxu0 0
    %5782 = vmatprep.subr.bf16.mxu0 0
    %5783 = vmatpush1.bf16.xpose.msra.mxu0 0
    %5784 = vmatprep.subr.bf16.mxu0 0
    %5785 = vmatpush1.bf16.xpose.msra.mxu0 0
    %5786 = vmatprep.subr.bf16.mxu0 0
    %5787 = vmatpush1.bf16.xpose.msra.mxu0 0
    %5788 = vmatprep.subr.bf16.mxu0 0
    %5789 = vmatpush1.bf16.xpose.msra.mxu0 0
    %5790 = vmatprep.subr.bf16.mxu0 0
    %5791 = vmatpush1.bf16.xpose.msra.mxu0 0
    %5792 = vmatprep.subr.bf16.mxu0 0
    %5793 = vmatpush1.bf16.xpose.msra.mxu0 0
    %5794 = vmatprep.subr.bf16.mxu0 0
    %5795 = vmatpush1.bf16.xpose.msra.mxu0 0
    %5796 = vmatprep.subr.bf16.mxu0 0
    %5797 = vmatpush1.bf16.xpose.msra.mxu0 0
    %5798 = vmatprep.subr.bf16.mxu0 0
    %5799 = vmatpush1.bf16.xpose.msra.mxu0 0
    %5800 = vmatprep.subr.bf16.mxu0 0
    %5801 = vmatpush1.bf16.xpose.msra.mxu0 0
    %5802 = vmatprep.mubr.bf16.mxu0 0
    %5803 = vmatmul.mubr.bf16.gmra.mrb[0].mxu0 %v5765
    %v5804 = vpop.f32.mrb[0].mxu0
    %v5805 = vadd.f32 0.0, %v5804
    %v5806 = vpop.f32.mrb[0].mxu0
    %v5807 = vpop.f32.mrb[0].mxu0
    %v5808 = vpop.f32.mrb[0].mxu0
    %5809 = vdwg.mxu0
    %5810 = vrot.lane.b32.xlu0 %v5541, 120
    %v5811 = vpop.permute.xlu0 %5810
    %5812 = vrot.lane.b32.xlu0 %v5541, 88
    %v5813 = vpop.permute.xlu0 %5812
    %v5815 = vsel %vm483, %v5811, 0
    %v5818 = vsel %vm483, %v5813, 0
    %5820 = vmatprep.subr.bf16.mxu0 0
    %5821 = vmatpush1.bf16.xpose.msra.mxu0 %v5818
    %5822 = vmatprep.subr.bf16.mxu0 0
    %5823 = vmatpush1.bf16.xpose.msra.mxu0 0
    %5824 = vmatprep.subr.bf16.mxu0 0
    %5825 = vmatpush1.bf16.xpose.msra.mxu0 0
    %5826 = vmatprep.subr.bf16.mxu0 0
    %5827 = vmatpush1.bf16.xpose.msra.mxu0 0
    %5828 = vmatprep.subr.bf16.mxu0 0
    %5829 = vmatpush1.bf16.xpose.msra.mxu0 0
    %5830 = vmatprep.subr.bf16.mxu0 0
    %5831 = vmatpush1.bf16.xpose.msra.mxu0 0
    %5832 = vmatprep.subr.bf16.mxu0 0
    %5833 = vmatpush1.bf16.xpose.msra.mxu0 0
    %5834 = vmatprep.subr.bf16.mxu0 0
    %5835 = vmatpush1.bf16.xpose.msra.mxu0 0
    %5836 = vmatprep.subr.bf16.mxu0 0
    %5837 = vmatpush1.bf16.xpose.msra.mxu0 0
    %5838 = vmatprep.subr.bf16.mxu0 0
    %5839 = vmatpush1.bf16.xpose.msra.mxu0 0
    %5840 = vmatprep.subr.bf16.mxu0 0
    %5841 = vmatpush1.bf16.xpose.msra.mxu0 0
    %5842 = vmatprep.subr.bf16.mxu0 0
    %5843 = vmatpush1.bf16.xpose.msra.mxu0 0
    %5844 = vmatprep.subr.bf16.mxu0 0
    %5845 = vmatpush1.bf16.xpose.msra.mxu0 0
    %5846 = vmatprep.subr.bf16.mxu0 0
    %5847 = vmatpush1.bf16.xpose.msra.mxu0 0
    %5848 = vmatprep.subr.bf16.mxu0 0
    %5849 = vmatpush1.bf16.xpose.msra.mxu0 0
    %5850 = vmatprep.subr.bf16.mxu0 0
    %5851 = vmatpush1.bf16.xpose.msra.mxu0 0
    %5852 = vmatprep.mubr.bf16.mxu0 0
    %5853 = vmatmul.mubr.bf16.gmra.mrb[0].mxu0 %v5815
    %v5854 = vpop.f32.mrb[0].mxu0
    %v5855 = vadd.f32 0.0, %v5854
    %v5856 = vpop.f32.mrb[0].mxu0
    %v5857 = vpop.f32.mrb[0].mxu0
    %v5858 = vpop.f32.mrb[0].mxu0
    %5859 = vdwg.mxu0
    %v5860 = vsel %vm483, %v5805, -inf
    %5861 = vmax.xlane.f32.xlu0 %v5860
    %v5862 = vpop.xlane.xlu0 %5861
    %v5863 = vsel %vm483, %v5855, -inf
    %5864 = vmax.xlane.f32.xlu0 %v5863
    %v5865 = vpop.xlane.xlu0 %5864
    %v5866 = vsub.f32 %v5805, %v5862
    %v5867 = vsub.f32 %v5855, %v5865
    %v5868 = vmul.f32 %v5866, 1.442695
    %v5869 = vpow.pop %v5868
    %v5870 = vmul.f32 %v5867, 1.442695
    %v5871 = vpow.pop %v5870
    %v5872 = vsel %vm483, %v5869, 0.0
    %5873 = vadd.xlane.f32.xlu0 %v5872
    %v5874 = vpop.xlane.xlu0 %5873
    %v5875 = vsel %vm483, %v5871, 0.0
    %5876 = vadd.xlane.f32.xlu0 %v5875
    %v5877 = vpop.xlane.xlu0 %5876
    %v5878 = vrcp.pop %v5874
    %v5879 = vrcp.pop %v5877
    %v5880 = vmul.f32 %v5869, %v5878
    %v5881 = vmul.f32 %v5871, %v5879
    %v5882 = vpack.c.bf16 %v5880, %v5880
    %v5883 = vpack.c.bf16 %v5881, %v5881
    %5884 = vrot.lane.b32.xlu0 %v5540, 56
    %v5885 = vpop.permute.xlu0 %5884
    %v5887 = vsel %vm483, %v5882, 0
    %v5890 = vsel %vm608, %v5885, 0
    %5892 = vmatprep.subr.bf16.mxu0 0
    %5893 = vmatpush1.bf16.msra.mxu0 %v5890
    %5894 = vmatprep.subr.bf16.mxu0 0
    %5895 = vmatpush1.bf16.msra.mxu0 0
    %5896 = vmatprep.subr.bf16.mxu0 0
    %5897 = vmatpush1.bf16.msra.mxu0 0
    %5898 = vmatprep.subr.bf16.mxu0 0
    %5899 = vmatpush1.bf16.msra.mxu0 0
    %5900 = vmatprep.subr.bf16.mxu0 0
    %5901 = vmatpush1.bf16.msra.mxu0 0
    %5902 = vmatprep.subr.bf16.mxu0 0
    %5903 = vmatpush1.bf16.msra.mxu0 0
    %5904 = vmatprep.subr.bf16.mxu0 0
    %5905 = vmatpush1.bf16.msra.mxu0 0
    %5906 = vmatprep.subr.bf16.mxu0 0
    %5907 = vmatpush1.bf16.msra.mxu0 0
    %5908 = vmatprep.subr.bf16.mxu0 0
    %5909 = vmatpush1.bf16.msra.mxu0 0
    %5910 = vmatprep.subr.bf16.mxu0 0
    %5911 = vmatpush1.bf16.msra.mxu0 0
    %5912 = vmatprep.subr.bf16.mxu0 0
    %5913 = vmatpush1.bf16.msra.mxu0 0
    %5914 = vmatprep.subr.bf16.mxu0 0
    %5915 = vmatpush1.bf16.msra.mxu0 0
    %5916 = vmatprep.subr.bf16.mxu0 0
    %5917 = vmatpush1.bf16.msra.mxu0 0
    %5918 = vmatprep.subr.bf16.mxu0 0
    %5919 = vmatpush1.bf16.msra.mxu0 0
    %5920 = vmatprep.subr.bf16.mxu0 0
    %5921 = vmatpush1.bf16.msra.mxu0 0
    %5922 = vmatprep.subr.bf16.mxu0 0
    %5923 = vmatpush1.bf16.msra.mxu0 0
    %5924 = vmatprep.mubr.bf16.mxu0 0
    %5925 = vmatmul.mubr.bf16.gmra.mrb[0].mxu0 %v5887
    %v5926 = vpop.f32.mrb[0].mxu0
    %v5927 = vadd.f32 0.0, %v5926
    %v5928 = vpop.f32.mrb[0].mxu0
    %v5929 = vpop.f32.mrb[0].mxu0
    %v5930 = vpop.f32.mrb[0].mxu0
    %5931 = vdwg.mxu0
    %5932 = vrot.lane.b32.xlu0 %v5541, 56
    %v5933 = vpop.permute.xlu0 %5932
    %v5935 = vsel %vm483, %v5883, 0
    %v5938 = vsel %vm608, %v5933, 0
    %5940 = vmatprep.subr.bf16.mxu0 0
    %5941 = vmatpush1.bf16.msra.mxu0 %v5938
    %5942 = vmatprep.subr.bf16.mxu0 0
    %5943 = vmatpush1.bf16.msra.mxu0 0
    %5944 = vmatprep.subr.bf16.mxu0 0
    %5945 = vmatpush1.bf16.msra.mxu0 0
    %5946 = vmatprep.subr.bf16.mxu0 0
    %5947 = vmatpush1.bf16.msra.mxu0 0
    %5948 = vmatprep.subr.bf16.mxu0 0
    %5949 = vmatpush1.bf16.msra.mxu0 0
    %5950 = vmatprep.subr.bf16.mxu0 0
    %5951 = vmatpush1.bf16.msra.mxu0 0
    %5952 = vmatprep.subr.bf16.mxu0 0
    %5953 = vmatpush1.bf16.msra.mxu0 0
    %5954 = vmatprep.subr.bf16.mxu0 0
    %5955 = vmatpush1.bf16.msra.mxu0 0
    %5956 = vmatprep.subr.bf16.mxu0 0
    %5957 = vmatpush1.bf16.msra.mxu0 0
    %5958 = vmatprep.subr.bf16.mxu0 0
    %5959 = vmatpush1.bf16.msra.mxu0 0
    %5960 = vmatprep.subr.bf16.mxu0 0
    %5961 = vmatpush1.bf16.msra.mxu0 0
    %5962 = vmatprep.subr.bf16.mxu0 0
    %5963 = vmatpush1.bf16.msra.mxu0 0
    %5964 = vmatprep.subr.bf16.mxu0 0
    %5965 = vmatpush1.bf16.msra.mxu0 0
    %5966 = vmatprep.subr.bf16.mxu0 0
    %5967 = vmatpush1.bf16.msra.mxu0 0
    %5968 = vmatprep.subr.bf16.mxu0 0
    %5969 = vmatpush1.bf16.msra.mxu0 0
    %5970 = vmatprep.subr.bf16.mxu0 0
    %5971 = vmatpush1.bf16.msra.mxu0 0
    %5972 = vmatprep.mubr.bf16.mxu0 0
    %5973 = vmatmul.mubr.bf16.gmra.mrb[0].mxu0 %v5935
    %v5974 = vpop.f32.mrb[0].mxu0
    %v5975 = vadd.f32 0.0, %v5974
    %v5976 = vpop.f32.mrb[0].mxu0
    %v5977 = vpop.f32.mrb[0].mxu0
    %v5978 = vpop.f32.mrb[0].mxu0
    %5979 = vdwg.mxu0
    %5980 = vrot.lane.b32.xlu0 %v5540, 112
    %v5981 = vpop.permute.xlu0 %5980
    %5982 = vrot.lane.b32.xlu0 %v5540, 80
    %v5983 = vpop.permute.xlu0 %5982
    %v5985 = vsel %vm483, %v5981, 0
    %v5988 = vsel %vm483, %v5983, 0
    %5990 = vmatprep.subr.bf16.mxu0 0
    %5991 = vmatpush1.bf16.xpose.msra.mxu0 %v5988
    %5992 = vmatprep.subr.bf16.mxu0 0
    %5993 = vmatpush1.bf16.xpose.msra.mxu0 0
    %5994 = vmatprep.subr.bf16.mxu0 0
    %5995 = vmatpush1.bf16.xpose.msra.mxu0 0
    %5996 = vmatprep.subr.bf16.mxu0 0
    %5997 = vmatpush1.bf16.xpose.msra.mxu0 0
    %5998 = vmatprep.subr.bf16.mxu0 0
    %5999 = vmatpush1.bf16.xpose.msra.mxu0 0
    %6000 = vmatprep.subr.bf16.mxu0 0
    %6001 = vmatpush1.bf16.xpose.msra.mxu0 0
    %6002 = vmatprep.subr.bf16.mxu0 0
    %6003 = vmatpush1.bf16.xpose.msra.mxu0 0
    %6004 = vmatprep.subr.bf16.mxu0 0
    %6005 = vmatpush1.bf16.xpose.msra.mxu0 0
    %6006 = vmatprep.subr.bf16.mxu0 0
    %6007 = vmatpush1.bf16.xpose.msra.mxu0 0
    %6008 = vmatprep.subr.bf16.mxu0 0
    %6009 = vmatpush1.bf16.xpose.msra.mxu0 0
    %6010 = vmatprep.subr.bf16.mxu0 0
    %6011 = vmatpush1.bf16.xpose.msra.mxu0 0
    %6012 = vmatprep.subr.bf16.mxu0 0
    %6013 = vmatpush1.bf16.xpose.msra.mxu0 0
    %6014 = vmatprep.subr.bf16.mxu0 0
    %6015 = vmatpush1.bf16.xpose.msra.mxu0 0
    %6016 = vmatprep.subr.bf16.mxu0 0
    %6017 = vmatpush1.bf16.xpose.msra.mxu0 0
    %6018 = vmatprep.subr.bf16.mxu0 0
    %6019 = vmatpush1.bf16.xpose.msra.mxu0 0
    %6020 = vmatprep.subr.bf16.mxu0 0
    %6021 = vmatpush1.bf16.xpose.msra.mxu0 0
    %6022 = vmatprep.mubr.bf16.mxu0 0
    %6023 = vmatmul.mubr.bf16.gmra.mrb[0].mxu0 %v5985
    %v6024 = vpop.f32.mrb[0].mxu0
    %v6025 = vadd.f32 0.0, %v6024
    %v6026 = vpop.f32.mrb[0].mxu0
    %v6027 = vpop.f32.mrb[0].mxu0
    %v6028 = vpop.f32.mrb[0].mxu0
    %6029 = vdwg.mxu0
    %6030 = vrot.lane.b32.xlu0 %v5541, 112
    %v6031 = vpop.permute.xlu0 %6030
    %6032 = vrot.lane.b32.xlu0 %v5541, 80
    %v6033 = vpop.permute.xlu0 %6032
    %v6035 = vsel %vm483, %v6031, 0
    %v6038 = vsel %vm483, %v6033, 0
    %6040 = vmatprep.subr.bf16.mxu0 0
    %6041 = vmatpush1.bf16.xpose.msra.mxu0 %v6038
    %6042 = vmatprep.subr.bf16.mxu0 0
    %6043 = vmatpush1.bf16.xpose.msra.mxu0 0
    %6044 = vmatprep.subr.bf16.mxu0 0
    %6045 = vmatpush1.bf16.xpose.msra.mxu0 0
    %6046 = vmatprep.subr.bf16.mxu0 0
    %6047 = vmatpush1.bf16.xpose.msra.mxu0 0
    %6048 = vmatprep.subr.bf16.mxu0 0
    %6049 = vmatpush1.bf16.xpose.msra.mxu0 0
    %6050 = vmatprep.subr.bf16.mxu0 0
    %6051 = vmatpush1.bf16.xpose.msra.mxu0 0
    %6052 = vmatprep.subr.bf16.mxu0 0
    %6053 = vmatpush1.bf16.xpose.msra.mxu0 0
    %6054 = vmatprep.subr.bf16.mxu0 0
    %6055 = vmatpush1.bf16.xpose.msra.mxu0 0
    %6056 = vmatprep.subr.bf16.mxu0 0
    %6057 = vmatpush1.bf16.xpose.msra.mxu0 0
    %6058 = vmatprep.subr.bf16.mxu0 0
    %6059 = vmatpush1.bf16.xpose.msra.mxu0 0
    %6060 = vmatprep.subr.bf16.mxu0 0
    %6061 = vmatpush1.bf16.xpose.msra.mxu0 0
    %6062 = vmatprep.subr.bf16.mxu0 0
    %6063 = vmatpush1.bf16.xpose.msra.mxu0 0
    %6064 = vmatprep.subr.bf16.mxu0 0
    %6065 = vmatpush1.bf16.xpose.msra.mxu0 0
    %6066 = vmatprep.subr.bf16.mxu0 0
    %6067 = vmatpush1.bf16.xpose.msra.mxu0 0
    %6068 = vmatprep.subr.bf16.mxu0 0
    %6069 = vmatpush1.bf16.xpose.msra.mxu0 0
    %6070 = vmatprep.subr.bf16.mxu0 0
    %6071 = vmatpush1.bf16.xpose.msra.mxu0 0
    %6072 = vmatprep.mubr.bf16.mxu0 0
    %6073 = vmatmul.mubr.bf16.gmra.mrb[0].mxu0 %v6035
    %v6074 = vpop.f32.mrb[0].mxu0
    %v6075 = vadd.f32 0.0, %v6074
    %v6076 = vpop.f32.mrb[0].mxu0
    %v6077 = vpop.f32.mrb[0].mxu0
    %v6078 = vpop.f32.mrb[0].mxu0
    %6079 = vdwg.mxu0
    %v6080 = vsel %vm483, %v6025, -inf
    %6081 = vmax.xlane.f32.xlu0 %v6080
    %v6082 = vpop.xlane.xlu0 %6081
    %v6083 = vsel %vm483, %v6075, -inf
    %6084 = vmax.xlane.f32.xlu0 %v6083
    %v6085 = vpop.xlane.xlu0 %6084
    %v6086 = vsub.f32 %v6025, %v6082
    %v6087 = vsub.f32 %v6075, %v6085
    %v6088 = vmul.f32 %v6086, 1.442695
    %v6089 = vpow.pop %v6088
    %v6090 = vmul.f32 %v6087, 1.442695
    %v6091 = vpow.pop %v6090
    %v6092 = vsel %vm483, %v6089, 0.0
    %6093 = vadd.xlane.f32.xlu0 %v6092
    %v6094 = vpop.xlane.xlu0 %6093
    %v6095 = vsel %vm483, %v6091, 0.0
    %6096 = vadd.xlane.f32.xlu0 %v6095
    %v6097 = vpop.xlane.xlu0 %6096
    %v6098 = vrcp.pop %v6094
    %v6099 = vrcp.pop %v6097
    %v6100 = vmul.f32 %v6089, %v6098
    %v6101 = vmul.f32 %v6091, %v6099
    %v6102 = vpack.c.bf16 %v6100, %v6100
    %v6103 = vpack.c.bf16 %v6101, %v6101
    %6104 = vrot.lane.b32.xlu0 %v5540, 48
    %v6105 = vpop.permute.xlu0 %6104
    %v6107 = vsel %vm483, %v6102, 0
    %v6110 = vsel %vm608, %v6105, 0
    %6112 = vmatprep.subr.bf16.mxu0 0
    %6113 = vmatpush1.bf16.msra.mxu0 %v6110
    %6114 = vmatprep.subr.bf16.mxu0 0
    %6115 = vmatpush1.bf16.msra.mxu0 0
    %6116 = vmatprep.subr.bf16.mxu0 0
    %6117 = vmatpush1.bf16.msra.mxu0 0
    %6118 = vmatprep.subr.bf16.mxu0 0
    %6119 = vmatpush1.bf16.msra.mxu0 0
    %6120 = vmatprep.subr.bf16.mxu0 0
    %6121 = vmatpush1.bf16.msra.mxu0 0
    %6122 = vmatprep.subr.bf16.mxu0 0
    %6123 = vmatpush1.bf16.msra.mxu0 0
    %6124 = vmatprep.subr.bf16.mxu0 0
    %6125 = vmatpush1.bf16.msra.mxu0 0
    %6126 = vmatprep.subr.bf16.mxu0 0
    %6127 = vmatpush1.bf16.msra.mxu0 0
    %6128 = vmatprep.subr.bf16.mxu0 0
    %6129 = vmatpush1.bf16.msra.mxu0 0
    %6130 = vmatprep.subr.bf16.mxu0 0
    %6131 = vmatpush1.bf16.msra.mxu0 0
    %6132 = vmatprep.subr.bf16.mxu0 0
    %6133 = vmatpush1.bf16.msra.mxu0 0
    %6134 = vmatprep.subr.bf16.mxu0 0
    %6135 = vmatpush1.bf16.msra.mxu0 0
    %6136 = vmatprep.subr.bf16.mxu0 0
    %6137 = vmatpush1.bf16.msra.mxu0 0
    %6138 = vmatprep.subr.bf16.mxu0 0
    %6139 = vmatpush1.bf16.msra.mxu0 0
    %6140 = vmatprep.subr.bf16.mxu0 0
    %6141 = vmatpush1.bf16.msra.mxu0 0
    %6142 = vmatprep.subr.bf16.mxu0 0
    %6143 = vmatpush1.bf16.msra.mxu0 0
    %6144 = vmatprep.mubr.bf16.mxu0 0
    %6145 = vmatmul.mubr.bf16.gmra.mrb[0].mxu0 %v6107
    %v6146 = vpop.f32.mrb[0].mxu0
    %v6147 = vadd.f32 0.0, %v6146
    %v6148 = vpop.f32.mrb[0].mxu0
    %v6149 = vpop.f32.mrb[0].mxu0
    %v6150 = vpop.f32.mrb[0].mxu0
    %6151 = vdwg.mxu0
    %6152 = vrot.lane.b32.xlu0 %v5541, 48
    %v6153 = vpop.permute.xlu0 %6152
    %v6155 = vsel %vm483, %v6103, 0
    %v6158 = vsel %vm608, %v6153, 0
    %6160 = vmatprep.subr.bf16.mxu0 0
    %6161 = vmatpush1.bf16.msra.mxu0 %v6158
    %6162 = vmatprep.subr.bf16.mxu0 0
    %6163 = vmatpush1.bf16.msra.mxu0 0
    %6164 = vmatprep.subr.bf16.mxu0 0
    %6165 = vmatpush1.bf16.msra.mxu0 0
    %6166 = vmatprep.subr.bf16.mxu0 0
    %6167 = vmatpush1.bf16.msra.mxu0 0
    %6168 = vmatprep.subr.bf16.mxu0 0
    %6169 = vmatpush1.bf16.msra.mxu0 0
    %6170 = vmatprep.subr.bf16.mxu0 0
    %6171 = vmatpush1.bf16.msra.mxu0 0
    %6172 = vmatprep.subr.bf16.mxu0 0
    %6173 = vmatpush1.bf16.msra.mxu0 0
    %6174 = vmatprep.subr.bf16.mxu0 0
    %6175 = vmatpush1.bf16.msra.mxu0 0
    %6176 = vmatprep.subr.bf16.mxu0 0
    %6177 = vmatpush1.bf16.msra.mxu0 0
    %6178 = vmatprep.subr.bf16.mxu0 0
    %6179 = vmatpush1.bf16.msra.mxu0 0
    %6180 = vmatprep.subr.bf16.mxu0 0
    %6181 = vmatpush1.bf16.msra.mxu0 0
    %6182 = vmatprep.subr.bf16.mxu0 0
    %6183 = vmatpush1.bf16.msra.mxu0 0
    %6184 = vmatprep.subr.bf16.mxu0 0
    %6185 = vmatpush1.bf16.msra.mxu0 0
    %6186 = vmatprep.subr.bf16.mxu0 0
    %6187 = vmatpush1.bf16.msra.mxu0 0
    %6188 = vmatprep.subr.bf16.mxu0 0
    %6189 = vmatpush1.bf16.msra.mxu0 0
    %6190 = vmatprep.subr.bf16.mxu0 0
    %6191 = vmatpush1.bf16.msra.mxu0 0
    %6192 = vmatprep.mubr.bf16.mxu0 0
    %6193 = vmatmul.mubr.bf16.gmra.mrb[0].mxu0 %v6155
    %v6194 = vpop.f32.mrb[0].mxu0
    %v6195 = vadd.f32 0.0, %v6194
    %v6196 = vpop.f32.mrb[0].mxu0
    %v6197 = vpop.f32.mrb[0].mxu0
    %v6198 = vpop.f32.mrb[0].mxu0
    %6199 = vdwg.mxu0
    %6200 = vrot.lane.b32.xlu0 %v5540, 104
    %v6201 = vpop.permute.xlu0 %6200
    %6202 = vrot.lane.b32.xlu0 %v5540, 72
    %v6203 = vpop.permute.xlu0 %6202
    %v6205 = vsel %vm483, %v6201, 0
    %v6208 = vsel %vm483, %v6203, 0
    %6210 = vmatprep.subr.bf16.mxu0 0
    %6211 = vmatpush1.bf16.xpose.msra.mxu0 %v6208
    %6212 = vmatprep.subr.bf16.mxu0 0
    %6213 = vmatpush1.bf16.xpose.msra.mxu0 0
    %6214 = vmatprep.subr.bf16.mxu0 0
    %6215 = vmatpush1.bf16.xpose.msra.mxu0 0
    %6216 = vmatprep.subr.bf16.mxu0 0
    %6217 = vmatpush1.bf16.xpose.msra.mxu0 0
    %6218 = vmatprep.subr.bf16.mxu0 0
    %6219 = vmatpush1.bf16.xpose.msra.mxu0 0
    %6220 = vmatprep.subr.bf16.mxu0 0
    %6221 = vmatpush1.bf16.xpose.msra.mxu0 0
    %6222 = vmatprep.subr.bf16.mxu0 0
    %6223 = vmatpush1.bf16.xpose.msra.mxu0 0
    %6224 = vmatprep.subr.bf16.mxu0 0
    %6225 = vmatpush1.bf16.xpose.msra.mxu0 0
    %6226 = vmatprep.subr.bf16.mxu0 0
    %6227 = vmatpush1.bf16.xpose.msra.mxu0 0
    %6228 = vmatprep.subr.bf16.mxu0 0
    %6229 = vmatpush1.bf16.xpose.msra.mxu0 0
    %6230 = vmatprep.subr.bf16.mxu0 0
    %6231 = vmatpush1.bf16.xpose.msra.mxu0 0
    %6232 = vmatprep.subr.bf16.mxu0 0
    %6233 = vmatpush1.bf16.xpose.msra.mxu0 0
    %6234 = vmatprep.subr.bf16.mxu0 0
    %6235 = vmatpush1.bf16.xpose.msra.mxu0 0
    %6236 = vmatprep.subr.bf16.mxu0 0
    %6237 = vmatpush1.bf16.xpose.msra.mxu0 0
    %6238 = vmatprep.subr.bf16.mxu0 0
    %6239 = vmatpush1.bf16.xpose.msra.mxu0 0
    %6240 = vmatprep.subr.bf16.mxu0 0
    %6241 = vmatpush1.bf16.xpose.msra.mxu0 0
    %6242 = vmatprep.mubr.bf16.mxu0 0
    %6243 = vmatmul.mubr.bf16.gmra.mrb[0].mxu0 %v6205
    %v6244 = vpop.f32.mrb[0].mxu0
    %v6245 = vadd.f32 0.0, %v6244
    %v6246 = vpop.f32.mrb[0].mxu0
    %v6247 = vpop.f32.mrb[0].mxu0
    %v6248 = vpop.f32.mrb[0].mxu0
    %6249 = vdwg.mxu0
    %6250 = vrot.lane.b32.xlu0 %v5541, 104
    %v6251 = vpop.permute.xlu0 %6250
    %6252 = vrot.lane.b32.xlu0 %v5541, 72
    %v6253 = vpop.permute.xlu0 %6252
    %v6255 = vsel %vm483, %v6251, 0
    %v6258 = vsel %vm483, %v6253, 0
    %6260 = vmatprep.subr.bf16.mxu0 0
    %6261 = vmatpush1.bf16.xpose.msra.mxu0 %v6258
    %6262 = vmatprep.subr.bf16.mxu0 0
    %6263 = vmatpush1.bf16.xpose.msra.mxu0 0
    %6264 = vmatprep.subr.bf16.mxu0 0
    %6265 = vmatpush1.bf16.xpose.msra.mxu0 0
    %6266 = vmatprep.subr.bf16.mxu0 0
    %6267 = vmatpush1.bf16.xpose.msra.mxu0 0
    %6268 = vmatprep.subr.bf16.mxu0 0
    %6269 = vmatpush1.bf16.xpose.msra.mxu0 0
    %6270 = vmatprep.subr.bf16.mxu0 0
    %6271 = vmatpush1.bf16.xpose.msra.mxu0 0
    %6272 = vmatprep.subr.bf16.mxu0 0
    %6273 = vmatpush1.bf16.xpose.msra.mxu0 0
    %6274 = vmatprep.subr.bf16.mxu0 0
    %6275 = vmatpush1.bf16.xpose.msra.mxu0 0
    %6276 = vmatprep.subr.bf16.mxu0 0
    %6277 = vmatpush1.bf16.xpose.msra.mxu0 0
    %6278 = vmatprep.subr.bf16.mxu0 0
    %6279 = vmatpush1.bf16.xpose.msra.mxu0 0
    %6280 = vmatprep.subr.bf16.mxu0 0
    %6281 = vmatpush1.bf16.xpose.msra.mxu0 0
    %6282 = vmatprep.subr.bf16.mxu0 0
    %6283 = vmatpush1.bf16.xpose.msra.mxu0 0
    %6284 = vmatprep.subr.bf16.mxu0 0
    %6285 = vmatpush1.bf16.xpose.msra.mxu0 0
    %6286 = vmatprep.subr.bf16.mxu0 0
    %6287 = vmatpush1.bf16.xpose.msra.mxu0 0
    %6288 = vmatprep.subr.bf16.mxu0 0
    %6289 = vmatpush1.bf16.xpose.msra.mxu0 0
    %6290 = vmatprep.subr.bf16.mxu0 0
    %6291 = vmatpush1.bf16.xpose.msra.mxu0 0
    %6292 = vmatprep.mubr.bf16.mxu0 0
    %6293 = vmatmul.mubr.bf16.gmra.mrb[0].mxu0 %v6255
    %v6294 = vpop.f32.mrb[0].mxu0
    %v6295 = vadd.f32 0.0, %v6294
    %v6296 = vpop.f32.mrb[0].mxu0
    %v6297 = vpop.f32.mrb[0].mxu0
    %v6298 = vpop.f32.mrb[0].mxu0
    %6299 = vdwg.mxu0
    %v6300 = vsel %vm483, %v6245, -inf
    %6301 = vmax.xlane.f32.xlu0 %v6300
    %v6302 = vpop.xlane.xlu0 %6301
    %v6303 = vsel %vm483, %v6295, -inf
    %6304 = vmax.xlane.f32.xlu0 %v6303
    %v6305 = vpop.xlane.xlu0 %6304
    %v6306 = vsub.f32 %v6245, %v6302
    %v6307 = vsub.f32 %v6295, %v6305
    %v6308 = vmul.f32 %v6306, 1.442695
    %v6309 = vpow.pop %v6308
    %v6310 = vmul.f32 %v6307, 1.442695
    %v6311 = vpow.pop %v6310
    %v6312 = vsel %vm483, %v6309, 0.0
    %6313 = vadd.xlane.f32.xlu0 %v6312
    %v6314 = vpop.xlane.xlu0 %6313
    %v6315 = vsel %vm483, %v6311, 0.0
    %6316 = vadd.xlane.f32.xlu0 %v6315
    %v6317 = vpop.xlane.xlu0 %6316
    %v6318 = vrcp.pop %v6314
    %v6319 = vrcp.pop %v6317
    %v6320 = vmul.f32 %v6309, %v6318
    %v6321 = vmul.f32 %v6311, %v6319
    %v6322 = vpack.c.bf16 %v6320, %v6320
    %v6323 = vpack.c.bf16 %v6321, %v6321
    %6324 = vrot.lane.b32.xlu0 %v5540, 40
    %v6325 = vpop.permute.xlu0 %6324
    %v6327 = vsel %vm483, %v6322, 0
    %v6330 = vsel %vm608, %v6325, 0
    %6332 = vmatprep.subr.bf16.mxu0 0
    %6333 = vmatpush1.bf16.msra.mxu0 %v6330
    %6334 = vmatprep.subr.bf16.mxu0 0
    %6335 = vmatpush1.bf16.msra.mxu0 0
    %6336 = vmatprep.subr.bf16.mxu0 0
    %6337 = vmatpush1.bf16.msra.mxu0 0
    %6338 = vmatprep.subr.bf16.mxu0 0
    %6339 = vmatpush1.bf16.msra.mxu0 0
    %6340 = vmatprep.subr.bf16.mxu0 0
    %6341 = vmatpush1.bf16.msra.mxu0 0
    %6342 = vmatprep.subr.bf16.mxu0 0
    %6343 = vmatpush1.bf16.msra.mxu0 0
    %6344 = vmatprep.subr.bf16.mxu0 0
    %6345 = vmatpush1.bf16.msra.mxu0 0
    %6346 = vmatprep.subr.bf16.mxu0 0
    %6347 = vmatpush1.bf16.msra.mxu0 0
    %6348 = vmatprep.subr.bf16.mxu0 0
    %6349 = vmatpush1.bf16.msra.mxu0 0
    %6350 = vmatprep.subr.bf16.mxu0 0
    %6351 = vmatpush1.bf16.msra.mxu0 0
    %6352 = vmatprep.subr.bf16.mxu0 0
    %6353 = vmatpush1.bf16.msra.mxu0 0
    %6354 = vmatprep.subr.bf16.mxu0 0
    %6355 = vmatpush1.bf16.msra.mxu0 0
    %6356 = vmatprep.subr.bf16.mxu0 0
    %6357 = vmatpush1.bf16.msra.mxu0 0
    %6358 = vmatprep.subr.bf16.mxu0 0
    %6359 = vmatpush1.bf16.msra.mxu0 0
    %6360 = vmatprep.subr.bf16.mxu0 0
    %6361 = vmatpush1.bf16.msra.mxu0 0
    %6362 = vmatprep.subr.bf16.mxu0 0
    %6363 = vmatpush1.bf16.msra.mxu0 0
    %6364 = vmatprep.mubr.bf16.mxu0 0
    %6365 = vmatmul.mubr.bf16.gmra.mrb[0].mxu0 %v6327
    %v6366 = vpop.f32.mrb[0].mxu0
    %v6367 = vadd.f32 0.0, %v6366
    %v6368 = vpop.f32.mrb[0].mxu0
    %v6369 = vpop.f32.mrb[0].mxu0
    %v6370 = vpop.f32.mrb[0].mxu0
    %6371 = vdwg.mxu0
    %6372 = vrot.lane.b32.xlu0 %v5541, 40
    %v6373 = vpop.permute.xlu0 %6372
    %v6375 = vsel %vm483, %v6323, 0
    %v6378 = vsel %vm608, %v6373, 0
    %6380 = vmatprep.subr.bf16.mxu0 0
    %6381 = vmatpush1.bf16.msra.mxu0 %v6378
    %6382 = vmatprep.subr.bf16.mxu0 0
    %6383 = vmatpush1.bf16.msra.mxu0 0
    %6384 = vmatprep.subr.bf16.mxu0 0
    %6385 = vmatpush1.bf16.msra.mxu0 0
    %6386 = vmatprep.subr.bf16.mxu0 0
    %6387 = vmatpush1.bf16.msra.mxu0 0
    %6388 = vmatprep.subr.bf16.mxu0 0
    %6389 = vmatpush1.bf16.msra.mxu0 0
    %6390 = vmatprep.subr.bf16.mxu0 0
    %6391 = vmatpush1.bf16.msra.mxu0 0
    %6392 = vmatprep.subr.bf16.mxu0 0
    %6393 = vmatpush1.bf16.msra.mxu0 0
    %6394 = vmatprep.subr.bf16.mxu0 0
    %6395 = vmatpush1.bf16.msra.mxu0 0
    %6396 = vmatprep.subr.bf16.mxu0 0
    %6397 = vmatpush1.bf16.msra.mxu0 0
    %6398 = vmatprep.subr.bf16.mxu0 0
    %6399 = vmatpush1.bf16.msra.mxu0 0
    %6400 = vmatprep.subr.bf16.mxu0 0
    %6401 = vmatpush1.bf16.msra.mxu0 0
    %6402 = vmatprep.subr.bf16.mxu0 0
    %6403 = vmatpush1.bf16.msra.mxu0 0
    %6404 = vmatprep.subr.bf16.mxu0 0
    %6405 = vmatpush1.bf16.msra.mxu0 0
    %6406 = vmatprep.subr.bf16.mxu0 0
    %6407 = vmatpush1.bf16.msra.mxu0 0
    %6408 = vmatprep.subr.bf16.mxu0 0
    %6409 = vmatpush1.bf16.msra.mxu0 0
    %6410 = vmatprep.subr.bf16.mxu0 0
    %6411 = vmatpush1.bf16.msra.mxu0 0
    %6412 = vmatprep.mubr.bf16.mxu0 0
    %6413 = vmatmul.mubr.bf16.gmra.mrb[0].mxu0 %v6375
    %v6414 = vpop.f32.mrb[0].mxu0
    %v6415 = vadd.f32 0.0, %v6414
    %v6416 = vpop.f32.mrb[0].mxu0
    %v6417 = vpop.f32.mrb[0].mxu0
    %v6418 = vpop.f32.mrb[0].mxu0
    %6419 = vdwg.mxu0
    %6422 = vrot.lane.b32.xlu0 %v5927, 8
    %v6423 = vpop.permute.xlu0 %6422
    %6424 = vrot.lane.b32.xlu0 %v5975, 8
    %v6425 = vpop.permute.xlu0 %6424
    %6430 = vrot.lane.b32.xlu0 %v6147, 16
    %v6431 = vpop.permute.xlu0 %6430
    %6432 = vrot.lane.b32.xlu0 %v6195, 16
    %v6433 = vpop.permute.xlu0 %6432
    %6438 = vrot.lane.b32.xlu0 %v6367, 24
    %v6439 = vpop.permute.xlu0 %6438
    %6440 = vrot.lane.b32.xlu0 %v6415, 24
    %v6441 = vpop.permute.xlu0 %6440
    %v6444 = vsel %vm483, %v5707, %v6423
    %v6445 = vsel %vm483, %v5755, %v6425
    %v6446 = vsel %vm1386, %v6444, %v6431
    %v6447 = vsel %vm1386, %v6445, %v6433
    %v6448 = vsel %vm1389, %v6446, %v6439
    %v6449 = vsel %vm1389, %v6447, %v6441
    %v6450 = vpack.c.bf16 %v6449, %v6448
    %v6452 = vlaneseq
    %v6453 = vshrl.u32 %v6452, 7
    %v6454 = vsub.s32 0, %v6453
    %v6455 = vrot.slane %v5476, %v6454
    %v6461 = vunpack.c.l.b16 %v5471
    %v6462 = vunpack.c.l.b16 %v5472
    %v6463 = vunpack.c.l.b16 %v5473
    %v6464 = vunpack.c.l.b16 %v5474
    %v6465 = vpack.c.b16 %v6462, %v6461
    %v6466 = vpack.c.b16 %v6464, %v6463
    %v6470 = vsel %vm433, %v6450, 0
    %6472 = vmatprep.subr.bf16.mxu0 0
    %6473 = vmatpush1.bf16.msra.mxu0 %v6465
    %6474 = vmatprep.subr.bf16.mxu0 0
    %6475 = vmatpush1.bf16.msra.mxu0 %v6466
    %6476 = vmatprep.subr.bf16.mxu0 0
    %6477 = vmatpush1.bf16.msra.mxu0 0
    %6478 = vmatprep.subr.bf16.mxu0 0
    %6479 = vmatpush1.bf16.msra.mxu0 0
    %6480 = vmatprep.subr.bf16.mxu0 0
    %6481 = vmatpush1.bf16.msra.mxu0 0
    %6482 = vmatprep.subr.bf16.mxu0 0
    %6483 = vmatpush1.bf16.msra.mxu0 0
    %6484 = vmatprep.subr.bf16.mxu0 0
    %6485 = vmatpush1.bf16.msra.mxu0 0
    %6486 = vmatprep.subr.bf16.mxu0 0
    %6487 = vmatpush1.bf16.msra.mxu0 0
    %6488 = vmatprep.subr.bf16.mxu0 0
    %6489 = vmatpush1.bf16.msra.mxu0 0
    %6490 = vmatprep.subr.bf16.mxu0 0
    %6491 = vmatpush1.bf16.msra.mxu0 0
    %6492 = vmatprep.subr.bf16.mxu0 0
    %6493 = vmatpush1.bf16.msra.mxu0 0
    %6494 = vmatprep.subr.bf16.mxu0 0
    %6495 = vmatpush1.bf16.msra.mxu0 0
    %6496 = vmatprep.subr.bf16.mxu0 0
    %6497 = vmatpush1.bf16.msra.mxu0 0
    %6498 = vmatprep.subr.bf16.mxu0 0
    %6499 = vmatpush1.bf16.msra.mxu0 0
    %6500 = vmatprep.subr.bf16.mxu0 0
    %6501 = vmatpush1.bf16.msra.mxu0 0
    %6502 = vmatprep.subr.bf16.mxu0 0
    %6503 = vmatpush1.bf16.msra.mxu0 0
    %6504 = vmatprep.mubr.bf16.mxu0 0
    %6505 = vmatmul.mubr.bf16.gmra.mrb[0].mxu0 %v6470
    %v6506 = vpop.f32.mrb[0].mxu0
    %v6507 = vadd.f32 %v6455, %v6506
    %v6508 = vpop.f32.mrb[0].mxu0
    %v6509 = vpop.f32.mrb[0].mxu0
    %v6510 = vadd.f32 %v6455, %v6509
    %v6511 = vpop.f32.mrb[0].mxu0
    %6512 = vdwg.mxu0
    %v6513 = vadd.f32 %v5461, %v6507
    %v6514 = vadd.f32 %v5462, %v6510
    %s6515 = scalar_lea.vmem %s59, 1
    %v6516 = vld [vmem:[%s6515] sm:$0x1]
    %s6517 = scalar_lea.vmem %s61, 1
    %v6518 = vld [vmem:[%s6517] sm:$0x1]
    %v6519 = vsel %vm433, %v6513, 0.0
    %6520 = vadd.xlane.f32.xlu0 %v6519
    %v6521 = vpop.xlane.xlu0 %6520
    %v6522 = vsel %vm433, %v6514, 0.0
    %6523 = vadd.xlane.f32.xlu0 %v6522
    %v6524 = vpop.xlane.xlu0 %6523
    %v6525 = vmul.f32 %v6521, %v1465
    %v6526 = vmul.f32 %v6524, %v1465
    %v6527 = vsub.f32 %v6513, %v6525
    %v6528 = vsub.f32 %v6514, %v6526
    %v6529 = vmul.f32 %v6527, %v6527
    %v6530 = vmul.f32 %v6528, %v6528
    %v6531 = vsel %vm433, %v6529, 0.0
    %6532 = vadd.xlane.f32.xlu0 %v6531
    %v6533 = vpop.xlane.xlu0 %6532
    %v6534 = vsel %vm433, %v6530, 0.0
    %6535 = vadd.xlane.f32.xlu0 %v6534
    %v6536 = vpop.xlane.xlu0 %6535
    %v6537 = vmul.f32 %v6533, %v1465
    %v6538 = vmul.f32 %v6536, %v1465
    %v6539 = vadd.f32 %v6537, 1e-05
    %v6540 = vadd.f32 %v6538, 1e-05
    %v6541 = vrsqrt.pop %v6539
    %v6542 = vrsqrt.pop %v6540
    %v6543 = vmul.f32 %v6527, %v6541
    %v6544 = vmul.f32 %v6528, %v6542
    %v6546 = vlaneseq
    %v6547 = vshrl.u32 %v6546, 7
    %v6548 = vsub.s32 0, %v6547
    %v6549 = vrot.slane %v6516, %v6548
    %v6551 = vmul.f32 %v6543, %v6549
    %v6552 = vmul.f32 %v6544, %v6549
    %v6554 = vlaneseq
    %v6555 = vshrl.u32 %v6554, 7
    %v6556 = vsub.s32 0, %v6555
    %v6557 = vrot.slane %v6518, %v6556
    %v6559 = vadd.f32 %v6551, %v6557
    %v6560 = vadd.f32 %v6552, %v6557
    %s6561 = scalar_lea.vmem %s39, 16
    %v6562 = vld [vmem:[%s6561] sm:$0xf]
    %v6563 = vld [vmem:[%s6561 + $0x4] sm:$0xf]
    %v6564 = vld [vmem:[%s6561 + $0x8] sm:$0xf]
    %v6565 = vld [vmem:[%s6561 + $0xc] sm:$0xf]
    %s6566 = scalar_lea.vmem [#allocation22], 1
    %v6567 = vld [vmem:[%s6566] sm:$0x1]
    %s6568 = scalar_lea.vmem [#allocation23], 16
    %v6569 = vld [vmem:[%s6568] sm:$0xf]
    %v6570 = vld [vmem:[%s6568 + $0x4] sm:$0xf]
    %v6571 = vld [vmem:[%s6568 + $0x8] sm:$0xf]
    %v6572 = vld [vmem:[%s6568 + $0xc] sm:$0xf]
    %s6573 = scalar_lea.vmem [#allocation25], 1
    %v6574 = vld [vmem:[%s6573] sm:$0x1]
    %s6575 = scalar_lea.vmem [#allocation26], 16
    %v6576 = vld [vmem:[%s6575] sm:$0xf]
    %v6577 = vld [vmem:[%s6575 + $0x4] sm:$0xf]
    %v6578 = vld [vmem:[%s6575 + $0x8] sm:$0xf]
    %v6579 = vld [vmem:[%s6575 + $0xc] sm:$0xf]
    %s6580 = scalar_lea.vmem %s49, 1
    %v6581 = vld [vmem:[%s6580] sm:$0x1]
    %v6582 = vpack.c.bf16 %v6560, %v6559
    %v6584 = vlaneseq
    %v6585 = vshrl.u32 %v6584, 7
    %v6586 = vsub.s32 0, %v6585
    %v6587 = vrot.slane %v6567, %v6586
    %v6593 = vunpack.c.l.b16 %v6562
    %v6594 = vunpack.c.l.b16 %v6563
    %v6595 = vunpack.c.l.b16 %v6564
    %v6596 = vunpack.c.l.b16 %v6565
    %v6597 = vpack.c.b16 %v6594, %v6593
    %v6598 = vpack.c.b16 %v6596, %v6595
    %v6602 = vsel %vm433, %v6582, 0
    %6604 = vmatprep.subr.bf16.mxu0 0
    %6605 = vmatpush1.bf16.msra.mxu0 %v6597
    %6606 = vmatprep.subr.bf16.mxu0 0
    %6607 = vmatpush1.bf16.msra.mxu0 %v6598
    %6608 = vmatprep.subr.bf16.mxu0 0
    %6609 = vmatpush1.bf16.msra.mxu0 0
    %6610 = vmatprep.subr.bf16.mxu0 0
    %6611 = vmatpush1.bf16.msra.mxu0 0
    %6612 = vmatprep.subr.bf16.mxu0 0
    %6613 = vmatpush1.bf16.msra.mxu0 0
    %6614 = vmatprep.subr.bf16.mxu0 0
    %6615 = vmatpush1.bf16.msra.mxu0 0
    %6616 = vmatprep.subr.bf16.mxu0 0
    %6617 = vmatpush1.bf16.msra.mxu0 0
    %6618 = vmatprep.subr.bf16.mxu0 0
    %6619 = vmatpush1.bf16.msra.mxu0 0
    %6620 = vmatprep.subr.bf16.mxu0 0
    %6621 = vmatpush1.bf16.msra.mxu0 0
    %6622 = vmatprep.subr.bf16.mxu0 0
    %6623 = vmatpush1.bf16.msra.mxu0 0
    %6624 = vmatprep.subr.bf16.mxu0 0
    %6625 = vmatpush1.bf16.msra.mxu0 0
    %6626 = vmatprep.subr.bf16.mxu0 0
    %6627 = vmatpush1.bf16.msra.mxu0 0
    %6628 = vmatprep.subr.bf16.mxu0 0
    %6629 = vmatpush1.bf16.msra.mxu0 0
    %6630 = vmatprep.subr.bf16.mxu0 0
    %6631 = vmatpush1.bf16.msra.mxu0 0
    %6632 = vmatprep.subr.bf16.mxu0 0
    %6633 = vmatpush1.bf16.msra.mxu0 0
    %6634 = vmatprep.subr.bf16.mxu0 0
    %6635 = vmatpush1.bf16.msra.mxu0 0
    %6636 = vmatprep.mubr.bf16.mxu0 0
    %6637 = vmatmul.mubr.bf16.gmra.mrb[0].mxu0 %v6602
    %v6638 = vpop.f32.mrb[0].mxu0
    %v6639 = vadd.f32 %v6587, %v6638
    %v6640 = vpop.f32.mrb[0].mxu0
    %v6641 = vpop.f32.mrb[0].mxu0
    %v6642 = vadd.f32 %v6587, %v6641
    %v6643 = vpop.f32.mrb[0].mxu0
    %6644 = vdwg.mxu0
    %v6646 = vlaneseq
    %v6647 = vshrl.u32 %v6646, 7
    %v6648 = vsub.s32 0, %v6647
    %v6649 = vrot.slane %v6574, %v6648
    %v6655 = vunpack.c.l.b16 %v6569
    %v6656 = vunpack.c.l.b16 %v6570
    %v6657 = vunpack.c.l.b16 %v6571
    %v6658 = vunpack.c.l.b16 %v6572
    %v6659 = vpack.c.b16 %v6656, %v6655
    %v6660 = vpack.c.b16 %v6658, %v6657
    %6663 = vmatprep.subr.bf16.mxu0 0
    %6664 = vmatpush1.bf16.msra.mxu0 %v6659
    %6665 = vmatprep.subr.bf16.mxu0 0
    %6666 = vmatpush1.bf16.msra.mxu0 %v6660
    %6667 = vmatprep.subr.bf16.mxu0 0
    %6668 = vmatpush1.bf16.msra.mxu0 0
    %6669 = vmatprep.subr.bf16.mxu0 0
    %6670 = vmatpush1.bf16.msra.mxu0 0
    %6671 = vmatprep.subr.bf16.mxu0 0
    %6672 = vmatpush1.bf16.msra.mxu0 0
    %6673 = vmatprep.subr.bf16.mxu0 0
    %6674 = vmatpush1.bf16.msra.mxu0 0
    %6675 = vmatprep.subr.bf16.mxu0 0
    %6676 = vmatpush1.bf16.msra.mxu0 0
    %6677 = vmatprep.subr.bf16.mxu0 0
    %6678 = vmatpush1.bf16.msra.mxu0 0
    %6679 = vmatprep.subr.bf16.mxu0 0
    %6680 = vmatpush1.bf16.msra.mxu0 0
    %6681 = vmatprep.subr.bf16.mxu0 0
    %6682 = vmatpush1.bf16.msra.mxu0 0
    %6683 = vmatprep.subr.bf16.mxu0 0
    %6684 = vmatpush1.bf16.msra.mxu0 0
    %6685 = vmatprep.subr.bf16.mxu0 0
    %6686 = vmatpush1.bf16.msra.mxu0 0
    %6687 = vmatprep.subr.bf16.mxu0 0
    %6688 = vmatpush1.bf16.msra.mxu0 0
    %6689 = vmatprep.subr.bf16.mxu0 0
    %6690 = vmatpush1.bf16.msra.mxu0 0
    %6691 = vmatprep.subr.bf16.mxu0 0
    %6692 = vmatpush1.bf16.msra.mxu0 0
    %6693 = vmatprep.subr.bf16.mxu0 0
    %6694 = vmatpush1.bf16.msra.mxu0 0
    %6695 = vmatprep.mubr.bf16.mxu0 0
    %6696 = vmatmul.mubr.bf16.gmra.mrb[0].mxu0 %v4201
    %v6697 = vpop.f32.mrb[0].mxu0
    %v6698 = vadd.f32 %v6649, %v6697
    %v6699 = vpop.f32.mrb[0].mxu0
    %v6700 = vpop.f32.mrb[0].mxu0
    %v6701 = vadd.f32 %v6649, %v6700
    %v6702 = vpop.f32.mrb[0].mxu0
    %6703 = vdwg.mxu0
    %v6704 = vpack.c.bf16 %v6639, %v6639
    %v6705 = vpack.c.bf16 %v6642, %v6642
    %v6706 = vpack.c.bf16 %v6698, %v6698
    %v6707 = vpack.c.bf16 %v6701, %v6701
    %v6709 = vsel %vm483, %v6704, 0
    %v6712 = vsel %vm483, %v6706, 0
    %6714 = vmatprep.subr.bf16.mxu0 0
    %6715 = vmatpush1.bf16.xpose.msra.mxu0 %v6712
    %6716 = vmatprep.subr.bf16.mxu0 0
    %6717 = vmatpush1.bf16.xpose.msra.mxu0 0
    %6718 = vmatprep.subr.bf16.mxu0 0
    %6719 = vmatpush1.bf16.xpose.msra.mxu0 0
    %6720 = vmatprep.subr.bf16.mxu0 0
    %6721 = vmatpush1.bf16.xpose.msra.mxu0 0
    %6722 = vmatprep.subr.bf16.mxu0 0
    %6723 = vmatpush1.bf16.xpose.msra.mxu0 0
    %6724 = vmatprep.subr.bf16.mxu0 0
    %6725 = vmatpush1.bf16.xpose.msra.mxu0 0
    %6726 = vmatprep.subr.bf16.mxu0 0
    %6727 = vmatpush1.bf16.xpose.msra.mxu0 0
    %6728 = vmatprep.subr.bf16.mxu0 0
    %6729 = vmatpush1.bf16.xpose.msra.mxu0 0
    %6730 = vmatprep.subr.bf16.mxu0 0
    %6731 = vmatpush1.bf16.xpose.msra.mxu0 0
    %6732 = vmatprep.subr.bf16.mxu0 0
    %6733 = vmatpush1.bf16.xpose.msra.mxu0 0
    %6734 = vmatprep.subr.bf16.mxu0 0
    %6735 = vmatpush1.bf16.xpose.msra.mxu0 0
    %6736 = vmatprep.subr.bf16.mxu0 0
    %6737 = vmatpush1.bf16.xpose.msra.mxu0 0
    %6738 = vmatprep.subr.bf16.mxu0 0
    %6739 = vmatpush1.bf16.xpose.msra.mxu0 0
    %6740 = vmatprep.subr.bf16.mxu0 0
    %6741 = vmatpush1.bf16.xpose.msra.mxu0 0
    %6742 = vmatprep.subr.bf16.mxu0 0
    %6743 = vmatpush1.bf16.xpose.msra.mxu0 0
    %6744 = vmatprep.subr.bf16.mxu0 0
    %6745 = vmatpush1.bf16.xpose.msra.mxu0 0
    %6746 = vmatprep.mubr.bf16.mxu0 0
    %6747 = vmatmul.mubr.bf16.gmra.mrb[0].mxu0 %v6709
    %v6748 = vpop.f32.mrb[0].mxu0
    %v6749 = vadd.f32 0.0, %v6748
    %v6750 = vpop.f32.mrb[0].mxu0
    %v6751 = vpop.f32.mrb[0].mxu0
    %v6752 = vpop.f32.mrb[0].mxu0
    %6753 = vdwg.mxu0
    %v6755 = vsel %vm483, %v6705, 0
    %v6758 = vsel %vm483, %v6707, 0
    %6760 = vmatprep.subr.bf16.mxu0 0
    %6761 = vmatpush1.bf16.xpose.msra.mxu0 %v6758
    %6762 = vmatprep.subr.bf16.mxu0 0
    %6763 = vmatpush1.bf16.xpose.msra.mxu0 0
    %6764 = vmatprep.subr.bf16.mxu0 0
    %6765 = vmatpush1.bf16.xpose.msra.mxu0 0
    %6766 = vmatprep.subr.bf16.mxu0 0
    %6767 = vmatpush1.bf16.xpose.msra.mxu0 0
    %6768 = vmatprep.subr.bf16.mxu0 0
    %6769 = vmatpush1.bf16.xpose.msra.mxu0 0
    %6770 = vmatprep.subr.bf16.mxu0 0
    %6771 = vmatpush1.bf16.xpose.msra.mxu0 0
    %6772 = vmatprep.subr.bf16.mxu0 0
    %6773 = vmatpush1.bf16.xpose.msra.mxu0 0
    %6774 = vmatprep.subr.bf16.mxu0 0
    %6775 = vmatpush1.bf16.xpose.msra.mxu0 0
    %6776 = vmatprep.subr.bf16.mxu0 0
    %6777 = vmatpush1.bf16.xpose.msra.mxu0 0
    %6778 = vmatprep.subr.bf16.mxu0 0
    %6779 = vmatpush1.bf16.xpose.msra.mxu0 0
    %6780 = vmatprep.subr.bf16.mxu0 0
    %6781 = vmatpush1.bf16.xpose.msra.mxu0 0
    %6782 = vmatprep.subr.bf16.mxu0 0
    %6783 = vmatpush1.bf16.xpose.msra.mxu0 0
    %6784 = vmatprep.subr.bf16.mxu0 0
    %6785 = vmatpush1.bf16.xpose.msra.mxu0 0
    %6786 = vmatprep.subr.bf16.mxu0 0
    %6787 = vmatpush1.bf16.xpose.msra.mxu0 0
    %6788 = vmatprep.subr.bf16.mxu0 0
    %6789 = vmatpush1.bf16.xpose.msra.mxu0 0
    %6790 = vmatprep.subr.bf16.mxu0 0
    %6791 = vmatpush1.bf16.xpose.msra.mxu0 0
    %6792 = vmatprep.mubr.bf16.mxu0 0
    %6793 = vmatmul.mubr.bf16.gmra.mrb[0].mxu0 %v6755
    %v6794 = vpop.f32.mrb[0].mxu0
    %v6795 = vadd.f32 0.0, %v6794
    %v6796 = vpop.f32.mrb[0].mxu0
    %v6797 = vpop.f32.mrb[0].mxu0
    %v6798 = vpop.f32.mrb[0].mxu0
    %6799 = vdwg.mxu0
    %v6800 = vsel %vm483, %v6749, -inf
    %6801 = vmax.xlane.f32.xlu0 %v6800
    %v6802 = vpop.xlane.xlu0 %6801
    %v6803 = vsel %vm483, %v6795, -inf
    %6804 = vmax.xlane.f32.xlu0 %v6803
    %v6805 = vpop.xlane.xlu0 %6804
    %v6806 = vsub.f32 %v6749, %v6802
    %v6807 = vsub.f32 %v6795, %v6805
    %v6808 = vmul.f32 %v6806, 1.442695
    %v6809 = vpow.pop %v6808
    %v6810 = vmul.f32 %v6807, 1.442695
    %v6811 = vpow.pop %v6810
    %v6812 = vsel %vm483, %v6809, 0.0
    %6813 = vadd.xlane.f32.xlu0 %v6812
    %v6814 = vpop.xlane.xlu0 %6813
    %v6815 = vsel %vm483, %v6811, 0.0
    %6816 = vadd.xlane.f32.xlu0 %v6815
    %v6817 = vpop.xlane.xlu0 %6816
    %v6818 = vrcp.pop %v6814
    %v6819 = vrcp.pop %v6817
    %v6820 = vmul.f32 %v6809, %v6818
    %v6821 = vmul.f32 %v6811, %v6819
    %v6822 = vpack.c.bf16 %v6820, %v6820
    %v6823 = vpack.c.bf16 %v6821, %v6821
    %6825 = vrot.lane.b32.xlu0 %v6706, 96
    %v6826 = vpop.permute.xlu0 %6825
    %v6828 = vsel %vm483, %v6822, 0
    %v6831 = vsel %vm608, %v6826, 0
    %6833 = vmatprep.subr.bf16.mxu0 0
    %6834 = vmatpush1.bf16.msra.mxu0 %v6831
    %6835 = vmatprep.subr.bf16.mxu0 0
    %6836 = vmatpush1.bf16.msra.mxu0 0
    %6837 = vmatprep.subr.bf16.mxu0 0
    %6838 = vmatpush1.bf16.msra.mxu0 0
    %6839 = vmatprep.subr.bf16.mxu0 0
    %6840 = vmatpush1.bf16.msra.mxu0 0
    %6841 = vmatprep.subr.bf16.mxu0 0
    %6842 = vmatpush1.bf16.msra.mxu0 0
    %6843 = vmatprep.subr.bf16.mxu0 0
    %6844 = vmatpush1.bf16.msra.mxu0 0
    %6845 = vmatprep.subr.bf16.mxu0 0
    %6846 = vmatpush1.bf16.msra.mxu0 0
    %6847 = vmatprep.subr.bf16.mxu0 0
    %6848 = vmatpush1.bf16.msra.mxu0 0
    %6849 = vmatprep.subr.bf16.mxu0 0
    %6850 = vmatpush1.bf16.msra.mxu0 0
    %6851 = vmatprep.subr.bf16.mxu0 0
    %6852 = vmatpush1.bf16.msra.mxu0 0
    %6853 = vmatprep.subr.bf16.mxu0 0
    %6854 = vmatpush1.bf16.msra.mxu0 0
    %6855 = vmatprep.subr.bf16.mxu0 0
    %6856 = vmatpush1.bf16.msra.mxu0 0
    %6857 = vmatprep.subr.bf16.mxu0 0
    %6858 = vmatpush1.bf16.msra.mxu0 0
    %6859 = vmatprep.subr.bf16.mxu0 0
    %6860 = vmatpush1.bf16.msra.mxu0 0
    %6861 = vmatprep.subr.bf16.mxu0 0
    %6862 = vmatpush1.bf16.msra.mxu0 0
    %6863 = vmatprep.subr.bf16.mxu0 0
    %6864 = vmatpush1.bf16.msra.mxu0 0
    %6865 = vmatprep.mubr.bf16.mxu0 0
    %6866 = vmatmul.mubr.bf16.gmra.mrb[0].mxu0 %v6828
    %v6867 = vpop.f32.mrb[0].mxu0
    %v6868 = vadd.f32 0.0, %v6867
    %v6869 = vpop.f32.mrb[0].mxu0
    %v6870 = vpop.f32.mrb[0].mxu0
    %v6871 = vpop.f32.mrb[0].mxu0
    %6872 = vdwg.mxu0
    %6874 = vrot.lane.b32.xlu0 %v6707, 96
    %v6875 = vpop.permute.xlu0 %6874
    %v6877 = vsel %vm483, %v6823, 0
    %v6880 = vsel %vm608, %v6875, 0
    %6882 = vmatprep.subr.bf16.mxu0 0
    %6883 = vmatpush1.bf16.msra.mxu0 %v6880
    %6884 = vmatprep.subr.bf16.mxu0 0
    %6885 = vmatpush1.bf16.msra.mxu0 0
    %6886 = vmatprep.subr.bf16.mxu0 0
    %6887 = vmatpush1.bf16.msra.mxu0 0
    %6888 = vmatprep.subr.bf16.mxu0 0
    %6889 = vmatpush1.bf16.msra.mxu0 0
    %6890 = vmatprep.subr.bf16.mxu0 0
    %6891 = vmatpush1.bf16.msra.mxu0 0
    %6892 = vmatprep.subr.bf16.mxu0 0
    %6893 = vmatpush1.bf16.msra.mxu0 0
    %6894 = vmatprep.subr.bf16.mxu0 0
    %6895 = vmatpush1.bf16.msra.mxu0 0
    %6896 = vmatprep.subr.bf16.mxu0 0
    %6897 = vmatpush1.bf16.msra.mxu0 0
    %6898 = vmatprep.subr.bf16.mxu0 0
    %6899 = vmatpush1.bf16.msra.mxu0 0
    %6900 = vmatprep.subr.bf16.mxu0 0
    %6901 = vmatpush1.bf16.msra.mxu0 0
    %6902 = vmatprep.subr.bf16.mxu0 0
    %6903 = vmatpush1.bf16.msra.mxu0 0
    %6904 = vmatprep.subr.bf16.mxu0 0
    %6905 = vmatpush1.bf16.msra.mxu0 0
    %6906 = vmatprep.subr.bf16.mxu0 0
    %6907 = vmatpush1.bf16.msra.mxu0 0
    %6908 = vmatprep.subr.bf16.mxu0 0
    %6909 = vmatpush1.bf16.msra.mxu0 0
    %6910 = vmatprep.subr.bf16.mxu0 0
    %6911 = vmatpush1.bf16.msra.mxu0 0
    %6912 = vmatprep.subr.bf16.mxu0 0
    %6913 = vmatpush1.bf16.msra.mxu0 0
    %6914 = vmatprep.mubr.bf16.mxu0 0
    %6915 = vmatmul.mubr.bf16.gmra.mrb[0].mxu0 %v6877
    %v6916 = vpop.f32.mrb[0].mxu0
    %v6917 = vadd.f32 0.0, %v6916
    %v6918 = vpop.f32.mrb[0].mxu0
    %v6919 = vpop.f32.mrb[0].mxu0
    %v6920 = vpop.f32.mrb[0].mxu0
    %6921 = vdwg.mxu0
    %6923 = vrot.lane.b32.xlu0 %v6704, 120
    %v6924 = vpop.permute.xlu0 %6923
    %6925 = vrot.lane.b32.xlu0 %v6706, 120
    %v6926 = vpop.permute.xlu0 %6925
    %v6928 = vsel %vm483, %v6924, 0
    %v6931 = vsel %vm483, %v6926, 0
    %6933 = vmatprep.subr.bf16.mxu0 0
    %6934 = vmatpush1.bf16.xpose.msra.mxu0 %v6931
    %6935 = vmatprep.subr.bf16.mxu0 0
    %6936 = vmatpush1.bf16.xpose.msra.mxu0 0
    %6937 = vmatprep.subr.bf16.mxu0 0
    %6938 = vmatpush1.bf16.xpose.msra.mxu0 0
    %6939 = vmatprep.subr.bf16.mxu0 0
    %6940 = vmatpush1.bf16.xpose.msra.mxu0 0
    %6941 = vmatprep.subr.bf16.mxu0 0
    %6942 = vmatpush1.bf16.xpose.msra.mxu0 0
    %6943 = vmatprep.subr.bf16.mxu0 0
    %6944 = vmatpush1.bf16.xpose.msra.mxu0 0
    %6945 = vmatprep.subr.bf16.mxu0 0
    %6946 = vmatpush1.bf16.xpose.msra.mxu0 0
    %6947 = vmatprep.subr.bf16.mxu0 0
    %6948 = vmatpush1.bf16.xpose.msra.mxu0 0
    %6949 = vmatprep.subr.bf16.mxu0 0
    %6950 = vmatpush1.bf16.xpose.msra.mxu0 0
    %6951 = vmatprep.subr.bf16.mxu0 0
    %6952 = vmatpush1.bf16.xpose.msra.mxu0 0
    %6953 = vmatprep.subr.bf16.mxu0 0
    %6954 = vmatpush1.bf16.xpose.msra.mxu0 0
    %6955 = vmatprep.subr.bf16.mxu0 0
    %6956 = vmatpush1.bf16.xpose.msra.mxu0 0
    %6957 = vmatprep.subr.bf16.mxu0 0
    %6958 = vmatpush1.bf16.xpose.msra.mxu0 0
    %6959 = vmatprep.subr.bf16.mxu0 0
    %6960 = vmatpush1.bf16.xpose.msra.mxu0 0
    %6961 = vmatprep.subr.bf16.mxu0 0
    %6962 = vmatpush1.bf16.xpose.msra.mxu0 0
    %6963 = vmatprep.subr.bf16.mxu0 0
    %6964 = vmatpush1.bf16.xpose.msra.mxu0 0
    %6965 = vmatprep.mubr.bf16.mxu0 0
    %6966 = vmatmul.mubr.bf16.gmra.mrb[0].mxu0 %v6928
    %v6967 = vpop.f32.mrb[0].mxu0
    %v6968 = vadd.f32 0.0, %v6967
    %v6969 = vpop.f32.mrb[0].mxu0
    %v6970 = vpop.f32.mrb[0].mxu0
    %v6971 = vpop.f32.mrb[0].mxu0
    %6972 = vdwg.mxu0
    %6974 = vrot.lane.b32.xlu0 %v6705, 120
    %v6975 = vpop.permute.xlu0 %6974
    %6976 = vrot.lane.b32.xlu0 %v6707, 120
    %v6977 = vpop.permute.xlu0 %6976
    %v6979 = vsel %vm483, %v6975, 0
    %v6982 = vsel %vm483, %v6977, 0
    %6984 = vmatprep.subr.bf16.mxu0 0
    %6985 = vmatpush1.bf16.xpose.msra.mxu0 %v6982
    %6986 = vmatprep.subr.bf16.mxu0 0
    %6987 = vmatpush1.bf16.xpose.msra.mxu0 0
    %6988 = vmatprep.subr.bf16.mxu0 0
    %6989 = vmatpush1.bf16.xpose.msra.mxu0 0
    %6990 = vmatprep.subr.bf16.mxu0 0
    %6991 = vmatpush1.bf16.xpose.msra.mxu0 0
    %6992 = vmatprep.subr.bf16.mxu0 0
    %6993 = vmatpush1.bf16.xpose.msra.mxu0 0
    %6994 = vmatprep.subr.bf16.mxu0 0
    %6995 = vmatpush1.bf16.xpose.msra.mxu0 0
    %6996 = vmatprep.subr.bf16.mxu0 0
    %6997 = vmatpush1.bf16.xpose.msra.mxu0 0
    %6998 = vmatprep.subr.bf16.mxu0 0
    %6999 = vmatpush1.bf16.xpose.msra.mxu0 0
    %7000 = vmatprep.subr.bf16.mxu0 0
    %7001 = vmatpush1.bf16.xpose.msra.mxu0 0
    %7002 = vmatprep.subr.bf16.mxu0 0
    %7003 = vmatpush1.bf16.xpose.msra.mxu0 0
    %7004 = vmatprep.subr.bf16.mxu0 0
    %7005 = vmatpush1.bf16.xpose.msra.mxu0 0
    %7006 = vmatprep.subr.bf16.mxu0 0
    %7007 = vmatpush1.bf16.xpose.msra.mxu0 0
    %7008 = vmatprep.subr.bf16.mxu0 0
    %7009 = vmatpush1.bf16.xpose.msra.mxu0 0
    %7010 = vmatprep.subr.bf16.mxu0 0
    %7011 = vmatpush1.bf16.xpose.msra.mxu0 0
    %7012 = vmatprep.subr.bf16.mxu0 0
    %7013 = vmatpush1.bf16.xpose.msra.mxu0 0
    %7014 = vmatprep.subr.bf16.mxu0 0
    %7015 = vmatpush1.bf16.xpose.msra.mxu0 0
    %7016 = vmatprep.mubr.bf16.mxu0 0
    %7017 = vmatmul.mubr.bf16.gmra.mrb[0].mxu0 %v6979
    %v7018 = vpop.f32.mrb[0].mxu0
    %v7019 = vadd.f32 0.0, %v7018
    %v7020 = vpop.f32.mrb[0].mxu0
    %v7021 = vpop.f32.mrb[0].mxu0
    %v7022 = vpop.f32.mrb[0].mxu0
    %7023 = vdwg.mxu0
    %v7024 = vsel %vm483, %v6968, -inf
    %7025 = vmax.xlane.f32.xlu0 %v7024
    %v7026 = vpop.xlane.xlu0 %7025
    %v7027 = vsel %vm483, %v7019, -inf
    %7028 = vmax.xlane.f32.xlu0 %v7027
    %v7029 = vpop.xlane.xlu0 %7028
    %v7030 = vsub.f32 %v6968, %v7026
    %v7031 = vsub.f32 %v7019, %v7029
    %v7032 = vmul.f32 %v7030, 1.442695
    %v7033 = vpow.pop %v7032
    %v7034 = vmul.f32 %v7031, 1.442695
    %v7035 = vpow.pop %v7034
    %v7036 = vsel %vm483, %v7033, 0.0
    %7037 = vadd.xlane.f32.xlu0 %v7036
    %v7038 = vpop.xlane.xlu0 %7037
    %v7039 = vsel %vm483, %v7035, 0.0
    %7040 = vadd.xlane.f32.xlu0 %v7039
    %v7041 = vpop.xlane.xlu0 %7040
    %v7042 = vrcp.pop %v7038
    %v7043 = vrcp.pop %v7041
    %v7044 = vmul.f32 %v7033, %v7042
    %v7045 = vmul.f32 %v7035, %v7043
    %v7046 = vpack.c.bf16 %v7044, %v7044
    %v7047 = vpack.c.bf16 %v7045, %v7045
    %7048 = vrot.lane.b32.xlu0 %v6706, 88
    %v7049 = vpop.permute.xlu0 %7048
    %v7051 = vsel %vm483, %v7046, 0
    %v7054 = vsel %vm608, %v7049, 0
    %7056 = vmatprep.subr.bf16.mxu0 0
    %7057 = vmatpush1.bf16.msra.mxu0 %v7054
    %7058 = vmatprep.subr.bf16.mxu0 0
    %7059 = vmatpush1.bf16.msra.mxu0 0
    %7060 = vmatprep.subr.bf16.mxu0 0
    %7061 = vmatpush1.bf16.msra.mxu0 0
    %7062 = vmatprep.subr.bf16.mxu0 0
    %7063 = vmatpush1.bf16.msra.mxu0 0
    %7064 = vmatprep.subr.bf16.mxu0 0
    %7065 = vmatpush1.bf16.msra.mxu0 0
    %7066 = vmatprep.subr.bf16.mxu0 0
    %7067 = vmatpush1.bf16.msra.mxu0 0
    %7068 = vmatprep.subr.bf16.mxu0 0
    %7069 = vmatpush1.bf16.msra.mxu0 0
    %7070 = vmatprep.subr.bf16.mxu0 0
    %7071 = vmatpush1.bf16.msra.mxu0 0
    %7072 = vmatprep.subr.bf16.mxu0 0
    %7073 = vmatpush1.bf16.msra.mxu0 0
    %7074 = vmatprep.subr.bf16.mxu0 0
    %7075 = vmatpush1.bf16.msra.mxu0 0
    %7076 = vmatprep.subr.bf16.mxu0 0
    %7077 = vmatpush1.bf16.msra.mxu0 0
    %7078 = vmatprep.subr.bf16.mxu0 0
    %7079 = vmatpush1.bf16.msra.mxu0 0
    %7080 = vmatprep.subr.bf16.mxu0 0
    %7081 = vmatpush1.bf16.msra.mxu0 0
    %7082 = vmatprep.subr.bf16.mxu0 0
    %7083 = vmatpush1.bf16.msra.mxu0 0
    %7084 = vmatprep.subr.bf16.mxu0 0
    %7085 = vmatpush1.bf16.msra.mxu0 0
    %7086 = vmatprep.subr.bf16.mxu0 0
    %7087 = vmatpush1.bf16.msra.mxu0 0
    %7088 = vmatprep.mubr.bf16.mxu0 0
    %7089 = vmatmul.mubr.bf16.gmra.mrb[0].mxu0 %v7051
    %v7090 = vpop.f32.mrb[0].mxu0
    %v7091 = vadd.f32 0.0, %v7090
    %v7092 = vpop.f32.mrb[0].mxu0
    %v7093 = vpop.f32.mrb[0].mxu0
    %v7094 = vpop.f32.mrb[0].mxu0
    %7095 = vdwg.mxu0
    %7096 = vrot.lane.b32.xlu0 %v6707, 88
    %v7097 = vpop.permute.xlu0 %7096
    %v7099 = vsel %vm483, %v7047, 0
    %v7102 = vsel %vm608, %v7097, 0
    %7104 = vmatprep.subr.bf16.mxu0 0
    %7105 = vmatpush1.bf16.msra.mxu0 %v7102
    %7106 = vmatprep.subr.bf16.mxu0 0
    %7107 = vmatpush1.bf16.msra.mxu0 0
    %7108 = vmatprep.subr.bf16.mxu0 0
    %7109 = vmatpush1.bf16.msra.mxu0 0
    %7110 = vmatprep.subr.bf16.mxu0 0
    %7111 = vmatpush1.bf16.msra.mxu0 0
    %7112 = vmatprep.subr.bf16.mxu0 0
    %7113 = vmatpush1.bf16.msra.mxu0 0
    %7114 = vmatprep.subr.bf16.mxu0 0
    %7115 = vmatpush1.bf16.msra.mxu0 0
    %7116 = vmatprep.subr.bf16.mxu0 0
    %7117 = vmatpush1.bf16.msra.mxu0 0
    %7118 = vmatprep.subr.bf16.mxu0 0
    %7119 = vmatpush1.bf16.msra.mxu0 0
    %7120 = vmatprep.subr.bf16.mxu0 0
    %7121 = vmatpush1.bf16.msra.mxu0 0
    %7122 = vmatprep.subr.bf16.mxu0 0
    %7123 = vmatpush1.bf16.msra.mxu0 0
    %7124 = vmatprep.subr.bf16.mxu0 0
    %7125 = vmatpush1.bf16.msra.mxu0 0
    %7126 = vmatprep.subr.bf16.mxu0 0
    %7127 = vmatpush1.bf16.msra.mxu0 0
    %7128 = vmatprep.subr.bf16.mxu0 0
    %7129 = vmatpush1.bf16.msra.mxu0 0
    %7130 = vmatprep.subr.bf16.mxu0 0
    %7131 = vmatpush1.bf16.msra.mxu0 0
    %7132 = vmatprep.subr.bf16.mxu0 0
    %7133 = vmatpush1.bf16.msra.mxu0 0
    %7134 = vmatprep.subr.bf16.mxu0 0
    %7135 = vmatpush1.bf16.msra.mxu0 0
    %7136 = vmatprep.mubr.bf16.mxu0 0
    %7137 = vmatmul.mubr.bf16.gmra.mrb[0].mxu0 %v7099
    %v7138 = vpop.f32.mrb[0].mxu0
    %v7139 = vadd.f32 0.0, %v7138
    %v7140 = vpop.f32.mrb[0].mxu0
    %v7141 = vpop.f32.mrb[0].mxu0
    %v7142 = vpop.f32.mrb[0].mxu0
    %7143 = vdwg.mxu0
    %7144 = vrot.lane.b32.xlu0 %v6704, 112
    %v7145 = vpop.permute.xlu0 %7144
    %7146 = vrot.lane.b32.xlu0 %v6706, 112
    %v7147 = vpop.permute.xlu0 %7146
    %v7149 = vsel %vm483, %v7145, 0
    %v7152 = vsel %vm483, %v7147, 0
    %7154 = vmatprep.subr.bf16.mxu0 0
    %7155 = vmatpush1.bf16.xpose.msra.mxu0 %v7152
    %7156 = vmatprep.subr.bf16.mxu0 0
    %7157 = vmatpush1.bf16.xpose.msra.mxu0 0
    %7158 = vmatprep.subr.bf16.mxu0 0
    %7159 = vmatpush1.bf16.xpose.msra.mxu0 0
    %7160 = vmatprep.subr.bf16.mxu0 0
    %7161 = vmatpush1.bf16.xpose.msra.mxu0 0
    %7162 = vmatprep.subr.bf16.mxu0 0
    %7163 = vmatpush1.bf16.xpose.msra.mxu0 0
    %7164 = vmatprep.subr.bf16.mxu0 0
    %7165 = vmatpush1.bf16.xpose.msra.mxu0 0
    %7166 = vmatprep.subr.bf16.mxu0 0
    %7167 = vmatpush1.bf16.xpose.msra.mxu0 0
    %7168 = vmatprep.subr.bf16.mxu0 0
    %7169 = vmatpush1.bf16.xpose.msra.mxu0 0
    %7170 = vmatprep.subr.bf16.mxu0 0
    %7171 = vmatpush1.bf16.xpose.msra.mxu0 0
    %7172 = vmatprep.subr.bf16.mxu0 0
    %7173 = vmatpush1.bf16.xpose.msra.mxu0 0
    %7174 = vmatprep.subr.bf16.mxu0 0
    %7175 = vmatpush1.bf16.xpose.msra.mxu0 0
    %7176 = vmatprep.subr.bf16.mxu0 0
    %7177 = vmatpush1.bf16.xpose.msra.mxu0 0
    %7178 = vmatprep.subr.bf16.mxu0 0
    %7179 = vmatpush1.bf16.xpose.msra.mxu0 0
    %7180 = vmatprep.subr.bf16.mxu0 0
    %7181 = vmatpush1.bf16.xpose.msra.mxu0 0
    %7182 = vmatprep.subr.bf16.mxu0 0
    %7183 = vmatpush1.bf16.xpose.msra.mxu0 0
    %7184 = vmatprep.subr.bf16.mxu0 0
    %7185 = vmatpush1.bf16.xpose.msra.mxu0 0
    %7186 = vmatprep.mubr.bf16.mxu0 0
    %7187 = vmatmul.mubr.bf16.gmra.mrb[0].mxu0 %v7149
    %v7188 = vpop.f32.mrb[0].mxu0
    %v7189 = vadd.f32 0.0, %v7188
    %v7190 = vpop.f32.mrb[0].mxu0
    %v7191 = vpop.f32.mrb[0].mxu0
    %v7192 = vpop.f32.mrb[0].mxu0
    %7193 = vdwg.mxu0
    %7194 = vrot.lane.b32.xlu0 %v6705, 112
    %v7195 = vpop.permute.xlu0 %7194
    %7196 = vrot.lane.b32.xlu0 %v6707, 112
    %v7197 = vpop.permute.xlu0 %7196
    %v7199 = vsel %vm483, %v7195, 0
    %v7202 = vsel %vm483, %v7197, 0
    %7204 = vmatprep.subr.bf16.mxu0 0
    %7205 = vmatpush1.bf16.xpose.msra.mxu0 %v7202
    %7206 = vmatprep.subr.bf16.mxu0 0
    %7207 = vmatpush1.bf16.xpose.msra.mxu0 0
    %7208 = vmatprep.subr.bf16.mxu0 0
    %7209 = vmatpush1.bf16.xpose.msra.mxu0 0
    %7210 = vmatprep.subr.bf16.mxu0 0
    %7211 = vmatpush1.bf16.xpose.msra.mxu0 0
    %7212 = vmatprep.subr.bf16.mxu0 0
    %7213 = vmatpush1.bf16.xpose.msra.mxu0 0
    %7214 = vmatprep.subr.bf16.mxu0 0
    %7215 = vmatpush1.bf16.xpose.msra.mxu0 0
    %7216 = vmatprep.subr.bf16.mxu0 0
    %7217 = vmatpush1.bf16.xpose.msra.mxu0 0
    %7218 = vmatprep.subr.bf16.mxu0 0
    %7219 = vmatpush1.bf16.xpose.msra.mxu0 0
    %7220 = vmatprep.subr.bf16.mxu0 0
    %7221 = vmatpush1.bf16.xpose.msra.mxu0 0
    %7222 = vmatprep.subr.bf16.mxu0 0
    %7223 = vmatpush1.bf16.xpose.msra.mxu0 0
    %7224 = vmatprep.subr.bf16.mxu0 0
    %7225 = vmatpush1.bf16.xpose.msra.mxu0 0
    %7226 = vmatprep.subr.bf16.mxu0 0
    %7227 = vmatpush1.bf16.xpose.msra.mxu0 0
    %7228 = vmatprep.subr.bf16.mxu0 0
    %7229 = vmatpush1.bf16.xpose.msra.mxu0 0
    %7230 = vmatprep.subr.bf16.mxu0 0
    %7231 = vmatpush1.bf16.xpose.msra.mxu0 0
    %7232 = vmatprep.subr.bf16.mxu0 0
    %7233 = vmatpush1.bf16.xpose.msra.mxu0 0
    %7234 = vmatprep.subr.bf16.mxu0 0
    %7235 = vmatpush1.bf16.xpose.msra.mxu0 0
    %7236 = vmatprep.mubr.bf16.mxu0 0
    %7237 = vmatmul.mubr.bf16.gmra.mrb[0].mxu0 %v7199
    %v7238 = vpop.f32.mrb[0].mxu0
    %v7239 = vadd.f32 0.0, %v7238
    %v7240 = vpop.f32.mrb[0].mxu0
    %v7241 = vpop.f32.mrb[0].mxu0
    %v7242 = vpop.f32.mrb[0].mxu0
    %7243 = vdwg.mxu0
    %v7244 = vsel %vm483, %v7189, -inf
    %7245 = vmax.xlane.f32.xlu0 %v7244
    %v7246 = vpop.xlane.xlu0 %7245
    %v7247 = vsel %vm483, %v7239, -inf
    %7248 = vmax.xlane.f32.xlu0 %v7247
    %v7249 = vpop.xlane.xlu0 %7248
    %v7250 = vsub.f32 %v7189, %v7246
    %v7251 = vsub.f32 %v7239, %v7249
    %v7252 = vmul.f32 %v7250, 1.442695
    %v7253 = vpow.pop %v7252
    %v7254 = vmul.f32 %v7251, 1.442695
    %v7255 = vpow.pop %v7254
    %v7256 = vsel %vm483, %v7253, 0.0
    %7257 = vadd.xlane.f32.xlu0 %v7256
    %v7258 = vpop.xlane.xlu0 %7257
    %v7259 = vsel %vm483, %v7255, 0.0
    %7260 = vadd.xlane.f32.xlu0 %v7259
    %v7261 = vpop.xlane.xlu0 %7260
    %v7262 = vrcp.pop %v7258
    %v7263 = vrcp.pop %v7261
    %v7264 = vmul.f32 %v7253, %v7262
    %v7265 = vmul.f32 %v7255, %v7263
    %v7266 = vpack.c.bf16 %v7264, %v7264
    %v7267 = vpack.c.bf16 %v7265, %v7265
    %7268 = vrot.lane.b32.xlu0 %v6706, 80
    %v7269 = vpop.permute.xlu0 %7268
    %v7271 = vsel %vm483, %v7266, 0
    %v7274 = vsel %vm608, %v7269, 0
    %7276 = vmatprep.subr.bf16.mxu0 0
    %7277 = vmatpush1.bf16.msra.mxu0 %v7274
    %7278 = vmatprep.subr.bf16.mxu0 0
    %7279 = vmatpush1.bf16.msra.mxu0 0
    %7280 = vmatprep.subr.bf16.mxu0 0
    %7281 = vmatpush1.bf16.msra.mxu0 0
    %7282 = vmatprep.subr.bf16.mxu0 0
    %7283 = vmatpush1.bf16.msra.mxu0 0
    %7284 = vmatprep.subr.bf16.mxu0 0
    %7285 = vmatpush1.bf16.msra.mxu0 0
    %7286 = vmatprep.subr.bf16.mxu0 0
    %7287 = vmatpush1.bf16.msra.mxu0 0
    %7288 = vmatprep.subr.bf16.mxu0 0
    %7289 = vmatpush1.bf16.msra.mxu0 0
    %7290 = vmatprep.subr.bf16.mxu0 0
    %7291 = vmatpush1.bf16.msra.mxu0 0
    %7292 = vmatprep.subr.bf16.mxu0 0
    %7293 = vmatpush1.bf16.msra.mxu0 0
    %7294 = vmatprep.subr.bf16.mxu0 0
    %7295 = vmatpush1.bf16.msra.mxu0 0
    %7296 = vmatprep.subr.bf16.mxu0 0
    %7297 = vmatpush1.bf16.msra.mxu0 0
    %7298 = vmatprep.subr.bf16.mxu0 0
    %7299 = vmatpush1.bf16.msra.mxu0 0
    %7300 = vmatprep.subr.bf16.mxu0 0
    %7301 = vmatpush1.bf16.msra.mxu0 0
    %7302 = vmatprep.subr.bf16.mxu0 0
    %7303 = vmatpush1.bf16.msra.mxu0 0
    %7304 = vmatprep.subr.bf16.mxu0 0
    %7305 = vmatpush1.bf16.msra.mxu0 0
    %7306 = vmatprep.subr.bf16.mxu0 0
    %7307 = vmatpush1.bf16.msra.mxu0 0
    %7308 = vmatprep.mubr.bf16.mxu0 0
    %7309 = vmatmul.mubr.bf16.gmra.mrb[0].mxu0 %v7271
    %v7310 = vpop.f32.mrb[0].mxu0
    %v7311 = vadd.f32 0.0, %v7310
    %v7312 = vpop.f32.mrb[0].mxu0
    %v7313 = vpop.f32.mrb[0].mxu0
    %v7314 = vpop.f32.mrb[0].mxu0
    %7315 = vdwg.mxu0
    %7316 = vrot.lane.b32.xlu0 %v6707, 80
    %v7317 = vpop.permute.xlu0 %7316
    %v7319 = vsel %vm483, %v7267, 0
    %v7322 = vsel %vm608, %v7317, 0
    %7324 = vmatprep.subr.bf16.mxu0 0
    %7325 = vmatpush1.bf16.msra.mxu0 %v7322
    %7326 = vmatprep.subr.bf16.mxu0 0
    %7327 = vmatpush1.bf16.msra.mxu0 0
    %7328 = vmatprep.subr.bf16.mxu0 0
    %7329 = vmatpush1.bf16.msra.mxu0 0
    %7330 = vmatprep.subr.bf16.mxu0 0
    %7331 = vmatpush1.bf16.msra.mxu0 0
    %7332 = vmatprep.subr.bf16.mxu0 0
    %7333 = vmatpush1.bf16.msra.mxu0 0
    %7334 = vmatprep.subr.bf16.mxu0 0
    %7335 = vmatpush1.bf16.msra.mxu0 0
    %7336 = vmatprep.subr.bf16.mxu0 0
    %7337 = vmatpush1.bf16.msra.mxu0 0
    %7338 = vmatprep.subr.bf16.mxu0 0
    %7339 = vmatpush1.bf16.msra.mxu0 0
    %7340 = vmatprep.subr.bf16.mxu0 0
    %7341 = vmatpush1.bf16.msra.mxu0 0
    %7342 = vmatprep.subr.bf16.mxu0 0
    %7343 = vmatpush1.bf16.msra.mxu0 0
    %7344 = vmatprep.subr.bf16.mxu0 0
    %7345 = vmatpush1.bf16.msra.mxu0 0
    %7346 = vmatprep.subr.bf16.mxu0 0
    %7347 = vmatpush1.bf16.msra.mxu0 0
    %7348 = vmatprep.subr.bf16.mxu0 0
    %7349 = vmatpush1.bf16.msra.mxu0 0
    %7350 = vmatprep.subr.bf16.mxu0 0
    %7351 = vmatpush1.bf16.msra.mxu0 0
    %7352 = vmatprep.subr.bf16.mxu0 0
    %7353 = vmatpush1.bf16.msra.mxu0 0
    %7354 = vmatprep.subr.bf16.mxu0 0
    %7355 = vmatpush1.bf16.msra.mxu0 0
    %7356 = vmatprep.mubr.bf16.mxu0 0
    %7357 = vmatmul.mubr.bf16.gmra.mrb[0].mxu0 %v7319
    %v7358 = vpop.f32.mrb[0].mxu0
    %v7359 = vadd.f32 0.0, %v7358
    %v7360 = vpop.f32.mrb[0].mxu0
    %v7361 = vpop.f32.mrb[0].mxu0
    %v7362 = vpop.f32.mrb[0].mxu0
    %7363 = vdwg.mxu0
    %7364 = vrot.lane.b32.xlu0 %v6704, 104
    %v7365 = vpop.permute.xlu0 %7364
    %7366 = vrot.lane.b32.xlu0 %v6706, 104
    %v7367 = vpop.permute.xlu0 %7366
    %v7369 = vsel %vm483, %v7365, 0
    %v7372 = vsel %vm483, %v7367, 0
    %7374 = vmatprep.subr.bf16.mxu0 0
    %7375 = vmatpush1.bf16.xpose.msra.mxu0 %v7372
    %7376 = vmatprep.subr.bf16.mxu0 0
    %7377 = vmatpush1.bf16.xpose.msra.mxu0 0
    %7378 = vmatprep.subr.bf16.mxu0 0
    %7379 = vmatpush1.bf16.xpose.msra.mxu0 0
    %7380 = vmatprep.subr.bf16.mxu0 0
    %7381 = vmatpush1.bf16.xpose.msra.mxu0 0
    %7382 = vmatprep.subr.bf16.mxu0 0
    %7383 = vmatpush1.bf16.xpose.msra.mxu0 0
    %7384 = vmatprep.subr.bf16.mxu0 0
    %7385 = vmatpush1.bf16.xpose.msra.mxu0 0
    %7386 = vmatprep.subr.bf16.mxu0 0
    %7387 = vmatpush1.bf16.xpose.msra.mxu0 0
    %7388 = vmatprep.subr.bf16.mxu0 0
    %7389 = vmatpush1.bf16.xpose.msra.mxu0 0
    %7390 = vmatprep.subr.bf16.mxu0 0
    %7391 = vmatpush1.bf16.xpose.msra.mxu0 0
    %7392 = vmatprep.subr.bf16.mxu0 0
    %7393 = vmatpush1.bf16.xpose.msra.mxu0 0
    %7394 = vmatprep.subr.bf16.mxu0 0
    %7395 = vmatpush1.bf16.xpose.msra.mxu0 0
    %7396 = vmatprep.subr.bf16.mxu0 0
    %7397 = vmatpush1.bf16.xpose.msra.mxu0 0
    %7398 = vmatprep.subr.bf16.mxu0 0
    %7399 = vmatpush1.bf16.xpose.msra.mxu0 0
    %7400 = vmatprep.subr.bf16.mxu0 0
    %7401 = vmatpush1.bf16.xpose.msra.mxu0 0
    %7402 = vmatprep.subr.bf16.mxu0 0
    %7403 = vmatpush1.bf16.xpose.msra.mxu0 0
    %7404 = vmatprep.subr.bf16.mxu0 0
    %7405 = vmatpush1.bf16.xpose.msra.mxu0 0
    %7406 = vmatprep.mubr.bf16.mxu0 0
    %7407 = vmatmul.mubr.bf16.gmra.mrb[0].mxu0 %v7369
    %v7408 = vpop.f32.mrb[0].mxu0
    %v7409 = vadd.f32 0.0, %v7408
    %v7410 = vpop.f32.mrb[0].mxu0
    %v7411 = vpop.f32.mrb[0].mxu0
    %v7412 = vpop.f32.mrb[0].mxu0
    %7413 = vdwg.mxu0
    %7414 = vrot.lane.b32.xlu0 %v6705, 104
    %v7415 = vpop.permute.xlu0 %7414
    %7416 = vrot.lane.b32.xlu0 %v6707, 104
    %v7417 = vpop.permute.xlu0 %7416
    %v7419 = vsel %vm483, %v7415, 0
    %v7422 = vsel %vm483, %v7417, 0
    %7424 = vmatprep.subr.bf16.mxu0 0
    %7425 = vmatpush1.bf16.xpose.msra.mxu0 %v7422
    %7426 = vmatprep.subr.bf16.mxu0 0
    %7427 = vmatpush1.bf16.xpose.msra.mxu0 0
    %7428 = vmatprep.subr.bf16.mxu0 0
    %7429 = vmatpush1.bf16.xpose.msra.mxu0 0
    %7430 = vmatprep.subr.bf16.mxu0 0
    %7431 = vmatpush1.bf16.xpose.msra.mxu0 0
    %7432 = vmatprep.subr.bf16.mxu0 0
    %7433 = vmatpush1.bf16.xpose.msra.mxu0 0
    %7434 = vmatprep.subr.bf16.mxu0 0
    %7435 = vmatpush1.bf16.xpose.msra.mxu0 0
    %7436 = vmatprep.subr.bf16.mxu0 0
    %7437 = vmatpush1.bf16.xpose.msra.mxu0 0
    %7438 = vmatprep.subr.bf16.mxu0 0
    %7439 = vmatpush1.bf16.xpose.msra.mxu0 0
    %7440 = vmatprep.subr.bf16.mxu0 0
    %7441 = vmatpush1.bf16.xpose.msra.mxu0 0
    %7442 = vmatprep.subr.bf16.mxu0 0
    %7443 = vmatpush1.bf16.xpose.msra.mxu0 0
    %7444 = vmatprep.subr.bf16.mxu0 0
    %7445 = vmatpush1.bf16.xpose.msra.mxu0 0
    %7446 = vmatprep.subr.bf16.mxu0 0
    %7447 = vmatpush1.bf16.xpose.msra.mxu0 0
    %7448 = vmatprep.subr.bf16.mxu0 0
    %7449 = vmatpush1.bf16.xpose.msra.mxu0 0
    %7450 = vmatprep.subr.bf16.mxu0 0
    %7451 = vmatpush1.bf16.xpose.msra.mxu0 0
    %7452 = vmatprep.subr.bf16.mxu0 0
    %7453 = vmatpush1.bf16.xpose.msra.mxu0 0
    %7454 = vmatprep.subr.bf16.mxu0 0
    %7455 = vmatpush1.bf16.xpose.msra.mxu0 0
    %7456 = vmatprep.mubr.bf16.mxu0 0
    %7457 = vmatmul.mubr.bf16.gmra.mrb[0].mxu0 %v7419
    %v7458 = vpop.f32.mrb[0].mxu0
    %v7459 = vadd.f32 0.0, %v7458
    %v7460 = vpop.f32.mrb[0].mxu0
    %v7461 = vpop.f32.mrb[0].mxu0
    %v7462 = vpop.f32.mrb[0].mxu0
    %7463 = vdwg.mxu0
    %v7464 = vsel %vm483, %v7409, -inf
    %7465 = vmax.xlane.f32.xlu0 %v7464
    %v7466 = vpop.xlane.xlu0 %7465
    %v7467 = vsel %vm483, %v7459, -inf
    %7468 = vmax.xlane.f32.xlu0 %v7467
    %v7469 = vpop.xlane.xlu0 %7468
    %v7470 = vsub.f32 %v7409, %v7466
    %v7471 = vsub.f32 %v7459, %v7469
    %v7472 = vmul.f32 %v7470, 1.442695
    %v7473 = vpow.pop %v7472
    %v7474 = vmul.f32 %v7471, 1.442695
    %v7475 = vpow.pop %v7474
    %v7476 = vsel %vm483, %v7473, 0.0
    %7477 = vadd.xlane.f32.xlu0 %v7476
    %v7478 = vpop.xlane.xlu0 %7477
    %v7479 = vsel %vm483, %v7475, 0.0
    %7480 = vadd.xlane.f32.xlu0 %v7479
    %v7481 = vpop.xlane.xlu0 %7480
    %v7482 = vrcp.pop %v7478
    %v7483 = vrcp.pop %v7481
    %v7484 = vmul.f32 %v7473, %v7482
    %v7485 = vmul.f32 %v7475, %v7483
    %v7486 = vpack.c.bf16 %v7484, %v7484
    %v7487 = vpack.c.bf16 %v7485, %v7485
    %7488 = vrot.lane.b32.xlu0 %v6706, 72
    %v7489 = vpop.permute.xlu0 %7488
    %v7491 = vsel %vm483, %v7486, 0
    %v7494 = vsel %vm608, %v7489, 0
    %7496 = vmatprep.subr.bf16.mxu0 0
    %7497 = vmatpush1.bf16.msra.mxu0 %v7494
    %7498 = vmatprep.subr.bf16.mxu0 0
    %7499 = vmatpush1.bf16.msra.mxu0 0
    %7500 = vmatprep.subr.bf16.mxu0 0
    %7501 = vmatpush1.bf16.msra.mxu0 0
    %7502 = vmatprep.subr.bf16.mxu0 0
    %7503 = vmatpush1.bf16.msra.mxu0 0
    %7504 = vmatprep.subr.bf16.mxu0 0
    %7505 = vmatpush1.bf16.msra.mxu0 0
    %7506 = vmatprep.subr.bf16.mxu0 0
    %7507 = vmatpush1.bf16.msra.mxu0 0
    %7508 = vmatprep.subr.bf16.mxu0 0
    %7509 = vmatpush1.bf16.msra.mxu0 0
    %7510 = vmatprep.subr.bf16.mxu0 0
    %7511 = vmatpush1.bf16.msra.mxu0 0
    %7512 = vmatprep.subr.bf16.mxu0 0
    %7513 = vmatpush1.bf16.msra.mxu0 0
    %7514 = vmatprep.subr.bf16.mxu0 0
    %7515 = vmatpush1.bf16.msra.mxu0 0
    %7516 = vmatprep.subr.bf16.mxu0 0
    %7517 = vmatpush1.bf16.msra.mxu0 0
    %7518 = vmatprep.subr.bf16.mxu0 0
    %7519 = vmatpush1.bf16.msra.mxu0 0
    %7520 = vmatprep.subr.bf16.mxu0 0
    %7521 = vmatpush1.bf16.msra.mxu0 0
    %7522 = vmatprep.subr.bf16.mxu0 0
    %7523 = vmatpush1.bf16.msra.mxu0 0
    %7524 = vmatprep.subr.bf16.mxu0 0
    %7525 = vmatpush1.bf16.msra.mxu0 0
    %7526 = vmatprep.subr.bf16.mxu0 0
    %7527 = vmatpush1.bf16.msra.mxu0 0
    %7528 = vmatprep.mubr.bf16.mxu0 0
    %7529 = vmatmul.mubr.bf16.gmra.mrb[0].mxu0 %v7491
    %v7530 = vpop.f32.mrb[0].mxu0
    %v7531 = vadd.f32 0.0, %v7530
    %v7532 = vpop.f32.mrb[0].mxu0
    %v7533 = vpop.f32.mrb[0].mxu0
    %v7534 = vpop.f32.mrb[0].mxu0
    %7535 = vdwg.mxu0
    %7536 = vrot.lane.b32.xlu0 %v6707, 72
    %v7537 = vpop.permute.xlu0 %7536
    %v7539 = vsel %vm483, %v7487, 0
    %v7542 = vsel %vm608, %v7537, 0
    %7544 = vmatprep.subr.bf16.mxu0 0
    %7545 = vmatpush1.bf16.msra.mxu0 %v7542
    %7546 = vmatprep.subr.bf16.mxu0 0
    %7547 = vmatpush1.bf16.msra.mxu0 0
    %7548 = vmatprep.subr.bf16.mxu0 0
    %7549 = vmatpush1.bf16.msra.mxu0 0
    %7550 = vmatprep.subr.bf16.mxu0 0
    %7551 = vmatpush1.bf16.msra.mxu0 0
    %7552 = vmatprep.subr.bf16.mxu0 0
    %7553 = vmatpush1.bf16.msra.mxu0 0
    %7554 = vmatprep.subr.bf16.mxu0 0
    %7555 = vmatpush1.bf16.msra.mxu0 0
    %7556 = vmatprep.subr.bf16.mxu0 0
    %7557 = vmatpush1.bf16.msra.mxu0 0
    %7558 = vmatprep.subr.bf16.mxu0 0
    %7559 = vmatpush1.bf16.msra.mxu0 0
    %7560 = vmatprep.subr.bf16.mxu0 0
    %7561 = vmatpush1.bf16.msra.mxu0 0
    %7562 = vmatprep.subr.bf16.mxu0 0
    %7563 = vmatpush1.bf16.msra.mxu0 0
    %7564 = vmatprep.subr.bf16.mxu0 0
    %7565 = vmatpush1.bf16.msra.mxu0 0
    %7566 = vmatprep.subr.bf16.mxu0 0
    %7567 = vmatpush1.bf16.msra.mxu0 0
    %7568 = vmatprep.subr.bf16.mxu0 0
    %7569 = vmatpush1.bf16.msra.mxu0 0
    %7570 = vmatprep.subr.bf16.mxu0 0
    %7571 = vmatpush1.bf16.msra.mxu0 0
    %7572 = vmatprep.subr.bf16.mxu0 0
    %7573 = vmatpush1.bf16.msra.mxu0 0
    %7574 = vmatprep.subr.bf16.mxu0 0
    %7575 = vmatpush1.bf16.msra.mxu0 0
    %7576 = vmatprep.mubr.bf16.mxu0 0
    %7577 = vmatmul.mubr.bf16.gmra.mrb[0].mxu0 %v7539
    %v7578 = vpop.f32.mrb[0].mxu0
    %v7579 = vadd.f32 0.0, %v7578
    %v7580 = vpop.f32.mrb[0].mxu0
    %v7581 = vpop.f32.mrb[0].mxu0
    %v7582 = vpop.f32.mrb[0].mxu0
    %7583 = vdwg.mxu0
    %7586 = vrot.lane.b32.xlu0 %v7091, 8
    %v7587 = vpop.permute.xlu0 %7586
    %7588 = vrot.lane.b32.xlu0 %v7139, 8
    %v7589 = vpop.permute.xlu0 %7588
    %7594 = vrot.lane.b32.xlu0 %v7311, 16
    %v7595 = vpop.permute.xlu0 %7594
    %7596 = vrot.lane.b32.xlu0 %v7359, 16
    %v7597 = vpop.permute.xlu0 %7596
    %7602 = vrot.lane.b32.xlu0 %v7531, 24
    %v7603 = vpop.permute.xlu0 %7602
    %7604 = vrot.lane.b32.xlu0 %v7579, 24
    %v7605 = vpop.permute.xlu0 %7604
    %v7608 = vsel %vm483, %v6868, %v7587
    %v7609 = vsel %vm483, %v6917, %v7589
    %v7610 = vsel %vm1386, %v7608, %v7595
    %v7611 = vsel %vm1386, %v7609, %v7597
    %v7612 = vsel %vm1389, %v7610, %v7603
    %v7613 = vsel %vm1389, %v7611, %v7605
    %v7614 = vpack.c.bf16 %v7613, %v7612
    %v7616 = vlaneseq
    %v7617 = vshrl.u32 %v7616, 7
    %v7618 = vsub.s32 0, %v7617
    %v7619 = vrot.slane %v6581, %v7618
    %v7625 = vunpack.c.l.b16 %v6576
    %v7626 = vunpack.c.l.b16 %v6577
    %v7627 = vunpack.c.l.b16 %v6578
    %v7628 = vunpack.c.l.b16 %v6579
    %v7629 = vpack.c.b16 %v7626, %v7625
    %v7630 = vpack.c.b16 %v7628, %v7627
    %v7634 = vsel %vm433, %v7614, 0
    %7636 = vmatprep.subr.bf16.mxu0 0
    %7637 = vmatpush1.bf16.msra.mxu0 %v7629
    %7638 = vmatprep.subr.bf16.mxu0 0
    %7639 = vmatpush1.bf16.msra.mxu0 %v7630
    %7640 = vmatprep.subr.bf16.mxu0 0
    %7641 = vmatpush1.bf16.msra.mxu0 0
    %7642 = vmatprep.subr.bf16.mxu0 0
    %7643 = vmatpush1.bf16.msra.mxu0 0
    %7644 = vmatprep.subr.bf16.mxu0 0
    %7645 = vmatpush1.bf16.msra.mxu0 0
    %7646 = vmatprep.subr.bf16.mxu0 0
    %7647 = vmatpush1.bf16.msra.mxu0 0
    %7648 = vmatprep.subr.bf16.mxu0 0
    %7649 = vmatpush1.bf16.msra.mxu0 0
    %7650 = vmatprep.subr.bf16.mxu0 0
    %7651 = vmatpush1.bf16.msra.mxu0 0
    %7652 = vmatprep.subr.bf16.mxu0 0
    %7653 = vmatpush1.bf16.msra.mxu0 0
    %7654 = vmatprep.subr.bf16.mxu0 0
    %7655 = vmatpush1.bf16.msra.mxu0 0
    %7656 = vmatprep.subr.bf16.mxu0 0
    %7657 = vmatpush1.bf16.msra.mxu0 0
    %7658 = vmatprep.subr.bf16.mxu0 0
    %7659 = vmatpush1.bf16.msra.mxu0 0
    %7660 = vmatprep.subr.bf16.mxu0 0
    %7661 = vmatpush1.bf16.msra.mxu0 0
    %7662 = vmatprep.subr.bf16.mxu0 0
    %7663 = vmatpush1.bf16.msra.mxu0 0
    %7664 = vmatprep.subr.bf16.mxu0 0
    %7665 = vmatpush1.bf16.msra.mxu0 0
    %7666 = vmatprep.subr.bf16.mxu0 0
    %7667 = vmatpush1.bf16.msra.mxu0 0
    %7668 = vmatprep.mubr.bf16.mxu0 0
    %7669 = vmatmul.mubr.bf16.gmra.mrb[0].mxu0 %v7634
    %v7670 = vpop.f32.mrb[0].mxu0
    %v7671 = vadd.f32 %v7619, %v7670
    %v7672 = vpop.f32.mrb[0].mxu0
    %v7673 = vpop.f32.mrb[0].mxu0
    %v7674 = vadd.f32 %v7619, %v7673
    %v7675 = vpop.f32.mrb[0].mxu0
    %7676 = vdwg.mxu0
    %v7677 = vadd.f32 %v6559, %v7671
    %v7678 = vadd.f32 %v6560, %v7674
    %s7679 = scalar_lea.vmem %s63, 1
    %v7680 = vld [vmem:[%s7679] sm:$0x1]
    %s7681 = scalar_lea.vmem %s65, 1
    %v7682 = vld [vmem:[%s7681] sm:$0x1]
    %v7683 = vsel %vm433, %v7677, 0.0
    %7684 = vadd.xlane.f32.xlu0 %v7683
    %v7685 = vpop.xlane.xlu0 %7684
    %v7686 = vsel %vm433, %v7678, 0.0
    %7687 = vadd.xlane.f32.xlu0 %v7686
    %v7688 = vpop.xlane.xlu0 %7687
    %v7689 = vmul.f32 %v7685, %v1465
    %v7690 = vmul.f32 %v7688, %v1465
    %v7691 = vsub.f32 %v7677, %v7689
    %v7692 = vsub.f32 %v7678, %v7690
    %v7693 = vmul.f32 %v7691, %v7691
    %v7694 = vmul.f32 %v7692, %v7692
    %v7695 = vsel %vm433, %v7693, 0.0
    %7696 = vadd.xlane.f32.xlu0 %v7695
    %v7697 = vpop.xlane.xlu0 %7696
    %v7698 = vsel %vm433, %v7694, 0.0
    %7699 = vadd.xlane.f32.xlu0 %v7698
    %v7700 = vpop.xlane.xlu0 %7699
    %v7701 = vmul.f32 %v7697, %v1465
    %v7702 = vmul.f32 %v7700, %v1465
    %v7703 = vadd.f32 %v7701, 1e-05
    %v7704 = vadd.f32 %v7702, 1e-05
    %v7705 = vrsqrt.pop %v7703
    %v7706 = vrsqrt.pop %v7704
    %v7707 = vmul.f32 %v7691, %v7705
    %v7708 = vmul.f32 %v7692, %v7706
    %v7710 = vlaneseq
    %v7711 = vshrl.u32 %v7710, 7
    %v7712 = vsub.s32 0, %v7711
    %v7713 = vrot.slane %v7680, %v7712
    %v7715 = vmul.f32 %v7707, %v7713
    %v7716 = vmul.f32 %v7708, %v7713
    %v7718 = vlaneseq
    %v7719 = vshrl.u32 %v7718, 7
    %v7720 = vsub.s32 0, %v7719
    %v7721 = vrot.slane %v7682, %v7720
    %v7723 = vadd.f32 %v7715, %v7721
    %v7724 = vadd.f32 %v7716, %v7721
    %s7725 = scalar_lea.vmem [#allocation28], 16
    %v7726 = vld [vmem:[%s7725] sm:$0xf]
    %v7727 = vld [vmem:[%s7725 + $0x4] sm:$0xf]
    %v7728 = vld [vmem:[%s7725 + $0x8] sm:$0xf]
    %v7729 = vld [vmem:[%s7725 + $0xc] sm:$0xf]
    %s7730 = scalar_lea.vmem %s53, 1
    %v7731 = vld [vmem:[%s7730] sm:$0x1]
    %s7732 = scalar_lea.vmem %s55, 32
    %v7733 = vld [vmem:[%s7732] sm:$0xf]
    %v7734 = vld [vmem:[%s7732 + $0x4] sm:$0xf]
    %v7735 = vld [vmem:[%s7732 + $0x8] sm:$0xf]
    %v7736 = vld [vmem:[%s7732 + $0xc] sm:$0xf]
    %v7737 = vld [vmem:[%s7732 + $0x10] sm:$0xf]
    %v7738 = vld [vmem:[%s7732 + $0x14] sm:$0xf]
    %v7739 = vld [vmem:[%s7732 + $0x18] sm:$0xf]
    %v7740 = vld [vmem:[%s7732 + $0x1c] sm:$0xf]
    %s7741 = scalar_lea.vmem %s57, 1
    %v7742 = vld [vmem:[%s7741] sm:$0x1]
    %v7743 = vpack.c.bf16 %v7724, %v7723
    %v7745 = vlaneseq
    %v7746 = vshrl.u32 %v7745, 7
    %v7747 = vsub.s32 0, %v7746
    %v7748 = vrot.slane %v7731, %v7747
    %v7754 = vunpack.c.l.b16 %v7726
    %v7755 = vunpack.c.l.b16 %v7727
    %v7756 = vunpack.c.l.b16 %v7728
    %v7757 = vunpack.c.l.b16 %v7729
    %v7758 = vpack.c.b16 %v7755, %v7754
    %v7759 = vpack.c.b16 %v7757, %v7756
    %v7763 = vsel %vm433, %v7743, 0
    %7765 = vmatprep.subr.bf16.mxu0 0
    %7766 = vmatpush1.bf16.msra.mxu0 %v7758
    %7767 = vmatprep.subr.bf16.mxu0 0
    %7768 = vmatpush1.bf16.msra.mxu0 %v7759
    %7769 = vmatprep.subr.bf16.mxu0 0
    %7770 = vmatpush1.bf16.msra.mxu0 0
    %7771 = vmatprep.subr.bf16.mxu0 0
    %7772 = vmatpush1.bf16.msra.mxu0 0
    %7773 = vmatprep.subr.bf16.mxu0 0
    %7774 = vmatpush1.bf16.msra.mxu0 0
    %7775 = vmatprep.subr.bf16.mxu0 0
    %7776 = vmatpush1.bf16.msra.mxu0 0
    %7777 = vmatprep.subr.bf16.mxu0 0
    %7778 = vmatpush1.bf16.msra.mxu0 0
    %7779 = vmatprep.subr.bf16.mxu0 0
    %7780 = vmatpush1.bf16.msra.mxu0 0
    %7781 = vmatprep.subr.bf16.mxu0 0
    %7782 = vmatpush1.bf16.msra.mxu0 0
    %7783 = vmatprep.subr.bf16.mxu0 0
    %7784 = vmatpush1.bf16.msra.mxu0 0
    %7785 = vmatprep.subr.bf16.mxu0 0
    %7786 = vmatpush1.bf16.msra.mxu0 0
    %7787 = vmatprep.subr.bf16.mxu0 0
    %7788 = vmatpush1.bf16.msra.mxu0 0
    %7789 = vmatprep.subr.bf16.mxu0 0
    %7790 = vmatpush1.bf16.msra.mxu0 0
    %7791 = vmatprep.subr.bf16.mxu0 0
    %7792 = vmatpush1.bf16.msra.mxu0 0
    %7793 = vmatprep.subr.bf16.mxu0 0
    %7794 = vmatpush1.bf16.msra.mxu0 0
    %7795 = vmatprep.subr.bf16.mxu0 0
    %7796 = vmatpush1.bf16.msra.mxu0 0
    %7797 = vmatprep.mubr.bf16.mxu0 0
    %7798 = vmatmul.mubr.bf16.gmra.mrb[0].mxu0 %v7763
    %v7799 = vpop.f32.mrb[0].mxu0
    %v7800 = vadd.f32 %v7748, %v7799
    %v7801 = vpop.f32.mrb[0].mxu0
    %v7802 = vpop.f32.mrb[0].mxu0
    %v7803 = vadd.f32 %v7748, %v7802
    %v7804 = vpop.f32.mrb[0].mxu0
    %7805 = vdwg.mxu0
    %v7806 = vmax.f32 %v7800, 0.0
    %v7807 = vmax.f32 %v7803, 0.0
    %v7808 = vpack.c.bf16 %v7807, %v7806
    %v7810 = vlaneseq
    %v7811 = vshrl.u32 %v7810, 7
    %v7812 = vsub.s32 0, %v7811
    %v7813 = vrot.slane %v7742, %v7812
    %v7823 = vunpack.c.l.b16 %v7733
    %v7824 = vunpack.c.l.b16 %v7734
    %v7825 = vunpack.c.l.b16 %v7735
    %v7826 = vunpack.c.l.b16 %v7736
    %v7827 = vunpack.c.l.b16 %v7737
    %v7828 = vunpack.c.l.b16 %v7738
    %v7829 = vunpack.c.l.b16 %v7739
    %v7830 = vunpack.c.l.b16 %v7740
    %v7831 = vpack.c.b16 %v7824, %v7823
    %v7832 = vpack.c.b16 %v7826, %v7825
    %v7833 = vpack.c.b16 %v7828, %v7827
    %v7834 = vpack.c.b16 %v7830, %v7829
    %v7840 = vsel %vm1612, %v7808, 0
    %7842 = vmatprep.subr.bf16.mxu0 0
    %7843 = vmatpush1.bf16.msra.mxu0 %v7831
    %7844 = vmatprep.subr.bf16.mxu0 0
    %7845 = vmatpush1.bf16.msra.mxu0 %v7832
    %7846 = vmatprep.subr.bf16.mxu0 0
    %7847 = vmatpush1.bf16.msra.mxu0 %v7833
    %7848 = vmatprep.subr.bf16.mxu0 0
    %7849 = vmatpush1.bf16.msra.mxu0 %v7834
    %7850 = vmatprep.subr.bf16.mxu0 0
    %7851 = vmatpush1.bf16.msra.mxu0 0
    %7852 = vmatprep.subr.bf16.mxu0 0
    %7853 = vmatpush1.bf16.msra.mxu0 0
    %7854 = vmatprep.subr.bf16.mxu0 0
    %7855 = vmatpush1.bf16.msra.mxu0 0
    %7856 = vmatprep.subr.bf16.mxu0 0
    %7857 = vmatpush1.bf16.msra.mxu0 0
    %7858 = vmatprep.subr.bf16.mxu0 0
    %7859 = vmatpush1.bf16.msra.mxu0 0
    %7860 = vmatprep.subr.bf16.mxu0 0
    %7861 = vmatpush1.bf16.msra.mxu0 0
    %7862 = vmatprep.subr.bf16.mxu0 0
    %7863 = vmatpush1.bf16.msra.mxu0 0
    %7864 = vmatprep.subr.bf16.mxu0 0
    %7865 = vmatpush1.bf16.msra.mxu0 0
    %7866 = vmatprep.subr.bf16.mxu0 0
    %7867 = vmatpush1.bf16.msra.mxu0 0
    %7868 = vmatprep.subr.bf16.mxu0 0
    %7869 = vmatpush1.bf16.msra.mxu0 0
    %7870 = vmatprep.subr.bf16.mxu0 0
    %7871 = vmatpush1.bf16.msra.mxu0 0
    %7872 = vmatprep.subr.bf16.mxu0 0
    %7873 = vmatpush1.bf16.msra.mxu0 0
    %7874 = vmatprep.mubr.bf16.mxu0 0
    %7875 = vmatmul.mubr.bf16.gmra.mrb[0].mxu0 %v7840
    %v7876 = vpop.f32.mrb[0].mxu0
    %v7877 = vadd.f32 %v7813, %v7876
    %v7878 = vpop.f32.mrb[0].mxu0
    %v7879 = vpop.f32.mrb[0].mxu0
    %v7880 = vadd.f32 %v7813, %v7879
    %v7881 = vpop.f32.mrb[0].mxu0
    %7882 = vdwg.mxu0
    %v7883 = vadd.f32 %v7723, %v7877
    %v7884 = vadd.f32 %v7724, %v7880
    %s7885 = scalar_lea.vmem %s67, 1
    %v7886 = vld [vmem:[%s7885] sm:$0x1]
    %s7887 = scalar_lea.vmem %s69, 1
    %v7888 = vld [vmem:[%s7887] sm:$0x1]
    %v7889 = vsel %vm433, %v7883, 0.0
    %7890 = vadd.xlane.f32.xlu0 %v7889
    %v7891 = vpop.xlane.xlu0 %7890
    %v7892 = vsel %vm433, %v7884, 0.0
    %7893 = vadd.xlane.f32.xlu0 %v7892
    %v7894 = vpop.xlane.xlu0 %7893
    %v7895 = vmul.f32 %v7891, %v1465
    %v7896 = vmul.f32 %v7894, %v1465
    %v7897 = vsub.f32 %v7883, %v7895
    %v7898 = vsub.f32 %v7884, %v7896
    %v7899 = vmul.f32 %v7897, %v7897
    %v7900 = vmul.f32 %v7898, %v7898
    %v7901 = vsel %vm433, %v7899, 0.0
    %7902 = vadd.xlane.f32.xlu0 %v7901
    %v7903 = vpop.xlane.xlu0 %7902
    %v7904 = vsel %vm433, %v7900, 0.0
    %7905 = vadd.xlane.f32.xlu0 %v7904
    %v7906 = vpop.xlane.xlu0 %7905
    %v7907 = vmul.f32 %v7903, %v1465
    %v7908 = vmul.f32 %v7906, %v1465
    %v7909 = vadd.f32 %v7907, 1e-05
    %v7910 = vadd.f32 %v7908, 1e-05
    %v7911 = vrsqrt.pop %v7909
    %v7912 = vrsqrt.pop %v7910
    %v7913 = vmul.f32 %v7897, %v7911
    %v7914 = vmul.f32 %v7898, %v7912
    %v7916 = vlaneseq
    %v7917 = vshrl.u32 %v7916, 7
    %v7918 = vsub.s32 0, %v7917
    %v7919 = vrot.slane %v7886, %v7918
    %v7921 = vmul.f32 %v7913, %v7919
    %v7922 = vmul.f32 %v7914, %v7919
    %v7924 = vlaneseq
    %v7925 = vshrl.u32 %v7924, 7
    %v7926 = vsub.s32 0, %v7925
    %v7927 = vrot.slane %v7888, %v7926
    %v7929 = vadd.f32 %v7921, %v7927
    %v7930 = vadd.f32 %v7922, %v7927
    %v7931 = vpack.c.bf16 %v7930, %v7929
    %v7932 = vld [vmem:[%s71] sm:$0xf]
    %v7933 = vld [vmem:[%s71 + $0x4] sm:$0xf]
    %v7934 = vld [vmem:[%s71 + $0x8] sm:$0xf]
    %v7935 = vld [vmem:[%s71 + $0xc] sm:$0xf]
    %v7936 = vld [vmem:[%s73] sm:$0x1]
    %v7938 = vlaneseq
    %v7939 = vshrl.u32 %v7938, 7
    %v7940 = vsub.s32 0, %v7939
    %v7941 = vrot.slane %v7936, %v7940
    %v7947 = vunpack.c.l.b16 %v7932
    %v7948 = vunpack.c.l.b16 %v7933
    %v7949 = vunpack.c.l.b16 %v7934
    %v7950 = vunpack.c.l.b16 %v7935
    %v7951 = vpack.c.b16 %v7948, %v7947
    %v7952 = vpack.c.b16 %v7950, %v7949
    %v7956 = vsel %vm433, %v7931, 0
    %7958 = vmatprep.subr.bf16.mxu0 0
    %7959 = vmatpush1.bf16.msra.mxu0 %v7951
    %7960 = vmatprep.subr.bf16.mxu0 0
    %7961 = vmatpush1.bf16.msra.mxu0 %v7952
    %7962 = vmatprep.subr.bf16.mxu0 0
    %7963 = vmatpush1.bf16.msra.mxu0 0
    %7964 = vmatprep.subr.bf16.mxu0 0
    %7965 = vmatpush1.bf16.msra.mxu0 0
    %7966 = vmatprep.subr.bf16.mxu0 0
    %7967 = vmatpush1.bf16.msra.mxu0 0
    %7968 = vmatprep.subr.bf16.mxu0 0
    %7969 = vmatpush1.bf16.msra.mxu0 0
    %7970 = vmatprep.subr.bf16.mxu0 0
    %7971 = vmatpush1.bf16.msra.mxu0 0
    %7972 = vmatprep.subr.bf16.mxu0 0
    %7973 = vmatpush1.bf16.msra.mxu0 0
    %7974 = vmatprep.subr.bf16.mxu0 0
    %7975 = vmatpush1.bf16.msra.mxu0 0
    %7976 = vmatprep.subr.bf16.mxu0 0
    %7977 = vmatpush1.bf16.msra.mxu0 0
    %7978 = vmatprep.subr.bf16.mxu0 0
    %7979 = vmatpush1.bf16.msra.mxu0 0
    %7980 = vmatprep.subr.bf16.mxu0 0
    %7981 = vmatpush1.bf16.msra.mxu0 0
    %7982 = vmatprep.subr.bf16.mxu0 0
    %7983 = vmatpush1.bf16.msra.mxu0 0
    %7984 = vmatprep.subr.bf16.mxu0 0
    %7985 = vmatpush1.bf16.msra.mxu0 0
    %7986 = vmatprep.subr.bf16.mxu0 0
    %7987 = vmatpush1.bf16.msra.mxu0 0
    %7988 = vmatprep.subr.bf16.mxu0 0
    %7989 = vmatpush1.bf16.msra.mxu0 0
    %7990 = vmatprep.mubr.bf16.mxu0 0
    %7991 = vmatmul.mubr.bf16.gmra.mrb[0].mxu0 %v7956
    %v7992 = vpop.f32.mrb[0].mxu0
    %v7993 = vadd.f32 %v7941, %v7992
    %v7994 = vpop.f32.mrb[0].mxu0
    %v7995 = vpop.f32.mrb[0].mxu0
    %v7996 = vadd.f32 %v7941, %v7995
    %v7997 = vpop.f32.mrb[0].mxu0
    %7998 = vdwg.mxu0
    %7999 = vst [vmem:[#allocation29] sm:$0xff] %v7993
    %8000 = vst [vmem:[#allocation29 + $0x8] sm:$0xff] %v7996
    // Predicated region
    $region218: #{tpu_custom_call.1} parent=1 // pred_check
      _
    $region219: #{tpu_custom_call.1} parent=1 // pred_check_branch
      %8002 = sbr.rel (0) target = $region221
    $region220: #{tpu_custom_call.1} parent=1 // pred_region
      %s8004 = ssub.s32 256, 256
      %8005 = vsyncadd [#allocation4], %s8004
      %s8006 = sshll.u32 [#allocation29], 4
      %s8007 = int_to_ptr.vmem [resolvable:$true] %s8006
      %8012 = dma.vmem_to_hbm [thread:$0]  %s8007, 256, %s75, [#allocation4], 128, 128, 8
    $region221: #{tpu_custom_call.1} parent=1 // pred_fallthru
      _
    // Predicated region
    $region222: #{tpu_custom_call.1} parent=1 // pred_check
      _
    $region223: #{tpu_custom_call.1} parent=1 // pred_check_branch
      %8014 = sbr.rel (0) target = $region225
    $region224: #{tpu_custom_call.1} parent=1 // pred_region
      %8015 = dma.done [#allocation4], 256
    $region225: #{tpu_custom_call.1} parent=1 // pred_fallthru
      _
    %8016 = vsyncpa [#allocation3], 1
    %8017 = vsyncpa [#allocation6], 1
    %8018 = vsyncpa [#allocation9], 1
    %8019 = vsyncpa [#allocation12], 1
    %8020 = vsyncpa [#allocation15], 1
    %8021 = vsyncpa [#allocation18], 1
    %8022 = vsyncpa [#allocation21], 1
    %8023 = vsyncpa [#allocation24], 1
    %8024 = vsyncpa [#allocation27], 1
    %8025 = vsyncpa [#allocation4], 1

</llo_original>
